<compile_context>
chip_gen: v6e
topology: v6e:2x2x1
jax: 0.10.0
libtpu: 0.0.40
codegen_flags: <defaults>
</compile_context>

<pallas_src>
import math

import jax
import jax.numpy as jnp
from jax import lax
from jax.experimental import pallas as pl
from jax.experimental.pallas import tpu as pltpu

HIDDEN = 1024


def _round_up(n: int, m: int) -> int:
    return ((n + m - 1) // m) * m


def _make_mi_kernel(n_chunks: int):
    """Kernel over (x_0..x_{n-1}, w1_0..w1_{n-1}, b1, w2, b2, w3, b3, out)."""

    def kernel(*refs):
        x_refs = refs[:n_chunks]                       # each (tile_b, d_i) f32
        w1_refs = refs[n_chunks:2 * n_chunks]          # each (HIDDEN, d_i) compute dtype
        b1_ref, w2_ref, b2_ref, w3_ref, b3_ref, o_ref = refs[2 * n_chunks:]
        cdt = w2_ref.dtype

        # Layer 1: sum of per-chunk K-blocks, contracting the feature axis of
        # both operands (w1_i: (H, d_i), x_i: (tile_b, d_i)) -> (H, tile_b) f32.
        h = None
        for x_ref, w_ref in zip(x_refs, w1_refs):
            part = lax.dot_general(
                w_ref[...],
                x_ref[...].astype(cdt),
                dimension_numbers=(((1,), (1,)), ((), ())),
                preferred_element_type=jnp.float32,
            )
            h = part if h is None else h + part
        h = jnp.maximum(h + b1_ref[...], 0.0)          # (HIDDEN, tile_b) f32

        # Layer 2: (HIDDEN, HIDDEN) @ (HIDDEN, tile_b), f32 accumulation.
        h = jnp.dot(w2_ref[...], h.astype(cdt), preferred_element_type=jnp.float32)
        h = jnp.maximum(h + b2_ref[...], 0.0)          # (HIDDEN, tile_b) f32

        # Layer 3 (1024 -> 1): VPU multiply + cross-sublane reduce -> (1, tile_b).
        # Keeps the MXU free and the store lane-dense.
        o = jnp.sum(h * w3_ref[...], axis=0, keepdims=True) + b3_ref[...]
        o_ref[...] = o.astype(o_ref.dtype)

    return kernel


def mi_estimator_forward(inputs, z, params, *, tile_b=None,
                         compute_dtype=jnp.bfloat16):
    """Forward pass of MIEstimator.

    inputs: list of (B, d_i) arrays; z: (B, z_dim).
    params: (w1, b1, w2, b2, w3, b3) in PyTorch nn.Linear layout
            (w: (out_features, in_features), b: (out_features,)).
    """
    w1, b1, w2, b2, w3, b3 = params

    chunks = [jnp.asarray(c, jnp.float32) for c in list(inputs) + [z]]
    dims = [int(c.shape[1]) for c in chunks]
    n = len(chunks)
    B = int(chunks[0].shape[0])
    D = sum(dims)
    assert w1.shape == (HIDDEN, D)

    # --- batch tile selection -------------------------------------------------
    if tile_b is None:
        b128 = _round_up(B, 128)
        # Larger tiles amortize per-grid-step overhead; f32 debug path capped at
        # 512 to keep intermediates comfortably inside scoped VMEM.
        cap = 1024 if jnp.dtype(compute_dtype).itemsize <= 2 else 512
        tile_b = min(cap, b128)
        if b128 >= 256:
            # Keep >= 2 grid steps so the "parallel" axis splits across both
            # v7x TensorCores (no cost on single-TC v5e/v6e).
            tile_b = min(tile_b, _round_up(max(b128 // 2, 128), 128))
    tile_b = max(128, _round_up(tile_b, 128))
    B_pad = _round_up(B, tile_b)
    grid = (B_pad // tile_b,)

    # --- operand prep (batch padding only; inputs stay f32, cast in-kernel) ----
    xs = [jnp.pad(c, ((0, B_pad - B), (0, 0))) for c in chunks]

    # Split W1 into column blocks matching the input chunks (PyTorch (out, in)).
    w1_chunks = []
    off = 0
    for d in dims:
        w1_chunks.append(w1[:, off:off + d].astype(compute_dtype))
        off += d

    w2_c = w2.astype(compute_dtype)                       # (HIDDEN, HIDDEN)
    b1_c = b1.reshape(HIDDEN, 1).astype(jnp.float32)
    b2_c = b2.reshape(HIDDEN, 1).astype(jnp.float32)
    w3_c = w3.reshape(HIDDEN, 1).astype(jnp.float32)
    b3_c = b3.reshape(1, 1).astype(jnp.float32)

    resident = lambda i: (0, 0)  # grid-invariant blocks (weights / biases)

    in_specs = (
        # x chunks: batch streamed over the grid, full feature extent per chunk
        [pl.BlockSpec((tile_b, d), lambda i: (i, 0)) for d in dims]
        # W1 column blocks: fully resident, single-buffered
        + [pl.BlockSpec((HIDDEN, d), resident, pipeline_mode=pl.Buffered(1))
           for d in dims]
        # b1, W2, b2, w3, b3: fully resident, single-buffered
        + [pl.BlockSpec((HIDDEN, 1), resident, pipeline_mode=pl.Buffered(1)),
           pl.BlockSpec((HIDDEN, HIDDEN), resident, pipeline_mode=pl.Buffered(1)),
           pl.BlockSpec((HIDDEN, 1), resident, pipeline_mode=pl.Buffered(1)),
           pl.BlockSpec((HIDDEN, 1), resident, pipeline_mode=pl.Buffered(1)),
           pl.BlockSpec((1, 1), resident, pipeline_mode=pl.Buffered(1))]
    )

    out2d = pl.pallas_call(
        _make_mi_kernel(n),
        out_shape=jax.ShapeDtypeStruct((1, B_pad), jnp.float32),
        grid_spec=pltpu.PrefetchScalarGridSpec(
            num_scalar_prefetch=0,
            grid=grid,
            in_specs=in_specs,
            # lane-dense output: tile_b (multiple of 128) on the last axis
            out_specs=pl.BlockSpec((1, tile_b), lambda i: (0, i)),
        ),
        compiler_params=pltpu.CompilerParams(
            dimension_semantics=("parallel",),
            # Covers the f32 debug path / tile_b=1024 on v5e's 16 MiB scoped
            # default; well under physical VMEM on all generations.
            vmem_limit_bytes=32 * 1024 * 1024,
        ),
    )(*xs, *w1_chunks, b1_c, w2_c, b2_c, w3_c, b3_c)

    return out2d[0, :B].reshape(B, 1)


def init_linear(key, fan_in, fan_out):
    """torch.nn.Linear default init (uniform +-1/sqrt(fan_in)), PyTorch layout."""
    kw, kb = jax.random.split(key)
    bound = 1.0 / math.sqrt(fan_in)
    w = jax.random.uniform(kw, (fan_out, fan_in), jnp.float32, -bound, bound)
    b = jax.random.uniform(kb, (fan_out,), jnp.float32, -bound, bound)
    return w, b


def reference_forward(inputs, z, params):
    x = jnp.concatenate(list(inputs) + [z], axis=1).astype(jnp.float32)
    w1, b1, w2, b2, w3, b3 = params
    h = jnp.maximum(x @ w1.T + b1, 0.0)
    h = jnp.maximum(h @ w2.T + b2, 0.0)
    return h @ w3.T + b3


if __name__ == "__main__":
    key = jax.random.PRNGKey(0)

    # Module config (synthetic): input_dims = [48, 32], z_dim = 32 -> total 112
    input_dims = [48, 32]
    z_dim = 32
    total_input_dim = sum(input_dims) + z_dim
    batch = 16

    keys = jax.random.split(key, 9)
    x1 = jax.random.normal(keys[0], (batch, input_dims[0]), jnp.float32)
    x2 = jax.random.normal(keys[1], (batch, input_dims[1]), jnp.float32)
    z = jax.random.normal(keys[2], (batch, z_dim), jnp.float32)

    w1, b1 = init_linear(keys[3], total_input_dim, HIDDEN)
    w2, b2 = init_linear(keys[4], HIDDEN, HIDDEN)
    w3, b3 = init_linear(keys[5], HIDDEN, 1)
    params = (w1, b1, w2, b2, w3, b3)

    ref = reference_forward([x1, x2], z, params)

    # 1) f32 path: structural correctness against the f32 reference (tight tol).
    out_f32 = mi_estimator_forward([x1, x2], z, params, compute_dtype=jnp.float32)
    out_f32 = jax.block_until_ready(out_f32)
    assert out_f32.shape == (batch, 1)
    assert jnp.allclose(out_f32, ref, atol=1e-3, rtol=1e-3), "f32 kernel mismatch vs reference"

    # 2) default bf16-matmul path (v6e/v7x perf path): loosened tolerance.
    out_bf16 = mi_estimator_forward([x1, x2], z, params)
    out_bf16 = jax.block_until_ready(out_bf16)
    assert out_bf16.shape == (batch, 1)
    assert jnp.allclose(out_bf16, ref, atol=5e-2, rtol=5e-2), "bf16 kernel mismatch vs reference"

    # 3) multi-tile path: B=260 -> tile_b=256, B_pad=512, 2 "parallel" grid steps
    #    (exercises batch padding + the v7x two-TC grid shaping).
    batch2 = 260
    x1b = jax.random.normal(keys[6], (batch2, input_dims[0]), jnp.float32)
    x2b = jax.random.normal(keys[7], (batch2, input_dims[1]), jnp.float32)
    zb = jax.random.normal(keys[8], (batch2, z_dim), jnp.float32)
    ref2 = reference_forward([x1b, x2b], zb, params)
    out2 = mi_estimator_forward([x1b, x2b], zb, params)
    out2 = jax.block_until_ready(out2)
    assert out2.shape == (batch2, 1)
    assert jnp.allclose(out2, ref2, atol=5e-2, rtol=5e-2), "multi-tile kernel mismatch vs reference"

    print("KERNEL_OK")
</pallas_src>

<mosaic_0001>
module attributes {stable_mosaic.version = 11 : i64} {
  func.func @kernel(%arg0: i32, %arg1: memref<128x48xf32, #tpu.memory_space<vmem>>, %arg2: memref<128x32xf32, #tpu.memory_space<vmem>>, %arg3: memref<128x32xf32, #tpu.memory_space<vmem>>, %arg4: memref<1024x48xf32, #tpu.memory_space<vmem>>, %arg5: memref<1024x32xf32, #tpu.memory_space<vmem>>, %arg6: memref<1024x32xf32, #tpu.memory_space<vmem>>, %arg7: memref<1024x1xf32, #tpu.memory_space<vmem>>, %arg8: memref<1024x1024xf32, #tpu.memory_space<vmem>>, %arg9: memref<1024x1xf32, #tpu.memory_space<vmem>>, %arg10: memref<1024x1xf32, #tpu.memory_space<vmem>>, %arg11: memref<1x1xf32, #tpu.memory_space<vmem>>, %arg12: memref<1x128xf32, #tpu.memory_space<vmem>>) attributes {dimension_semantics = [#tpu.dimension_semantics<parallel>], iteration_bounds = array<i64: 1>, scalar_prefetch = 0 : i64, scratch_operands = 0 : i64, tpu.core_type = #tpu.core_type<tc>, window_params = [{transform_indices = @transform_0, window_bounds = array<i64: 128, 48>}, {transform_indices = @transform_1, window_bounds = array<i64: 128, 32>}, {transform_indices = @transform_2, window_bounds = array<i64: 128, 32>}, {pipeline_mode = #tpu.pipeline_mode<synchronous>, transform_indices = @transform_3, window_bounds = array<i64: 1024, 48>}, {pipeline_mode = #tpu.pipeline_mode<synchronous>, transform_indices = @transform_4, window_bounds = array<i64: 1024, 32>}, {pipeline_mode = #tpu.pipeline_mode<synchronous>, transform_indices = @transform_5, window_bounds = array<i64: 1024, 32>}, {pipeline_mode = #tpu.pipeline_mode<synchronous>, transform_indices = @transform_6, window_bounds = array<i64: 1024, 1>}, {pipeline_mode = #tpu.pipeline_mode<synchronous>, transform_indices = @transform_7, window_bounds = array<i64: 1024, 1024>}, {pipeline_mode = #tpu.pipeline_mode<synchronous>, transform_indices = @transform_8, window_bounds = array<i64: 1024, 1>}, {pipeline_mode = #tpu.pipeline_mode<synchronous>, transform_indices = @transform_9, window_bounds = array<i64: 1024, 1>}, {pipeline_mode = #tpu.pipeline_mode<synchronous>, transform_indices = @transform_10, window_bounds = array<i64: 1, 1>}, {transform_indices = @transform_11, window_bounds = array<i64: 1, 128>}]} {
    %c0 = arith.constant 0 : index
    %c0_0 = arith.constant 0 : index
    %0 = vector.load %arg4[%c0, %c0_0] : memref<1024x48xf32, #tpu.memory_space<vmem>>, vector<1024x48xf32>
    %c0_1 = arith.constant 0 : index
    %c0_2 = arith.constant 0 : index
    %1 = vector.load %arg1[%c0_1, %c0_2] : memref<128x48xf32, #tpu.memory_space<vmem>>, vector<128x48xf32>
    %cst = arith.constant dense<0.000000e+00> : vector<1024x128xf32>
    %2 = tpu.matmul %0, %1, %cst {dimension_numbers = #tpu.dot_dimension_numbers<[1], [1], [0], [0], [0, 0, 1, 0], [], []>} : vector<1024x48xf32>, vector<128x48xf32>, vector<1024x128xf32> -> vector<1024x128xf32>
    %c0_3 = arith.constant 0 : index
    %c0_4 = arith.constant 0 : index
    %3 = vector.load %arg5[%c0_3, %c0_4] : memref<1024x32xf32, #tpu.memory_space<vmem>>, vector<1024x32xf32>
    %c0_5 = arith.constant 0 : index
    %c0_6 = arith.constant 0 : index
    %4 = vector.load %arg2[%c0_5, %c0_6] : memref<128x32xf32, #tpu.memory_space<vmem>>, vector<128x32xf32>
    %cst_7 = arith.constant dense<0.000000e+00> : vector<1024x128xf32>
    %5 = tpu.matmul %3, %4, %cst_7 {dimension_numbers = #tpu.dot_dimension_numbers<[1], [1], [0], [0], [0, 0, 1, 0], [], []>} : vector<1024x32xf32>, vector<128x32xf32>, vector<1024x128xf32> -> vector<1024x128xf32>
    %6 = arith.addf %2, %5 : vector<1024x128xf32>
    %c0_8 = arith.constant 0 : index
    %c0_9 = arith.constant 0 : index
    %7 = vector.load %arg6[%c0_8, %c0_9] : memref<1024x32xf32, #tpu.memory_space<vmem>>, vector<1024x32xf32>
    %c0_10 = arith.constant 0 : index
    %c0_11 = arith.constant 0 : index
    %8 = vector.load %arg3[%c0_10, %c0_11] : memref<128x32xf32, #tpu.memory_space<vmem>>, vector<128x32xf32>
    %cst_12 = arith.constant dense<0.000000e+00> : vector<1024x128xf32>
    %9 = tpu.matmul %7, %8, %cst_12 {dimension_numbers = #tpu.dot_dimension_numbers<[1], [1], [0], [0], [0, 0, 1, 0], [], []>} : vector<1024x32xf32>, vector<128x32xf32>, vector<1024x128xf32> -> vector<1024x128xf32>
    %10 = arith.addf %6, %9 : vector<1024x128xf32>
    %c0_13 = arith.constant 0 : index
    %c0_14 = arith.constant 0 : index
    %11 = vector.load %arg7[%c0_13, %c0_14] : memref<1024x1xf32, #tpu.memory_space<vmem>>, vector<1024x1xf32>
    %12 = vector.broadcast %11 : vector<1024x1xf32> to vector<1024x128xf32>
    %13 = arith.addf %10, %12 : vector<1024x128xf32>
    %cst_15 = arith.constant 0.000000e+00 : f32
    %14 = vector.broadcast %cst_15 : f32 to vector<1024x128xf32>
    %15 = arith.maximumf %13, %14 : vector<1024x128xf32>
    %c0_16 = arith.constant 0 : index
    %c0_17 = arith.constant 0 : index
    %16 = vector.load %arg8[%c0_16, %c0_17] : memref<1024x1024xf32, #tpu.memory_space<vmem>>, vector<1024x1024xf32>
    %cst_18 = arith.constant dense<0.000000e+00> : vector<1024x128xf32>
    %17 = tpu.matmul %16, %15, %cst_18 {dimension_numbers = #tpu.dot_dimension_numbers<[1], [0], [0], [1], [0, 0, 1, 1], [], []>} : vector<1024x1024xf32>, vector<1024x128xf32>, vector<1024x128xf32> -> vector<1024x128xf32>
    %c0_19 = arith.constant 0 : index
    %c0_20 = arith.constant 0 : index
    %18 = vector.load %arg9[%c0_19, %c0_20] : memref<1024x1xf32, #tpu.memory_space<vmem>>, vector<1024x1xf32>
    %19 = vector.broadcast %18 : vector<1024x1xf32> to vector<1024x128xf32>
    %20 = arith.addf %17, %19 : vector<1024x128xf32>
    %cst_21 = arith.constant 0.000000e+00 : f32
    %21 = vector.broadcast %cst_21 : f32 to vector<1024x128xf32>
    %22 = arith.maximumf %20, %21 : vector<1024x128xf32>
    %c0_22 = arith.constant 0 : index
    %c0_23 = arith.constant 0 : index
    %23 = vector.load %arg10[%c0_22, %c0_23] : memref<1024x1xf32, #tpu.memory_space<vmem>>, vector<1024x1xf32>
    %24 = vector.broadcast %23 : vector<1024x1xf32> to vector<1024x128xf32>
    %25 = arith.mulf %22, %24 : vector<1024x128xf32>
    %cst_24 = arith.constant dense<0.000000e+00> : vector<128xf32>
    %26 = vector.multi_reduction <add>, %25, %cst_24 [0] : vector<1024x128xf32> to vector<128xf32>
    %27 = vector.shape_cast %26 : vector<128xf32> to vector<1x128xf32>
    %c0_25 = arith.constant 0 : index
    %c0_26 = arith.constant 0 : index
    %28 = vector.load %arg11[%c0_25, %c0_26] : memref<1x1xf32, #tpu.memory_space<vmem>>, vector<1x1xf32>
    %29 = vector.broadcast %28 : vector<1x1xf32> to vector<1x128xf32>
    %30 = arith.addf %27, %29 : vector<1x128xf32>
    %c0_27 = arith.constant 0 : index
    %c0_28 = arith.constant 0 : index
    %31 = vector.load %arg12[%c0_27, %c0_28] : memref<1x128xf32, #tpu.memory_space<vmem>>, vector<1x128xf32>
    tpu.vector_store %arg12[%c0_27, %c0_28], %30 {strides = array<i32>} : memref<1x128xf32, #tpu.memory_space<vmem>>, vector<1x128xf32>,
    return
  }
  func.func @transform_0(%arg0: i32) -> (i32, i32) {
    %c0_i32 = arith.constant 0 : i32
    %c0_i32_0 = arith.constant 0 : i32
    return %arg0, %c0_i32 : i32, i32
  }
  func.func @transform_1(%arg0: i32) -> (i32, i32) {
    %c0_i32 = arith.constant 0 : i32
    %c0_i32_0 = arith.constant 0 : i32
    return %arg0, %c0_i32 : i32, i32
  }
  func.func @transform_2(%arg0: i32) -> (i32, i32) {
    %c0_i32 = arith.constant 0 : i32
    %c0_i32_0 = arith.constant 0 : i32
    return %arg0, %c0_i32 : i32, i32
  }
  func.func @transform_3(%arg0: i32) -> (i32, i32) {
    %c0_i32 = arith.constant 0 : i32
    %c0_i32_0 = arith.constant 0 : i32
    %c0_i32_1 = arith.constant 0 : i32
    return %c0_i32, %c0_i32_0 : i32, i32
  }
  func.func @transform_4(%arg0: i32) -> (i32, i32) {
    %c0_i32 = arith.constant 0 : i32
    %c0_i32_0 = arith.constant 0 : i32
    %c0_i32_1 = arith.constant 0 : i32
    return %c0_i32, %c0_i32_0 : i32, i32
  }
  func.func @transform_5(%arg0: i32) -> (i32, i32) {
    %c0_i32 = arith.constant 0 : i32
    %c0_i32_0 = arith.constant 0 : i32
    %c0_i32_1 = arith.constant 0 : i32
    return %c0_i32, %c0_i32_0 : i32, i32
  }
  func.func @transform_6(%arg0: i32) -> (i32, i32) {
    %c0_i32 = arith.constant 0 : i32
    %c0_i32_0 = arith.constant 0 : i32
    %c0_i32_1 = arith.constant 0 : i32
    return %c0_i32, %c0_i32_0 : i32, i32
  }
  func.func @transform_7(%arg0: i32) -> (i32, i32) {
    %c0_i32 = arith.constant 0 : i32
    %c0_i32_0 = arith.constant 0 : i32
    %c0_i32_1 = arith.constant 0 : i32
    return %c0_i32, %c0_i32_0 : i32, i32
  }
  func.func @transform_8(%arg0: i32) -> (i32, i32) {
    %c0_i32 = arith.constant 0 : i32
    %c0_i32_0 = arith.constant 0 : i32
    %c0_i32_1 = arith.constant 0 : i32
    return %c0_i32, %c0_i32_0 : i32, i32
  }
  func.func @transform_9(%arg0: i32) -> (i32, i32) {
    %c0_i32 = arith.constant 0 : i32
    %c0_i32_0 = arith.constant 0 : i32
    %c0_i32_1 = arith.constant 0 : i32
    return %c0_i32, %c0_i32_0 : i32, i32
  }
  func.func @transform_10(%arg0: i32) -> (i32, i32) {
    %c0_i32 = arith.constant 0 : i32
    %c0_i32_0 = arith.constant 0 : i32
    %c0_i32_1 = arith.constant 0 : i32
    return %c0_i32, %c0_i32_0 : i32, i32
  }
  func.func @transform_11(%arg0: i32) -> (i32, i32) {
    %c0_i32 = arith.constant 0 : i32
    %c0_i32_0 = arith.constant 0 : i32
    return %c0_i32, %arg0 : i32, i32
  }
}

</mosaic_0001>

<llo_original>
// kernel: tpu_custom_call.1
$region0: #{tpu_custom_call.1}
  #allocation0 [shape = 'u32[]', space=smem, size = 0x4, offset = 0x4, fixed_abs, tag = 'smem constant byte address 0x4 - core index']
  #allocation1 [shape = 'u32[144,128]{1,0:T(1,128)}', space=vmem, size = 0x12000, scoped, tag = 'internal scratch']
  #allocation2 [shape = 'f32[1,1]{1,0:T(1,128)S(1)}', space=vmem, size = 0x200, scoped, tag = 'scoped memory for tpu_custom_call.1']
  %s0 = inlined_call_operand.vmem [shape: f32[128,48], index: 0, kind: input, shape index: {}]
  %s1 = inlined_call_operand.vmem [shape: f32[128,32], index: 1, kind: input, shape index: {}]
  %s2 = inlined_call_operand.vmem [shape: f32[128,32], index: 2, kind: input, shape index: {}]
  %s3 = inlined_call_operand.vmem [shape: f32[1024,48], index: 3, kind: input, shape index: {}]
  %s4 = inlined_call_operand.vmem [shape: f32[1024,32], index: 4, kind: input, shape index: {}]
  %s5 = inlined_call_operand.vmem [shape: f32[1024,32], index: 5, kind: input, shape index: {}]
  %s6 = inlined_call_operand.vmem [shape: f32[1024,1], index: 6, kind: input, shape index: {}]
  %s7 = inlined_call_operand.hbm [shape: f32[1024,1024], index: 7, kind: input, shape index: {}]
  %s8 = inlined_call_operand.vmem [shape: f32[1024,1], index: 8, kind: input, shape index: {}]
  %s9 = inlined_call_operand.vmem [shape: f32[1024,1], index: 9, kind: input, shape index: {}]
  %s10 = inlined_call_operand.<no memory space> [shape: f32[1,1], index: 10, kind: input, shape index: {}]
  %s11 = inlined_call_operand.hbm [shape: f32[1,128], index: 11, kind: output, shape index: {}]
  %s12 = sld [smem:[#allocation0]]
  $region58: #{tpu_custom_call.1} parent=0
    _
  %s14 = ssub.s32 1, %s12
  %s15 = scalar_select 0, %s14, %s12
  %v16 = vstv %s10
  %17 = vst [vmem:[#allocation2] sm:$0x1] %v16
  $region1: #{tpu_custom_call.1} parent=0
    #allocation3 [shape = 'u8[4194304]{0}', space=vmem, size = 0x400000, scoped, tag = 'input window, operand 7, single buffered']
    #allocation4 [shape = 's32[1]{0}', space=sflag, size = 0x4, scoped, tag = 'scoped memory for tpu_custom_call.1']
    #allocation5 [shape = 's32[1]{0}', space=sflag, size = 0x4, scoped, tag = 'scoped memory for tpu_custom_call.1']
    #allocation6 [shape = 'u8[512]{0}', space=vmem, size = 0x400, scoped, tag = 'output window, operand 0, single buffered']
    %18 = vsyncpa [#allocation4], 0
    %19 = vsyncpa [#allocation5], 0
    // Predicated region
    $region2: #{tpu_custom_call.1} parent=1 // pred_check
      _
    $region3: #{tpu_custom_call.1} parent=1 // pred_check_branch
      %21 = sbr.rel (0) target = $region5
    $region4: #{tpu_custom_call.1} parent=1 // pred_region
      _
    $region5: #{tpu_custom_call.1} parent=1 // pred_fallthru
      _
    // Predicated region
    $region6: #{tpu_custom_call.1} parent=1 // pred_check
      _
    $region7: #{tpu_custom_call.1} parent=1 // pred_check_branch
      %23 = sbr.rel (0) target = $region9
    $region8: #{tpu_custom_call.1} parent=1 // pred_region
      _
    $region9: #{tpu_custom_call.1} parent=1 // pred_fallthru
      _
    // Predicated region
    $region10: #{tpu_custom_call.1} parent=1 // pred_check
      _
    $region11: #{tpu_custom_call.1} parent=1 // pred_check_branch
      %25 = sbr.rel (0) target = $region13
    $region12: #{tpu_custom_call.1} parent=1 // pred_region
      _
    $region13: #{tpu_custom_call.1} parent=1 // pred_fallthru
      _
    // Predicated region
    $region14: #{tpu_custom_call.1} parent=1 // pred_check
      _
    $region15: #{tpu_custom_call.1} parent=1 // pred_check_branch
      %27 = sbr.rel (0) target = $region17
    $region16: #{tpu_custom_call.1} parent=1 // pred_region
      _
    $region17: #{tpu_custom_call.1} parent=1 // pred_fallthru
      _
    // Predicated region
    $region18: #{tpu_custom_call.1} parent=1 // pred_check
      _
    $region19: #{tpu_custom_call.1} parent=1 // pred_check_branch
      %29 = sbr.rel (0) target = $region21
    $region20: #{tpu_custom_call.1} parent=1 // pred_region
      _
    $region21: #{tpu_custom_call.1} parent=1 // pred_fallthru
      _
    // Predicated region
    $region22: #{tpu_custom_call.1} parent=1 // pred_check
      _
    $region23: #{tpu_custom_call.1} parent=1 // pred_check_branch
      %31 = sbr.rel (0) target = $region25
    $region24: #{tpu_custom_call.1} parent=1 // pred_region
      _
    $region25: #{tpu_custom_call.1} parent=1 // pred_fallthru
      _
    // Predicated region
    $region26: #{tpu_custom_call.1} parent=1 // pred_check
      _
    $region27: #{tpu_custom_call.1} parent=1 // pred_check_branch
      %33 = sbr.rel (0) target = $region29
    $region28: #{tpu_custom_call.1} parent=1 // pred_region
      _
    $region29: #{tpu_custom_call.1} parent=1 // pred_fallthru
      _
    // Predicated region
    $region30: #{tpu_custom_call.1} parent=1 // pred_check
      _
    $region31: #{tpu_custom_call.1} parent=1 // pred_check_branch
      %35 = sbr.rel (0) target = $region33
    $region32: #{tpu_custom_call.1} parent=1 // pred_region
      %s37 = ssub.s32 131072, 131072
      %38 = vsyncadd [#allocation4], %s37
      %s39 = sshll.u32 [#allocation3], 4
      %s40 = int_to_ptr.vmem [resolvable:$true] %s39
      %45 = dma.hbm_to_vmem [thread:$0]  %s7, 131072, %s40, [#allocation4], 1024, 1024, 64
    $region33: #{tpu_custom_call.1} parent=1 // pred_fallthru
      _
    // Predicated region
    $region34: #{tpu_custom_call.1} parent=1 // pred_check
      _
    $region35: #{tpu_custom_call.1} parent=1 // pred_check_branch
      %47 = sbr.rel (0) target = $region37
    $region36: #{tpu_custom_call.1} parent=1 // pred_region
      _
    $region37: #{tpu_custom_call.1} parent=1 // pred_fallthru
      _
    // Predicated region
    $region38: #{tpu_custom_call.1} parent=1 // pred_check
      _
    $region39: #{tpu_custom_call.1} parent=1 // pred_check_branch
      %49 = sbr.rel (0) target = $region41
    $region40: #{tpu_custom_call.1} parent=1 // pred_region
      _
    $region41: #{tpu_custom_call.1} parent=1 // pred_fallthru
      _
    // Predicated region
    $region42: #{tpu_custom_call.1} parent=1 // pred_check
      _
    $region43: #{tpu_custom_call.1} parent=1 // pred_check_branch
      %51 = sbr.rel (0) target = $region45
    $region44: #{tpu_custom_call.1} parent=1 // pred_region
      _
    $region45: #{tpu_custom_call.1} parent=1 // pred_fallthru
      _
    // Predicated region
    $region46: #{tpu_custom_call.1} parent=1 // pred_check
      _
    $region47: #{tpu_custom_call.1} parent=1 // pred_check_branch
      %53 = sbr.rel (0) target = $region49
    $region48: #{tpu_custom_call.1} parent=1 // pred_region
      %54 = dma.done [#allocation4], 131072
    $region49: #{tpu_custom_call.1} parent=1 // pred_fallthru
      _
    %v55 = vld [vmem:[%s3] sm:$0xff]
    %v56 = vld [vmem:[%s3 + $0x8] sm:$0xff]
    %v57 = vld [vmem:[%s3 + $0x10] sm:$0xff]
    %v58 = vld [vmem:[%s3 + $0x18] sm:$0xff]
    %v59 = vld [vmem:[%s3 + $0x20] sm:$0xff]
    %v60 = vld [vmem:[%s3 + $0x28] sm:$0xff]
    %v61 = vld [vmem:[%s3 + $0x30] sm:$0xff]
    %v62 = vld [vmem:[%s3 + $0x38] sm:$0xff]
    %v63 = vld [vmem:[%s3 + $0x40] sm:$0xff]
    %v64 = vld [vmem:[%s3 + $0x48] sm:$0xff]
    %v65 = vld [vmem:[%s3 + $0x50] sm:$0xff]
    %v66 = vld [vmem:[%s3 + $0x58] sm:$0xff]
    %v67 = vld [vmem:[%s3 + $0x60] sm:$0xff]
    %v68 = vld [vmem:[%s3 + $0x68] sm:$0xff]
    %v69 = vld [vmem:[%s3 + $0x70] sm:$0xff]
    %v70 = vld [vmem:[%s3 + $0x78] sm:$0xff]
    %v71 = vld [vmem:[%s3 + $0x80] sm:$0xff]
    %v72 = vld [vmem:[%s3 + $0x88] sm:$0xff]
    %v73 = vld [vmem:[%s3 + $0x90] sm:$0xff]
    %v74 = vld [vmem:[%s3 + $0x98] sm:$0xff]
    %v75 = vld [vmem:[%s3 + $0xa0] sm:$0xff]
    %v76 = vld [vmem:[%s3 + $0xa8] sm:$0xff]
    %v77 = vld [vmem:[%s3 + $0xb0] sm:$0xff]
    %v78 = vld [vmem:[%s3 + $0xb8] sm:$0xff]
    %v79 = vld [vmem:[%s3 + $0xc0] sm:$0xff]
    %v80 = vld [vmem:[%s3 + $0xc8] sm:$0xff]
    %v81 = vld [vmem:[%s3 + $0xd0] sm:$0xff]
    %v82 = vld [vmem:[%s3 + $0xd8] sm:$0xff]
    %v83 = vld [vmem:[%s3 + $0xe0] sm:$0xff]
    %v84 = vld [vmem:[%s3 + $0xe8] sm:$0xff]
    %v85 = vld [vmem:[%s3 + $0xf0] sm:$0xff]
    %v86 = vld [vmem:[%s3 + $0xf8] sm:$0xff]
    %v87 = vld [vmem:[%s3 + $0x100] sm:$0xff]
    %v88 = vld [vmem:[%s3 + $0x108] sm:$0xff]
    %v89 = vld [vmem:[%s3 + $0x110] sm:$0xff]
    %v90 = vld [vmem:[%s3 + $0x118] sm:$0xff]
    %v91 = vld [vmem:[%s3 + $0x120] sm:$0xff]
    %v92 = vld [vmem:[%s3 + $0x128] sm:$0xff]
    %v93 = vld [vmem:[%s3 + $0x130] sm:$0xff]
    %v94 = vld [vmem:[%s3 + $0x138] sm:$0xff]
    %v95 = vld [vmem:[%s3 + $0x140] sm:$0xff]
    %v96 = vld [vmem:[%s3 + $0x148] sm:$0xff]
    %v97 = vld [vmem:[%s3 + $0x150] sm:$0xff]
    %v98 = vld [vmem:[%s3 + $0x158] sm:$0xff]
    %v99 = vld [vmem:[%s3 + $0x160] sm:$0xff]
    %v100 = vld [vmem:[%s3 + $0x168] sm:$0xff]
    %v101 = vld [vmem:[%s3 + $0x170] sm:$0xff]
    %v102 = vld [vmem:[%s3 + $0x178] sm:$0xff]
    %v103 = vld [vmem:[%s3 + $0x180] sm:$0xff]
    %v104 = vld [vmem:[%s3 + $0x188] sm:$0xff]
    %v105 = vld [vmem:[%s3 + $0x190] sm:$0xff]
    %v106 = vld [vmem:[%s3 + $0x198] sm:$0xff]
    %v107 = vld [vmem:[%s3 + $0x1a0] sm:$0xff]
    %v108 = vld [vmem:[%s3 + $0x1a8] sm:$0xff]
    %v109 = vld [vmem:[%s3 + $0x1b0] sm:$0xff]
    %v110 = vld [vmem:[%s3 + $0x1b8] sm:$0xff]
    %v111 = vld [vmem:[%s3 + $0x1c0] sm:$0xff]
    %v112 = vld [vmem:[%s3 + $0x1c8] sm:$0xff]
    %v113 = vld [vmem:[%s3 + $0x1d0] sm:$0xff]
    %v114 = vld [vmem:[%s3 + $0x1d8] sm:$0xff]
    %v115 = vld [vmem:[%s3 + $0x1e0] sm:$0xff]
    %v116 = vld [vmem:[%s3 + $0x1e8] sm:$0xff]
    %v117 = vld [vmem:[%s3 + $0x1f0] sm:$0xff]
    %v118 = vld [vmem:[%s3 + $0x1f8] sm:$0xff]
    %v119 = vld [vmem:[%s3 + $0x200] sm:$0xff]
    %v120 = vld [vmem:[%s3 + $0x208] sm:$0xff]
    %v121 = vld [vmem:[%s3 + $0x210] sm:$0xff]
    %v122 = vld [vmem:[%s3 + $0x218] sm:$0xff]
    %v123 = vld [vmem:[%s3 + $0x220] sm:$0xff]
    %v124 = vld [vmem:[%s3 + $0x228] sm:$0xff]
    %v125 = vld [vmem:[%s3 + $0x230] sm:$0xff]
    %v126 = vld [vmem:[%s3 + $0x238] sm:$0xff]
    %v127 = vld [vmem:[%s3 + $0x240] sm:$0xff]
    %v128 = vld [vmem:[%s3 + $0x248] sm:$0xff]
    %v129 = vld [vmem:[%s3 + $0x250] sm:$0xff]
    %v130 = vld [vmem:[%s3 + $0x258] sm:$0xff]
    %v131 = vld [vmem:[%s3 + $0x260] sm:$0xff]
    %v132 = vld [vmem:[%s3 + $0x268] sm:$0xff]
    %v133 = vld [vmem:[%s3 + $0x270] sm:$0xff]
    %v134 = vld [vmem:[%s3 + $0x278] sm:$0xff]
    %v135 = vld [vmem:[%s3 + $0x280] sm:$0xff]
    %v136 = vld [vmem:[%s3 + $0x288] sm:$0xff]
    %v137 = vld [vmem:[%s3 + $0x290] sm:$0xff]
    %v138 = vld [vmem:[%s3 + $0x298] sm:$0xff]
    %v139 = vld [vmem:[%s3 + $0x2a0] sm:$0xff]
    %v140 = vld [vmem:[%s3 + $0x2a8] sm:$0xff]
    %v141 = vld [vmem:[%s3 + $0x2b0] sm:$0xff]
    %v142 = vld [vmem:[%s3 + $0x2b8] sm:$0xff]
    %v143 = vld [vmem:[%s3 + $0x2c0] sm:$0xff]
    %v144 = vld [vmem:[%s3 + $0x2c8] sm:$0xff]
    %v145 = vld [vmem:[%s3 + $0x2d0] sm:$0xff]
    %v146 = vld [vmem:[%s3 + $0x2d8] sm:$0xff]
    %v147 = vld [vmem:[%s3 + $0x2e0] sm:$0xff]
    %v148 = vld [vmem:[%s3 + $0x2e8] sm:$0xff]
    %v149 = vld [vmem:[%s3 + $0x2f0] sm:$0xff]
    %v150 = vld [vmem:[%s3 + $0x2f8] sm:$0xff]
    %v151 = vld [vmem:[%s3 + $0x300] sm:$0xff]
    %v152 = vld [vmem:[%s3 + $0x308] sm:$0xff]
    %v153 = vld [vmem:[%s3 + $0x310] sm:$0xff]
    %v154 = vld [vmem:[%s3 + $0x318] sm:$0xff]
    %v155 = vld [vmem:[%s3 + $0x320] sm:$0xff]
    %v156 = vld [vmem:[%s3 + $0x328] sm:$0xff]
    %v157 = vld [vmem:[%s3 + $0x330] sm:$0xff]
    %v158 = vld [vmem:[%s3 + $0x338] sm:$0xff]
    %v159 = vld [vmem:[%s3 + $0x340] sm:$0xff]
    %v160 = vld [vmem:[%s3 + $0x348] sm:$0xff]
    %v161 = vld [vmem:[%s3 + $0x350] sm:$0xff]
    %v162 = vld [vmem:[%s3 + $0x358] sm:$0xff]
    %v163 = vld [vmem:[%s3 + $0x360] sm:$0xff]
    %v164 = vld [vmem:[%s3 + $0x368] sm:$0xff]
    %v165 = vld [vmem:[%s3 + $0x370] sm:$0xff]
    %v166 = vld [vmem:[%s3 + $0x378] sm:$0xff]
    %v167 = vld [vmem:[%s3 + $0x380] sm:$0xff]
    %v168 = vld [vmem:[%s3 + $0x388] sm:$0xff]
    %v169 = vld [vmem:[%s3 + $0x390] sm:$0xff]
    %v170 = vld [vmem:[%s3 + $0x398] sm:$0xff]
    %v171 = vld [vmem:[%s3 + $0x3a0] sm:$0xff]
    %v172 = vld [vmem:[%s3 + $0x3a8] sm:$0xff]
    %v173 = vld [vmem:[%s3 + $0x3b0] sm:$0xff]
    %v174 = vld [vmem:[%s3 + $0x3b8] sm:$0xff]
    %v175 = vld [vmem:[%s3 + $0x3c0] sm:$0xff]
    %v176 = vld [vmem:[%s3 + $0x3c8] sm:$0xff]
    %v177 = vld [vmem:[%s3 + $0x3d0] sm:$0xff]
    %v178 = vld [vmem:[%s3 + $0x3d8] sm:$0xff]
    %v179 = vld [vmem:[%s3 + $0x3e0] sm:$0xff]
    %v180 = vld [vmem:[%s3 + $0x3e8] sm:$0xff]
    %v181 = vld [vmem:[%s3 + $0x3f0] sm:$0xff]
    %v182 = vld [vmem:[%s3 + $0x3f8] sm:$0xff]
    %v183 = vld [vmem:[%s0] sm:$0xff]
    %v184 = vld [vmem:[%s0 + $0x8] sm:$0xff]
    %v185 = vld [vmem:[%s0 + $0x10] sm:$0xff]
    %v186 = vld [vmem:[%s0 + $0x18] sm:$0xff]
    %v187 = vld [vmem:[%s0 + $0x20] sm:$0xff]
    %v188 = vld [vmem:[%s0 + $0x28] sm:$0xff]
    %v189 = vld [vmem:[%s0 + $0x30] sm:$0xff]
    %v190 = vld [vmem:[%s0 + $0x38] sm:$0xff]
    %v191 = vld [vmem:[%s0 + $0x40] sm:$0xff]
    %v192 = vld [vmem:[%s0 + $0x48] sm:$0xff]
    %v193 = vld [vmem:[%s0 + $0x50] sm:$0xff]
    %v194 = vld [vmem:[%s0 + $0x58] sm:$0xff]
    %v195 = vld [vmem:[%s0 + $0x60] sm:$0xff]
    %v196 = vld [vmem:[%s0 + $0x68] sm:$0xff]
    %v197 = vld [vmem:[%s0 + $0x70] sm:$0xff]
    %v198 = vld [vmem:[%s0 + $0x78] sm:$0xff]
    %v199 = vld [vmem:[%s4] sm:$0xff]
    %v200 = vld [vmem:[%s4 + $0x8] sm:$0xff]
    %v201 = vld [vmem:[%s4 + $0x10] sm:$0xff]
    %v202 = vld [vmem:[%s4 + $0x18] sm:$0xff]
    %v203 = vld [vmem:[%s4 + $0x20] sm:$0xff]
    %v204 = vld [vmem:[%s4 + $0x28] sm:$0xff]
    %v205 = vld [vmem:[%s4 + $0x30] sm:$0xff]
    %v206 = vld [vmem:[%s4 + $0x38] sm:$0xff]
    %v207 = vld [vmem:[%s4 + $0x40] sm:$0xff]
    %v208 = vld [vmem:[%s4 + $0x48] sm:$0xff]
    %v209 = vld [vmem:[%s4 + $0x50] sm:$0xff]
    %v210 = vld [vmem:[%s4 + $0x58] sm:$0xff]
    %v211 = vld [vmem:[%s4 + $0x60] sm:$0xff]
    %v212 = vld [vmem:[%s4 + $0x68] sm:$0xff]
    %v213 = vld [vmem:[%s4 + $0x70] sm:$0xff]
    %v214 = vld [vmem:[%s4 + $0x78] sm:$0xff]
    %v215 = vld [vmem:[%s4 + $0x80] sm:$0xff]
    %v216 = vld [vmem:[%s4 + $0x88] sm:$0xff]
    %v217 = vld [vmem:[%s4 + $0x90] sm:$0xff]
    %v218 = vld [vmem:[%s4 + $0x98] sm:$0xff]
    %v219 = vld [vmem:[%s4 + $0xa0] sm:$0xff]
    %v220 = vld [vmem:[%s4 + $0xa8] sm:$0xff]
    %v221 = vld [vmem:[%s4 + $0xb0] sm:$0xff]
    %v222 = vld [vmem:[%s4 + $0xb8] sm:$0xff]
    %v223 = vld [vmem:[%s4 + $0xc0] sm:$0xff]
    %v224 = vld [vmem:[%s4 + $0xc8] sm:$0xff]
    %v225 = vld [vmem:[%s4 + $0xd0] sm:$0xff]
    %v226 = vld [vmem:[%s4 + $0xd8] sm:$0xff]
    %v227 = vld [vmem:[%s4 + $0xe0] sm:$0xff]
    %v228 = vld [vmem:[%s4 + $0xe8] sm:$0xff]
    %v229 = vld [vmem:[%s4 + $0xf0] sm:$0xff]
    %v230 = vld [vmem:[%s4 + $0xf8] sm:$0xff]
    %v231 = vld [vmem:[%s4 + $0x100] sm:$0xff]
    %v232 = vld [vmem:[%s4 + $0x108] sm:$0xff]
    %v233 = vld [vmem:[%s4 + $0x110] sm:$0xff]
    %v234 = vld [vmem:[%s4 + $0x118] sm:$0xff]
    %v235 = vld [vmem:[%s4 + $0x120] sm:$0xff]
    %v236 = vld [vmem:[%s4 + $0x128] sm:$0xff]
    %v237 = vld [vmem:[%s4 + $0x130] sm:$0xff]
    %v238 = vld [vmem:[%s4 + $0x138] sm:$0xff]
    %v239 = vld [vmem:[%s4 + $0x140] sm:$0xff]
    %v240 = vld [vmem:[%s4 + $0x148] sm:$0xff]
    %v241 = vld [vmem:[%s4 + $0x150] sm:$0xff]
    %v242 = vld [vmem:[%s4 + $0x158] sm:$0xff]
    %v243 = vld [vmem:[%s4 + $0x160] sm:$0xff]
    %v244 = vld [vmem:[%s4 + $0x168] sm:$0xff]
    %v245 = vld [vmem:[%s4 + $0x170] sm:$0xff]
    %v246 = vld [vmem:[%s4 + $0x178] sm:$0xff]
    %v247 = vld [vmem:[%s4 + $0x180] sm:$0xff]
    %v248 = vld [vmem:[%s4 + $0x188] sm:$0xff]
    %v249 = vld [vmem:[%s4 + $0x190] sm:$0xff]
    %v250 = vld [vmem:[%s4 + $0x198] sm:$0xff]
    %v251 = vld [vmem:[%s4 + $0x1a0] sm:$0xff]
    %v252 = vld [vmem:[%s4 + $0x1a8] sm:$0xff]
    %v253 = vld [vmem:[%s4 + $0x1b0] sm:$0xff]
    %v254 = vld [vmem:[%s4 + $0x1b8] sm:$0xff]
    %v255 = vld [vmem:[%s4 + $0x1c0] sm:$0xff]
    %v256 = vld [vmem:[%s4 + $0x1c8] sm:$0xff]
    %v257 = vld [vmem:[%s4 + $0x1d0] sm:$0xff]
    %v258 = vld [vmem:[%s4 + $0x1d8] sm:$0xff]
    %v259 = vld [vmem:[%s4 + $0x1e0] sm:$0xff]
    %v260 = vld [vmem:[%s4 + $0x1e8] sm:$0xff]
    %v261 = vld [vmem:[%s4 + $0x1f0] sm:$0xff]
    %v262 = vld [vmem:[%s4 + $0x1f8] sm:$0xff]
    %v263 = vld [vmem:[%s4 + $0x200] sm:$0xff]
    %v264 = vld [vmem:[%s4 + $0x208] sm:$0xff]
    %v265 = vld [vmem:[%s4 + $0x210] sm:$0xff]
    %v266 = vld [vmem:[%s4 + $0x218] sm:$0xff]
    %v267 = vld [vmem:[%s4 + $0x220] sm:$0xff]
    %v268 = vld [vmem:[%s4 + $0x228] sm:$0xff]
    %v269 = vld [vmem:[%s4 + $0x230] sm:$0xff]
    %v270 = vld [vmem:[%s4 + $0x238] sm:$0xff]
    %v271 = vld [vmem:[%s4 + $0x240] sm:$0xff]
    %v272 = vld [vmem:[%s4 + $0x248] sm:$0xff]
    %v273 = vld [vmem:[%s4 + $0x250] sm:$0xff]
    %v274 = vld [vmem:[%s4 + $0x258] sm:$0xff]
    %v275 = vld [vmem:[%s4 + $0x260] sm:$0xff]
    %v276 = vld [vmem:[%s4 + $0x268] sm:$0xff]
    %v277 = vld [vmem:[%s4 + $0x270] sm:$0xff]
    %v278 = vld [vmem:[%s4 + $0x278] sm:$0xff]
    %v279 = vld [vmem:[%s4 + $0x280] sm:$0xff]
    %v280 = vld [vmem:[%s4 + $0x288] sm:$0xff]
    %v281 = vld [vmem:[%s4 + $0x290] sm:$0xff]
    %v282 = vld [vmem:[%s4 + $0x298] sm:$0xff]
    %v283 = vld [vmem:[%s4 + $0x2a0] sm:$0xff]
    %v284 = vld [vmem:[%s4 + $0x2a8] sm:$0xff]
    %v285 = vld [vmem:[%s4 + $0x2b0] sm:$0xff]
    %v286 = vld [vmem:[%s4 + $0x2b8] sm:$0xff]
    %v287 = vld [vmem:[%s4 + $0x2c0] sm:$0xff]
    %v288 = vld [vmem:[%s4 + $0x2c8] sm:$0xff]
    %v289 = vld [vmem:[%s4 + $0x2d0] sm:$0xff]
    %v290 = vld [vmem:[%s4 + $0x2d8] sm:$0xff]
    %v291 = vld [vmem:[%s4 + $0x2e0] sm:$0xff]
    %v292 = vld [vmem:[%s4 + $0x2e8] sm:$0xff]
    %v293 = vld [vmem:[%s4 + $0x2f0] sm:$0xff]
    %v294 = vld [vmem:[%s4 + $0x2f8] sm:$0xff]
    %v295 = vld [vmem:[%s4 + $0x300] sm:$0xff]
    %v296 = vld [vmem:[%s4 + $0x308] sm:$0xff]
    %v297 = vld [vmem:[%s4 + $0x310] sm:$0xff]
    %v298 = vld [vmem:[%s4 + $0x318] sm:$0xff]
    %v299 = vld [vmem:[%s4 + $0x320] sm:$0xff]
    %v300 = vld [vmem:[%s4 + $0x328] sm:$0xff]
    %v301 = vld [vmem:[%s4 + $0x330] sm:$0xff]
    %v302 = vld [vmem:[%s4 + $0x338] sm:$0xff]
    %v303 = vld [vmem:[%s4 + $0x340] sm:$0xff]
    %v304 = vld [vmem:[%s4 + $0x348] sm:$0xff]
    %v305 = vld [vmem:[%s4 + $0x350] sm:$0xff]
    %v306 = vld [vmem:[%s4 + $0x358] sm:$0xff]
    %v307 = vld [vmem:[%s4 + $0x360] sm:$0xff]
    %v308 = vld [vmem:[%s4 + $0x368] sm:$0xff]
    %v309 = vld [vmem:[%s4 + $0x370] sm:$0xff]
    %v310 = vld [vmem:[%s4 + $0x378] sm:$0xff]
    %v311 = vld [vmem:[%s4 + $0x380] sm:$0xff]
    %v312 = vld [vmem:[%s4 + $0x388] sm:$0xff]
    %v313 = vld [vmem:[%s4 + $0x390] sm:$0xff]
    %v314 = vld [vmem:[%s4 + $0x398] sm:$0xff]
    %v315 = vld [vmem:[%s4 + $0x3a0] sm:$0xff]
    %v316 = vld [vmem:[%s4 + $0x3a8] sm:$0xff]
    %v317 = vld [vmem:[%s4 + $0x3b0] sm:$0xff]
    %v318 = vld [vmem:[%s4 + $0x3b8] sm:$0xff]
    %v319 = vld [vmem:[%s4 + $0x3c0] sm:$0xff]
    %v320 = vld [vmem:[%s4 + $0x3c8] sm:$0xff]
    %v321 = vld [vmem:[%s4 + $0x3d0] sm:$0xff]
    %v322 = vld [vmem:[%s4 + $0x3d8] sm:$0xff]
    %v323 = vld [vmem:[%s4 + $0x3e0] sm:$0xff]
    %v324 = vld [vmem:[%s4 + $0x3e8] sm:$0xff]
    %v325 = vld [vmem:[%s4 + $0x3f0] sm:$0xff]
    %v326 = vld [vmem:[%s4 + $0x3f8] sm:$0xff]
    %v327 = vld [vmem:[%s1] sm:$0xff]
    %v328 = vld [vmem:[%s1 + $0x8] sm:$0xff]
    %v329 = vld [vmem:[%s1 + $0x10] sm:$0xff]
    %v330 = vld [vmem:[%s1 + $0x18] sm:$0xff]
    %v331 = vld [vmem:[%s1 + $0x20] sm:$0xff]
    %v332 = vld [vmem:[%s1 + $0x28] sm:$0xff]
    %v333 = vld [vmem:[%s1 + $0x30] sm:$0xff]
    %v334 = vld [vmem:[%s1 + $0x38] sm:$0xff]
    %v335 = vld [vmem:[%s1 + $0x40] sm:$0xff]
    %v336 = vld [vmem:[%s1 + $0x48] sm:$0xff]
    %v337 = vld [vmem:[%s1 + $0x50] sm:$0xff]
    %v338 = vld [vmem:[%s1 + $0x58] sm:$0xff]
    %v339 = vld [vmem:[%s1 + $0x60] sm:$0xff]
    %v340 = vld [vmem:[%s1 + $0x68] sm:$0xff]
    %v341 = vld [vmem:[%s1 + $0x70] sm:$0xff]
    %v342 = vld [vmem:[%s1 + $0x78] sm:$0xff]
    %vm343 = vcmask 261120
    %v345 = vsel %vm343, %v199, 0
    %v348 = vsel %vm343, %v200, 0
    %v351 = vsel %vm343, %v201, 0
    %v354 = vsel %vm343, %v202, 0
    %v357 = vsel %vm343, %v203, 0
    %v360 = vsel %vm343, %v204, 0
    %v363 = vsel %vm343, %v205, 0
    %v366 = vsel %vm343, %v206, 0
    %v369 = vsel %vm343, %v207, 0
    %v372 = vsel %vm343, %v208, 0
    %v375 = vsel %vm343, %v209, 0
    %v378 = vsel %vm343, %v210, 0
    %v381 = vsel %vm343, %v211, 0
    %v384 = vsel %vm343, %v212, 0
    %v387 = vsel %vm343, %v213, 0
    %v390 = vsel %vm343, %v214, 0
    %v393 = vsel %vm343, %v215, 0
    %v396 = vsel %vm343, %v216, 0
    %v399 = vsel %vm343, %v217, 0
    %v402 = vsel %vm343, %v218, 0
    %v405 = vsel %vm343, %v219, 0
    %v408 = vsel %vm343, %v220, 0
    %v411 = vsel %vm343, %v221, 0
    %v414 = vsel %vm343, %v222, 0
    %v417 = vsel %vm343, %v223, 0
    %v420 = vsel %vm343, %v224, 0
    %v423 = vsel %vm343, %v225, 0
    %v426 = vsel %vm343, %v226, 0
    %v429 = vsel %vm343, %v227, 0
    %v432 = vsel %vm343, %v228, 0
    %v435 = vsel %vm343, %v229, 0
    %v438 = vsel %vm343, %v230, 0
    %v441 = vsel %vm343, %v231, 0
    %v444 = vsel %vm343, %v232, 0
    %v447 = vsel %vm343, %v233, 0
    %v450 = vsel %vm343, %v234, 0
    %v453 = vsel %vm343, %v235, 0
    %v456 = vsel %vm343, %v236, 0
    %v459 = vsel %vm343, %v237, 0
    %v462 = vsel %vm343, %v238, 0
    %v465 = vsel %vm343, %v239, 0
    %v468 = vsel %vm343, %v240, 0
    %v471 = vsel %vm343, %v241, 0
    %v474 = vsel %vm343, %v242, 0
    %v477 = vsel %vm343, %v243, 0
    %v480 = vsel %vm343, %v244, 0
    %v483 = vsel %vm343, %v245, 0
    %v486 = vsel %vm343, %v246, 0
    %v489 = vsel %vm343, %v247, 0
    %v492 = vsel %vm343, %v248, 0
    %v495 = vsel %vm343, %v249, 0
    %v498 = vsel %vm343, %v250, 0
    %v501 = vsel %vm343, %v251, 0
    %v504 = vsel %vm343, %v252, 0
    %v507 = vsel %vm343, %v253, 0
    %v510 = vsel %vm343, %v254, 0
    %v513 = vsel %vm343, %v255, 0
    %v516 = vsel %vm343, %v256, 0
    %v519 = vsel %vm343, %v257, 0
    %v522 = vsel %vm343, %v258, 0
    %v525 = vsel %vm343, %v259, 0
    %v528 = vsel %vm343, %v260, 0
    %v531 = vsel %vm343, %v261, 0
    %v534 = vsel %vm343, %v262, 0
    %v537 = vsel %vm343, %v263, 0
    %v540 = vsel %vm343, %v264, 0
    %v543 = vsel %vm343, %v265, 0
    %v546 = vsel %vm343, %v266, 0
    %v549 = vsel %vm343, %v267, 0
    %v552 = vsel %vm343, %v268, 0
    %v555 = vsel %vm343, %v269, 0
    %v558 = vsel %vm343, %v270, 0
    %v561 = vsel %vm343, %v271, 0
    %v564 = vsel %vm343, %v272, 0
    %v567 = vsel %vm343, %v273, 0
    %v570 = vsel %vm343, %v274, 0
    %v573 = vsel %vm343, %v275, 0
    %v576 = vsel %vm343, %v276, 0
    %v579 = vsel %vm343, %v277, 0
    %v582 = vsel %vm343, %v278, 0
    %v585 = vsel %vm343, %v279, 0
    %v588 = vsel %vm343, %v280, 0
    %v591 = vsel %vm343, %v281, 0
    %v594 = vsel %vm343, %v282, 0
    %v597 = vsel %vm343, %v283, 0
    %v600 = vsel %vm343, %v284, 0
    %v603 = vsel %vm343, %v285, 0
    %v606 = vsel %vm343, %v286, 0
    %v609 = vsel %vm343, %v287, 0
    %v612 = vsel %vm343, %v288, 0
    %v615 = vsel %vm343, %v289, 0
    %v618 = vsel %vm343, %v290, 0
    %v621 = vsel %vm343, %v291, 0
    %v624 = vsel %vm343, %v292, 0
    %v627 = vsel %vm343, %v293, 0
    %v630 = vsel %vm343, %v294, 0
    %v633 = vsel %vm343, %v295, 0
    %v636 = vsel %vm343, %v296, 0
    %v639 = vsel %vm343, %v297, 0
    %v642 = vsel %vm343, %v298, 0
    %v645 = vsel %vm343, %v299, 0
    %v648 = vsel %vm343, %v300, 0
    %v651 = vsel %vm343, %v301, 0
    %v654 = vsel %vm343, %v302, 0
    %v657 = vsel %vm343, %v303, 0
    %v660 = vsel %vm343, %v304, 0
    %v663 = vsel %vm343, %v305, 0
    %v666 = vsel %vm343, %v306, 0
    %v669 = vsel %vm343, %v307, 0
    %v672 = vsel %vm343, %v308, 0
    %v675 = vsel %vm343, %v309, 0
    %v678 = vsel %vm343, %v310, 0
    %v681 = vsel %vm343, %v311, 0
    %v684 = vsel %vm343, %v312, 0
    %v687 = vsel %vm343, %v313, 0
    %v690 = vsel %vm343, %v314, 0
    %v693 = vsel %vm343, %v315, 0
    %v696 = vsel %vm343, %v316, 0
    %v699 = vsel %vm343, %v317, 0
    %v702 = vsel %vm343, %v318, 0
    %v705 = vsel %vm343, %v319, 0
    %v708 = vsel %vm343, %v320, 0
    %v711 = vsel %vm343, %v321, 0
    %v714 = vsel %vm343, %v322, 0
    %v717 = vsel %vm343, %v323, 0
    %v720 = vsel %vm343, %v324, 0
    %v723 = vsel %vm343, %v325, 0
    %v726 = vsel %vm343, %v326, 0
    %v729 = vsel %vm343, %v327, 0
    %v732 = vsel %vm343, %v328, 0
    %v735 = vsel %vm343, %v329, 0
    %v738 = vsel %vm343, %v330, 0
    %v741 = vsel %vm343, %v331, 0
    %v744 = vsel %vm343, %v332, 0
    %v747 = vsel %vm343, %v333, 0
    %v750 = vsel %vm343, %v334, 0
    %v753 = vsel %vm343, %v335, 0
    %v756 = vsel %vm343, %v336, 0
    %v759 = vsel %vm343, %v337, 0
    %v762 = vsel %vm343, %v338, 0
    %v765 = vsel %vm343, %v339, 0
    %v768 = vsel %vm343, %v340, 0
    %v771 = vsel %vm343, %v341, 0
    %v774 = vsel %vm343, %v342, 0
    %776 = vmatprep.subr.mxu0 0.0
    %777 = vmatpush1.xpose.msra.mxu0 %v774
    %778 = vmatprep.subr.mxu0 0.0
    %779 = vmatpush1.xpose.msra.mxu0 %v771
    %780 = vmatprep.subr.mxu0 0.0
    %781 = vmatpush1.xpose.msra.mxu0 %v768
    %782 = vmatprep.subr.mxu0 0.0
    %783 = vmatpush1.xpose.msra.mxu0 %v765
    %784 = vmatprep.subr.mxu0 0.0
    %785 = vmatpush1.xpose.msra.mxu0 %v762
    %786 = vmatprep.subr.mxu0 0.0
    %787 = vmatpush1.xpose.msra.mxu0 %v759
    %788 = vmatprep.subr.mxu0 0.0
    %789 = vmatpush1.xpose.msra.mxu0 %v756
    %790 = vmatprep.subr.mxu0 0.0
    %791 = vmatpush1.xpose.msra.mxu0 %v753
    %792 = vmatprep.subr.mxu0 0.0
    %793 = vmatpush1.xpose.msra.mxu0 %v750
    %794 = vmatprep.subr.mxu0 0.0
    %795 = vmatpush1.xpose.msra.mxu0 %v747
    %796 = vmatprep.subr.mxu0 0.0
    %797 = vmatpush1.xpose.msra.mxu0 %v744
    %798 = vmatprep.subr.mxu0 0.0
    %799 = vmatpush1.xpose.msra.mxu0 %v741
    %800 = vmatprep.subr.mxu0 0.0
    %801 = vmatpush1.xpose.msra.mxu0 %v738
    %802 = vmatprep.subr.mxu0 0.0
    %803 = vmatpush1.xpose.msra.mxu0 %v735
    %804 = vmatprep.subr.mxu0 0.0
    %805 = vmatpush1.xpose.msra.mxu0 %v732
    %806 = vmatprep.subr.mxu0 0.0
    %807 = vmatpush1.xpose.msra.mxu0 %v729
    %808 = vmatprep.subr.mxu0 0.0
    %809 = vmatpush2.xpose.msra.mxu0 0.0
    %810 = vmatprep.subr.mxu0 0.0
    %811 = vmatpush2.xpose.msra.mxu0 0.0
    %812 = vmatprep.subr.mxu0 0.0
    %813 = vmatpush2.xpose.msra.mxu0 0.0
    %814 = vmatprep.subr.mxu0 0.0
    %815 = vmatpush2.xpose.msra.mxu0 0.0
    %816 = vmatprep.subr.mxu0 0.0
    %817 = vmatpush2.xpose.msra.mxu0 0.0
    %818 = vmatprep.subr.mxu0 0.0
    %819 = vmatpush2.xpose.msra.mxu0 0.0
    %820 = vmatprep.subr.mxu0 0.0
    %821 = vmatpush2.xpose.msra.mxu0 0.0
    %822 = vmatprep.subr.mxu0 0.0
    %823 = vmatpush2.xpose.msra.mxu0 0.0
    %824 = vmatprep.subr.mxu0 0.0
    %825 = vmatpush2.xpose.msra.mxu0 0.0
    %826 = vmatprep.subr.mxu0 0.0
    %827 = vmatpush2.xpose.msra.mxu0 0.0
    %828 = vmatprep.subr.mxu0 0.0
    %829 = vmatpush2.xpose.msra.mxu0 0.0
    %830 = vmatprep.subr.mxu0 0.0
    %831 = vmatpush2.xpose.msra.mxu0 0.0
    %832 = vmatprep.subr.mxu0 0.0
    %833 = vmatpush2.xpose.msra.mxu0 0.0
    %834 = vmatprep.subr.mxu0 0.0
    %835 = vmatpush2.xpose.msra.mxu0 0.0
    %836 = vmatprep.subr.mxu0 0.0
    %837 = vmatpush2.xpose.msra.mxu0 0.0
    %838 = vmatprep.subr.mxu0 0.0
    %839 = vmatpush2.xpose.msra.mxu0 0.0
    %840 = vmatprep.mubr.f32.mxu0 0.0
    %841 = vmatmul.mubr.f32.gmra.mxu0 %v345
    %v842 = vpop.f32.mrf.mxu0
    %v843 = vadd.f32 0.0, %v842
    %v844 = vpop.f32.mrf.mxu0
    %845 = vmatprep.mubr.f32.mxu0 0.0
    %846 = vmatmul.mubr.f32.gmra.mxu0 %v348
    %v847 = vpop.f32.mrf.mxu0
    %v848 = vadd.f32 0.0, %v847
    %v849 = vpop.f32.mrf.mxu0
    %850 = vmatprep.mubr.f32.mxu0 0.0
    %851 = vmatmul.mubr.f32.gmra.mxu0 %v351
    %v852 = vpop.f32.mrf.mxu0
    %v853 = vadd.f32 0.0, %v852
    %v854 = vpop.f32.mrf.mxu0
    %855 = vmatprep.mubr.f32.mxu0 0.0
    %856 = vmatmul.mubr.f32.gmra.mxu0 %v354
    %v857 = vpop.f32.mrf.mxu0
    %v858 = vadd.f32 0.0, %v857
    %v859 = vpop.f32.mrf.mxu0
    %860 = vmatprep.mubr.f32.mxu0 0.0
    %861 = vmatmul.mubr.f32.gmra.mxu0 %v357
    %v862 = vpop.f32.mrf.mxu0
    %v863 = vadd.f32 0.0, %v862
    %v864 = vpop.f32.mrf.mxu0
    %865 = vmatprep.mubr.f32.mxu0 0.0
    %866 = vmatmul.mubr.f32.gmra.mxu0 %v360
    %v867 = vpop.f32.mrf.mxu0
    %v868 = vadd.f32 0.0, %v867
    %v869 = vpop.f32.mrf.mxu0
    %870 = vmatprep.mubr.f32.mxu0 0.0
    %871 = vmatmul.mubr.f32.gmra.mxu0 %v363
    %v872 = vpop.f32.mrf.mxu0
    %v873 = vadd.f32 0.0, %v872
    %v874 = vpop.f32.mrf.mxu0
    %875 = vmatprep.mubr.f32.mxu0 0.0
    %876 = vmatmul.mubr.f32.gmra.mxu0 %v366
    %v877 = vpop.f32.mrf.mxu0
    %v878 = vadd.f32 0.0, %v877
    %v879 = vpop.f32.mrf.mxu0
    %880 = vmatprep.mubr.f32.mxu0 0.0
    %881 = vmatmul.mubr.f32.gmra.mxu0 %v369
    %v882 = vpop.f32.mrf.mxu0
    %v883 = vadd.f32 0.0, %v882
    %v884 = vpop.f32.mrf.mxu0
    %885 = vmatprep.mubr.f32.mxu0 0.0
    %886 = vmatmul.mubr.f32.gmra.mxu0 %v372
    %v887 = vpop.f32.mrf.mxu0
    %v888 = vadd.f32 0.0, %v887
    %v889 = vpop.f32.mrf.mxu0
    %890 = vmatprep.mubr.f32.mxu0 0.0
    %891 = vmatmul.mubr.f32.gmra.mxu0 %v375
    %v892 = vpop.f32.mrf.mxu0
    %v893 = vadd.f32 0.0, %v892
    %v894 = vpop.f32.mrf.mxu0
    %895 = vmatprep.mubr.f32.mxu0 0.0
    %896 = vmatmul.mubr.f32.gmra.mxu0 %v378
    %v897 = vpop.f32.mrf.mxu0
    %v898 = vadd.f32 0.0, %v897
    %v899 = vpop.f32.mrf.mxu0
    %900 = vmatprep.mubr.f32.mxu0 0.0
    %901 = vmatmul.mubr.f32.gmra.mxu0 %v381
    %v902 = vpop.f32.mrf.mxu0
    %v903 = vadd.f32 0.0, %v902
    %v904 = vpop.f32.mrf.mxu0
    %905 = vmatprep.mubr.f32.mxu0 0.0
    %906 = vmatmul.mubr.f32.gmra.mxu0 %v384
    %v907 = vpop.f32.mrf.mxu0
    %v908 = vadd.f32 0.0, %v907
    %v909 = vpop.f32.mrf.mxu0
    %910 = vmatprep.mubr.f32.mxu0 0.0
    %911 = vmatmul.mubr.f32.gmra.mxu0 %v387
    %v912 = vpop.f32.mrf.mxu0
    %v913 = vadd.f32 0.0, %v912
    %v914 = vpop.f32.mrf.mxu0
    %915 = vmatprep.mubr.f32.mxu0 0.0
    %916 = vmatmul.mubr.f32.gmra.mxu0 %v390
    %v917 = vpop.f32.mrf.mxu0
    %v918 = vadd.f32 0.0, %v917
    %v919 = vpop.f32.mrf.mxu0
    %920 = vmatprep.mubr.f32.mxu0 0.0
    %921 = vmatmul.mubr.f32.gmra.mxu0 %v393
    %v922 = vpop.f32.mrf.mxu0
    %v923 = vadd.f32 0.0, %v922
    %v924 = vpop.f32.mrf.mxu0
    %925 = vmatprep.mubr.f32.mxu0 0.0
    %926 = vmatmul.mubr.f32.gmra.mxu0 %v396
    %v927 = vpop.f32.mrf.mxu0
    %v928 = vadd.f32 0.0, %v927
    %v929 = vpop.f32.mrf.mxu0
    %930 = vmatprep.mubr.f32.mxu0 0.0
    %931 = vmatmul.mubr.f32.gmra.mxu0 %v399
    %v932 = vpop.f32.mrf.mxu0
    %v933 = vadd.f32 0.0, %v932
    %v934 = vpop.f32.mrf.mxu0
    %935 = vmatprep.mubr.f32.mxu0 0.0
    %936 = vmatmul.mubr.f32.gmra.mxu0 %v402
    %v937 = vpop.f32.mrf.mxu0
    %v938 = vadd.f32 0.0, %v937
    %v939 = vpop.f32.mrf.mxu0
    %940 = vmatprep.mubr.f32.mxu0 0.0
    %941 = vmatmul.mubr.f32.gmra.mxu0 %v405
    %v942 = vpop.f32.mrf.mxu0
    %v943 = vadd.f32 0.0, %v942
    %v944 = vpop.f32.mrf.mxu0
    %945 = vmatprep.mubr.f32.mxu0 0.0
    %946 = vmatmul.mubr.f32.gmra.mxu0 %v408
    %v947 = vpop.f32.mrf.mxu0
    %v948 = vadd.f32 0.0, %v947
    %v949 = vpop.f32.mrf.mxu0
    %950 = vmatprep.mubr.f32.mxu0 0.0
    %951 = vmatmul.mubr.f32.gmra.mxu0 %v411
    %v952 = vpop.f32.mrf.mxu0
    %v953 = vadd.f32 0.0, %v952
    %v954 = vpop.f32.mrf.mxu0
    %955 = vmatprep.mubr.f32.mxu0 0.0
    %956 = vmatmul.mubr.f32.gmra.mxu0 %v414
    %v957 = vpop.f32.mrf.mxu0
    %v958 = vadd.f32 0.0, %v957
    %v959 = vpop.f32.mrf.mxu0
    %960 = vmatprep.mubr.f32.mxu0 0.0
    %961 = vmatmul.mubr.f32.gmra.mxu0 %v417
    %v962 = vpop.f32.mrf.mxu0
    %v963 = vadd.f32 0.0, %v962
    %v964 = vpop.f32.mrf.mxu0
    %965 = vmatprep.mubr.f32.mxu0 0.0
    %966 = vmatmul.mubr.f32.gmra.mxu0 %v420
    %v967 = vpop.f32.mrf.mxu0
    %v968 = vadd.f32 0.0, %v967
    %v969 = vpop.f32.mrf.mxu0
    %970 = vmatprep.mubr.f32.mxu0 0.0
    %971 = vmatmul.mubr.f32.gmra.mxu0 %v423
    %v972 = vpop.f32.mrf.mxu0
    %v973 = vadd.f32 0.0, %v972
    %v974 = vpop.f32.mrf.mxu0
    %975 = vmatprep.mubr.f32.mxu0 0.0
    %976 = vmatmul.mubr.f32.gmra.mxu0 %v426
    %v977 = vpop.f32.mrf.mxu0
    %v978 = vadd.f32 0.0, %v977
    %v979 = vpop.f32.mrf.mxu0
    %980 = vmatprep.mubr.f32.mxu0 0.0
    %981 = vmatmul.mubr.f32.gmra.mxu0 %v429
    %v982 = vpop.f32.mrf.mxu0
    %v983 = vadd.f32 0.0, %v982
    %v984 = vpop.f32.mrf.mxu0
    %985 = vmatprep.mubr.f32.mxu0 0.0
    %986 = vmatmul.mubr.f32.gmra.mxu0 %v432
    %v987 = vpop.f32.mrf.mxu0
    %v988 = vadd.f32 0.0, %v987
    %v989 = vpop.f32.mrf.mxu0
    %990 = vmatprep.mubr.f32.mxu0 0.0
    %991 = vmatmul.mubr.f32.gmra.mxu0 %v435
    %v992 = vpop.f32.mrf.mxu0
    %v993 = vadd.f32 0.0, %v992
    %v994 = vpop.f32.mrf.mxu0
    %995 = vmatprep.mubr.f32.mxu0 0.0
    %996 = vmatmul.mubr.f32.gmra.mxu0 %v438
    %v997 = vpop.f32.mrf.mxu0
    %v998 = vadd.f32 0.0, %v997
    %v999 = vpop.f32.mrf.mxu0
    %1000 = vmatprep.mubr.f32.mxu0 0.0
    %1001 = vmatmul.mubr.f32.gmra.mxu0 %v441
    %v1002 = vpop.f32.mrf.mxu0
    %v1003 = vadd.f32 0.0, %v1002
    %v1004 = vpop.f32.mrf.mxu0
    %1005 = vmatprep.mubr.f32.mxu0 0.0
    %1006 = vmatmul.mubr.f32.gmra.mxu0 %v444
    %v1007 = vpop.f32.mrf.mxu0
    %v1008 = vadd.f32 0.0, %v1007
    %v1009 = vpop.f32.mrf.mxu0
    %1010 = vmatprep.mubr.f32.mxu0 0.0
    %1011 = vmatmul.mubr.f32.gmra.mxu0 %v447
    %v1012 = vpop.f32.mrf.mxu0
    %v1013 = vadd.f32 0.0, %v1012
    %v1014 = vpop.f32.mrf.mxu0
    %1015 = vmatprep.mubr.f32.mxu0 0.0
    %1016 = vmatmul.mubr.f32.gmra.mxu0 %v450
    %v1017 = vpop.f32.mrf.mxu0
    %v1018 = vadd.f32 0.0, %v1017
    %v1019 = vpop.f32.mrf.mxu0
    %1020 = vmatprep.mubr.f32.mxu0 0.0
    %1021 = vmatmul.mubr.f32.gmra.mxu0 %v453
    %v1022 = vpop.f32.mrf.mxu0
    %v1023 = vadd.f32 0.0, %v1022
    %v1024 = vpop.f32.mrf.mxu0
    %1025 = vmatprep.mubr.f32.mxu0 0.0
    %1026 = vmatmul.mubr.f32.gmra.mxu0 %v456
    %v1027 = vpop.f32.mrf.mxu0
    %v1028 = vadd.f32 0.0, %v1027
    %v1029 = vpop.f32.mrf.mxu0
    %1030 = vmatprep.mubr.f32.mxu0 0.0
    %1031 = vmatmul.mubr.f32.gmra.mxu0 %v459
    %v1032 = vpop.f32.mrf.mxu0
    %v1033 = vadd.f32 0.0, %v1032
    %v1034 = vpop.f32.mrf.mxu0
    %1035 = vmatprep.mubr.f32.mxu0 0.0
    %1036 = vmatmul.mubr.f32.gmra.mxu0 %v462
    %v1037 = vpop.f32.mrf.mxu0
    %v1038 = vadd.f32 0.0, %v1037
    %v1039 = vpop.f32.mrf.mxu0
    %1040 = vmatprep.mubr.f32.mxu0 0.0
    %1041 = vmatmul.mubr.f32.gmra.mxu0 %v465
    %v1042 = vpop.f32.mrf.mxu0
    %v1043 = vadd.f32 0.0, %v1042
    %v1044 = vpop.f32.mrf.mxu0
    %1045 = vmatprep.mubr.f32.mxu0 0.0
    %1046 = vmatmul.mubr.f32.gmra.mxu0 %v468
    %v1047 = vpop.f32.mrf.mxu0
    %v1048 = vadd.f32 0.0, %v1047
    %v1049 = vpop.f32.mrf.mxu0
    %1050 = vmatprep.mubr.f32.mxu0 0.0
    %1051 = vmatmul.mubr.f32.gmra.mxu0 %v471
    %v1052 = vpop.f32.mrf.mxu0
    %v1053 = vadd.f32 0.0, %v1052
    %v1054 = vpop.f32.mrf.mxu0
    %1055 = vmatprep.mubr.f32.mxu0 0.0
    %1056 = vmatmul.mubr.f32.gmra.mxu0 %v474
    %v1057 = vpop.f32.mrf.mxu0
    %v1058 = vadd.f32 0.0, %v1057
    %v1059 = vpop.f32.mrf.mxu0
    %1060 = vmatprep.mubr.f32.mxu0 0.0
    %1061 = vmatmul.mubr.f32.gmra.mxu0 %v477
    %v1062 = vpop.f32.mrf.mxu0
    %v1063 = vadd.f32 0.0, %v1062
    %v1064 = vpop.f32.mrf.mxu0
    %1065 = vmatprep.mubr.f32.mxu0 0.0
    %1066 = vmatmul.mubr.f32.gmra.mxu0 %v480
    %v1067 = vpop.f32.mrf.mxu0
    %v1068 = vadd.f32 0.0, %v1067
    %v1069 = vpop.f32.mrf.mxu0
    %1070 = vmatprep.mubr.f32.mxu0 0.0
    %1071 = vmatmul.mubr.f32.gmra.mxu0 %v483
    %v1072 = vpop.f32.mrf.mxu0
    %v1073 = vadd.f32 0.0, %v1072
    %v1074 = vpop.f32.mrf.mxu0
    %1075 = vmatprep.mubr.f32.mxu0 0.0
    %1076 = vmatmul.mubr.f32.gmra.mxu0 %v486
    %v1077 = vpop.f32.mrf.mxu0
    %v1078 = vadd.f32 0.0, %v1077
    %v1079 = vpop.f32.mrf.mxu0
    %1080 = vmatprep.mubr.f32.mxu0 0.0
    %1081 = vmatmul.mubr.f32.gmra.mxu0 %v489
    %v1082 = vpop.f32.mrf.mxu0
    %v1083 = vadd.f32 0.0, %v1082
    %v1084 = vpop.f32.mrf.mxu0
    %1085 = vmatprep.mubr.f32.mxu0 0.0
    %1086 = vmatmul.mubr.f32.gmra.mxu0 %v492
    %v1087 = vpop.f32.mrf.mxu0
    %v1088 = vadd.f32 0.0, %v1087
    %v1089 = vpop.f32.mrf.mxu0
    %1090 = vmatprep.mubr.f32.mxu0 0.0
    %1091 = vmatmul.mubr.f32.gmra.mxu0 %v495
    %v1092 = vpop.f32.mrf.mxu0
    %v1093 = vadd.f32 0.0, %v1092
    %v1094 = vpop.f32.mrf.mxu0
    %1095 = vmatprep.mubr.f32.mxu0 0.0
    %1096 = vmatmul.mubr.f32.gmra.mxu0 %v498
    %v1097 = vpop.f32.mrf.mxu0
    %v1098 = vadd.f32 0.0, %v1097
    %v1099 = vpop.f32.mrf.mxu0
    %1100 = vmatprep.mubr.f32.mxu0 0.0
    %1101 = vmatmul.mubr.f32.gmra.mxu0 %v501
    %v1102 = vpop.f32.mrf.mxu0
    %v1103 = vadd.f32 0.0, %v1102
    %v1104 = vpop.f32.mrf.mxu0
    %1105 = vmatprep.mubr.f32.mxu0 0.0
    %1106 = vmatmul.mubr.f32.gmra.mxu0 %v504
    %v1107 = vpop.f32.mrf.mxu0
    %v1108 = vadd.f32 0.0, %v1107
    %v1109 = vpop.f32.mrf.mxu0
    %1110 = vmatprep.mubr.f32.mxu0 0.0
    %1111 = vmatmul.mubr.f32.gmra.mxu0 %v507
    %v1112 = vpop.f32.mrf.mxu0
    %v1113 = vadd.f32 0.0, %v1112
    %v1114 = vpop.f32.mrf.mxu0
    %1115 = vmatprep.mubr.f32.mxu0 0.0
    %1116 = vmatmul.mubr.f32.gmra.mxu0 %v510
    %v1117 = vpop.f32.mrf.mxu0
    %v1118 = vadd.f32 0.0, %v1117
    %v1119 = vpop.f32.mrf.mxu0
    %1120 = vmatprep.mubr.f32.mxu0 0.0
    %1121 = vmatmul.mubr.f32.gmra.mxu0 %v513
    %v1122 = vpop.f32.mrf.mxu0
    %v1123 = vadd.f32 0.0, %v1122
    %v1124 = vpop.f32.mrf.mxu0
    %1125 = vmatprep.mubr.f32.mxu0 0.0
    %1126 = vmatmul.mubr.f32.gmra.mxu0 %v516
    %v1127 = vpop.f32.mrf.mxu0
    %v1128 = vadd.f32 0.0, %v1127
    %v1129 = vpop.f32.mrf.mxu0
    %1130 = vmatprep.mubr.f32.mxu0 0.0
    %1131 = vmatmul.mubr.f32.gmra.mxu0 %v519
    %v1132 = vpop.f32.mrf.mxu0
    %v1133 = vadd.f32 0.0, %v1132
    %v1134 = vpop.f32.mrf.mxu0
    %1135 = vmatprep.mubr.f32.mxu0 0.0
    %1136 = vmatmul.mubr.f32.gmra.mxu0 %v522
    %v1137 = vpop.f32.mrf.mxu0
    %v1138 = vadd.f32 0.0, %v1137
    %v1139 = vpop.f32.mrf.mxu0
    %1140 = vmatprep.mubr.f32.mxu0 0.0
    %1141 = vmatmul.mubr.f32.gmra.mxu0 %v525
    %v1142 = vpop.f32.mrf.mxu0
    %v1143 = vadd.f32 0.0, %v1142
    %v1144 = vpop.f32.mrf.mxu0
    %1145 = vmatprep.mubr.f32.mxu0 0.0
    %1146 = vmatmul.mubr.f32.gmra.mxu0 %v528
    %v1147 = vpop.f32.mrf.mxu0
    %v1148 = vadd.f32 0.0, %v1147
    %v1149 = vpop.f32.mrf.mxu0
    %1150 = vmatprep.mubr.f32.mxu0 0.0
    %1151 = vmatmul.mubr.f32.gmra.mxu0 %v531
    %v1152 = vpop.f32.mrf.mxu0
    %v1153 = vadd.f32 0.0, %v1152
    %v1154 = vpop.f32.mrf.mxu0
    %1155 = vmatprep.mubr.f32.mxu0 0.0
    %1156 = vmatmul.mubr.f32.gmra.mxu0 %v534
    %v1157 = vpop.f32.mrf.mxu0
    %v1158 = vadd.f32 0.0, %v1157
    %v1159 = vpop.f32.mrf.mxu0
    %1160 = vmatprep.mubr.f32.mxu0 0.0
    %1161 = vmatmul.mubr.f32.gmra.mxu0 %v537
    %v1162 = vpop.f32.mrf.mxu0
    %v1163 = vadd.f32 0.0, %v1162
    %v1164 = vpop.f32.mrf.mxu0
    %1165 = vmatprep.mubr.f32.mxu0 0.0
    %1166 = vmatmul.mubr.f32.gmra.mxu0 %v540
    %v1167 = vpop.f32.mrf.mxu0
    %v1168 = vadd.f32 0.0, %v1167
    %v1169 = vpop.f32.mrf.mxu0
    %1170 = vmatprep.mubr.f32.mxu0 0.0
    %1171 = vmatmul.mubr.f32.gmra.mxu0 %v543
    %v1172 = vpop.f32.mrf.mxu0
    %v1173 = vadd.f32 0.0, %v1172
    %v1174 = vpop.f32.mrf.mxu0
    %1175 = vmatprep.mubr.f32.mxu0 0.0
    %1176 = vmatmul.mubr.f32.gmra.mxu0 %v546
    %v1177 = vpop.f32.mrf.mxu0
    %v1178 = vadd.f32 0.0, %v1177
    %v1179 = vpop.f32.mrf.mxu0
    %1180 = vmatprep.mubr.f32.mxu0 0.0
    %1181 = vmatmul.mubr.f32.gmra.mxu0 %v549
    %v1182 = vpop.f32.mrf.mxu0
    %v1183 = vadd.f32 0.0, %v1182
    %v1184 = vpop.f32.mrf.mxu0
    %1185 = vmatprep.mubr.f32.mxu0 0.0
    %1186 = vmatmul.mubr.f32.gmra.mxu0 %v552
    %v1187 = vpop.f32.mrf.mxu0
    %v1188 = vadd.f32 0.0, %v1187
    %v1189 = vpop.f32.mrf.mxu0
    %1190 = vmatprep.mubr.f32.mxu0 0.0
    %1191 = vmatmul.mubr.f32.gmra.mxu0 %v555
    %v1192 = vpop.f32.mrf.mxu0
    %v1193 = vadd.f32 0.0, %v1192
    %v1194 = vpop.f32.mrf.mxu0
    %1195 = vmatprep.mubr.f32.mxu0 0.0
    %1196 = vmatmul.mubr.f32.gmra.mxu0 %v558
    %v1197 = vpop.f32.mrf.mxu0
    %v1198 = vadd.f32 0.0, %v1197
    %v1199 = vpop.f32.mrf.mxu0
    %1200 = vmatprep.mubr.f32.mxu0 0.0
    %1201 = vmatmul.mubr.f32.gmra.mxu0 %v561
    %v1202 = vpop.f32.mrf.mxu0
    %v1203 = vadd.f32 0.0, %v1202
    %v1204 = vpop.f32.mrf.mxu0
    %1205 = vmatprep.mubr.f32.mxu0 0.0
    %1206 = vmatmul.mubr.f32.gmra.mxu0 %v564
    %v1207 = vpop.f32.mrf.mxu0
    %v1208 = vadd.f32 0.0, %v1207
    %v1209 = vpop.f32.mrf.mxu0
    %1210 = vmatprep.mubr.f32.mxu0 0.0
    %1211 = vmatmul.mubr.f32.gmra.mxu0 %v567
    %v1212 = vpop.f32.mrf.mxu0
    %v1213 = vadd.f32 0.0, %v1212
    %v1214 = vpop.f32.mrf.mxu0
    %1215 = vmatprep.mubr.f32.mxu0 0.0
    %1216 = vmatmul.mubr.f32.gmra.mxu0 %v570
    %v1217 = vpop.f32.mrf.mxu0
    %v1218 = vadd.f32 0.0, %v1217
    %v1219 = vpop.f32.mrf.mxu0
    %1220 = vmatprep.mubr.f32.mxu0 0.0
    %1221 = vmatmul.mubr.f32.gmra.mxu0 %v573
    %v1222 = vpop.f32.mrf.mxu0
    %v1223 = vadd.f32 0.0, %v1222
    %v1224 = vpop.f32.mrf.mxu0
    %1225 = vmatprep.mubr.f32.mxu0 0.0
    %1226 = vmatmul.mubr.f32.gmra.mxu0 %v576
    %v1227 = vpop.f32.mrf.mxu0
    %v1228 = vadd.f32 0.0, %v1227
    %v1229 = vpop.f32.mrf.mxu0
    %1230 = vmatprep.mubr.f32.mxu0 0.0
    %1231 = vmatmul.mubr.f32.gmra.mxu0 %v579
    %v1232 = vpop.f32.mrf.mxu0
    %v1233 = vadd.f32 0.0, %v1232
    %v1234 = vpop.f32.mrf.mxu0
    %1235 = vmatprep.mubr.f32.mxu0 0.0
    %1236 = vmatmul.mubr.f32.gmra.mxu0 %v582
    %v1237 = vpop.f32.mrf.mxu0
    %v1238 = vadd.f32 0.0, %v1237
    %v1239 = vpop.f32.mrf.mxu0
    %1240 = vmatprep.mubr.f32.mxu0 0.0
    %1241 = vmatmul.mubr.f32.gmra.mxu0 %v585
    %v1242 = vpop.f32.mrf.mxu0
    %v1243 = vadd.f32 0.0, %v1242
    %v1244 = vpop.f32.mrf.mxu0
    %1245 = vmatprep.mubr.f32.mxu0 0.0
    %1246 = vmatmul.mubr.f32.gmra.mxu0 %v588
    %v1247 = vpop.f32.mrf.mxu0
    %v1248 = vadd.f32 0.0, %v1247
    %v1249 = vpop.f32.mrf.mxu0
    %1250 = vmatprep.mubr.f32.mxu0 0.0
    %1251 = vmatmul.mubr.f32.gmra.mxu0 %v591
    %v1252 = vpop.f32.mrf.mxu0
    %v1253 = vadd.f32 0.0, %v1252
    %v1254 = vpop.f32.mrf.mxu0
    %1255 = vmatprep.mubr.f32.mxu0 0.0
    %1256 = vmatmul.mubr.f32.gmra.mxu0 %v594
    %v1257 = vpop.f32.mrf.mxu0
    %v1258 = vadd.f32 0.0, %v1257
    %v1259 = vpop.f32.mrf.mxu0
    %1260 = vmatprep.mubr.f32.mxu0 0.0
    %1261 = vmatmul.mubr.f32.gmra.mxu0 %v597
    %v1262 = vpop.f32.mrf.mxu0
    %v1263 = vadd.f32 0.0, %v1262
    %v1264 = vpop.f32.mrf.mxu0
    %1265 = vmatprep.mubr.f32.mxu0 0.0
    %1266 = vmatmul.mubr.f32.gmra.mxu0 %v600
    %v1267 = vpop.f32.mrf.mxu0
    %v1268 = vadd.f32 0.0, %v1267
    %v1269 = vpop.f32.mrf.mxu0
    %1270 = vmatprep.mubr.f32.mxu0 0.0
    %1271 = vmatmul.mubr.f32.gmra.mxu0 %v603
    %v1272 = vpop.f32.mrf.mxu0
    %v1273 = vadd.f32 0.0, %v1272
    %v1274 = vpop.f32.mrf.mxu0
    %1275 = vmatprep.mubr.f32.mxu0 0.0
    %1276 = vmatmul.mubr.f32.gmra.mxu0 %v606
    %v1277 = vpop.f32.mrf.mxu0
    %v1278 = vadd.f32 0.0, %v1277
    %v1279 = vpop.f32.mrf.mxu0
    %1280 = vmatprep.mubr.f32.mxu0 0.0
    %1281 = vmatmul.mubr.f32.gmra.mxu0 %v609
    %v1282 = vpop.f32.mrf.mxu0
    %v1283 = vadd.f32 0.0, %v1282
    %v1284 = vpop.f32.mrf.mxu0
    %1285 = vmatprep.mubr.f32.mxu0 0.0
    %1286 = vmatmul.mubr.f32.gmra.mxu0 %v612
    %v1287 = vpop.f32.mrf.mxu0
    %v1288 = vadd.f32 0.0, %v1287
    %v1289 = vpop.f32.mrf.mxu0
    %1290 = vmatprep.mubr.f32.mxu0 0.0
    %1291 = vmatmul.mubr.f32.gmra.mxu0 %v615
    %v1292 = vpop.f32.mrf.mxu0
    %v1293 = vadd.f32 0.0, %v1292
    %v1294 = vpop.f32.mrf.mxu0
    %1295 = vmatprep.mubr.f32.mxu0 0.0
    %1296 = vmatmul.mubr.f32.gmra.mxu0 %v618
    %v1297 = vpop.f32.mrf.mxu0
    %v1298 = vadd.f32 0.0, %v1297
    %v1299 = vpop.f32.mrf.mxu0
    %1300 = vmatprep.mubr.f32.mxu0 0.0
    %1301 = vmatmul.mubr.f32.gmra.mxu0 %v621
    %v1302 = vpop.f32.mrf.mxu0
    %v1303 = vadd.f32 0.0, %v1302
    %v1304 = vpop.f32.mrf.mxu0
    %1305 = vmatprep.mubr.f32.mxu0 0.0
    %1306 = vmatmul.mubr.f32.gmra.mxu0 %v624
    %v1307 = vpop.f32.mrf.mxu0
    %v1308 = vadd.f32 0.0, %v1307
    %v1309 = vpop.f32.mrf.mxu0
    %1310 = vmatprep.mubr.f32.mxu0 0.0
    %1311 = vmatmul.mubr.f32.gmra.mxu0 %v627
    %v1312 = vpop.f32.mrf.mxu0
    %v1313 = vadd.f32 0.0, %v1312
    %v1314 = vpop.f32.mrf.mxu0
    %1315 = vmatprep.mubr.f32.mxu0 0.0
    %1316 = vmatmul.mubr.f32.gmra.mxu0 %v630
    %v1317 = vpop.f32.mrf.mxu0
    %v1318 = vadd.f32 0.0, %v1317
    %v1319 = vpop.f32.mrf.mxu0
    %1320 = vmatprep.mubr.f32.mxu0 0.0
    %1321 = vmatmul.mubr.f32.gmra.mxu0 %v633
    %v1322 = vpop.f32.mrf.mxu0
    %v1323 = vadd.f32 0.0, %v1322
    %v1324 = vpop.f32.mrf.mxu0
    %1325 = vmatprep.mubr.f32.mxu0 0.0
    %1326 = vmatmul.mubr.f32.gmra.mxu0 %v636
    %v1327 = vpop.f32.mrf.mxu0
    %v1328 = vadd.f32 0.0, %v1327
    %v1329 = vpop.f32.mrf.mxu0
    %1330 = vmatprep.mubr.f32.mxu0 0.0
    %1331 = vmatmul.mubr.f32.gmra.mxu0 %v639
    %v1332 = vpop.f32.mrf.mxu0
    %v1333 = vadd.f32 0.0, %v1332
    %v1334 = vpop.f32.mrf.mxu0
    %1335 = vmatprep.mubr.f32.mxu0 0.0
    %1336 = vmatmul.mubr.f32.gmra.mxu0 %v642
    %v1337 = vpop.f32.mrf.mxu0
    %v1338 = vadd.f32 0.0, %v1337
    %v1339 = vpop.f32.mrf.mxu0
    %1340 = vmatprep.mubr.f32.mxu0 0.0
    %1341 = vmatmul.mubr.f32.gmra.mxu0 %v645
    %v1342 = vpop.f32.mrf.mxu0
    %v1343 = vadd.f32 0.0, %v1342
    %v1344 = vpop.f32.mrf.mxu0
    %1345 = vmatprep.mubr.f32.mxu0 0.0
    %1346 = vmatmul.mubr.f32.gmra.mxu0 %v648
    %v1347 = vpop.f32.mrf.mxu0
    %v1348 = vadd.f32 0.0, %v1347
    %v1349 = vpop.f32.mrf.mxu0
    %1350 = vmatprep.mubr.f32.mxu0 0.0
    %1351 = vmatmul.mubr.f32.gmra.mxu0 %v651
    %v1352 = vpop.f32.mrf.mxu0
    %v1353 = vadd.f32 0.0, %v1352
    %v1354 = vpop.f32.mrf.mxu0
    %1355 = vmatprep.mubr.f32.mxu0 0.0
    %1356 = vmatmul.mubr.f32.gmra.mxu0 %v654
    %v1357 = vpop.f32.mrf.mxu0
    %v1358 = vadd.f32 0.0, %v1357
    %v1359 = vpop.f32.mrf.mxu0
    %1360 = vmatprep.mubr.f32.mxu0 0.0
    %1361 = vmatmul.mubr.f32.gmra.mxu0 %v657
    %v1362 = vpop.f32.mrf.mxu0
    %v1363 = vadd.f32 0.0, %v1362
    %v1364 = vpop.f32.mrf.mxu0
    %1365 = vmatprep.mubr.f32.mxu0 0.0
    %1366 = vmatmul.mubr.f32.gmra.mxu0 %v660
    %v1367 = vpop.f32.mrf.mxu0
    %v1368 = vadd.f32 0.0, %v1367
    %v1369 = vpop.f32.mrf.mxu0
    %1370 = vmatprep.mubr.f32.mxu0 0.0
    %1371 = vmatmul.mubr.f32.gmra.mxu0 %v663
    %v1372 = vpop.f32.mrf.mxu0
    %v1373 = vadd.f32 0.0, %v1372
    %v1374 = vpop.f32.mrf.mxu0
    %1375 = vmatprep.mubr.f32.mxu0 0.0
    %1376 = vmatmul.mubr.f32.gmra.mxu0 %v666
    %v1377 = vpop.f32.mrf.mxu0
    %v1378 = vadd.f32 0.0, %v1377
    %v1379 = vpop.f32.mrf.mxu0
    %1380 = vmatprep.mubr.f32.mxu0 0.0
    %1381 = vmatmul.mubr.f32.gmra.mxu0 %v669
    %v1382 = vpop.f32.mrf.mxu0
    %v1383 = vadd.f32 0.0, %v1382
    %v1384 = vpop.f32.mrf.mxu0
    %1385 = vmatprep.mubr.f32.mxu0 0.0
    %1386 = vmatmul.mubr.f32.gmra.mxu0 %v672
    %v1387 = vpop.f32.mrf.mxu0
    %v1388 = vadd.f32 0.0, %v1387
    %v1389 = vpop.f32.mrf.mxu0
    %1390 = vmatprep.mubr.f32.mxu0 0.0
    %1391 = vmatmul.mubr.f32.gmra.mxu0 %v675
    %v1392 = vpop.f32.mrf.mxu0
    %v1393 = vadd.f32 0.0, %v1392
    %v1394 = vpop.f32.mrf.mxu0
    %1395 = vmatprep.mubr.f32.mxu0 0.0
    %1396 = vmatmul.mubr.f32.gmra.mxu0 %v678
    %v1397 = vpop.f32.mrf.mxu0
    %v1398 = vadd.f32 0.0, %v1397
    %v1399 = vpop.f32.mrf.mxu0
    %1400 = vmatprep.mubr.f32.mxu0 0.0
    %1401 = vmatmul.mubr.f32.gmra.mxu0 %v681
    %v1402 = vpop.f32.mrf.mxu0
    %v1403 = vadd.f32 0.0, %v1402
    %v1404 = vpop.f32.mrf.mxu0
    %1405 = vmatprep.mubr.f32.mxu0 0.0
    %1406 = vmatmul.mubr.f32.gmra.mxu0 %v684
    %v1407 = vpop.f32.mrf.mxu0
    %v1408 = vadd.f32 0.0, %v1407
    %v1409 = vpop.f32.mrf.mxu0
    %1410 = vmatprep.mubr.f32.mxu0 0.0
    %1411 = vmatmul.mubr.f32.gmra.mxu0 %v687
    %v1412 = vpop.f32.mrf.mxu0
    %v1413 = vadd.f32 0.0, %v1412
    %v1414 = vpop.f32.mrf.mxu0
    %1415 = vmatprep.mubr.f32.mxu0 0.0
    %1416 = vmatmul.mubr.f32.gmra.mxu0 %v690
    %v1417 = vpop.f32.mrf.mxu0
    %v1418 = vadd.f32 0.0, %v1417
    %v1419 = vpop.f32.mrf.mxu0
    %1420 = vmatprep.mubr.f32.mxu0 0.0
    %1421 = vmatmul.mubr.f32.gmra.mxu0 %v693
    %v1422 = vpop.f32.mrf.mxu0
    %v1423 = vadd.f32 0.0, %v1422
    %v1424 = vpop.f32.mrf.mxu0
    %1425 = vmatprep.mubr.f32.mxu0 0.0
    %1426 = vmatmul.mubr.f32.gmra.mxu0 %v696
    %v1427 = vpop.f32.mrf.mxu0
    %v1428 = vadd.f32 0.0, %v1427
    %v1429 = vpop.f32.mrf.mxu0
    %1430 = vmatprep.mubr.f32.mxu0 0.0
    %1431 = vmatmul.mubr.f32.gmra.mxu0 %v699
    %v1432 = vpop.f32.mrf.mxu0
    %v1433 = vadd.f32 0.0, %v1432
    %v1434 = vpop.f32.mrf.mxu0
    %1435 = vmatprep.mubr.f32.mxu0 0.0
    %1436 = vmatmul.mubr.f32.gmra.mxu0 %v702
    %v1437 = vpop.f32.mrf.mxu0
    %v1438 = vadd.f32 0.0, %v1437
    %v1439 = vpop.f32.mrf.mxu0
    %1440 = vmatprep.mubr.f32.mxu0 0.0
    %1441 = vmatmul.mubr.f32.gmra.mxu0 %v705
    %v1442 = vpop.f32.mrf.mxu0
    %v1443 = vadd.f32 0.0, %v1442
    %v1444 = vpop.f32.mrf.mxu0
    %1445 = vmatprep.mubr.f32.mxu0 0.0
    %1446 = vmatmul.mubr.f32.gmra.mxu0 %v708
    %v1447 = vpop.f32.mrf.mxu0
    %v1448 = vadd.f32 0.0, %v1447
    %v1449 = vpop.f32.mrf.mxu0
    %1450 = vmatprep.mubr.f32.mxu0 0.0
    %1451 = vmatmul.mubr.f32.gmra.mxu0 %v711
    %v1452 = vpop.f32.mrf.mxu0
    %v1453 = vadd.f32 0.0, %v1452
    %v1454 = vpop.f32.mrf.mxu0
    %1455 = vmatprep.mubr.f32.mxu0 0.0
    %1456 = vmatmul.mubr.f32.gmra.mxu0 %v714
    %v1457 = vpop.f32.mrf.mxu0
    %v1458 = vadd.f32 0.0, %v1457
    %v1459 = vpop.f32.mrf.mxu0
    %1460 = vmatprep.mubr.f32.mxu0 0.0
    %1461 = vmatmul.mubr.f32.gmra.mxu0 %v717
    %v1462 = vpop.f32.mrf.mxu0
    %v1463 = vadd.f32 0.0, %v1462
    %v1464 = vpop.f32.mrf.mxu0
    %1465 = vmatprep.mubr.f32.mxu0 0.0
    %1466 = vmatmul.mubr.f32.gmra.mxu0 %v720
    %v1467 = vpop.f32.mrf.mxu0
    %v1468 = vadd.f32 0.0, %v1467
    %v1469 = vpop.f32.mrf.mxu0
    %1470 = vmatprep.mubr.f32.mxu0 0.0
    %1471 = vmatmul.mubr.f32.gmra.mxu0 %v723
    %v1472 = vpop.f32.mrf.mxu0
    %v1473 = vadd.f32 0.0, %v1472
    %v1474 = vpop.f32.mrf.mxu0
    %1475 = vmatprep.mubr.f32.mxu0 0.0
    %1476 = vmatmul.mubr.f32.gmra.mxu0 %v726
    %v1477 = vpop.f32.mrf.mxu0
    %v1478 = vadd.f32 0.0, %v1477
    %v1479 = vpop.f32.mrf.mxu0
    %1480 = vdwg.mxu0
    %vm1481 = vcmask 392192
    %v1483 = vsel %vm1481, %v55, 0
    %v1486 = vsel %vm1481, %v56, 0
    %v1489 = vsel %vm1481, %v57, 0
    %v1492 = vsel %vm1481, %v58, 0
    %v1495 = vsel %vm1481, %v59, 0
    %v1498 = vsel %vm1481, %v60, 0
    %v1501 = vsel %vm1481, %v61, 0
    %v1504 = vsel %vm1481, %v62, 0
    %v1507 = vsel %vm1481, %v63, 0
    %v1510 = vsel %vm1481, %v64, 0
    %v1513 = vsel %vm1481, %v65, 0
    %v1516 = vsel %vm1481, %v66, 0
    %v1519 = vsel %vm1481, %v67, 0
    %v1522 = vsel %vm1481, %v68, 0
    %v1525 = vsel %vm1481, %v69, 0
    %v1528 = vsel %vm1481, %v70, 0
    %v1531 = vsel %vm1481, %v71, 0
    %v1534 = vsel %vm1481, %v72, 0
    %v1537 = vsel %vm1481, %v73, 0
    %v1540 = vsel %vm1481, %v74, 0
    %v1543 = vsel %vm1481, %v75, 0
    %v1546 = vsel %vm1481, %v76, 0
    %v1549 = vsel %vm1481, %v77, 0
    %v1552 = vsel %vm1481, %v78, 0
    %v1555 = vsel %vm1481, %v79, 0
    %v1558 = vsel %vm1481, %v80, 0
    %v1561 = vsel %vm1481, %v81, 0
    %v1564 = vsel %vm1481, %v82, 0
    %v1567 = vsel %vm1481, %v83, 0
    %v1570 = vsel %vm1481, %v84, 0
    %v1573 = vsel %vm1481, %v85, 0
    %v1576 = vsel %vm1481, %v86, 0
    %v1579 = vsel %vm1481, %v87, 0
    %v1582 = vsel %vm1481, %v88, 0
    %v1585 = vsel %vm1481, %v89, 0
    %v1588 = vsel %vm1481, %v90, 0
    %v1591 = vsel %vm1481, %v91, 0
    %v1594 = vsel %vm1481, %v92, 0
    %v1597 = vsel %vm1481, %v93, 0
    %v1600 = vsel %vm1481, %v94, 0
    %v1603 = vsel %vm1481, %v95, 0
    %v1606 = vsel %vm1481, %v96, 0
    %v1609 = vsel %vm1481, %v97, 0
    %v1612 = vsel %vm1481, %v98, 0
    %v1615 = vsel %vm1481, %v99, 0
    %v1618 = vsel %vm1481, %v100, 0
    %v1621 = vsel %vm1481, %v101, 0
    %v1624 = vsel %vm1481, %v102, 0
    %v1627 = vsel %vm1481, %v103, 0
    %v1630 = vsel %vm1481, %v104, 0
    %v1633 = vsel %vm1481, %v105, 0
    %v1636 = vsel %vm1481, %v106, 0
    %v1639 = vsel %vm1481, %v107, 0
    %v1642 = vsel %vm1481, %v108, 0
    %v1645 = vsel %vm1481, %v109, 0
    %v1648 = vsel %vm1481, %v110, 0
    %v1651 = vsel %vm1481, %v111, 0
    %v1654 = vsel %vm1481, %v112, 0
    %v1657 = vsel %vm1481, %v113, 0
    %v1660 = vsel %vm1481, %v114, 0
    %v1663 = vsel %vm1481, %v115, 0
    %v1666 = vsel %vm1481, %v116, 0
    %v1669 = vsel %vm1481, %v117, 0
    %v1672 = vsel %vm1481, %v118, 0
    %v1675 = vsel %vm1481, %v119, 0
    %v1678 = vsel %vm1481, %v120, 0
    %v1681 = vsel %vm1481, %v121, 0
    %v1684 = vsel %vm1481, %v122, 0
    %v1687 = vsel %vm1481, %v123, 0
    %v1690 = vsel %vm1481, %v124, 0
    %v1693 = vsel %vm1481, %v125, 0
    %v1696 = vsel %vm1481, %v126, 0
    %v1699 = vsel %vm1481, %v127, 0
    %v1702 = vsel %vm1481, %v128, 0
    %v1705 = vsel %vm1481, %v129, 0
    %v1708 = vsel %vm1481, %v130, 0
    %v1711 = vsel %vm1481, %v131, 0
    %v1714 = vsel %vm1481, %v132, 0
    %v1717 = vsel %vm1481, %v133, 0
    %v1720 = vsel %vm1481, %v134, 0
    %v1723 = vsel %vm1481, %v135, 0
    %v1726 = vsel %vm1481, %v136, 0
    %v1729 = vsel %vm1481, %v137, 0
    %v1732 = vsel %vm1481, %v138, 0
    %v1735 = vsel %vm1481, %v139, 0
    %v1738 = vsel %vm1481, %v140, 0
    %v1741 = vsel %vm1481, %v141, 0
    %v1744 = vsel %vm1481, %v142, 0
    %v1747 = vsel %vm1481, %v143, 0
    %v1750 = vsel %vm1481, %v144, 0
    %v1753 = vsel %vm1481, %v145, 0
    %v1756 = vsel %vm1481, %v146, 0
    %v1759 = vsel %vm1481, %v147, 0
    %v1762 = vsel %vm1481, %v148, 0
    %v1765 = vsel %vm1481, %v149, 0
    %v1768 = vsel %vm1481, %v150, 0
    %v1771 = vsel %vm1481, %v151, 0
    %v1774 = vsel %vm1481, %v152, 0
    %v1777 = vsel %vm1481, %v153, 0
    %v1780 = vsel %vm1481, %v154, 0
    %v1783 = vsel %vm1481, %v155, 0
    %v1786 = vsel %vm1481, %v156, 0
    %v1789 = vsel %vm1481, %v157, 0
    %v1792 = vsel %vm1481, %v158, 0
    %v1795 = vsel %vm1481, %v159, 0
    %v1798 = vsel %vm1481, %v160, 0
    %v1801 = vsel %vm1481, %v161, 0
    %v1804 = vsel %vm1481, %v162, 0
    %v1807 = vsel %vm1481, %v163, 0
    %v1810 = vsel %vm1481, %v164, 0
    %v1813 = vsel %vm1481, %v165, 0
    %v1816 = vsel %vm1481, %v166, 0
    %v1819 = vsel %vm1481, %v167, 0
    %v1822 = vsel %vm1481, %v168, 0
    %v1825 = vsel %vm1481, %v169, 0
    %v1828 = vsel %vm1481, %v170, 0
    %v1831 = vsel %vm1481, %v171, 0
    %v1834 = vsel %vm1481, %v172, 0
    %v1837 = vsel %vm1481, %v173, 0
    %v1840 = vsel %vm1481, %v174, 0
    %v1843 = vsel %vm1481, %v175, 0
    %v1846 = vsel %vm1481, %v176, 0
    %v1849 = vsel %vm1481, %v177, 0
    %v1852 = vsel %vm1481, %v178, 0
    %v1855 = vsel %vm1481, %v179, 0
    %v1858 = vsel %vm1481, %v180, 0
    %v1861 = vsel %vm1481, %v181, 0
    %v1864 = vsel %vm1481, %v182, 0
    %v1867 = vsel %vm1481, %v183, 0
    %v1870 = vsel %vm1481, %v184, 0
    %v1873 = vsel %vm1481, %v185, 0
    %v1876 = vsel %vm1481, %v186, 0
    %v1879 = vsel %vm1481, %v187, 0
    %v1882 = vsel %vm1481, %v188, 0
    %v1885 = vsel %vm1481, %v189, 0
    %v1888 = vsel %vm1481, %v190, 0
    %v1891 = vsel %vm1481, %v191, 0
    %v1894 = vsel %vm1481, %v192, 0
    %v1897 = vsel %vm1481, %v193, 0
    %v1900 = vsel %vm1481, %v194, 0
    %v1903 = vsel %vm1481, %v195, 0
    %v1906 = vsel %vm1481, %v196, 0
    %v1909 = vsel %vm1481, %v197, 0
    %v1912 = vsel %vm1481, %v198, 0
    %1914 = vmatprep.subr.mxu0 0.0
    %1915 = vmatpush1.xpose.msra.mxu0 %v1912
    %1916 = vmatprep.subr.mxu0 0.0
    %1917 = vmatpush1.xpose.msra.mxu0 %v1909
    %1918 = vmatprep.subr.mxu0 0.0
    %1919 = vmatpush1.xpose.msra.mxu0 %v1906
    %1920 = vmatprep.subr.mxu0 0.0
    %1921 = vmatpush1.xpose.msra.mxu0 %v1903
    %1922 = vmatprep.subr.mxu0 0.0
    %1923 = vmatpush1.xpose.msra.mxu0 %v1900
    %1924 = vmatprep.subr.mxu0 0.0
    %1925 = vmatpush1.xpose.msra.mxu0 %v1897
    %1926 = vmatprep.subr.mxu0 0.0
    %1927 = vmatpush1.xpose.msra.mxu0 %v1894
    %1928 = vmatprep.subr.mxu0 0.0
    %1929 = vmatpush1.xpose.msra.mxu0 %v1891
    %1930 = vmatprep.subr.mxu0 0.0
    %1931 = vmatpush1.xpose.msra.mxu0 %v1888
    %1932 = vmatprep.subr.mxu0 0.0
    %1933 = vmatpush1.xpose.msra.mxu0 %v1885
    %1934 = vmatprep.subr.mxu0 0.0
    %1935 = vmatpush1.xpose.msra.mxu0 %v1882
    %1936 = vmatprep.subr.mxu0 0.0
    %1937 = vmatpush1.xpose.msra.mxu0 %v1879
    %1938 = vmatprep.subr.mxu0 0.0
    %1939 = vmatpush1.xpose.msra.mxu0 %v1876
    %1940 = vmatprep.subr.mxu0 0.0
    %1941 = vmatpush1.xpose.msra.mxu0 %v1873
    %1942 = vmatprep.subr.mxu0 0.0
    %1943 = vmatpush1.xpose.msra.mxu0 %v1870
    %1944 = vmatprep.subr.mxu0 0.0
    %1945 = vmatpush1.xpose.msra.mxu0 %v1867
    %1946 = vmatprep.subr.mxu0 0.0
    %1947 = vmatpush2.xpose.msra.mxu0 0.0
    %1948 = vmatprep.subr.mxu0 0.0
    %1949 = vmatpush2.xpose.msra.mxu0 0.0
    %1950 = vmatprep.subr.mxu0 0.0
    %1951 = vmatpush2.xpose.msra.mxu0 0.0
    %1952 = vmatprep.subr.mxu0 0.0
    %1953 = vmatpush2.xpose.msra.mxu0 0.0
    %1954 = vmatprep.subr.mxu0 0.0
    %1955 = vmatpush2.xpose.msra.mxu0 0.0
    %1956 = vmatprep.subr.mxu0 0.0
    %1957 = vmatpush2.xpose.msra.mxu0 0.0
    %1958 = vmatprep.subr.mxu0 0.0
    %1959 = vmatpush2.xpose.msra.mxu0 0.0
    %1960 = vmatprep.subr.mxu0 0.0
    %1961 = vmatpush2.xpose.msra.mxu0 0.0
    %1962 = vmatprep.subr.mxu0 0.0
    %1963 = vmatpush2.xpose.msra.mxu0 0.0
    %1964 = vmatprep.subr.mxu0 0.0
    %1965 = vmatpush2.xpose.msra.mxu0 0.0
    %1966 = vmatprep.subr.mxu0 0.0
    %1967 = vmatpush2.xpose.msra.mxu0 0.0
    %1968 = vmatprep.subr.mxu0 0.0
    %1969 = vmatpush2.xpose.msra.mxu0 0.0
    %1970 = vmatprep.subr.mxu0 0.0
    %1971 = vmatpush2.xpose.msra.mxu0 0.0
    %1972 = vmatprep.subr.mxu0 0.0
    %1973 = vmatpush2.xpose.msra.mxu0 0.0
    %1974 = vmatprep.subr.mxu0 0.0
    %1975 = vmatpush2.xpose.msra.mxu0 0.0
    %1976 = vmatprep.subr.mxu0 0.0
    %1977 = vmatpush2.xpose.msra.mxu0 0.0
    %1978 = vmatprep.mubr.f32.mxu0 0.0
    %1979 = vmatmul.mubr.f32.gmra.mxu0 %v1483
    %v1980 = vpop.f32.mrf.mxu0
    %v1981 = vadd.f32 %v843, %v1980
    %v1982 = vpop.f32.mrf.mxu0
    %1983 = vmatprep.mubr.f32.mxu0 0.0
    %1984 = vmatmul.mubr.f32.gmra.mxu0 %v1486
    %v1985 = vpop.f32.mrf.mxu0
    %v1986 = vadd.f32 %v848, %v1985
    %v1987 = vpop.f32.mrf.mxu0
    %1988 = vmatprep.mubr.f32.mxu0 0.0
    %1989 = vmatmul.mubr.f32.gmra.mxu0 %v1489
    %v1990 = vpop.f32.mrf.mxu0
    %v1991 = vadd.f32 %v853, %v1990
    %v1992 = vpop.f32.mrf.mxu0
    %1993 = vmatprep.mubr.f32.mxu0 0.0
    %1994 = vmatmul.mubr.f32.gmra.mxu0 %v1492
    %v1995 = vpop.f32.mrf.mxu0
    %v1996 = vadd.f32 %v858, %v1995
    %v1997 = vpop.f32.mrf.mxu0
    %1998 = vmatprep.mubr.f32.mxu0 0.0
    %1999 = vmatmul.mubr.f32.gmra.mxu0 %v1495
    %v2000 = vpop.f32.mrf.mxu0
    %v2001 = vadd.f32 %v863, %v2000
    %v2002 = vpop.f32.mrf.mxu0
    %2003 = vmatprep.mubr.f32.mxu0 0.0
    %2004 = vmatmul.mubr.f32.gmra.mxu0 %v1498
    %v2005 = vpop.f32.mrf.mxu0
    %v2006 = vadd.f32 %v868, %v2005
    %v2007 = vpop.f32.mrf.mxu0
    %2008 = vmatprep.mubr.f32.mxu0 0.0
    %2009 = vmatmul.mubr.f32.gmra.mxu0 %v1501
    %v2010 = vpop.f32.mrf.mxu0
    %v2011 = vadd.f32 %v873, %v2010
    %v2012 = vpop.f32.mrf.mxu0
    %2013 = vmatprep.mubr.f32.mxu0 0.0
    %2014 = vmatmul.mubr.f32.gmra.mxu0 %v1504
    %v2015 = vpop.f32.mrf.mxu0
    %v2016 = vadd.f32 %v878, %v2015
    %v2017 = vpop.f32.mrf.mxu0
    %2018 = vmatprep.mubr.f32.mxu0 0.0
    %2019 = vmatmul.mubr.f32.gmra.mxu0 %v1507
    %v2020 = vpop.f32.mrf.mxu0
    %v2021 = vadd.f32 %v883, %v2020
    %v2022 = vpop.f32.mrf.mxu0
    %2023 = vmatprep.mubr.f32.mxu0 0.0
    %2024 = vmatmul.mubr.f32.gmra.mxu0 %v1510
    %v2025 = vpop.f32.mrf.mxu0
    %v2026 = vadd.f32 %v888, %v2025
    %v2027 = vpop.f32.mrf.mxu0
    %2028 = vmatprep.mubr.f32.mxu0 0.0
    %2029 = vmatmul.mubr.f32.gmra.mxu0 %v1513
    %v2030 = vpop.f32.mrf.mxu0
    %v2031 = vadd.f32 %v893, %v2030
    %v2032 = vpop.f32.mrf.mxu0
    %2033 = vmatprep.mubr.f32.mxu0 0.0
    %2034 = vmatmul.mubr.f32.gmra.mxu0 %v1516
    %v2035 = vpop.f32.mrf.mxu0
    %v2036 = vadd.f32 %v898, %v2035
    %v2037 = vpop.f32.mrf.mxu0
    %2038 = vmatprep.mubr.f32.mxu0 0.0
    %2039 = vmatmul.mubr.f32.gmra.mxu0 %v1519
    %v2040 = vpop.f32.mrf.mxu0
    %v2041 = vadd.f32 %v903, %v2040
    %v2042 = vpop.f32.mrf.mxu0
    %2043 = vmatprep.mubr.f32.mxu0 0.0
    %2044 = vmatmul.mubr.f32.gmra.mxu0 %v1522
    %v2045 = vpop.f32.mrf.mxu0
    %v2046 = vadd.f32 %v908, %v2045
    %v2047 = vpop.f32.mrf.mxu0
    %2048 = vmatprep.mubr.f32.mxu0 0.0
    %2049 = vmatmul.mubr.f32.gmra.mxu0 %v1525
    %v2050 = vpop.f32.mrf.mxu0
    %v2051 = vadd.f32 %v913, %v2050
    %v2052 = vpop.f32.mrf.mxu0
    %2053 = vmatprep.mubr.f32.mxu0 0.0
    %2054 = vmatmul.mubr.f32.gmra.mxu0 %v1528
    %v2055 = vpop.f32.mrf.mxu0
    %v2056 = vadd.f32 %v918, %v2055
    %v2057 = vpop.f32.mrf.mxu0
    %2058 = vmatprep.mubr.f32.mxu0 0.0
    %2059 = vmatmul.mubr.f32.gmra.mxu0 %v1531
    %v2060 = vpop.f32.mrf.mxu0
    %v2061 = vadd.f32 %v923, %v2060
    %v2062 = vpop.f32.mrf.mxu0
    %2063 = vmatprep.mubr.f32.mxu0 0.0
    %2064 = vmatmul.mubr.f32.gmra.mxu0 %v1534
    %v2065 = vpop.f32.mrf.mxu0
    %v2066 = vadd.f32 %v928, %v2065
    %v2067 = vpop.f32.mrf.mxu0
    %2068 = vmatprep.mubr.f32.mxu0 0.0
    %2069 = vmatmul.mubr.f32.gmra.mxu0 %v1537
    %v2070 = vpop.f32.mrf.mxu0
    %v2071 = vadd.f32 %v933, %v2070
    %v2072 = vpop.f32.mrf.mxu0
    %2073 = vmatprep.mubr.f32.mxu0 0.0
    %2074 = vmatmul.mubr.f32.gmra.mxu0 %v1540
    %v2075 = vpop.f32.mrf.mxu0
    %v2076 = vadd.f32 %v938, %v2075
    %v2077 = vpop.f32.mrf.mxu0
    %2078 = vmatprep.mubr.f32.mxu0 0.0
    %2079 = vmatmul.mubr.f32.gmra.mxu0 %v1543
    %v2080 = vpop.f32.mrf.mxu0
    %v2081 = vadd.f32 %v943, %v2080
    %v2082 = vpop.f32.mrf.mxu0
    %2083 = vmatprep.mubr.f32.mxu0 0.0
    %2084 = vmatmul.mubr.f32.gmra.mxu0 %v1546
    %v2085 = vpop.f32.mrf.mxu0
    %v2086 = vadd.f32 %v948, %v2085
    %v2087 = vpop.f32.mrf.mxu0
    %2088 = vmatprep.mubr.f32.mxu0 0.0
    %2089 = vmatmul.mubr.f32.gmra.mxu0 %v1549
    %v2090 = vpop.f32.mrf.mxu0
    %v2091 = vadd.f32 %v953, %v2090
    %v2092 = vpop.f32.mrf.mxu0
    %2093 = vmatprep.mubr.f32.mxu0 0.0
    %2094 = vmatmul.mubr.f32.gmra.mxu0 %v1552
    %v2095 = vpop.f32.mrf.mxu0
    %v2096 = vadd.f32 %v958, %v2095
    %v2097 = vpop.f32.mrf.mxu0
    %2098 = vmatprep.mubr.f32.mxu0 0.0
    %2099 = vmatmul.mubr.f32.gmra.mxu0 %v1555
    %v2100 = vpop.f32.mrf.mxu0
    %v2101 = vadd.f32 %v963, %v2100
    %v2102 = vpop.f32.mrf.mxu0
    %2103 = vmatprep.mubr.f32.mxu0 0.0
    %2104 = vmatmul.mubr.f32.gmra.mxu0 %v1558
    %v2105 = vpop.f32.mrf.mxu0
    %v2106 = vadd.f32 %v968, %v2105
    %v2107 = vpop.f32.mrf.mxu0
    %2108 = vmatprep.mubr.f32.mxu0 0.0
    %2109 = vmatmul.mubr.f32.gmra.mxu0 %v1561
    %v2110 = vpop.f32.mrf.mxu0
    %v2111 = vadd.f32 %v973, %v2110
    %v2112 = vpop.f32.mrf.mxu0
    %2113 = vmatprep.mubr.f32.mxu0 0.0
    %2114 = vmatmul.mubr.f32.gmra.mxu0 %v1564
    %v2115 = vpop.f32.mrf.mxu0
    %v2116 = vadd.f32 %v978, %v2115
    %v2117 = vpop.f32.mrf.mxu0
    %2118 = vmatprep.mubr.f32.mxu0 0.0
    %2119 = vmatmul.mubr.f32.gmra.mxu0 %v1567
    %v2120 = vpop.f32.mrf.mxu0
    %v2121 = vadd.f32 %v983, %v2120
    %v2122 = vpop.f32.mrf.mxu0
    %2123 = vmatprep.mubr.f32.mxu0 0.0
    %2124 = vmatmul.mubr.f32.gmra.mxu0 %v1570
    %v2125 = vpop.f32.mrf.mxu0
    %v2126 = vadd.f32 %v988, %v2125
    %v2127 = vpop.f32.mrf.mxu0
    %2128 = vmatprep.mubr.f32.mxu0 0.0
    %2129 = vmatmul.mubr.f32.gmra.mxu0 %v1573
    %v2130 = vpop.f32.mrf.mxu0
    %v2131 = vadd.f32 %v993, %v2130
    %v2132 = vpop.f32.mrf.mxu0
    %2133 = vmatprep.mubr.f32.mxu0 0.0
    %2134 = vmatmul.mubr.f32.gmra.mxu0 %v1576
    %v2135 = vpop.f32.mrf.mxu0
    %v2136 = vadd.f32 %v998, %v2135
    %v2137 = vpop.f32.mrf.mxu0
    %2138 = vmatprep.mubr.f32.mxu0 0.0
    %2139 = vmatmul.mubr.f32.gmra.mxu0 %v1579
    %v2140 = vpop.f32.mrf.mxu0
    %v2141 = vadd.f32 %v1003, %v2140
    %v2142 = vpop.f32.mrf.mxu0
    %2143 = vmatprep.mubr.f32.mxu0 0.0
    %2144 = vmatmul.mubr.f32.gmra.mxu0 %v1582
    %v2145 = vpop.f32.mrf.mxu0
    %v2146 = vadd.f32 %v1008, %v2145
    %v2147 = vpop.f32.mrf.mxu0
    %2148 = vmatprep.mubr.f32.mxu0 0.0
    %2149 = vmatmul.mubr.f32.gmra.mxu0 %v1585
    %v2150 = vpop.f32.mrf.mxu0
    %v2151 = vadd.f32 %v1013, %v2150
    %v2152 = vpop.f32.mrf.mxu0
    %2153 = vmatprep.mubr.f32.mxu0 0.0
    %2154 = vmatmul.mubr.f32.gmra.mxu0 %v1588
    %v2155 = vpop.f32.mrf.mxu0
    %v2156 = vadd.f32 %v1018, %v2155
    %v2157 = vpop.f32.mrf.mxu0
    %2158 = vmatprep.mubr.f32.mxu0 0.0
    %2159 = vmatmul.mubr.f32.gmra.mxu0 %v1591
    %v2160 = vpop.f32.mrf.mxu0
    %v2161 = vadd.f32 %v1023, %v2160
    %v2162 = vpop.f32.mrf.mxu0
    %2163 = vmatprep.mubr.f32.mxu0 0.0
    %2164 = vmatmul.mubr.f32.gmra.mxu0 %v1594
    %v2165 = vpop.f32.mrf.mxu0
    %v2166 = vadd.f32 %v1028, %v2165
    %v2167 = vpop.f32.mrf.mxu0
    %2168 = vmatprep.mubr.f32.mxu0 0.0
    %2169 = vmatmul.mubr.f32.gmra.mxu0 %v1597
    %v2170 = vpop.f32.mrf.mxu0
    %v2171 = vadd.f32 %v1033, %v2170
    %v2172 = vpop.f32.mrf.mxu0
    %2173 = vmatprep.mubr.f32.mxu0 0.0
    %2174 = vmatmul.mubr.f32.gmra.mxu0 %v1600
    %v2175 = vpop.f32.mrf.mxu0
    %v2176 = vadd.f32 %v1038, %v2175
    %v2177 = vpop.f32.mrf.mxu0
    %2178 = vmatprep.mubr.f32.mxu0 0.0
    %2179 = vmatmul.mubr.f32.gmra.mxu0 %v1603
    %v2180 = vpop.f32.mrf.mxu0
    %v2181 = vadd.f32 %v1043, %v2180
    %v2182 = vpop.f32.mrf.mxu0
    %2183 = vmatprep.mubr.f32.mxu0 0.0
    %2184 = vmatmul.mubr.f32.gmra.mxu0 %v1606
    %v2185 = vpop.f32.mrf.mxu0
    %v2186 = vadd.f32 %v1048, %v2185
    %v2187 = vpop.f32.mrf.mxu0
    %2188 = vmatprep.mubr.f32.mxu0 0.0
    %2189 = vmatmul.mubr.f32.gmra.mxu0 %v1609
    %v2190 = vpop.f32.mrf.mxu0
    %v2191 = vadd.f32 %v1053, %v2190
    %v2192 = vpop.f32.mrf.mxu0
    %2193 = vmatprep.mubr.f32.mxu0 0.0
    %2194 = vmatmul.mubr.f32.gmra.mxu0 %v1612
    %v2195 = vpop.f32.mrf.mxu0
    %v2196 = vadd.f32 %v1058, %v2195
    %v2197 = vpop.f32.mrf.mxu0
    %2198 = vmatprep.mubr.f32.mxu0 0.0
    %2199 = vmatmul.mubr.f32.gmra.mxu0 %v1615
    %v2200 = vpop.f32.mrf.mxu0
    %v2201 = vadd.f32 %v1063, %v2200
    %v2202 = vpop.f32.mrf.mxu0
    %2203 = vmatprep.mubr.f32.mxu0 0.0
    %2204 = vmatmul.mubr.f32.gmra.mxu0 %v1618
    %v2205 = vpop.f32.mrf.mxu0
    %v2206 = vadd.f32 %v1068, %v2205
    %v2207 = vpop.f32.mrf.mxu0
    %2208 = vmatprep.mubr.f32.mxu0 0.0
    %2209 = vmatmul.mubr.f32.gmra.mxu0 %v1621
    %v2210 = vpop.f32.mrf.mxu0
    %v2211 = vadd.f32 %v1073, %v2210
    %v2212 = vpop.f32.mrf.mxu0
    %2213 = vmatprep.mubr.f32.mxu0 0.0
    %2214 = vmatmul.mubr.f32.gmra.mxu0 %v1624
    %v2215 = vpop.f32.mrf.mxu0
    %v2216 = vadd.f32 %v1078, %v2215
    %v2217 = vpop.f32.mrf.mxu0
    %2218 = vmatprep.mubr.f32.mxu0 0.0
    %2219 = vmatmul.mubr.f32.gmra.mxu0 %v1627
    %v2220 = vpop.f32.mrf.mxu0
    %v2221 = vadd.f32 %v1083, %v2220
    %v2222 = vpop.f32.mrf.mxu0
    %2223 = vmatprep.mubr.f32.mxu0 0.0
    %2224 = vmatmul.mubr.f32.gmra.mxu0 %v1630
    %v2225 = vpop.f32.mrf.mxu0
    %v2226 = vadd.f32 %v1088, %v2225
    %v2227 = vpop.f32.mrf.mxu0
    %2228 = vmatprep.mubr.f32.mxu0 0.0
    %2229 = vmatmul.mubr.f32.gmra.mxu0 %v1633
    %v2230 = vpop.f32.mrf.mxu0
    %v2231 = vadd.f32 %v1093, %v2230
    %v2232 = vpop.f32.mrf.mxu0
    %2233 = vmatprep.mubr.f32.mxu0 0.0
    %2234 = vmatmul.mubr.f32.gmra.mxu0 %v1636
    %v2235 = vpop.f32.mrf.mxu0
    %v2236 = vadd.f32 %v1098, %v2235
    %v2237 = vpop.f32.mrf.mxu0
    %2238 = vmatprep.mubr.f32.mxu0 0.0
    %2239 = vmatmul.mubr.f32.gmra.mxu0 %v1639
    %v2240 = vpop.f32.mrf.mxu0
    %v2241 = vadd.f32 %v1103, %v2240
    %v2242 = vpop.f32.mrf.mxu0
    %2243 = vmatprep.mubr.f32.mxu0 0.0
    %2244 = vmatmul.mubr.f32.gmra.mxu0 %v1642
    %v2245 = vpop.f32.mrf.mxu0
    %v2246 = vadd.f32 %v1108, %v2245
    %v2247 = vpop.f32.mrf.mxu0
    %2248 = vmatprep.mubr.f32.mxu0 0.0
    %2249 = vmatmul.mubr.f32.gmra.mxu0 %v1645
    %v2250 = vpop.f32.mrf.mxu0
    %v2251 = vadd.f32 %v1113, %v2250
    %v2252 = vpop.f32.mrf.mxu0
    %2253 = vmatprep.mubr.f32.mxu0 0.0
    %2254 = vmatmul.mubr.f32.gmra.mxu0 %v1648
    %v2255 = vpop.f32.mrf.mxu0
    %v2256 = vadd.f32 %v1118, %v2255
    %v2257 = vpop.f32.mrf.mxu0
    %2258 = vmatprep.mubr.f32.mxu0 0.0
    %2259 = vmatmul.mubr.f32.gmra.mxu0 %v1651
    %v2260 = vpop.f32.mrf.mxu0
    %v2261 = vadd.f32 %v1123, %v2260
    %v2262 = vpop.f32.mrf.mxu0
    %2263 = vmatprep.mubr.f32.mxu0 0.0
    %2264 = vmatmul.mubr.f32.gmra.mxu0 %v1654
    %v2265 = vpop.f32.mrf.mxu0
    %v2266 = vadd.f32 %v1128, %v2265
    %v2267 = vpop.f32.mrf.mxu0
    %2268 = vmatprep.mubr.f32.mxu0 0.0
    %2269 = vmatmul.mubr.f32.gmra.mxu0 %v1657
    %v2270 = vpop.f32.mrf.mxu0
    %v2271 = vadd.f32 %v1133, %v2270
    %v2272 = vpop.f32.mrf.mxu0
    %2273 = vmatprep.mubr.f32.mxu0 0.0
    %2274 = vmatmul.mubr.f32.gmra.mxu0 %v1660
    %v2275 = vpop.f32.mrf.mxu0
    %v2276 = vadd.f32 %v1138, %v2275
    %v2277 = vpop.f32.mrf.mxu0
    %2278 = vmatprep.mubr.f32.mxu0 0.0
    %2279 = vmatmul.mubr.f32.gmra.mxu0 %v1663
    %v2280 = vpop.f32.mrf.mxu0
    %v2281 = vadd.f32 %v1143, %v2280
    %v2282 = vpop.f32.mrf.mxu0
    %2283 = vmatprep.mubr.f32.mxu0 0.0
    %2284 = vmatmul.mubr.f32.gmra.mxu0 %v1666
    %v2285 = vpop.f32.mrf.mxu0
    %v2286 = vadd.f32 %v1148, %v2285
    %v2287 = vpop.f32.mrf.mxu0
    %2288 = vmatprep.mubr.f32.mxu0 0.0
    %2289 = vmatmul.mubr.f32.gmra.mxu0 %v1669
    %v2290 = vpop.f32.mrf.mxu0
    %v2291 = vadd.f32 %v1153, %v2290
    %v2292 = vpop.f32.mrf.mxu0
    %2293 = vmatprep.mubr.f32.mxu0 0.0
    %2294 = vmatmul.mubr.f32.gmra.mxu0 %v1672
    %v2295 = vpop.f32.mrf.mxu0
    %v2296 = vadd.f32 %v1158, %v2295
    %v2297 = vpop.f32.mrf.mxu0
    %2298 = vmatprep.mubr.f32.mxu0 0.0
    %2299 = vmatmul.mubr.f32.gmra.mxu0 %v1675
    %v2300 = vpop.f32.mrf.mxu0
    %v2301 = vadd.f32 %v1163, %v2300
    %v2302 = vpop.f32.mrf.mxu0
    %2303 = vmatprep.mubr.f32.mxu0 0.0
    %2304 = vmatmul.mubr.f32.gmra.mxu0 %v1678
    %v2305 = vpop.f32.mrf.mxu0
    %v2306 = vadd.f32 %v1168, %v2305
    %v2307 = vpop.f32.mrf.mxu0
    %2308 = vmatprep.mubr.f32.mxu0 0.0
    %2309 = vmatmul.mubr.f32.gmra.mxu0 %v1681
    %v2310 = vpop.f32.mrf.mxu0
    %v2311 = vadd.f32 %v1173, %v2310
    %v2312 = vpop.f32.mrf.mxu0
    %2313 = vmatprep.mubr.f32.mxu0 0.0
    %2314 = vmatmul.mubr.f32.gmra.mxu0 %v1684
    %v2315 = vpop.f32.mrf.mxu0
    %v2316 = vadd.f32 %v1178, %v2315
    %v2317 = vpop.f32.mrf.mxu0
    %2318 = vmatprep.mubr.f32.mxu0 0.0
    %2319 = vmatmul.mubr.f32.gmra.mxu0 %v1687
    %v2320 = vpop.f32.mrf.mxu0
    %v2321 = vadd.f32 %v1183, %v2320
    %v2322 = vpop.f32.mrf.mxu0
    %2323 = vmatprep.mubr.f32.mxu0 0.0
    %2324 = vmatmul.mubr.f32.gmra.mxu0 %v1690
    %v2325 = vpop.f32.mrf.mxu0
    %v2326 = vadd.f32 %v1188, %v2325
    %v2327 = vpop.f32.mrf.mxu0
    %2328 = vmatprep.mubr.f32.mxu0 0.0
    %2329 = vmatmul.mubr.f32.gmra.mxu0 %v1693
    %v2330 = vpop.f32.mrf.mxu0
    %v2331 = vadd.f32 %v1193, %v2330
    %v2332 = vpop.f32.mrf.mxu0
    %2333 = vmatprep.mubr.f32.mxu0 0.0
    %2334 = vmatmul.mubr.f32.gmra.mxu0 %v1696
    %v2335 = vpop.f32.mrf.mxu0
    %v2336 = vadd.f32 %v1198, %v2335
    %v2337 = vpop.f32.mrf.mxu0
    %2338 = vmatprep.mubr.f32.mxu0 0.0
    %2339 = vmatmul.mubr.f32.gmra.mxu0 %v1699
    %v2340 = vpop.f32.mrf.mxu0
    %v2341 = vadd.f32 %v1203, %v2340
    %v2342 = vpop.f32.mrf.mxu0
    %2343 = vmatprep.mubr.f32.mxu0 0.0
    %2344 = vmatmul.mubr.f32.gmra.mxu0 %v1702
    %v2345 = vpop.f32.mrf.mxu0
    %v2346 = vadd.f32 %v1208, %v2345
    %v2347 = vpop.f32.mrf.mxu0
    %2348 = vmatprep.mubr.f32.mxu0 0.0
    %2349 = vmatmul.mubr.f32.gmra.mxu0 %v1705
    %v2350 = vpop.f32.mrf.mxu0
    %v2351 = vadd.f32 %v1213, %v2350
    %v2352 = vpop.f32.mrf.mxu0
    %2353 = vmatprep.mubr.f32.mxu0 0.0
    %2354 = vmatmul.mubr.f32.gmra.mxu0 %v1708
    %v2355 = vpop.f32.mrf.mxu0
    %v2356 = vadd.f32 %v1218, %v2355
    %v2357 = vpop.f32.mrf.mxu0
    %2358 = vmatprep.mubr.f32.mxu0 0.0
    %2359 = vmatmul.mubr.f32.gmra.mxu0 %v1711
    %v2360 = vpop.f32.mrf.mxu0
    %v2361 = vadd.f32 %v1223, %v2360
    %v2362 = vpop.f32.mrf.mxu0
    %2363 = vmatprep.mubr.f32.mxu0 0.0
    %2364 = vmatmul.mubr.f32.gmra.mxu0 %v1714
    %v2365 = vpop.f32.mrf.mxu0
    %v2366 = vadd.f32 %v1228, %v2365
    %v2367 = vpop.f32.mrf.mxu0
    %2368 = vmatprep.mubr.f32.mxu0 0.0
    %2369 = vmatmul.mubr.f32.gmra.mxu0 %v1717
    %v2370 = vpop.f32.mrf.mxu0
    %v2371 = vadd.f32 %v1233, %v2370
    %v2372 = vpop.f32.mrf.mxu0
    %2373 = vmatprep.mubr.f32.mxu0 0.0
    %2374 = vmatmul.mubr.f32.gmra.mxu0 %v1720
    %v2375 = vpop.f32.mrf.mxu0
    %v2376 = vadd.f32 %v1238, %v2375
    %v2377 = vpop.f32.mrf.mxu0
    %2378 = vmatprep.mubr.f32.mxu0 0.0
    %2379 = vmatmul.mubr.f32.gmra.mxu0 %v1723
    %v2380 = vpop.f32.mrf.mxu0
    %v2381 = vadd.f32 %v1243, %v2380
    %v2382 = vpop.f32.mrf.mxu0
    %2383 = vmatprep.mubr.f32.mxu0 0.0
    %2384 = vmatmul.mubr.f32.gmra.mxu0 %v1726
    %v2385 = vpop.f32.mrf.mxu0
    %v2386 = vadd.f32 %v1248, %v2385
    %v2387 = vpop.f32.mrf.mxu0
    %2388 = vmatprep.mubr.f32.mxu0 0.0
    %2389 = vmatmul.mubr.f32.gmra.mxu0 %v1729
    %v2390 = vpop.f32.mrf.mxu0
    %v2391 = vadd.f32 %v1253, %v2390
    %v2392 = vpop.f32.mrf.mxu0
    %2393 = vmatprep.mubr.f32.mxu0 0.0
    %2394 = vmatmul.mubr.f32.gmra.mxu0 %v1732
    %v2395 = vpop.f32.mrf.mxu0
    %v2396 = vadd.f32 %v1258, %v2395
    %v2397 = vpop.f32.mrf.mxu0
    %2398 = vmatprep.mubr.f32.mxu0 0.0
    %2399 = vmatmul.mubr.f32.gmra.mxu0 %v1735
    %v2400 = vpop.f32.mrf.mxu0
    %v2401 = vadd.f32 %v1263, %v2400
    %v2402 = vpop.f32.mrf.mxu0
    %2403 = vmatprep.mubr.f32.mxu0 0.0
    %2404 = vmatmul.mubr.f32.gmra.mxu0 %v1738
    %v2405 = vpop.f32.mrf.mxu0
    %v2406 = vadd.f32 %v1268, %v2405
    %v2407 = vpop.f32.mrf.mxu0
    %2408 = vmatprep.mubr.f32.mxu0 0.0
    %2409 = vmatmul.mubr.f32.gmra.mxu0 %v1741
    %v2410 = vpop.f32.mrf.mxu0
    %v2411 = vadd.f32 %v1273, %v2410
    %v2412 = vpop.f32.mrf.mxu0
    %2413 = vmatprep.mubr.f32.mxu0 0.0
    %2414 = vmatmul.mubr.f32.gmra.mxu0 %v1744
    %v2415 = vpop.f32.mrf.mxu0
    %v2416 = vadd.f32 %v1278, %v2415
    %v2417 = vpop.f32.mrf.mxu0
    %2418 = vmatprep.mubr.f32.mxu0 0.0
    %2419 = vmatmul.mubr.f32.gmra.mxu0 %v1747
    %v2420 = vpop.f32.mrf.mxu0
    %v2421 = vadd.f32 %v1283, %v2420
    %v2422 = vpop.f32.mrf.mxu0
    %2423 = vmatprep.mubr.f32.mxu0 0.0
    %2424 = vmatmul.mubr.f32.gmra.mxu0 %v1750
    %v2425 = vpop.f32.mrf.mxu0
    %v2426 = vadd.f32 %v1288, %v2425
    %v2427 = vpop.f32.mrf.mxu0
    %2428 = vmatprep.mubr.f32.mxu0 0.0
    %2429 = vmatmul.mubr.f32.gmra.mxu0 %v1753
    %v2430 = vpop.f32.mrf.mxu0
    %v2431 = vadd.f32 %v1293, %v2430
    %v2432 = vpop.f32.mrf.mxu0
    %2433 = vmatprep.mubr.f32.mxu0 0.0
    %2434 = vmatmul.mubr.f32.gmra.mxu0 %v1756
    %v2435 = vpop.f32.mrf.mxu0
    %v2436 = vadd.f32 %v1298, %v2435
    %v2437 = vpop.f32.mrf.mxu0
    %2438 = vmatprep.mubr.f32.mxu0 0.0
    %2439 = vmatmul.mubr.f32.gmra.mxu0 %v1759
    %v2440 = vpop.f32.mrf.mxu0
    %v2441 = vadd.f32 %v1303, %v2440
    %v2442 = vpop.f32.mrf.mxu0
    %2443 = vmatprep.mubr.f32.mxu0 0.0
    %2444 = vmatmul.mubr.f32.gmra.mxu0 %v1762
    %v2445 = vpop.f32.mrf.mxu0
    %v2446 = vadd.f32 %v1308, %v2445
    %v2447 = vpop.f32.mrf.mxu0
    %2448 = vmatprep.mubr.f32.mxu0 0.0
    %2449 = vmatmul.mubr.f32.gmra.mxu0 %v1765
    %v2450 = vpop.f32.mrf.mxu0
    %v2451 = vadd.f32 %v1313, %v2450
    %v2452 = vpop.f32.mrf.mxu0
    %2453 = vmatprep.mubr.f32.mxu0 0.0
    %2454 = vmatmul.mubr.f32.gmra.mxu0 %v1768
    %v2455 = vpop.f32.mrf.mxu0
    %v2456 = vadd.f32 %v1318, %v2455
    %v2457 = vpop.f32.mrf.mxu0
    %2458 = vmatprep.mubr.f32.mxu0 0.0
    %2459 = vmatmul.mubr.f32.gmra.mxu0 %v1771
    %v2460 = vpop.f32.mrf.mxu0
    %v2461 = vadd.f32 %v1323, %v2460
    %v2462 = vpop.f32.mrf.mxu0
    %2463 = vmatprep.mubr.f32.mxu0 0.0
    %2464 = vmatmul.mubr.f32.gmra.mxu0 %v1774
    %v2465 = vpop.f32.mrf.mxu0
    %v2466 = vadd.f32 %v1328, %v2465
    %v2467 = vpop.f32.mrf.mxu0
    %2468 = vmatprep.mubr.f32.mxu0 0.0
    %2469 = vmatmul.mubr.f32.gmra.mxu0 %v1777
    %v2470 = vpop.f32.mrf.mxu0
    %v2471 = vadd.f32 %v1333, %v2470
    %v2472 = vpop.f32.mrf.mxu0
    %2473 = vmatprep.mubr.f32.mxu0 0.0
    %2474 = vmatmul.mubr.f32.gmra.mxu0 %v1780
    %v2475 = vpop.f32.mrf.mxu0
    %v2476 = vadd.f32 %v1338, %v2475
    %v2477 = vpop.f32.mrf.mxu0
    %2478 = vmatprep.mubr.f32.mxu0 0.0
    %2479 = vmatmul.mubr.f32.gmra.mxu0 %v1783
    %v2480 = vpop.f32.mrf.mxu0
    %v2481 = vadd.f32 %v1343, %v2480
    %v2482 = vpop.f32.mrf.mxu0
    %2483 = vmatprep.mubr.f32.mxu0 0.0
    %2484 = vmatmul.mubr.f32.gmra.mxu0 %v1786
    %v2485 = vpop.f32.mrf.mxu0
    %v2486 = vadd.f32 %v1348, %v2485
    %v2487 = vpop.f32.mrf.mxu0
    %2488 = vmatprep.mubr.f32.mxu0 0.0
    %2489 = vmatmul.mubr.f32.gmra.mxu0 %v1789
    %v2490 = vpop.f32.mrf.mxu0
    %v2491 = vadd.f32 %v1353, %v2490
    %v2492 = vpop.f32.mrf.mxu0
    %2493 = vmatprep.mubr.f32.mxu0 0.0
    %2494 = vmatmul.mubr.f32.gmra.mxu0 %v1792
    %v2495 = vpop.f32.mrf.mxu0
    %v2496 = vadd.f32 %v1358, %v2495
    %v2497 = vpop.f32.mrf.mxu0
    %2498 = vmatprep.mubr.f32.mxu0 0.0
    %2499 = vmatmul.mubr.f32.gmra.mxu0 %v1795
    %v2500 = vpop.f32.mrf.mxu0
    %v2501 = vadd.f32 %v1363, %v2500
    %v2502 = vpop.f32.mrf.mxu0
    %2503 = vmatprep.mubr.f32.mxu0 0.0
    %2504 = vmatmul.mubr.f32.gmra.mxu0 %v1798
    %v2505 = vpop.f32.mrf.mxu0
    %v2506 = vadd.f32 %v1368, %v2505
    %v2507 = vpop.f32.mrf.mxu0
    %2508 = vmatprep.mubr.f32.mxu0 0.0
    %2509 = vmatmul.mubr.f32.gmra.mxu0 %v1801
    %v2510 = vpop.f32.mrf.mxu0
    %v2511 = vadd.f32 %v1373, %v2510
    %v2512 = vpop.f32.mrf.mxu0
    %2513 = vmatprep.mubr.f32.mxu0 0.0
    %2514 = vmatmul.mubr.f32.gmra.mxu0 %v1804
    %v2515 = vpop.f32.mrf.mxu0
    %v2516 = vadd.f32 %v1378, %v2515
    %v2517 = vpop.f32.mrf.mxu0
    %2518 = vmatprep.mubr.f32.mxu0 0.0
    %2519 = vmatmul.mubr.f32.gmra.mxu0 %v1807
    %v2520 = vpop.f32.mrf.mxu0
    %v2521 = vadd.f32 %v1383, %v2520
    %v2522 = vpop.f32.mrf.mxu0
    %2523 = vmatprep.mubr.f32.mxu0 0.0
    %2524 = vmatmul.mubr.f32.gmra.mxu0 %v1810
    %v2525 = vpop.f32.mrf.mxu0
    %v2526 = vadd.f32 %v1388, %v2525
    %v2527 = vpop.f32.mrf.mxu0
    %2528 = vmatprep.mubr.f32.mxu0 0.0
    %2529 = vmatmul.mubr.f32.gmra.mxu0 %v1813
    %v2530 = vpop.f32.mrf.mxu0
    %v2531 = vadd.f32 %v1393, %v2530
    %v2532 = vpop.f32.mrf.mxu0
    %2533 = vmatprep.mubr.f32.mxu0 0.0
    %2534 = vmatmul.mubr.f32.gmra.mxu0 %v1816
    %v2535 = vpop.f32.mrf.mxu0
    %v2536 = vadd.f32 %v1398, %v2535
    %v2537 = vpop.f32.mrf.mxu0
    %2538 = vmatprep.mubr.f32.mxu0 0.0
    %2539 = vmatmul.mubr.f32.gmra.mxu0 %v1819
    %v2540 = vpop.f32.mrf.mxu0
    %v2541 = vadd.f32 %v1403, %v2540
    %v2542 = vpop.f32.mrf.mxu0
    %2543 = vmatprep.mubr.f32.mxu0 0.0
    %2544 = vmatmul.mubr.f32.gmra.mxu0 %v1822
    %v2545 = vpop.f32.mrf.mxu0
    %v2546 = vadd.f32 %v1408, %v2545
    %v2547 = vpop.f32.mrf.mxu0
    %2548 = vmatprep.mubr.f32.mxu0 0.0
    %2549 = vmatmul.mubr.f32.gmra.mxu0 %v1825
    %v2550 = vpop.f32.mrf.mxu0
    %v2551 = vadd.f32 %v1413, %v2550
    %v2552 = vpop.f32.mrf.mxu0
    %2553 = vmatprep.mubr.f32.mxu0 0.0
    %2554 = vmatmul.mubr.f32.gmra.mxu0 %v1828
    %v2555 = vpop.f32.mrf.mxu0
    %v2556 = vadd.f32 %v1418, %v2555
    %v2557 = vpop.f32.mrf.mxu0
    %2558 = vmatprep.mubr.f32.mxu0 0.0
    %2559 = vmatmul.mubr.f32.gmra.mxu0 %v1831
    %v2560 = vpop.f32.mrf.mxu0
    %v2561 = vadd.f32 %v1423, %v2560
    %v2562 = vpop.f32.mrf.mxu0
    %2563 = vmatprep.mubr.f32.mxu0 0.0
    %2564 = vmatmul.mubr.f32.gmra.mxu0 %v1834
    %v2565 = vpop.f32.mrf.mxu0
    %v2566 = vadd.f32 %v1428, %v2565
    %v2567 = vpop.f32.mrf.mxu0
    %2568 = vmatprep.mubr.f32.mxu0 0.0
    %2569 = vmatmul.mubr.f32.gmra.mxu0 %v1837
    %v2570 = vpop.f32.mrf.mxu0
    %v2571 = vadd.f32 %v1433, %v2570
    %v2572 = vpop.f32.mrf.mxu0
    %2573 = vmatprep.mubr.f32.mxu0 0.0
    %2574 = vmatmul.mubr.f32.gmra.mxu0 %v1840
    %v2575 = vpop.f32.mrf.mxu0
    %v2576 = vadd.f32 %v1438, %v2575
    %v2577 = vpop.f32.mrf.mxu0
    %2578 = vmatprep.mubr.f32.mxu0 0.0
    %2579 = vmatmul.mubr.f32.gmra.mxu0 %v1843
    %v2580 = vpop.f32.mrf.mxu0
    %v2581 = vadd.f32 %v1443, %v2580
    %v2582 = vpop.f32.mrf.mxu0
    %2583 = vmatprep.mubr.f32.mxu0 0.0
    %2584 = vmatmul.mubr.f32.gmra.mxu0 %v1846
    %v2585 = vpop.f32.mrf.mxu0
    %v2586 = vadd.f32 %v1448, %v2585
    %v2587 = vpop.f32.mrf.mxu0
    %2588 = vmatprep.mubr.f32.mxu0 0.0
    %2589 = vmatmul.mubr.f32.gmra.mxu0 %v1849
    %v2590 = vpop.f32.mrf.mxu0
    %v2591 = vadd.f32 %v1453, %v2590
    %v2592 = vpop.f32.mrf.mxu0
    %2593 = vmatprep.mubr.f32.mxu0 0.0
    %2594 = vmatmul.mubr.f32.gmra.mxu0 %v1852
    %v2595 = vpop.f32.mrf.mxu0
    %v2596 = vadd.f32 %v1458, %v2595
    %v2597 = vpop.f32.mrf.mxu0
    %2598 = vmatprep.mubr.f32.mxu0 0.0
    %2599 = vmatmul.mubr.f32.gmra.mxu0 %v1855
    %v2600 = vpop.f32.mrf.mxu0
    %v2601 = vadd.f32 %v1463, %v2600
    %v2602 = vpop.f32.mrf.mxu0
    %2603 = vmatprep.mubr.f32.mxu0 0.0
    %2604 = vmatmul.mubr.f32.gmra.mxu0 %v1858
    %v2605 = vpop.f32.mrf.mxu0
    %v2606 = vadd.f32 %v1468, %v2605
    %v2607 = vpop.f32.mrf.mxu0
    %2608 = vmatprep.mubr.f32.mxu0 0.0
    %2609 = vmatmul.mubr.f32.gmra.mxu0 %v1861
    %v2610 = vpop.f32.mrf.mxu0
    %v2611 = vadd.f32 %v1473, %v2610
    %v2612 = vpop.f32.mrf.mxu0
    %2613 = vmatprep.mubr.f32.mxu0 0.0
    %2614 = vmatmul.mubr.f32.gmra.mxu0 %v1864
    %v2615 = vpop.f32.mrf.mxu0
    %v2616 = vadd.f32 %v1478, %v2615
    %v2617 = vpop.f32.mrf.mxu0
    %2618 = vdwg.mxu0
    %v2619 = vld [vmem:[%s5] sm:$0xff]
    %v2620 = vld [vmem:[%s5 + $0x8] sm:$0xff]
    %v2621 = vld [vmem:[%s5 + $0x10] sm:$0xff]
    %v2622 = vld [vmem:[%s5 + $0x18] sm:$0xff]
    %v2623 = vld [vmem:[%s5 + $0x20] sm:$0xff]
    %v2624 = vld [vmem:[%s5 + $0x28] sm:$0xff]
    %v2625 = vld [vmem:[%s5 + $0x30] sm:$0xff]
    %v2626 = vld [vmem:[%s5 + $0x38] sm:$0xff]
    %v2627 = vld [vmem:[%s5 + $0x40] sm:$0xff]
    %v2628 = vld [vmem:[%s5 + $0x48] sm:$0xff]
    %v2629 = vld [vmem:[%s5 + $0x50] sm:$0xff]
    %v2630 = vld [vmem:[%s5 + $0x58] sm:$0xff]
    %v2631 = vld [vmem:[%s5 + $0x60] sm:$0xff]
    %v2632 = vld [vmem:[%s5 + $0x68] sm:$0xff]
    %v2633 = vld [vmem:[%s5 + $0x70] sm:$0xff]
    %v2634 = vld [vmem:[%s5 + $0x78] sm:$0xff]
    %v2635 = vld [vmem:[%s5 + $0x80] sm:$0xff]
    %v2636 = vld [vmem:[%s5 + $0x88] sm:$0xff]
    %v2637 = vld [vmem:[%s5 + $0x90] sm:$0xff]
    %v2638 = vld [vmem:[%s5 + $0x98] sm:$0xff]
    %v2639 = vld [vmem:[%s5 + $0xa0] sm:$0xff]
    %v2640 = vld [vmem:[%s5 + $0xa8] sm:$0xff]
    %v2641 = vld [vmem:[%s5 + $0xb0] sm:$0xff]
    %v2642 = vld [vmem:[%s5 + $0xb8] sm:$0xff]
    %v2643 = vld [vmem:[%s5 + $0xc0] sm:$0xff]
    %v2644 = vld [vmem:[%s5 + $0xc8] sm:$0xff]
    %v2645 = vld [vmem:[%s5 + $0xd0] sm:$0xff]
    %v2646 = vld [vmem:[%s5 + $0xd8] sm:$0xff]
    %v2647 = vld [vmem:[%s5 + $0xe0] sm:$0xff]
    %v2648 = vld [vmem:[%s5 + $0xe8] sm:$0xff]
    %v2649 = vld [vmem:[%s5 + $0xf0] sm:$0xff]
    %v2650 = vld [vmem:[%s5 + $0xf8] sm:$0xff]
    %v2651 = vld [vmem:[%s5 + $0x100] sm:$0xff]
    %v2652 = vld [vmem:[%s5 + $0x108] sm:$0xff]
    %v2653 = vld [vmem:[%s5 + $0x110] sm:$0xff]
    %v2654 = vld [vmem:[%s5 + $0x118] sm:$0xff]
    %v2655 = vld [vmem:[%s5 + $0x120] sm:$0xff]
    %v2656 = vld [vmem:[%s5 + $0x128] sm:$0xff]
    %v2657 = vld [vmem:[%s5 + $0x130] sm:$0xff]
    %v2658 = vld [vmem:[%s5 + $0x138] sm:$0xff]
    %v2659 = vld [vmem:[%s5 + $0x140] sm:$0xff]
    %v2660 = vld [vmem:[%s5 + $0x148] sm:$0xff]
    %v2661 = vld [vmem:[%s5 + $0x150] sm:$0xff]
    %v2662 = vld [vmem:[%s5 + $0x158] sm:$0xff]
    %v2663 = vld [vmem:[%s5 + $0x160] sm:$0xff]
    %v2664 = vld [vmem:[%s5 + $0x168] sm:$0xff]
    %v2665 = vld [vmem:[%s5 + $0x170] sm:$0xff]
    %v2666 = vld [vmem:[%s5 + $0x178] sm:$0xff]
    %v2667 = vld [vmem:[%s5 + $0x180] sm:$0xff]
    %v2668 = vld [vmem:[%s5 + $0x188] sm:$0xff]
    %v2669 = vld [vmem:[%s5 + $0x190] sm:$0xff]
    %v2670 = vld [vmem:[%s5 + $0x198] sm:$0xff]
    %v2671 = vld [vmem:[%s5 + $0x1a0] sm:$0xff]
    %v2672 = vld [vmem:[%s5 + $0x1a8] sm:$0xff]
    %v2673 = vld [vmem:[%s5 + $0x1b0] sm:$0xff]
    %v2674 = vld [vmem:[%s5 + $0x1b8] sm:$0xff]
    %v2675 = vld [vmem:[%s5 + $0x1c0] sm:$0xff]
    %v2676 = vld [vmem:[%s5 + $0x1c8] sm:$0xff]
    %v2677 = vld [vmem:[%s5 + $0x1d0] sm:$0xff]
    %v2678 = vld [vmem:[%s5 + $0x1d8] sm:$0xff]
    %v2679 = vld [vmem:[%s5 + $0x1e0] sm:$0xff]
    %v2680 = vld [vmem:[%s5 + $0x1e8] sm:$0xff]
    %v2681 = vld [vmem:[%s5 + $0x1f0] sm:$0xff]
    %v2682 = vld [vmem:[%s5 + $0x1f8] sm:$0xff]
    %v2683 = vld [vmem:[%s5 + $0x200] sm:$0xff]
    %v2684 = vld [vmem:[%s5 + $0x208] sm:$0xff]
    %v2685 = vld [vmem:[%s5 + $0x210] sm:$0xff]
    %v2686 = vld [vmem:[%s5 + $0x218] sm:$0xff]
    %v2687 = vld [vmem:[%s5 + $0x220] sm:$0xff]
    %v2688 = vld [vmem:[%s5 + $0x228] sm:$0xff]
    %v2689 = vld [vmem:[%s5 + $0x230] sm:$0xff]
    %v2690 = vld [vmem:[%s5 + $0x238] sm:$0xff]
    %v2691 = vld [vmem:[%s5 + $0x240] sm:$0xff]
    %v2692 = vld [vmem:[%s5 + $0x248] sm:$0xff]
    %v2693 = vld [vmem:[%s5 + $0x250] sm:$0xff]
    %v2694 = vld [vmem:[%s5 + $0x258] sm:$0xff]
    %v2695 = vld [vmem:[%s5 + $0x260] sm:$0xff]
    %v2696 = vld [vmem:[%s5 + $0x268] sm:$0xff]
    %v2697 = vld [vmem:[%s5 + $0x270] sm:$0xff]
    %v2698 = vld [vmem:[%s5 + $0x278] sm:$0xff]
    %v2699 = vld [vmem:[%s5 + $0x280] sm:$0xff]
    %v2700 = vld [vmem:[%s5 + $0x288] sm:$0xff]
    %v2701 = vld [vmem:[%s5 + $0x290] sm:$0xff]
    %v2702 = vld [vmem:[%s5 + $0x298] sm:$0xff]
    %v2703 = vld [vmem:[%s5 + $0x2a0] sm:$0xff]
    %v2704 = vld [vmem:[%s5 + $0x2a8] sm:$0xff]
    %v2705 = vld [vmem:[%s5 + $0x2b0] sm:$0xff]
    %v2706 = vld [vmem:[%s5 + $0x2b8] sm:$0xff]
    %v2707 = vld [vmem:[%s5 + $0x2c0] sm:$0xff]
    %v2708 = vld [vmem:[%s5 + $0x2c8] sm:$0xff]
    %v2709 = vld [vmem:[%s5 + $0x2d0] sm:$0xff]
    %v2710 = vld [vmem:[%s5 + $0x2d8] sm:$0xff]
    %v2711 = vld [vmem:[%s5 + $0x2e0] sm:$0xff]
    %v2712 = vld [vmem:[%s5 + $0x2e8] sm:$0xff]
    %v2713 = vld [vmem:[%s5 + $0x2f0] sm:$0xff]
    %v2714 = vld [vmem:[%s5 + $0x2f8] sm:$0xff]
    %v2715 = vld [vmem:[%s5 + $0x300] sm:$0xff]
    %v2716 = vld [vmem:[%s5 + $0x308] sm:$0xff]
    %v2717 = vld [vmem:[%s5 + $0x310] sm:$0xff]
    %v2718 = vld [vmem:[%s5 + $0x318] sm:$0xff]
    %v2719 = vld [vmem:[%s5 + $0x320] sm:$0xff]
    %v2720 = vld [vmem:[%s5 + $0x328] sm:$0xff]
    %v2721 = vld [vmem:[%s5 + $0x330] sm:$0xff]
    %v2722 = vld [vmem:[%s5 + $0x338] sm:$0xff]
    %v2723 = vld [vmem:[%s5 + $0x340] sm:$0xff]
    %v2724 = vld [vmem:[%s5 + $0x348] sm:$0xff]
    %v2725 = vld [vmem:[%s5 + $0x350] sm:$0xff]
    %v2726 = vld [vmem:[%s5 + $0x358] sm:$0xff]
    %v2727 = vld [vmem:[%s5 + $0x360] sm:$0xff]
    %v2728 = vld [vmem:[%s5 + $0x368] sm:$0xff]
    %v2729 = vld [vmem:[%s5 + $0x370] sm:$0xff]
    %v2730 = vld [vmem:[%s5 + $0x378] sm:$0xff]
    %v2731 = vld [vmem:[%s5 + $0x380] sm:$0xff]
    %v2732 = vld [vmem:[%s5 + $0x388] sm:$0xff]
    %v2733 = vld [vmem:[%s5 + $0x390] sm:$0xff]
    %v2734 = vld [vmem:[%s5 + $0x398] sm:$0xff]
    %v2735 = vld [vmem:[%s5 + $0x3a0] sm:$0xff]
    %v2736 = vld [vmem:[%s5 + $0x3a8] sm:$0xff]
    %v2737 = vld [vmem:[%s5 + $0x3b0] sm:$0xff]
    %v2738 = vld [vmem:[%s5 + $0x3b8] sm:$0xff]
    %v2739 = vld [vmem:[%s5 + $0x3c0] sm:$0xff]
    %v2740 = vld [vmem:[%s5 + $0x3c8] sm:$0xff]
    %v2741 = vld [vmem:[%s5 + $0x3d0] sm:$0xff]
    %v2742 = vld [vmem:[%s5 + $0x3d8] sm:$0xff]
    %v2743 = vld [vmem:[%s5 + $0x3e0] sm:$0xff]
    %v2744 = vld [vmem:[%s5 + $0x3e8] sm:$0xff]
    %v2745 = vld [vmem:[%s5 + $0x3f0] sm:$0xff]
    %v2746 = vld [vmem:[%s5 + $0x3f8] sm:$0xff]
    %v2747 = vld [vmem:[%s2] sm:$0xff]
    %v2748 = vld [vmem:[%s2 + $0x8] sm:$0xff]
    %v2749 = vld [vmem:[%s2 + $0x10] sm:$0xff]
    %v2750 = vld [vmem:[%s2 + $0x18] sm:$0xff]
    %v2751 = vld [vmem:[%s2 + $0x20] sm:$0xff]
    %v2752 = vld [vmem:[%s2 + $0x28] sm:$0xff]
    %v2753 = vld [vmem:[%s2 + $0x30] sm:$0xff]
    %v2754 = vld [vmem:[%s2 + $0x38] sm:$0xff]
    %v2755 = vld [vmem:[%s2 + $0x40] sm:$0xff]
    %v2756 = vld [vmem:[%s2 + $0x48] sm:$0xff]
    %v2757 = vld [vmem:[%s2 + $0x50] sm:$0xff]
    %v2758 = vld [vmem:[%s2 + $0x58] sm:$0xff]
    %v2759 = vld [vmem:[%s2 + $0x60] sm:$0xff]
    %v2760 = vld [vmem:[%s2 + $0x68] sm:$0xff]
    %v2761 = vld [vmem:[%s2 + $0x70] sm:$0xff]
    %v2762 = vld [vmem:[%s2 + $0x78] sm:$0xff]
    %v2764 = vsel %vm343, %v2619, 0
    %v2767 = vsel %vm343, %v2620, 0
    %v2770 = vsel %vm343, %v2621, 0
    %v2773 = vsel %vm343, %v2622, 0
    %v2776 = vsel %vm343, %v2623, 0
    %v2779 = vsel %vm343, %v2624, 0
    %v2782 = vsel %vm343, %v2625, 0
    %v2785 = vsel %vm343, %v2626, 0
    %v2788 = vsel %vm343, %v2627, 0
    %v2791 = vsel %vm343, %v2628, 0
    %v2794 = vsel %vm343, %v2629, 0
    %v2797 = vsel %vm343, %v2630, 0
    %v2800 = vsel %vm343, %v2631, 0
    %v2803 = vsel %vm343, %v2632, 0
    %v2806 = vsel %vm343, %v2633, 0
    %v2809 = vsel %vm343, %v2634, 0
    %v2812 = vsel %vm343, %v2635, 0
    %v2815 = vsel %vm343, %v2636, 0
    %v2818 = vsel %vm343, %v2637, 0
    %v2821 = vsel %vm343, %v2638, 0
    %v2824 = vsel %vm343, %v2639, 0
    %v2827 = vsel %vm343, %v2640, 0
    %v2830 = vsel %vm343, %v2641, 0
    %v2833 = vsel %vm343, %v2642, 0
    %v2836 = vsel %vm343, %v2643, 0
    %v2839 = vsel %vm343, %v2644, 0
    %v2842 = vsel %vm343, %v2645, 0
    %v2845 = vsel %vm343, %v2646, 0
    %v2848 = vsel %vm343, %v2647, 0
    %v2851 = vsel %vm343, %v2648, 0
    %v2854 = vsel %vm343, %v2649, 0
    %v2857 = vsel %vm343, %v2650, 0
    %v2860 = vsel %vm343, %v2651, 0
    %v2863 = vsel %vm343, %v2652, 0
    %v2866 = vsel %vm343, %v2653, 0
    %v2869 = vsel %vm343, %v2654, 0
    %v2872 = vsel %vm343, %v2655, 0
    %v2875 = vsel %vm343, %v2656, 0
    %v2878 = vsel %vm343, %v2657, 0
    %v2881 = vsel %vm343, %v2658, 0
    %v2884 = vsel %vm343, %v2659, 0
    %v2887 = vsel %vm343, %v2660, 0
    %v2890 = vsel %vm343, %v2661, 0
    %v2893 = vsel %vm343, %v2662, 0
    %v2896 = vsel %vm343, %v2663, 0
    %v2899 = vsel %vm343, %v2664, 0
    %v2902 = vsel %vm343, %v2665, 0
    %v2905 = vsel %vm343, %v2666, 0
    %v2908 = vsel %vm343, %v2667, 0
    %v2911 = vsel %vm343, %v2668, 0
    %v2914 = vsel %vm343, %v2669, 0
    %v2917 = vsel %vm343, %v2670, 0
    %v2920 = vsel %vm343, %v2671, 0
    %v2923 = vsel %vm343, %v2672, 0
    %v2926 = vsel %vm343, %v2673, 0
    %v2929 = vsel %vm343, %v2674, 0
    %v2932 = vsel %vm343, %v2675, 0
    %v2935 = vsel %vm343, %v2676, 0
    %v2938 = vsel %vm343, %v2677, 0
    %v2941 = vsel %vm343, %v2678, 0
    %v2944 = vsel %vm343, %v2679, 0
    %v2947 = vsel %vm343, %v2680, 0
    %v2950 = vsel %vm343, %v2681, 0
    %v2953 = vsel %vm343, %v2682, 0
    %v2956 = vsel %vm343, %v2683, 0
    %v2959 = vsel %vm343, %v2684, 0
    %v2962 = vsel %vm343, %v2685, 0
    %v2965 = vsel %vm343, %v2686, 0
    %v2968 = vsel %vm343, %v2687, 0
    %v2971 = vsel %vm343, %v2688, 0
    %v2974 = vsel %vm343, %v2689, 0
    %v2977 = vsel %vm343, %v2690, 0
    %v2980 = vsel %vm343, %v2691, 0
    %v2983 = vsel %vm343, %v2692, 0
    %v2986 = vsel %vm343, %v2693, 0
    %v2989 = vsel %vm343, %v2694, 0
    %v2992 = vsel %vm343, %v2695, 0
    %v2995 = vsel %vm343, %v2696, 0
    %v2998 = vsel %vm343, %v2697, 0
    %v3001 = vsel %vm343, %v2698, 0
    %v3004 = vsel %vm343, %v2699, 0
    %v3007 = vsel %vm343, %v2700, 0
    %v3010 = vsel %vm343, %v2701, 0
    %v3013 = vsel %vm343, %v2702, 0
    %v3016 = vsel %vm343, %v2703, 0
    %v3019 = vsel %vm343, %v2704, 0
    %v3022 = vsel %vm343, %v2705, 0
    %v3025 = vsel %vm343, %v2706, 0
    %v3028 = vsel %vm343, %v2707, 0
    %v3031 = vsel %vm343, %v2708, 0
    %v3034 = vsel %vm343, %v2709, 0
    %v3037 = vsel %vm343, %v2710, 0
    %v3040 = vsel %vm343, %v2711, 0
    %v3043 = vsel %vm343, %v2712, 0
    %v3046 = vsel %vm343, %v2713, 0
    %v3049 = vsel %vm343, %v2714, 0
    %v3052 = vsel %vm343, %v2715, 0
    %v3055 = vsel %vm343, %v2716, 0
    %v3058 = vsel %vm343, %v2717, 0
    %v3061 = vsel %vm343, %v2718, 0
    %v3064 = vsel %vm343, %v2719, 0
    %v3067 = vsel %vm343, %v2720, 0
    %v3070 = vsel %vm343, %v2721, 0
    %v3073 = vsel %vm343, %v2722, 0
    %v3076 = vsel %vm343, %v2723, 0
    %v3079 = vsel %vm343, %v2724, 0
    %v3082 = vsel %vm343, %v2725, 0
    %v3085 = vsel %vm343, %v2726, 0
    %v3088 = vsel %vm343, %v2727, 0
    %v3091 = vsel %vm343, %v2728, 0
    %v3094 = vsel %vm343, %v2729, 0
    %v3097 = vsel %vm343, %v2730, 0
    %v3100 = vsel %vm343, %v2731, 0
    %v3103 = vsel %vm343, %v2732, 0
    %v3106 = vsel %vm343, %v2733, 0
    %v3109 = vsel %vm343, %v2734, 0
    %v3112 = vsel %vm343, %v2735, 0
    %v3115 = vsel %vm343, %v2736, 0
    %v3118 = vsel %vm343, %v2737, 0
    %v3121 = vsel %vm343, %v2738, 0
    %v3124 = vsel %vm343, %v2739, 0
    %v3127 = vsel %vm343, %v2740, 0
    %v3130 = vsel %vm343, %v2741, 0
    %v3133 = vsel %vm343, %v2742, 0
    %v3136 = vsel %vm343, %v2743, 0
    %v3139 = vsel %vm343, %v2744, 0
    %v3142 = vsel %vm343, %v2745, 0
    %v3145 = vsel %vm343, %v2746, 0
    %v3148 = vsel %vm343, %v2747, 0
    %v3151 = vsel %vm343, %v2748, 0
    %v3154 = vsel %vm343, %v2749, 0
    %v3157 = vsel %vm343, %v2750, 0
    %v3160 = vsel %vm343, %v2751, 0
    %v3163 = vsel %vm343, %v2752, 0
    %v3166 = vsel %vm343, %v2753, 0
    %v3169 = vsel %vm343, %v2754, 0
    %v3172 = vsel %vm343, %v2755, 0
    %v3175 = vsel %vm343, %v2756, 0
    %v3178 = vsel %vm343, %v2757, 0
    %v3181 = vsel %vm343, %v2758, 0
    %v3184 = vsel %vm343, %v2759, 0
    %v3187 = vsel %vm343, %v2760, 0
    %v3190 = vsel %vm343, %v2761, 0
    %v3193 = vsel %vm343, %v2762, 0
    %3195 = vmatprep.subr.mxu0 0.0
    %3196 = vmatpush1.xpose.msra.mxu0 %v3193
    %3197 = vmatprep.subr.mxu0 0.0
    %3198 = vmatpush1.xpose.msra.mxu0 %v3190
    %3199 = vmatprep.subr.mxu0 0.0
    %3200 = vmatpush1.xpose.msra.mxu0 %v3187
    %3201 = vmatprep.subr.mxu0 0.0
    %3202 = vmatpush1.xpose.msra.mxu0 %v3184
    %3203 = vmatprep.subr.mxu0 0.0
    %3204 = vmatpush1.xpose.msra.mxu0 %v3181
    %3205 = vmatprep.subr.mxu0 0.0
    %3206 = vmatpush1.xpose.msra.mxu0 %v3178
    %3207 = vmatprep.subr.mxu0 0.0
    %3208 = vmatpush1.xpose.msra.mxu0 %v3175
    %3209 = vmatprep.subr.mxu0 0.0
    %3210 = vmatpush1.xpose.msra.mxu0 %v3172
    %3211 = vmatprep.subr.mxu0 0.0
    %3212 = vmatpush1.xpose.msra.mxu0 %v3169
    %3213 = vmatprep.subr.mxu0 0.0
    %3214 = vmatpush1.xpose.msra.mxu0 %v3166
    %3215 = vmatprep.subr.mxu0 0.0
    %3216 = vmatpush1.xpose.msra.mxu0 %v3163
    %3217 = vmatprep.subr.mxu0 0.0
    %3218 = vmatpush1.xpose.msra.mxu0 %v3160
    %3219 = vmatprep.subr.mxu0 0.0
    %3220 = vmatpush1.xpose.msra.mxu0 %v3157
    %3221 = vmatprep.subr.mxu0 0.0
    %3222 = vmatpush1.xpose.msra.mxu0 %v3154
    %3223 = vmatprep.subr.mxu0 0.0
    %3224 = vmatpush1.xpose.msra.mxu0 %v3151
    %3225 = vmatprep.subr.mxu0 0.0
    %3226 = vmatpush1.xpose.msra.mxu0 %v3148
    %3227 = vmatprep.subr.mxu0 0.0
    %3228 = vmatpush2.xpose.msra.mxu0 0.0
    %3229 = vmatprep.subr.mxu0 0.0
    %3230 = vmatpush2.xpose.msra.mxu0 0.0
    %3231 = vmatprep.subr.mxu0 0.0
    %3232 = vmatpush2.xpose.msra.mxu0 0.0
    %3233 = vmatprep.subr.mxu0 0.0
    %3234 = vmatpush2.xpose.msra.mxu0 0.0
    %3235 = vmatprep.subr.mxu0 0.0
    %3236 = vmatpush2.xpose.msra.mxu0 0.0
    %3237 = vmatprep.subr.mxu0 0.0
    %3238 = vmatpush2.xpose.msra.mxu0 0.0
    %3239 = vmatprep.subr.mxu0 0.0
    %3240 = vmatpush2.xpose.msra.mxu0 0.0
    %3241 = vmatprep.subr.mxu0 0.0
    %3242 = vmatpush2.xpose.msra.mxu0 0.0
    %3243 = vmatprep.subr.mxu0 0.0
    %3244 = vmatpush2.xpose.msra.mxu0 0.0
    %3245 = vmatprep.subr.mxu0 0.0
    %3246 = vmatpush2.xpose.msra.mxu0 0.0
    %3247 = vmatprep.subr.mxu0 0.0
    %3248 = vmatpush2.xpose.msra.mxu0 0.0
    %3249 = vmatprep.subr.mxu0 0.0
    %3250 = vmatpush2.xpose.msra.mxu0 0.0
    %3251 = vmatprep.subr.mxu0 0.0
    %3252 = vmatpush2.xpose.msra.mxu0 0.0
    %3253 = vmatprep.subr.mxu0 0.0
    %3254 = vmatpush2.xpose.msra.mxu0 0.0
    %3255 = vmatprep.subr.mxu0 0.0
    %3256 = vmatpush2.xpose.msra.mxu0 0.0
    %3257 = vmatprep.subr.mxu0 0.0
    %3258 = vmatpush2.xpose.msra.mxu0 0.0
    %3259 = vmatprep.mubr.f32.mxu0 0.0
    %3260 = vmatmul.mubr.f32.gmra.mxu0 %v2764
    %v3261 = vpop.f32.mrf.mxu0
    %v3262 = vadd.f32 0.0, %v3261
    %v3263 = vpop.f32.mrf.mxu0
    %3264 = vmatprep.mubr.f32.mxu0 0.0
    %3265 = vmatmul.mubr.f32.gmra.mxu0 %v2767
    %v3266 = vpop.f32.mrf.mxu0
    %v3267 = vadd.f32 0.0, %v3266
    %v3268 = vpop.f32.mrf.mxu0
    %3269 = vmatprep.mubr.f32.mxu0 0.0
    %3270 = vmatmul.mubr.f32.gmra.mxu0 %v2770
    %v3271 = vpop.f32.mrf.mxu0
    %v3272 = vadd.f32 0.0, %v3271
    %v3273 = vpop.f32.mrf.mxu0
    %3274 = vmatprep.mubr.f32.mxu0 0.0
    %3275 = vmatmul.mubr.f32.gmra.mxu0 %v2773
    %v3276 = vpop.f32.mrf.mxu0
    %v3277 = vadd.f32 0.0, %v3276
    %v3278 = vpop.f32.mrf.mxu0
    %3279 = vmatprep.mubr.f32.mxu0 0.0
    %3280 = vmatmul.mubr.f32.gmra.mxu0 %v2776
    %v3281 = vpop.f32.mrf.mxu0
    %v3282 = vadd.f32 0.0, %v3281
    %v3283 = vpop.f32.mrf.mxu0
    %3284 = vmatprep.mubr.f32.mxu0 0.0
    %3285 = vmatmul.mubr.f32.gmra.mxu0 %v2779
    %v3286 = vpop.f32.mrf.mxu0
    %v3287 = vadd.f32 0.0, %v3286
    %v3288 = vpop.f32.mrf.mxu0
    %3289 = vmatprep.mubr.f32.mxu0 0.0
    %3290 = vmatmul.mubr.f32.gmra.mxu0 %v2782
    %v3291 = vpop.f32.mrf.mxu0
    %v3292 = vadd.f32 0.0, %v3291
    %v3293 = vpop.f32.mrf.mxu0
    %3294 = vmatprep.mubr.f32.mxu0 0.0
    %3295 = vmatmul.mubr.f32.gmra.mxu0 %v2785
    %v3296 = vpop.f32.mrf.mxu0
    %v3297 = vadd.f32 0.0, %v3296
    %v3298 = vpop.f32.mrf.mxu0
    %3299 = vmatprep.mubr.f32.mxu0 0.0
    %3300 = vmatmul.mubr.f32.gmra.mxu0 %v2788
    %v3301 = vpop.f32.mrf.mxu0
    %v3302 = vadd.f32 0.0, %v3301
    %v3303 = vpop.f32.mrf.mxu0
    %3304 = vmatprep.mubr.f32.mxu0 0.0
    %3305 = vmatmul.mubr.f32.gmra.mxu0 %v2791
    %v3306 = vpop.f32.mrf.mxu0
    %v3307 = vadd.f32 0.0, %v3306
    %v3308 = vpop.f32.mrf.mxu0
    %3309 = vmatprep.mubr.f32.mxu0 0.0
    %3310 = vmatmul.mubr.f32.gmra.mxu0 %v2794
    %v3311 = vpop.f32.mrf.mxu0
    %v3312 = vadd.f32 0.0, %v3311
    %v3313 = vpop.f32.mrf.mxu0
    %3314 = vmatprep.mubr.f32.mxu0 0.0
    %3315 = vmatmul.mubr.f32.gmra.mxu0 %v2797
    %v3316 = vpop.f32.mrf.mxu0
    %v3317 = vadd.f32 0.0, %v3316
    %v3318 = vpop.f32.mrf.mxu0
    %3319 = vmatprep.mubr.f32.mxu0 0.0
    %3320 = vmatmul.mubr.f32.gmra.mxu0 %v2800
    %v3321 = vpop.f32.mrf.mxu0
    %v3322 = vadd.f32 0.0, %v3321
    %v3323 = vpop.f32.mrf.mxu0
    %3324 = vmatprep.mubr.f32.mxu0 0.0
    %3325 = vmatmul.mubr.f32.gmra.mxu0 %v2803
    %v3326 = vpop.f32.mrf.mxu0
    %v3327 = vadd.f32 0.0, %v3326
    %v3328 = vpop.f32.mrf.mxu0
    %3329 = vmatprep.mubr.f32.mxu0 0.0
    %3330 = vmatmul.mubr.f32.gmra.mxu0 %v2806
    %v3331 = vpop.f32.mrf.mxu0
    %v3332 = vadd.f32 0.0, %v3331
    %v3333 = vpop.f32.mrf.mxu0
    %3334 = vmatprep.mubr.f32.mxu0 0.0
    %3335 = vmatmul.mubr.f32.gmra.mxu0 %v2809
    %v3336 = vpop.f32.mrf.mxu0
    %v3337 = vadd.f32 0.0, %v3336
    %v3338 = vpop.f32.mrf.mxu0
    %3339 = vmatprep.mubr.f32.mxu0 0.0
    %3340 = vmatmul.mubr.f32.gmra.mxu0 %v2812
    %v3341 = vpop.f32.mrf.mxu0
    %v3342 = vadd.f32 0.0, %v3341
    %v3343 = vpop.f32.mrf.mxu0
    %3344 = vmatprep.mubr.f32.mxu0 0.0
    %3345 = vmatmul.mubr.f32.gmra.mxu0 %v2815
    %v3346 = vpop.f32.mrf.mxu0
    %v3347 = vadd.f32 0.0, %v3346
    %v3348 = vpop.f32.mrf.mxu0
    %3349 = vmatprep.mubr.f32.mxu0 0.0
    %3350 = vmatmul.mubr.f32.gmra.mxu0 %v2818
    %v3351 = vpop.f32.mrf.mxu0
    %v3352 = vadd.f32 0.0, %v3351
    %v3353 = vpop.f32.mrf.mxu0
    %3354 = vmatprep.mubr.f32.mxu0 0.0
    %3355 = vmatmul.mubr.f32.gmra.mxu0 %v2821
    %v3356 = vpop.f32.mrf.mxu0
    %v3357 = vadd.f32 0.0, %v3356
    %v3358 = vpop.f32.mrf.mxu0
    %3359 = vmatprep.mubr.f32.mxu0 0.0
    %3360 = vmatmul.mubr.f32.gmra.mxu0 %v2824
    %v3361 = vpop.f32.mrf.mxu0
    %v3362 = vadd.f32 0.0, %v3361
    %v3363 = vpop.f32.mrf.mxu0
    %3364 = vmatprep.mubr.f32.mxu0 0.0
    %3365 = vmatmul.mubr.f32.gmra.mxu0 %v2827
    %v3366 = vpop.f32.mrf.mxu0
    %v3367 = vadd.f32 0.0, %v3366
    %v3368 = vpop.f32.mrf.mxu0
    %3369 = vmatprep.mubr.f32.mxu0 0.0
    %3370 = vmatmul.mubr.f32.gmra.mxu0 %v2830
    %v3371 = vpop.f32.mrf.mxu0
    %v3372 = vadd.f32 0.0, %v3371
    %v3373 = vpop.f32.mrf.mxu0
    %3374 = vmatprep.mubr.f32.mxu0 0.0
    %3375 = vmatmul.mubr.f32.gmra.mxu0 %v2833
    %v3376 = vpop.f32.mrf.mxu0
    %v3377 = vadd.f32 0.0, %v3376
    %v3378 = vpop.f32.mrf.mxu0
    %3379 = vmatprep.mubr.f32.mxu0 0.0
    %3380 = vmatmul.mubr.f32.gmra.mxu0 %v2836
    %v3381 = vpop.f32.mrf.mxu0
    %v3382 = vadd.f32 0.0, %v3381
    %v3383 = vpop.f32.mrf.mxu0
    %3384 = vmatprep.mubr.f32.mxu0 0.0
    %3385 = vmatmul.mubr.f32.gmra.mxu0 %v2839
    %v3386 = vpop.f32.mrf.mxu0
    %v3387 = vadd.f32 0.0, %v3386
    %v3388 = vpop.f32.mrf.mxu0
    %3389 = vmatprep.mubr.f32.mxu0 0.0
    %3390 = vmatmul.mubr.f32.gmra.mxu0 %v2842
    %v3391 = vpop.f32.mrf.mxu0
    %v3392 = vadd.f32 0.0, %v3391
    %v3393 = vpop.f32.mrf.mxu0
    %3394 = vmatprep.mubr.f32.mxu0 0.0
    %3395 = vmatmul.mubr.f32.gmra.mxu0 %v2845
    %v3396 = vpop.f32.mrf.mxu0
    %v3397 = vadd.f32 0.0, %v3396
    %v3398 = vpop.f32.mrf.mxu0
    %3399 = vmatprep.mubr.f32.mxu0 0.0
    %3400 = vmatmul.mubr.f32.gmra.mxu0 %v2848
    %v3401 = vpop.f32.mrf.mxu0
    %v3402 = vadd.f32 0.0, %v3401
    %v3403 = vpop.f32.mrf.mxu0
    %3404 = vmatprep.mubr.f32.mxu0 0.0
    %3405 = vmatmul.mubr.f32.gmra.mxu0 %v2851
    %v3406 = vpop.f32.mrf.mxu0
    %v3407 = vadd.f32 0.0, %v3406
    %v3408 = vpop.f32.mrf.mxu0
    %3409 = vmatprep.mubr.f32.mxu0 0.0
    %3410 = vmatmul.mubr.f32.gmra.mxu0 %v2854
    %v3411 = vpop.f32.mrf.mxu0
    %v3412 = vadd.f32 0.0, %v3411
    %v3413 = vpop.f32.mrf.mxu0
    %3414 = vmatprep.mubr.f32.mxu0 0.0
    %3415 = vmatmul.mubr.f32.gmra.mxu0 %v2857
    %v3416 = vpop.f32.mrf.mxu0
    %v3417 = vadd.f32 0.0, %v3416
    %v3418 = vpop.f32.mrf.mxu0
    %3419 = vmatprep.mubr.f32.mxu0 0.0
    %3420 = vmatmul.mubr.f32.gmra.mxu0 %v2860
    %v3421 = vpop.f32.mrf.mxu0
    %v3422 = vadd.f32 0.0, %v3421
    %v3423 = vpop.f32.mrf.mxu0
    %3424 = vmatprep.mubr.f32.mxu0 0.0
    %3425 = vmatmul.mubr.f32.gmra.mxu0 %v2863
    %v3426 = vpop.f32.mrf.mxu0
    %v3427 = vadd.f32 0.0, %v3426
    %v3428 = vpop.f32.mrf.mxu0
    %3429 = vmatprep.mubr.f32.mxu0 0.0
    %3430 = vmatmul.mubr.f32.gmra.mxu0 %v2866
    %v3431 = vpop.f32.mrf.mxu0
    %v3432 = vadd.f32 0.0, %v3431
    %v3433 = vpop.f32.mrf.mxu0
    %3434 = vmatprep.mubr.f32.mxu0 0.0
    %3435 = vmatmul.mubr.f32.gmra.mxu0 %v2869
    %v3436 = vpop.f32.mrf.mxu0
    %v3437 = vadd.f32 0.0, %v3436
    %v3438 = vpop.f32.mrf.mxu0
    %3439 = vmatprep.mubr.f32.mxu0 0.0
    %3440 = vmatmul.mubr.f32.gmra.mxu0 %v2872
    %v3441 = vpop.f32.mrf.mxu0
    %v3442 = vadd.f32 0.0, %v3441
    %v3443 = vpop.f32.mrf.mxu0
    %3444 = vmatprep.mubr.f32.mxu0 0.0
    %3445 = vmatmul.mubr.f32.gmra.mxu0 %v2875
    %v3446 = vpop.f32.mrf.mxu0
    %v3447 = vadd.f32 0.0, %v3446
    %v3448 = vpop.f32.mrf.mxu0
    %3449 = vmatprep.mubr.f32.mxu0 0.0
    %3450 = vmatmul.mubr.f32.gmra.mxu0 %v2878
    %v3451 = vpop.f32.mrf.mxu0
    %v3452 = vadd.f32 0.0, %v3451
    %v3453 = vpop.f32.mrf.mxu0
    %3454 = vmatprep.mubr.f32.mxu0 0.0
    %3455 = vmatmul.mubr.f32.gmra.mxu0 %v2881
    %v3456 = vpop.f32.mrf.mxu0
    %v3457 = vadd.f32 0.0, %v3456
    %v3458 = vpop.f32.mrf.mxu0
    %3459 = vmatprep.mubr.f32.mxu0 0.0
    %3460 = vmatmul.mubr.f32.gmra.mxu0 %v2884
    %v3461 = vpop.f32.mrf.mxu0
    %v3462 = vadd.f32 0.0, %v3461
    %v3463 = vpop.f32.mrf.mxu0
    %3464 = vmatprep.mubr.f32.mxu0 0.0
    %3465 = vmatmul.mubr.f32.gmra.mxu0 %v2887
    %v3466 = vpop.f32.mrf.mxu0
    %v3467 = vadd.f32 0.0, %v3466
    %v3468 = vpop.f32.mrf.mxu0
    %3469 = vmatprep.mubr.f32.mxu0 0.0
    %3470 = vmatmul.mubr.f32.gmra.mxu0 %v2890
    %v3471 = vpop.f32.mrf.mxu0
    %v3472 = vadd.f32 0.0, %v3471
    %v3473 = vpop.f32.mrf.mxu0
    %3474 = vmatprep.mubr.f32.mxu0 0.0
    %3475 = vmatmul.mubr.f32.gmra.mxu0 %v2893
    %v3476 = vpop.f32.mrf.mxu0
    %v3477 = vadd.f32 0.0, %v3476
    %v3478 = vpop.f32.mrf.mxu0
    %3479 = vmatprep.mubr.f32.mxu0 0.0
    %3480 = vmatmul.mubr.f32.gmra.mxu0 %v2896
    %v3481 = vpop.f32.mrf.mxu0
    %v3482 = vadd.f32 0.0, %v3481
    %v3483 = vpop.f32.mrf.mxu0
    %3484 = vmatprep.mubr.f32.mxu0 0.0
    %3485 = vmatmul.mubr.f32.gmra.mxu0 %v2899
    %v3486 = vpop.f32.mrf.mxu0
    %v3487 = vadd.f32 0.0, %v3486
    %v3488 = vpop.f32.mrf.mxu0
    %3489 = vmatprep.mubr.f32.mxu0 0.0
    %3490 = vmatmul.mubr.f32.gmra.mxu0 %v2902
    %v3491 = vpop.f32.mrf.mxu0
    %v3492 = vadd.f32 0.0, %v3491
    %v3493 = vpop.f32.mrf.mxu0
    %3494 = vmatprep.mubr.f32.mxu0 0.0
    %3495 = vmatmul.mubr.f32.gmra.mxu0 %v2905
    %v3496 = vpop.f32.mrf.mxu0
    %v3497 = vadd.f32 0.0, %v3496
    %v3498 = vpop.f32.mrf.mxu0
    %3499 = vmatprep.mubr.f32.mxu0 0.0
    %3500 = vmatmul.mubr.f32.gmra.mxu0 %v2908
    %v3501 = vpop.f32.mrf.mxu0
    %v3502 = vadd.f32 0.0, %v3501
    %v3503 = vpop.f32.mrf.mxu0
    %3504 = vmatprep.mubr.f32.mxu0 0.0
    %3505 = vmatmul.mubr.f32.gmra.mxu0 %v2911
    %v3506 = vpop.f32.mrf.mxu0
    %v3507 = vadd.f32 0.0, %v3506
    %v3508 = vpop.f32.mrf.mxu0
    %3509 = vmatprep.mubr.f32.mxu0 0.0
    %3510 = vmatmul.mubr.f32.gmra.mxu0 %v2914
    %v3511 = vpop.f32.mrf.mxu0
    %v3512 = vadd.f32 0.0, %v3511
    %v3513 = vpop.f32.mrf.mxu0
    %3514 = vmatprep.mubr.f32.mxu0 0.0
    %3515 = vmatmul.mubr.f32.gmra.mxu0 %v2917
    %v3516 = vpop.f32.mrf.mxu0
    %v3517 = vadd.f32 0.0, %v3516
    %v3518 = vpop.f32.mrf.mxu0
    %3519 = vmatprep.mubr.f32.mxu0 0.0
    %3520 = vmatmul.mubr.f32.gmra.mxu0 %v2920
    %v3521 = vpop.f32.mrf.mxu0
    %v3522 = vadd.f32 0.0, %v3521
    %v3523 = vpop.f32.mrf.mxu0
    %3524 = vmatprep.mubr.f32.mxu0 0.0
    %3525 = vmatmul.mubr.f32.gmra.mxu0 %v2923
    %v3526 = vpop.f32.mrf.mxu0
    %v3527 = vadd.f32 0.0, %v3526
    %v3528 = vpop.f32.mrf.mxu0
    %3529 = vmatprep.mubr.f32.mxu0 0.0
    %3530 = vmatmul.mubr.f32.gmra.mxu0 %v2926
    %v3531 = vpop.f32.mrf.mxu0
    %v3532 = vadd.f32 0.0, %v3531
    %v3533 = vpop.f32.mrf.mxu0
    %3534 = vmatprep.mubr.f32.mxu0 0.0
    %3535 = vmatmul.mubr.f32.gmra.mxu0 %v2929
    %v3536 = vpop.f32.mrf.mxu0
    %v3537 = vadd.f32 0.0, %v3536
    %v3538 = vpop.f32.mrf.mxu0
    %3539 = vmatprep.mubr.f32.mxu0 0.0
    %3540 = vmatmul.mubr.f32.gmra.mxu0 %v2932
    %v3541 = vpop.f32.mrf.mxu0
    %v3542 = vadd.f32 0.0, %v3541
    %v3543 = vpop.f32.mrf.mxu0
    %3544 = vmatprep.mubr.f32.mxu0 0.0
    %3545 = vmatmul.mubr.f32.gmra.mxu0 %v2935
    %v3546 = vpop.f32.mrf.mxu0
    %v3547 = vadd.f32 0.0, %v3546
    %v3548 = vpop.f32.mrf.mxu0
    %3549 = vmatprep.mubr.f32.mxu0 0.0
    %3550 = vmatmul.mubr.f32.gmra.mxu0 %v2938
    %v3551 = vpop.f32.mrf.mxu0
    %v3552 = vadd.f32 0.0, %v3551
    %v3553 = vpop.f32.mrf.mxu0
    %3554 = vmatprep.mubr.f32.mxu0 0.0
    %3555 = vmatmul.mubr.f32.gmra.mxu0 %v2941
    %v3556 = vpop.f32.mrf.mxu0
    %v3557 = vadd.f32 0.0, %v3556
    %v3558 = vpop.f32.mrf.mxu0
    %3559 = vmatprep.mubr.f32.mxu0 0.0
    %3560 = vmatmul.mubr.f32.gmra.mxu0 %v2944
    %v3561 = vpop.f32.mrf.mxu0
    %v3562 = vadd.f32 0.0, %v3561
    %v3563 = vpop.f32.mrf.mxu0
    %3564 = vmatprep.mubr.f32.mxu0 0.0
    %3565 = vmatmul.mubr.f32.gmra.mxu0 %v2947
    %v3566 = vpop.f32.mrf.mxu0
    %v3567 = vadd.f32 0.0, %v3566
    %v3568 = vpop.f32.mrf.mxu0
    %3569 = vmatprep.mubr.f32.mxu0 0.0
    %3570 = vmatmul.mubr.f32.gmra.mxu0 %v2950
    %v3571 = vpop.f32.mrf.mxu0
    %v3572 = vadd.f32 0.0, %v3571
    %v3573 = vpop.f32.mrf.mxu0
    %3574 = vmatprep.mubr.f32.mxu0 0.0
    %3575 = vmatmul.mubr.f32.gmra.mxu0 %v2953
    %v3576 = vpop.f32.mrf.mxu0
    %v3577 = vadd.f32 0.0, %v3576
    %v3578 = vpop.f32.mrf.mxu0
    %3579 = vmatprep.mubr.f32.mxu0 0.0
    %3580 = vmatmul.mubr.f32.gmra.mxu0 %v2956
    %v3581 = vpop.f32.mrf.mxu0
    %v3582 = vadd.f32 0.0, %v3581
    %v3583 = vpop.f32.mrf.mxu0
    %3584 = vmatprep.mubr.f32.mxu0 0.0
    %3585 = vmatmul.mubr.f32.gmra.mxu0 %v2959
    %v3586 = vpop.f32.mrf.mxu0
    %v3587 = vadd.f32 0.0, %v3586
    %v3588 = vpop.f32.mrf.mxu0
    %3589 = vmatprep.mubr.f32.mxu0 0.0
    %3590 = vmatmul.mubr.f32.gmra.mxu0 %v2962
    %v3591 = vpop.f32.mrf.mxu0
    %v3592 = vadd.f32 0.0, %v3591
    %v3593 = vpop.f32.mrf.mxu0
    %3594 = vmatprep.mubr.f32.mxu0 0.0
    %3595 = vmatmul.mubr.f32.gmra.mxu0 %v2965
    %v3596 = vpop.f32.mrf.mxu0
    %v3597 = vadd.f32 0.0, %v3596
    %v3598 = vpop.f32.mrf.mxu0
    %3599 = vmatprep.mubr.f32.mxu0 0.0
    %3600 = vmatmul.mubr.f32.gmra.mxu0 %v2968
    %v3601 = vpop.f32.mrf.mxu0
    %v3602 = vadd.f32 0.0, %v3601
    %v3603 = vpop.f32.mrf.mxu0
    %3604 = vmatprep.mubr.f32.mxu0 0.0
    %3605 = vmatmul.mubr.f32.gmra.mxu0 %v2971
    %v3606 = vpop.f32.mrf.mxu0
    %v3607 = vadd.f32 0.0, %v3606
    %v3608 = vpop.f32.mrf.mxu0
    %3609 = vmatprep.mubr.f32.mxu0 0.0
    %3610 = vmatmul.mubr.f32.gmra.mxu0 %v2974
    %v3611 = vpop.f32.mrf.mxu0
    %v3612 = vadd.f32 0.0, %v3611
    %v3613 = vpop.f32.mrf.mxu0
    %3614 = vmatprep.mubr.f32.mxu0 0.0
    %3615 = vmatmul.mubr.f32.gmra.mxu0 %v2977
    %v3616 = vpop.f32.mrf.mxu0
    %v3617 = vadd.f32 0.0, %v3616
    %v3618 = vpop.f32.mrf.mxu0
    %3619 = vmatprep.mubr.f32.mxu0 0.0
    %3620 = vmatmul.mubr.f32.gmra.mxu0 %v2980
    %v3621 = vpop.f32.mrf.mxu0
    %v3622 = vadd.f32 0.0, %v3621
    %v3623 = vpop.f32.mrf.mxu0
    %3624 = vmatprep.mubr.f32.mxu0 0.0
    %3625 = vmatmul.mubr.f32.gmra.mxu0 %v2983
    %v3626 = vpop.f32.mrf.mxu0
    %v3627 = vadd.f32 0.0, %v3626
    %v3628 = vpop.f32.mrf.mxu0
    %3629 = vmatprep.mubr.f32.mxu0 0.0
    %3630 = vmatmul.mubr.f32.gmra.mxu0 %v2986
    %v3631 = vpop.f32.mrf.mxu0
    %v3632 = vadd.f32 0.0, %v3631
    %v3633 = vpop.f32.mrf.mxu0
    %3634 = vmatprep.mubr.f32.mxu0 0.0
    %3635 = vmatmul.mubr.f32.gmra.mxu0 %v2989
    %v3636 = vpop.f32.mrf.mxu0
    %v3637 = vadd.f32 0.0, %v3636
    %v3638 = vpop.f32.mrf.mxu0
    %3639 = vmatprep.mubr.f32.mxu0 0.0
    %3640 = vmatmul.mubr.f32.gmra.mxu0 %v2992
    %v3641 = vpop.f32.mrf.mxu0
    %v3642 = vadd.f32 0.0, %v3641
    %v3643 = vpop.f32.mrf.mxu0
    %3644 = vmatprep.mubr.f32.mxu0 0.0
    %3645 = vmatmul.mubr.f32.gmra.mxu0 %v2995
    %v3646 = vpop.f32.mrf.mxu0
    %v3647 = vadd.f32 0.0, %v3646
    %v3648 = vpop.f32.mrf.mxu0
    %3649 = vmatprep.mubr.f32.mxu0 0.0
    %3650 = vmatmul.mubr.f32.gmra.mxu0 %v2998
    %v3651 = vpop.f32.mrf.mxu0
    %v3652 = vadd.f32 0.0, %v3651
    %v3653 = vpop.f32.mrf.mxu0
    %3654 = vmatprep.mubr.f32.mxu0 0.0
    %3655 = vmatmul.mubr.f32.gmra.mxu0 %v3001
    %v3656 = vpop.f32.mrf.mxu0
    %v3657 = vadd.f32 0.0, %v3656
    %v3658 = vpop.f32.mrf.mxu0
    %3659 = vmatprep.mubr.f32.mxu0 0.0
    %3660 = vmatmul.mubr.f32.gmra.mxu0 %v3004
    %v3661 = vpop.f32.mrf.mxu0
    %v3662 = vadd.f32 0.0, %v3661
    %v3663 = vpop.f32.mrf.mxu0
    %3664 = vmatprep.mubr.f32.mxu0 0.0
    %3665 = vmatmul.mubr.f32.gmra.mxu0 %v3007
    %v3666 = vpop.f32.mrf.mxu0
    %v3667 = vadd.f32 0.0, %v3666
    %v3668 = vpop.f32.mrf.mxu0
    %3669 = vmatprep.mubr.f32.mxu0 0.0
    %3670 = vmatmul.mubr.f32.gmra.mxu0 %v3010
    %v3671 = vpop.f32.mrf.mxu0
    %v3672 = vadd.f32 0.0, %v3671
    %v3673 = vpop.f32.mrf.mxu0
    %3674 = vmatprep.mubr.f32.mxu0 0.0
    %3675 = vmatmul.mubr.f32.gmra.mxu0 %v3013
    %v3676 = vpop.f32.mrf.mxu0
    %v3677 = vadd.f32 0.0, %v3676
    %v3678 = vpop.f32.mrf.mxu0
    %3679 = vmatprep.mubr.f32.mxu0 0.0
    %3680 = vmatmul.mubr.f32.gmra.mxu0 %v3016
    %v3681 = vpop.f32.mrf.mxu0
    %v3682 = vadd.f32 0.0, %v3681
    %v3683 = vpop.f32.mrf.mxu0
    %3684 = vmatprep.mubr.f32.mxu0 0.0
    %3685 = vmatmul.mubr.f32.gmra.mxu0 %v3019
    %v3686 = vpop.f32.mrf.mxu0
    %v3687 = vadd.f32 0.0, %v3686
    %v3688 = vpop.f32.mrf.mxu0
    %3689 = vmatprep.mubr.f32.mxu0 0.0
    %3690 = vmatmul.mubr.f32.gmra.mxu0 %v3022
    %v3691 = vpop.f32.mrf.mxu0
    %v3692 = vadd.f32 0.0, %v3691
    %v3693 = vpop.f32.mrf.mxu0
    %3694 = vmatprep.mubr.f32.mxu0 0.0
    %3695 = vmatmul.mubr.f32.gmra.mxu0 %v3025
    %v3696 = vpop.f32.mrf.mxu0
    %v3697 = vadd.f32 0.0, %v3696
    %v3698 = vpop.f32.mrf.mxu0
    %3699 = vmatprep.mubr.f32.mxu0 0.0
    %3700 = vmatmul.mubr.f32.gmra.mxu0 %v3028
    %v3701 = vpop.f32.mrf.mxu0
    %v3702 = vadd.f32 0.0, %v3701
    %v3703 = vpop.f32.mrf.mxu0
    %3704 = vmatprep.mubr.f32.mxu0 0.0
    %3705 = vmatmul.mubr.f32.gmra.mxu0 %v3031
    %v3706 = vpop.f32.mrf.mxu0
    %v3707 = vadd.f32 0.0, %v3706
    %v3708 = vpop.f32.mrf.mxu0
    %3709 = vmatprep.mubr.f32.mxu0 0.0
    %3710 = vmatmul.mubr.f32.gmra.mxu0 %v3034
    %v3711 = vpop.f32.mrf.mxu0
    %v3712 = vadd.f32 0.0, %v3711
    %v3713 = vpop.f32.mrf.mxu0
    %3714 = vmatprep.mubr.f32.mxu0 0.0
    %3715 = vmatmul.mubr.f32.gmra.mxu0 %v3037
    %v3716 = vpop.f32.mrf.mxu0
    %v3717 = vadd.f32 0.0, %v3716
    %v3718 = vpop.f32.mrf.mxu0
    %3719 = vmatprep.mubr.f32.mxu0 0.0
    %3720 = vmatmul.mubr.f32.gmra.mxu0 %v3040
    %v3721 = vpop.f32.mrf.mxu0
    %v3722 = vadd.f32 0.0, %v3721
    %v3723 = vpop.f32.mrf.mxu0
    %3724 = vmatprep.mubr.f32.mxu0 0.0
    %3725 = vmatmul.mubr.f32.gmra.mxu0 %v3043
    %v3726 = vpop.f32.mrf.mxu0
    %v3727 = vadd.f32 0.0, %v3726
    %v3728 = vpop.f32.mrf.mxu0
    %3729 = vmatprep.mubr.f32.mxu0 0.0
    %3730 = vmatmul.mubr.f32.gmra.mxu0 %v3046
    %v3731 = vpop.f32.mrf.mxu0
    %v3732 = vadd.f32 0.0, %v3731
    %v3733 = vpop.f32.mrf.mxu0
    %3734 = vmatprep.mubr.f32.mxu0 0.0
    %3735 = vmatmul.mubr.f32.gmra.mxu0 %v3049
    %v3736 = vpop.f32.mrf.mxu0
    %v3737 = vadd.f32 0.0, %v3736
    %v3738 = vpop.f32.mrf.mxu0
    %3739 = vmatprep.mubr.f32.mxu0 0.0
    %3740 = vmatmul.mubr.f32.gmra.mxu0 %v3052
    %v3741 = vpop.f32.mrf.mxu0
    %v3742 = vadd.f32 0.0, %v3741
    %v3743 = vpop.f32.mrf.mxu0
    %3744 = vmatprep.mubr.f32.mxu0 0.0
    %3745 = vmatmul.mubr.f32.gmra.mxu0 %v3055
    %v3746 = vpop.f32.mrf.mxu0
    %v3747 = vadd.f32 0.0, %v3746
    %v3748 = vpop.f32.mrf.mxu0
    %3749 = vmatprep.mubr.f32.mxu0 0.0
    %3750 = vmatmul.mubr.f32.gmra.mxu0 %v3058
    %v3751 = vpop.f32.mrf.mxu0
    %v3752 = vadd.f32 0.0, %v3751
    %v3753 = vpop.f32.mrf.mxu0
    %3754 = vmatprep.mubr.f32.mxu0 0.0
    %3755 = vmatmul.mubr.f32.gmra.mxu0 %v3061
    %v3756 = vpop.f32.mrf.mxu0
    %v3757 = vadd.f32 0.0, %v3756
    %v3758 = vpop.f32.mrf.mxu0
    %3759 = vmatprep.mubr.f32.mxu0 0.0
    %3760 = vmatmul.mubr.f32.gmra.mxu0 %v3064
    %v3761 = vpop.f32.mrf.mxu0
    %v3762 = vadd.f32 0.0, %v3761
    %v3763 = vpop.f32.mrf.mxu0
    %3764 = vmatprep.mubr.f32.mxu0 0.0
    %3765 = vmatmul.mubr.f32.gmra.mxu0 %v3067
    %v3766 = vpop.f32.mrf.mxu0
    %v3767 = vadd.f32 0.0, %v3766
    %v3768 = vpop.f32.mrf.mxu0
    %3769 = vmatprep.mubr.f32.mxu0 0.0
    %3770 = vmatmul.mubr.f32.gmra.mxu0 %v3070
    %v3771 = vpop.f32.mrf.mxu0
    %v3772 = vadd.f32 0.0, %v3771
    %v3773 = vpop.f32.mrf.mxu0
    %3774 = vmatprep.mubr.f32.mxu0 0.0
    %3775 = vmatmul.mubr.f32.gmra.mxu0 %v3073
    %v3776 = vpop.f32.mrf.mxu0
    %v3777 = vadd.f32 0.0, %v3776
    %v3778 = vpop.f32.mrf.mxu0
    %3779 = vmatprep.mubr.f32.mxu0 0.0
    %3780 = vmatmul.mubr.f32.gmra.mxu0 %v3076
    %v3781 = vpop.f32.mrf.mxu0
    %v3782 = vadd.f32 0.0, %v3781
    %v3783 = vpop.f32.mrf.mxu0
    %3784 = vmatprep.mubr.f32.mxu0 0.0
    %3785 = vmatmul.mubr.f32.gmra.mxu0 %v3079
    %v3786 = vpop.f32.mrf.mxu0
    %v3787 = vadd.f32 0.0, %v3786
    %v3788 = vpop.f32.mrf.mxu0
    %3789 = vmatprep.mubr.f32.mxu0 0.0
    %3790 = vmatmul.mubr.f32.gmra.mxu0 %v3082
    %v3791 = vpop.f32.mrf.mxu0
    %v3792 = vadd.f32 0.0, %v3791
    %v3793 = vpop.f32.mrf.mxu0
    %3794 = vmatprep.mubr.f32.mxu0 0.0
    %3795 = vmatmul.mubr.f32.gmra.mxu0 %v3085
    %v3796 = vpop.f32.mrf.mxu0
    %v3797 = vadd.f32 0.0, %v3796
    %v3798 = vpop.f32.mrf.mxu0
    %3799 = vmatprep.mubr.f32.mxu0 0.0
    %3800 = vmatmul.mubr.f32.gmra.mxu0 %v3088
    %v3801 = vpop.f32.mrf.mxu0
    %v3802 = vadd.f32 0.0, %v3801
    %v3803 = vpop.f32.mrf.mxu0
    %3804 = vmatprep.mubr.f32.mxu0 0.0
    %3805 = vmatmul.mubr.f32.gmra.mxu0 %v3091
    %v3806 = vpop.f32.mrf.mxu0
    %v3807 = vadd.f32 0.0, %v3806
    %v3808 = vpop.f32.mrf.mxu0
    %3809 = vmatprep.mubr.f32.mxu0 0.0
    %3810 = vmatmul.mubr.f32.gmra.mxu0 %v3094
    %v3811 = vpop.f32.mrf.mxu0
    %v3812 = vadd.f32 0.0, %v3811
    %v3813 = vpop.f32.mrf.mxu0
    %3814 = vmatprep.mubr.f32.mxu0 0.0
    %3815 = vmatmul.mubr.f32.gmra.mxu0 %v3097
    %v3816 = vpop.f32.mrf.mxu0
    %v3817 = vadd.f32 0.0, %v3816
    %v3818 = vpop.f32.mrf.mxu0
    %3819 = vmatprep.mubr.f32.mxu0 0.0
    %3820 = vmatmul.mubr.f32.gmra.mxu0 %v3100
    %v3821 = vpop.f32.mrf.mxu0
    %v3822 = vadd.f32 0.0, %v3821
    %v3823 = vpop.f32.mrf.mxu0
    %3824 = vmatprep.mubr.f32.mxu0 0.0
    %3825 = vmatmul.mubr.f32.gmra.mxu0 %v3103
    %v3826 = vpop.f32.mrf.mxu0
    %v3827 = vadd.f32 0.0, %v3826
    %v3828 = vpop.f32.mrf.mxu0
    %3829 = vmatprep.mubr.f32.mxu0 0.0
    %3830 = vmatmul.mubr.f32.gmra.mxu0 %v3106
    %v3831 = vpop.f32.mrf.mxu0
    %v3832 = vadd.f32 0.0, %v3831
    %v3833 = vpop.f32.mrf.mxu0
    %3834 = vmatprep.mubr.f32.mxu0 0.0
    %3835 = vmatmul.mubr.f32.gmra.mxu0 %v3109
    %v3836 = vpop.f32.mrf.mxu0
    %v3837 = vadd.f32 0.0, %v3836
    %v3838 = vpop.f32.mrf.mxu0
    %3839 = vmatprep.mubr.f32.mxu0 0.0
    %3840 = vmatmul.mubr.f32.gmra.mxu0 %v3112
    %v3841 = vpop.f32.mrf.mxu0
    %v3842 = vadd.f32 0.0, %v3841
    %v3843 = vpop.f32.mrf.mxu0
    %3844 = vmatprep.mubr.f32.mxu0 0.0
    %3845 = vmatmul.mubr.f32.gmra.mxu0 %v3115
    %v3846 = vpop.f32.mrf.mxu0
    %v3847 = vadd.f32 0.0, %v3846
    %v3848 = vpop.f32.mrf.mxu0
    %3849 = vmatprep.mubr.f32.mxu0 0.0
    %3850 = vmatmul.mubr.f32.gmra.mxu0 %v3118
    %v3851 = vpop.f32.mrf.mxu0
    %v3852 = vadd.f32 0.0, %v3851
    %v3853 = vpop.f32.mrf.mxu0
    %3854 = vmatprep.mubr.f32.mxu0 0.0
    %3855 = vmatmul.mubr.f32.gmra.mxu0 %v3121
    %v3856 = vpop.f32.mrf.mxu0
    %v3857 = vadd.f32 0.0, %v3856
    %v3858 = vpop.f32.mrf.mxu0
    %3859 = vmatprep.mubr.f32.mxu0 0.0
    %3860 = vmatmul.mubr.f32.gmra.mxu0 %v3124
    %v3861 = vpop.f32.mrf.mxu0
    %v3862 = vadd.f32 0.0, %v3861
    %v3863 = vpop.f32.mrf.mxu0
    %3864 = vmatprep.mubr.f32.mxu0 0.0
    %3865 = vmatmul.mubr.f32.gmra.mxu0 %v3127
    %v3866 = vpop.f32.mrf.mxu0
    %v3867 = vadd.f32 0.0, %v3866
    %v3868 = vpop.f32.mrf.mxu0
    %3869 = vmatprep.mubr.f32.mxu0 0.0
    %3870 = vmatmul.mubr.f32.gmra.mxu0 %v3130
    %v3871 = vpop.f32.mrf.mxu0
    %v3872 = vadd.f32 0.0, %v3871
    %v3873 = vpop.f32.mrf.mxu0
    %3874 = vmatprep.mubr.f32.mxu0 0.0
    %3875 = vmatmul.mubr.f32.gmra.mxu0 %v3133
    %v3876 = vpop.f32.mrf.mxu0
    %v3877 = vadd.f32 0.0, %v3876
    %v3878 = vpop.f32.mrf.mxu0
    %3879 = vmatprep.mubr.f32.mxu0 0.0
    %3880 = vmatmul.mubr.f32.gmra.mxu0 %v3136
    %v3881 = vpop.f32.mrf.mxu0
    %v3882 = vadd.f32 0.0, %v3881
    %v3883 = vpop.f32.mrf.mxu0
    %3884 = vmatprep.mubr.f32.mxu0 0.0
    %3885 = vmatmul.mubr.f32.gmra.mxu0 %v3139
    %v3886 = vpop.f32.mrf.mxu0
    %v3887 = vadd.f32 0.0, %v3886
    %v3888 = vpop.f32.mrf.mxu0
    %3889 = vmatprep.mubr.f32.mxu0 0.0
    %3890 = vmatmul.mubr.f32.gmra.mxu0 %v3142
    %v3891 = vpop.f32.mrf.mxu0
    %v3892 = vadd.f32 0.0, %v3891
    %v3893 = vpop.f32.mrf.mxu0
    %3894 = vmatprep.mubr.f32.mxu0 0.0
    %3895 = vmatmul.mubr.f32.gmra.mxu0 %v3145
    %v3896 = vpop.f32.mrf.mxu0
    %v3897 = vadd.f32 0.0, %v3896
    %v3898 = vpop.f32.mrf.mxu0
    %3899 = vdwg.mxu0
    %v3900 = vadd.f32 %v1981, %v3262
    %v3901 = vadd.f32 %v1986, %v3267
    %v3902 = vadd.f32 %v1991, %v3272
    %v3903 = vadd.f32 %v1996, %v3277
    %v3904 = vadd.f32 %v2001, %v3282
    %v3905 = vadd.f32 %v2006, %v3287
    %v3906 = vadd.f32 %v2011, %v3292
    %v3907 = vadd.f32 %v2016, %v3297
    %v3908 = vadd.f32 %v2021, %v3302
    %v3909 = vadd.f32 %v2026, %v3307
    %v3910 = vadd.f32 %v2031, %v3312
    %v3911 = vadd.f32 %v2036, %v3317
    %v3912 = vadd.f32 %v2041, %v3322
    %v3913 = vadd.f32 %v2046, %v3327
    %v3914 = vadd.f32 %v2051, %v3332
    %v3915 = vadd.f32 %v2056, %v3337
    %v3916 = vadd.f32 %v2061, %v3342
    %v3917 = vadd.f32 %v2066, %v3347
    %v3918 = vadd.f32 %v2071, %v3352
    %v3919 = vadd.f32 %v2076, %v3357
    %v3920 = vadd.f32 %v2081, %v3362
    %v3921 = vadd.f32 %v2086, %v3367
    %v3922 = vadd.f32 %v2091, %v3372
    %v3923 = vadd.f32 %v2096, %v3377
    %v3924 = vadd.f32 %v2101, %v3382
    %v3925 = vadd.f32 %v2106, %v3387
    %v3926 = vadd.f32 %v2111, %v3392
    %v3927 = vadd.f32 %v2116, %v3397
    %v3928 = vadd.f32 %v2121, %v3402
    %v3929 = vadd.f32 %v2126, %v3407
    %v3930 = vadd.f32 %v2131, %v3412
    %v3931 = vadd.f32 %v2136, %v3417
    %v3932 = vadd.f32 %v2141, %v3422
    %v3933 = vadd.f32 %v2146, %v3427
    %v3934 = vadd.f32 %v2151, %v3432
    %v3935 = vadd.f32 %v2156, %v3437
    %v3936 = vadd.f32 %v2161, %v3442
    %v3937 = vadd.f32 %v2166, %v3447
    %v3938 = vadd.f32 %v2171, %v3452
    %v3939 = vadd.f32 %v2176, %v3457
    %v3940 = vadd.f32 %v2181, %v3462
    %v3941 = vadd.f32 %v2186, %v3467
    %v3942 = vadd.f32 %v2191, %v3472
    %v3943 = vadd.f32 %v2196, %v3477
    %v3944 = vadd.f32 %v2201, %v3482
    %v3945 = vadd.f32 %v2206, %v3487
    %v3946 = vadd.f32 %v2211, %v3492
    %v3947 = vadd.f32 %v2216, %v3497
    %v3948 = vadd.f32 %v2221, %v3502
    %v3949 = vadd.f32 %v2226, %v3507
    %v3950 = vadd.f32 %v2231, %v3512
    %v3951 = vadd.f32 %v2236, %v3517
    %v3952 = vadd.f32 %v2241, %v3522
    %v3953 = vadd.f32 %v2246, %v3527
    %v3954 = vadd.f32 %v2251, %v3532
    %v3955 = vadd.f32 %v2256, %v3537
    %v3956 = vadd.f32 %v2261, %v3542
    %v3957 = vadd.f32 %v2266, %v3547
    %v3958 = vadd.f32 %v2271, %v3552
    %v3959 = vadd.f32 %v2276, %v3557
    %v3960 = vadd.f32 %v2281, %v3562
    %v3961 = vadd.f32 %v2286, %v3567
    %v3962 = vadd.f32 %v2291, %v3572
    %v3963 = vadd.f32 %v2296, %v3577
    %v3964 = vadd.f32 %v2301, %v3582
    %v3965 = vadd.f32 %v2306, %v3587
    %v3966 = vadd.f32 %v2311, %v3592
    %v3967 = vadd.f32 %v2316, %v3597
    %v3968 = vadd.f32 %v2321, %v3602
    %v3969 = vadd.f32 %v2326, %v3607
    %v3970 = vadd.f32 %v2331, %v3612
    %v3971 = vadd.f32 %v2336, %v3617
    %v3972 = vadd.f32 %v2341, %v3622
    %v3973 = vadd.f32 %v2346, %v3627
    %v3974 = vadd.f32 %v2351, %v3632
    %v3975 = vadd.f32 %v2356, %v3637
    %v3976 = vadd.f32 %v2361, %v3642
    %v3977 = vadd.f32 %v2366, %v3647
    %v3978 = vadd.f32 %v2371, %v3652
    %v3979 = vadd.f32 %v2376, %v3657
    %v3980 = vadd.f32 %v2381, %v3662
    %v3981 = vadd.f32 %v2386, %v3667
    %v3982 = vadd.f32 %v2391, %v3672
    %v3983 = vadd.f32 %v2396, %v3677
    %v3984 = vadd.f32 %v2401, %v3682
    %v3985 = vadd.f32 %v2406, %v3687
    %v3986 = vadd.f32 %v2411, %v3692
    %v3987 = vadd.f32 %v2416, %v3697
    %v3988 = vadd.f32 %v2421, %v3702
    %v3989 = vadd.f32 %v2426, %v3707
    %v3990 = vadd.f32 %v2431, %v3712
    %v3991 = vadd.f32 %v2436, %v3717
    %v3992 = vadd.f32 %v2441, %v3722
    %v3993 = vadd.f32 %v2446, %v3727
    %v3994 = vadd.f32 %v2451, %v3732
    %v3995 = vadd.f32 %v2456, %v3737
    %v3996 = vadd.f32 %v2461, %v3742
    %v3997 = vadd.f32 %v2466, %v3747
    %v3998 = vadd.f32 %v2471, %v3752
    %v3999 = vadd.f32 %v2476, %v3757
    %v4000 = vadd.f32 %v2481, %v3762
    %v4001 = vadd.f32 %v2486, %v3767
    %v4002 = vadd.f32 %v2491, %v3772
    %v4003 = vadd.f32 %v2496, %v3777
    %v4004 = vadd.f32 %v2501, %v3782
    %v4005 = vadd.f32 %v2506, %v3787
    %v4006 = vadd.f32 %v2511, %v3792
    %v4007 = vadd.f32 %v2516, %v3797
    %v4008 = vadd.f32 %v2521, %v3802
    %v4009 = vadd.f32 %v2526, %v3807
    %v4010 = vadd.f32 %v2531, %v3812
    %v4011 = vadd.f32 %v2536, %v3817
    %v4012 = vadd.f32 %v2541, %v3822
    %v4013 = vadd.f32 %v2546, %v3827
    %v4014 = vadd.f32 %v2551, %v3832
    %v4015 = vadd.f32 %v2556, %v3837
    %v4016 = vadd.f32 %v2561, %v3842
    %v4017 = vadd.f32 %v2566, %v3847
    %v4018 = vadd.f32 %v2571, %v3852
    %v4019 = vadd.f32 %v2576, %v3857
    %v4020 = vadd.f32 %v2581, %v3862
    %v4021 = vadd.f32 %v2586, %v3867
    %v4022 = vadd.f32 %v2591, %v3872
    %v4023 = vadd.f32 %v2596, %v3877
    %v4024 = vadd.f32 %v2601, %v3882
    %v4025 = vadd.f32 %v2606, %v3887
    %v4026 = vadd.f32 %v2611, %v3892
    %v4027 = vadd.f32 %v2616, %v3897
    %v4028 = vld [vmem:[%s6] sm:$0xff]
    %v4029 = vld [vmem:[%s6 + $0x8] sm:$0xff]
    %v4030 = vld [vmem:[%s6 + $0x10] sm:$0xff]
    %v4031 = vld [vmem:[%s6 + $0x18] sm:$0xff]
    %v4032 = vld [vmem:[%s6 + $0x20] sm:$0xff]
    %v4033 = vld [vmem:[%s6 + $0x28] sm:$0xff]
    %v4034 = vld [vmem:[%s6 + $0x30] sm:$0xff]
    %v4035 = vld [vmem:[%s6 + $0x38] sm:$0xff]
    %v4036 = vld [vmem:[%s6 + $0x40] sm:$0xff]
    %v4037 = vld [vmem:[%s6 + $0x48] sm:$0xff]
    %v4038 = vld [vmem:[%s6 + $0x50] sm:$0xff]
    %v4039 = vld [vmem:[%s6 + $0x58] sm:$0xff]
    %v4040 = vld [vmem:[%s6 + $0x60] sm:$0xff]
    %v4041 = vld [vmem:[%s6 + $0x68] sm:$0xff]
    %v4042 = vld [vmem:[%s6 + $0x70] sm:$0xff]
    %v4043 = vld [vmem:[%s6 + $0x78] sm:$0xff]
    %v4044 = vld [vmem:[%s6 + $0x80] sm:$0xff]
    %v4045 = vld [vmem:[%s6 + $0x88] sm:$0xff]
    %v4046 = vld [vmem:[%s6 + $0x90] sm:$0xff]
    %v4047 = vld [vmem:[%s6 + $0x98] sm:$0xff]
    %v4048 = vld [vmem:[%s6 + $0xa0] sm:$0xff]
    %v4049 = vld [vmem:[%s6 + $0xa8] sm:$0xff]
    %v4050 = vld [vmem:[%s6 + $0xb0] sm:$0xff]
    %v4051 = vld [vmem:[%s6 + $0xb8] sm:$0xff]
    %v4052 = vld [vmem:[%s6 + $0xc0] sm:$0xff]
    %v4053 = vld [vmem:[%s6 + $0xc8] sm:$0xff]
    %v4054 = vld [vmem:[%s6 + $0xd0] sm:$0xff]
    %v4055 = vld [vmem:[%s6 + $0xd8] sm:$0xff]
    %v4056 = vld [vmem:[%s6 + $0xe0] sm:$0xff]
    %v4057 = vld [vmem:[%s6 + $0xe8] sm:$0xff]
    %v4058 = vld [vmem:[%s6 + $0xf0] sm:$0xff]
    %v4059 = vld [vmem:[%s6 + $0xf8] sm:$0xff]
    %v4060 = vld [vmem:[%s6 + $0x100] sm:$0xff]
    %v4061 = vld [vmem:[%s6 + $0x108] sm:$0xff]
    %v4062 = vld [vmem:[%s6 + $0x110] sm:$0xff]
    %v4063 = vld [vmem:[%s6 + $0x118] sm:$0xff]
    %v4064 = vld [vmem:[%s6 + $0x120] sm:$0xff]
    %v4065 = vld [vmem:[%s6 + $0x128] sm:$0xff]
    %v4066 = vld [vmem:[%s6 + $0x130] sm:$0xff]
    %v4067 = vld [vmem:[%s6 + $0x138] sm:$0xff]
    %v4068 = vld [vmem:[%s6 + $0x140] sm:$0xff]
    %v4069 = vld [vmem:[%s6 + $0x148] sm:$0xff]
    %v4070 = vld [vmem:[%s6 + $0x150] sm:$0xff]
    %v4071 = vld [vmem:[%s6 + $0x158] sm:$0xff]
    %v4072 = vld [vmem:[%s6 + $0x160] sm:$0xff]
    %v4073 = vld [vmem:[%s6 + $0x168] sm:$0xff]
    %v4074 = vld [vmem:[%s6 + $0x170] sm:$0xff]
    %v4075 = vld [vmem:[%s6 + $0x178] sm:$0xff]
    %v4076 = vld [vmem:[%s6 + $0x180] sm:$0xff]
    %v4077 = vld [vmem:[%s6 + $0x188] sm:$0xff]
    %v4078 = vld [vmem:[%s6 + $0x190] sm:$0xff]
    %v4079 = vld [vmem:[%s6 + $0x198] sm:$0xff]
    %v4080 = vld [vmem:[%s6 + $0x1a0] sm:$0xff]
    %v4081 = vld [vmem:[%s6 + $0x1a8] sm:$0xff]
    %v4082 = vld [vmem:[%s6 + $0x1b0] sm:$0xff]
    %v4083 = vld [vmem:[%s6 + $0x1b8] sm:$0xff]
    %v4084 = vld [vmem:[%s6 + $0x1c0] sm:$0xff]
    %v4085 = vld [vmem:[%s6 + $0x1c8] sm:$0xff]
    %v4086 = vld [vmem:[%s6 + $0x1d0] sm:$0xff]
    %v4087 = vld [vmem:[%s6 + $0x1d8] sm:$0xff]
    %v4088 = vld [vmem:[%s6 + $0x1e0] sm:$0xff]
    %v4089 = vld [vmem:[%s6 + $0x1e8] sm:$0xff]
    %v4090 = vld [vmem:[%s6 + $0x1f0] sm:$0xff]
    %v4091 = vld [vmem:[%s6 + $0x1f8] sm:$0xff]
    %v4092 = vld [vmem:[%s6 + $0x200] sm:$0xff]
    %v4093 = vld [vmem:[%s6 + $0x208] sm:$0xff]
    %v4094 = vld [vmem:[%s6 + $0x210] sm:$0xff]
    %v4095 = vld [vmem:[%s6 + $0x218] sm:$0xff]
    %v4096 = vld [vmem:[%s6 + $0x220] sm:$0xff]
    %v4097 = vld [vmem:[%s6 + $0x228] sm:$0xff]
    %v4098 = vld [vmem:[%s6 + $0x230] sm:$0xff]
    %v4099 = vld [vmem:[%s6 + $0x238] sm:$0xff]
    %v4100 = vld [vmem:[%s6 + $0x240] sm:$0xff]
    %v4101 = vld [vmem:[%s6 + $0x248] sm:$0xff]
    %v4102 = vld [vmem:[%s6 + $0x250] sm:$0xff]
    %v4103 = vld [vmem:[%s6 + $0x258] sm:$0xff]
    %v4104 = vld [vmem:[%s6 + $0x260] sm:$0xff]
    %v4105 = vld [vmem:[%s6 + $0x268] sm:$0xff]
    %v4106 = vld [vmem:[%s6 + $0x270] sm:$0xff]
    %v4107 = vld [vmem:[%s6 + $0x278] sm:$0xff]
    %v4108 = vld [vmem:[%s6 + $0x280] sm:$0xff]
    %v4109 = vld [vmem:[%s6 + $0x288] sm:$0xff]
    %v4110 = vld [vmem:[%s6 + $0x290] sm:$0xff]
    %v4111 = vld [vmem:[%s6 + $0x298] sm:$0xff]
    %v4112 = vld [vmem:[%s6 + $0x2a0] sm:$0xff]
    %v4113 = vld [vmem:[%s6 + $0x2a8] sm:$0xff]
    %v4114 = vld [vmem:[%s6 + $0x2b0] sm:$0xff]
    %v4115 = vld [vmem:[%s6 + $0x2b8] sm:$0xff]
    %v4116 = vld [vmem:[%s6 + $0x2c0] sm:$0xff]
    %v4117 = vld [vmem:[%s6 + $0x2c8] sm:$0xff]
    %v4118 = vld [vmem:[%s6 + $0x2d0] sm:$0xff]
    %v4119 = vld [vmem:[%s6 + $0x2d8] sm:$0xff]
    %v4120 = vld [vmem:[%s6 + $0x2e0] sm:$0xff]
    %v4121 = vld [vmem:[%s6 + $0x2e8] sm:$0xff]
    %v4122 = vld [vmem:[%s6 + $0x2f0] sm:$0xff]
    %v4123 = vld [vmem:[%s6 + $0x2f8] sm:$0xff]
    %v4124 = vld [vmem:[%s6 + $0x300] sm:$0xff]
    %v4125 = vld [vmem:[%s6 + $0x308] sm:$0xff]
    %v4126 = vld [vmem:[%s6 + $0x310] sm:$0xff]
    %v4127 = vld [vmem:[%s6 + $0x318] sm:$0xff]
    %v4128 = vld [vmem:[%s6 + $0x320] sm:$0xff]
    %v4129 = vld [vmem:[%s6 + $0x328] sm:$0xff]
    %v4130 = vld [vmem:[%s6 + $0x330] sm:$0xff]
    %v4131 = vld [vmem:[%s6 + $0x338] sm:$0xff]
    %v4132 = vld [vmem:[%s6 + $0x340] sm:$0xff]
    %v4133 = vld [vmem:[%s6 + $0x348] sm:$0xff]
    %v4134 = vld [vmem:[%s6 + $0x350] sm:$0xff]
    %v4135 = vld [vmem:[%s6 + $0x358] sm:$0xff]
    %v4136 = vld [vmem:[%s6 + $0x360] sm:$0xff]
    %v4137 = vld [vmem:[%s6 + $0x368] sm:$0xff]
    %v4138 = vld [vmem:[%s6 + $0x370] sm:$0xff]
    %v4139 = vld [vmem:[%s6 + $0x378] sm:$0xff]
    %v4140 = vld [vmem:[%s6 + $0x380] sm:$0xff]
    %v4141 = vld [vmem:[%s6 + $0x388] sm:$0xff]
    %v4142 = vld [vmem:[%s6 + $0x390] sm:$0xff]
    %v4143 = vld [vmem:[%s6 + $0x398] sm:$0xff]
    %v4144 = vld [vmem:[%s6 + $0x3a0] sm:$0xff]
    %v4145 = vld [vmem:[%s6 + $0x3a8] sm:$0xff]
    %v4146 = vld [vmem:[%s6 + $0x3b0] sm:$0xff]
    %v4147 = vld [vmem:[%s6 + $0x3b8] sm:$0xff]
    %v4148 = vld [vmem:[%s6 + $0x3c0] sm:$0xff]
    %v4149 = vld [vmem:[%s6 + $0x3c8] sm:$0xff]
    %v4150 = vld [vmem:[%s6 + $0x3d0] sm:$0xff]
    %v4151 = vld [vmem:[%s6 + $0x3d8] sm:$0xff]
    %v4152 = vld [vmem:[%s6 + $0x3e0] sm:$0xff]
    %v4153 = vld [vmem:[%s6 + $0x3e8] sm:$0xff]
    %v4154 = vld [vmem:[%s6 + $0x3f0] sm:$0xff]
    %v4155 = vld [vmem:[%s6 + $0x3f8] sm:$0xff]
    %4157 = vset.pattern.permute.xlu0 0
    %4158 = vperm.xlu0 %4157, %v4028
    %v4159 = vpop.permute.xlu0 %4158
    %4162 = vset.pattern.permute.xlu0 0
    %4163 = vperm.xlu0 %4162, %v4029
    %v4164 = vpop.permute.xlu0 %4163
    %4167 = vset.pattern.permute.xlu0 0
    %4168 = vperm.xlu0 %4167, %v4030
    %v4169 = vpop.permute.xlu0 %4168
    %4172 = vset.pattern.permute.xlu0 0
    %4173 = vperm.xlu0 %4172, %v4031
    %v4174 = vpop.permute.xlu0 %4173
    %4177 = vset.pattern.permute.xlu0 0
    %4178 = vperm.xlu0 %4177, %v4032
    %v4179 = vpop.permute.xlu0 %4178
    %4182 = vset.pattern.permute.xlu0 0
    %4183 = vperm.xlu0 %4182, %v4033
    %v4184 = vpop.permute.xlu0 %4183
    %4187 = vset.pattern.permute.xlu0 0
    %4188 = vperm.xlu0 %4187, %v4034
    %v4189 = vpop.permute.xlu0 %4188
    %4192 = vset.pattern.permute.xlu0 0
    %4193 = vperm.xlu0 %4192, %v4035
    %v4194 = vpop.permute.xlu0 %4193
    %4197 = vset.pattern.permute.xlu0 0
    %4198 = vperm.xlu0 %4197, %v4036
    %v4199 = vpop.permute.xlu0 %4198
    %4202 = vset.pattern.permute.xlu0 0
    %4203 = vperm.xlu0 %4202, %v4037
    %v4204 = vpop.permute.xlu0 %4203
    %4207 = vset.pattern.permute.xlu0 0
    %4208 = vperm.xlu0 %4207, %v4038
    %v4209 = vpop.permute.xlu0 %4208
    %4212 = vset.pattern.permute.xlu0 0
    %4213 = vperm.xlu0 %4212, %v4039
    %v4214 = vpop.permute.xlu0 %4213
    %4217 = vset.pattern.permute.xlu0 0
    %4218 = vperm.xlu0 %4217, %v4040
    %v4219 = vpop.permute.xlu0 %4218
    %4222 = vset.pattern.permute.xlu0 0
    %4223 = vperm.xlu0 %4222, %v4041
    %v4224 = vpop.permute.xlu0 %4223
    %4227 = vset.pattern.permute.xlu0 0
    %4228 = vperm.xlu0 %4227, %v4042
    %v4229 = vpop.permute.xlu0 %4228
    %4232 = vset.pattern.permute.xlu0 0
    %4233 = vperm.xlu0 %4232, %v4043
    %v4234 = vpop.permute.xlu0 %4233
    %4237 = vset.pattern.permute.xlu0 0
    %4238 = vperm.xlu0 %4237, %v4044
    %v4239 = vpop.permute.xlu0 %4238
    %4242 = vset.pattern.permute.xlu0 0
    %4243 = vperm.xlu0 %4242, %v4045
    %v4244 = vpop.permute.xlu0 %4243
    %4247 = vset.pattern.permute.xlu0 0
    %4248 = vperm.xlu0 %4247, %v4046
    %v4249 = vpop.permute.xlu0 %4248
    %4252 = vset.pattern.permute.xlu0 0
    %4253 = vperm.xlu0 %4252, %v4047
    %v4254 = vpop.permute.xlu0 %4253
    %4257 = vset.pattern.permute.xlu0 0
    %4258 = vperm.xlu0 %4257, %v4048
    %v4259 = vpop.permute.xlu0 %4258
    %4262 = vset.pattern.permute.xlu0 0
    %4263 = vperm.xlu0 %4262, %v4049
    %v4264 = vpop.permute.xlu0 %4263
    %4267 = vset.pattern.permute.xlu0 0
    %4268 = vperm.xlu0 %4267, %v4050
    %v4269 = vpop.permute.xlu0 %4268
    %4272 = vset.pattern.permute.xlu0 0
    %4273 = vperm.xlu0 %4272, %v4051
    %v4274 = vpop.permute.xlu0 %4273
    %4277 = vset.pattern.permute.xlu0 0
    %4278 = vperm.xlu0 %4277, %v4052
    %v4279 = vpop.permute.xlu0 %4278
    %4282 = vset.pattern.permute.xlu0 0
    %4283 = vperm.xlu0 %4282, %v4053
    %v4284 = vpop.permute.xlu0 %4283
    %4287 = vset.pattern.permute.xlu0 0
    %4288 = vperm.xlu0 %4287, %v4054
    %v4289 = vpop.permute.xlu0 %4288
    %4292 = vset.pattern.permute.xlu0 0
    %4293 = vperm.xlu0 %4292, %v4055
    %v4294 = vpop.permute.xlu0 %4293
    %4297 = vset.pattern.permute.xlu0 0
    %4298 = vperm.xlu0 %4297, %v4056
    %v4299 = vpop.permute.xlu0 %4298
    %4302 = vset.pattern.permute.xlu0 0
    %4303 = vperm.xlu0 %4302, %v4057
    %v4304 = vpop.permute.xlu0 %4303
    %4307 = vset.pattern.permute.xlu0 0
    %4308 = vperm.xlu0 %4307, %v4058
    %v4309 = vpop.permute.xlu0 %4308
    %4312 = vset.pattern.permute.xlu0 0
    %4313 = vperm.xlu0 %4312, %v4059
    %v4314 = vpop.permute.xlu0 %4313
    %4317 = vset.pattern.permute.xlu0 0
    %4318 = vperm.xlu0 %4317, %v4060
    %v4319 = vpop.permute.xlu0 %4318
    %4322 = vset.pattern.permute.xlu0 0
    %4323 = vperm.xlu0 %4322, %v4061
    %v4324 = vpop.permute.xlu0 %4323
    %4327 = vset.pattern.permute.xlu0 0
    %4328 = vperm.xlu0 %4327, %v4062
    %v4329 = vpop.permute.xlu0 %4328
    %4332 = vset.pattern.permute.xlu0 0
    %4333 = vperm.xlu0 %4332, %v4063
    %v4334 = vpop.permute.xlu0 %4333
    %4337 = vset.pattern.permute.xlu0 0
    %4338 = vperm.xlu0 %4337, %v4064
    %v4339 = vpop.permute.xlu0 %4338
    %4342 = vset.pattern.permute.xlu0 0
    %4343 = vperm.xlu0 %4342, %v4065
    %v4344 = vpop.permute.xlu0 %4343
    %4347 = vset.pattern.permute.xlu0 0
    %4348 = vperm.xlu0 %4347, %v4066
    %v4349 = vpop.permute.xlu0 %4348
    %4352 = vset.pattern.permute.xlu0 0
    %4353 = vperm.xlu0 %4352, %v4067
    %v4354 = vpop.permute.xlu0 %4353
    %4357 = vset.pattern.permute.xlu0 0
    %4358 = vperm.xlu0 %4357, %v4068
    %v4359 = vpop.permute.xlu0 %4358
    %4362 = vset.pattern.permute.xlu0 0
    %4363 = vperm.xlu0 %4362, %v4069
    %v4364 = vpop.permute.xlu0 %4363
    %4367 = vset.pattern.permute.xlu0 0
    %4368 = vperm.xlu0 %4367, %v4070
    %v4369 = vpop.permute.xlu0 %4368
    %4372 = vset.pattern.permute.xlu0 0
    %4373 = vperm.xlu0 %4372, %v4071
    %v4374 = vpop.permute.xlu0 %4373
    %4377 = vset.pattern.permute.xlu0 0
    %4378 = vperm.xlu0 %4377, %v4072
    %v4379 = vpop.permute.xlu0 %4378
    %4382 = vset.pattern.permute.xlu0 0
    %4383 = vperm.xlu0 %4382, %v4073
    %v4384 = vpop.permute.xlu0 %4383
    %4387 = vset.pattern.permute.xlu0 0
    %4388 = vperm.xlu0 %4387, %v4074
    %v4389 = vpop.permute.xlu0 %4388
    %4392 = vset.pattern.permute.xlu0 0
    %4393 = vperm.xlu0 %4392, %v4075
    %v4394 = vpop.permute.xlu0 %4393
    %4397 = vset.pattern.permute.xlu0 0
    %4398 = vperm.xlu0 %4397, %v4076
    %v4399 = vpop.permute.xlu0 %4398
    %4402 = vset.pattern.permute.xlu0 0
    %4403 = vperm.xlu0 %4402, %v4077
    %v4404 = vpop.permute.xlu0 %4403
    %4407 = vset.pattern.permute.xlu0 0
    %4408 = vperm.xlu0 %4407, %v4078
    %v4409 = vpop.permute.xlu0 %4408
    %4412 = vset.pattern.permute.xlu0 0
    %4413 = vperm.xlu0 %4412, %v4079
    %v4414 = vpop.permute.xlu0 %4413
    %4417 = vset.pattern.permute.xlu0 0
    %4418 = vperm.xlu0 %4417, %v4080
    %v4419 = vpop.permute.xlu0 %4418
    %4422 = vset.pattern.permute.xlu0 0
    %4423 = vperm.xlu0 %4422, %v4081
    %v4424 = vpop.permute.xlu0 %4423
    %4427 = vset.pattern.permute.xlu0 0
    %4428 = vperm.xlu0 %4427, %v4082
    %v4429 = vpop.permute.xlu0 %4428
    %4432 = vset.pattern.permute.xlu0 0
    %4433 = vperm.xlu0 %4432, %v4083
    %v4434 = vpop.permute.xlu0 %4433
    %4437 = vset.pattern.permute.xlu0 0
    %4438 = vperm.xlu0 %4437, %v4084
    %v4439 = vpop.permute.xlu0 %4438
    %4442 = vset.pattern.permute.xlu0 0
    %4443 = vperm.xlu0 %4442, %v4085
    %v4444 = vpop.permute.xlu0 %4443
    %4447 = vset.pattern.permute.xlu0 0
    %4448 = vperm.xlu0 %4447, %v4086
    %v4449 = vpop.permute.xlu0 %4448
    %4452 = vset.pattern.permute.xlu0 0
    %4453 = vperm.xlu0 %4452, %v4087
    %v4454 = vpop.permute.xlu0 %4453
    %4457 = vset.pattern.permute.xlu0 0
    %4458 = vperm.xlu0 %4457, %v4088
    %v4459 = vpop.permute.xlu0 %4458
    %4462 = vset.pattern.permute.xlu0 0
    %4463 = vperm.xlu0 %4462, %v4089
    %v4464 = vpop.permute.xlu0 %4463
    %4467 = vset.pattern.permute.xlu0 0
    %4468 = vperm.xlu0 %4467, %v4090
    %v4469 = vpop.permute.xlu0 %4468
    %4472 = vset.pattern.permute.xlu0 0
    %4473 = vperm.xlu0 %4472, %v4091
    %v4474 = vpop.permute.xlu0 %4473
    %4477 = vset.pattern.permute.xlu0 0
    %4478 = vperm.xlu0 %4477, %v4092
    %v4479 = vpop.permute.xlu0 %4478
    %4482 = vset.pattern.permute.xlu0 0
    %4483 = vperm.xlu0 %4482, %v4093
    %v4484 = vpop.permute.xlu0 %4483
    %4487 = vset.pattern.permute.xlu0 0
    %4488 = vperm.xlu0 %4487, %v4094
    %v4489 = vpop.permute.xlu0 %4488
    %4492 = vset.pattern.permute.xlu0 0
    %4493 = vperm.xlu0 %4492, %v4095
    %v4494 = vpop.permute.xlu0 %4493
    %4497 = vset.pattern.permute.xlu0 0
    %4498 = vperm.xlu0 %4497, %v4096
    %v4499 = vpop.permute.xlu0 %4498
    %4502 = vset.pattern.permute.xlu0 0
    %4503 = vperm.xlu0 %4502, %v4097
    %v4504 = vpop.permute.xlu0 %4503
    %4507 = vset.pattern.permute.xlu0 0
    %4508 = vperm.xlu0 %4507, %v4098
    %v4509 = vpop.permute.xlu0 %4508
    %4512 = vset.pattern.permute.xlu0 0
    %4513 = vperm.xlu0 %4512, %v4099
    %v4514 = vpop.permute.xlu0 %4513
    %4517 = vset.pattern.permute.xlu0 0
    %4518 = vperm.xlu0 %4517, %v4100
    %v4519 = vpop.permute.xlu0 %4518
    %4522 = vset.pattern.permute.xlu0 0
    %4523 = vperm.xlu0 %4522, %v4101
    %v4524 = vpop.permute.xlu0 %4523
    %4527 = vset.pattern.permute.xlu0 0
    %4528 = vperm.xlu0 %4527, %v4102
    %v4529 = vpop.permute.xlu0 %4528
    %4532 = vset.pattern.permute.xlu0 0
    %4533 = vperm.xlu0 %4532, %v4103
    %v4534 = vpop.permute.xlu0 %4533
    %4537 = vset.pattern.permute.xlu0 0
    %4538 = vperm.xlu0 %4537, %v4104
    %v4539 = vpop.permute.xlu0 %4538
    %4542 = vset.pattern.permute.xlu0 0
    %4543 = vperm.xlu0 %4542, %v4105
    %v4544 = vpop.permute.xlu0 %4543
    %4547 = vset.pattern.permute.xlu0 0
    %4548 = vperm.xlu0 %4547, %v4106
    %v4549 = vpop.permute.xlu0 %4548
    %4552 = vset.pattern.permute.xlu0 0
    %4553 = vperm.xlu0 %4552, %v4107
    %v4554 = vpop.permute.xlu0 %4553
    %4557 = vset.pattern.permute.xlu0 0
    %4558 = vperm.xlu0 %4557, %v4108
    %v4559 = vpop.permute.xlu0 %4558
    %4562 = vset.pattern.permute.xlu0 0
    %4563 = vperm.xlu0 %4562, %v4109
    %v4564 = vpop.permute.xlu0 %4563
    %4567 = vset.pattern.permute.xlu0 0
    %4568 = vperm.xlu0 %4567, %v4110
    %v4569 = vpop.permute.xlu0 %4568
    %4572 = vset.pattern.permute.xlu0 0
    %4573 = vperm.xlu0 %4572, %v4111
    %v4574 = vpop.permute.xlu0 %4573
    %4577 = vset.pattern.permute.xlu0 0
    %4578 = vperm.xlu0 %4577, %v4112
    %v4579 = vpop.permute.xlu0 %4578
    %4582 = vset.pattern.permute.xlu0 0
    %4583 = vperm.xlu0 %4582, %v4113
    %v4584 = vpop.permute.xlu0 %4583
    %4587 = vset.pattern.permute.xlu0 0
    %4588 = vperm.xlu0 %4587, %v4114
    %v4589 = vpop.permute.xlu0 %4588
    %4592 = vset.pattern.permute.xlu0 0
    %4593 = vperm.xlu0 %4592, %v4115
    %v4594 = vpop.permute.xlu0 %4593
    %4597 = vset.pattern.permute.xlu0 0
    %4598 = vperm.xlu0 %4597, %v4116
    %v4599 = vpop.permute.xlu0 %4598
    %4602 = vset.pattern.permute.xlu0 0
    %4603 = vperm.xlu0 %4602, %v4117
    %v4604 = vpop.permute.xlu0 %4603
    %4607 = vset.pattern.permute.xlu0 0
    %4608 = vperm.xlu0 %4607, %v4118
    %v4609 = vpop.permute.xlu0 %4608
    %4612 = vset.pattern.permute.xlu0 0
    %4613 = vperm.xlu0 %4612, %v4119
    %v4614 = vpop.permute.xlu0 %4613
    %4617 = vset.pattern.permute.xlu0 0
    %4618 = vperm.xlu0 %4617, %v4120
    %v4619 = vpop.permute.xlu0 %4618
    %4622 = vset.pattern.permute.xlu0 0
    %4623 = vperm.xlu0 %4622, %v4121
    %v4624 = vpop.permute.xlu0 %4623
    %4627 = vset.pattern.permute.xlu0 0
    %4628 = vperm.xlu0 %4627, %v4122
    %v4629 = vpop.permute.xlu0 %4628
    %4632 = vset.pattern.permute.xlu0 0
    %4633 = vperm.xlu0 %4632, %v4123
    %v4634 = vpop.permute.xlu0 %4633
    %4637 = vset.pattern.permute.xlu0 0
    %4638 = vperm.xlu0 %4637, %v4124
    %v4639 = vpop.permute.xlu0 %4638
    %4642 = vset.pattern.permute.xlu0 0
    %4643 = vperm.xlu0 %4642, %v4125
    %v4644 = vpop.permute.xlu0 %4643
    %4647 = vset.pattern.permute.xlu0 0
    %4648 = vperm.xlu0 %4647, %v4126
    %v4649 = vpop.permute.xlu0 %4648
    %4652 = vset.pattern.permute.xlu0 0
    %4653 = vperm.xlu0 %4652, %v4127
    %v4654 = vpop.permute.xlu0 %4653
    %4657 = vset.pattern.permute.xlu0 0
    %4658 = vperm.xlu0 %4657, %v4128
    %v4659 = vpop.permute.xlu0 %4658
    %4662 = vset.pattern.permute.xlu0 0
    %4663 = vperm.xlu0 %4662, %v4129
    %v4664 = vpop.permute.xlu0 %4663
    %4667 = vset.pattern.permute.xlu0 0
    %4668 = vperm.xlu0 %4667, %v4130
    %v4669 = vpop.permute.xlu0 %4668
    %4672 = vset.pattern.permute.xlu0 0
    %4673 = vperm.xlu0 %4672, %v4131
    %v4674 = vpop.permute.xlu0 %4673
    %4677 = vset.pattern.permute.xlu0 0
    %4678 = vperm.xlu0 %4677, %v4132
    %v4679 = vpop.permute.xlu0 %4678
    %4682 = vset.pattern.permute.xlu0 0
    %4683 = vperm.xlu0 %4682, %v4133
    %v4684 = vpop.permute.xlu0 %4683
    %4687 = vset.pattern.permute.xlu0 0
    %4688 = vperm.xlu0 %4687, %v4134
    %v4689 = vpop.permute.xlu0 %4688
    %4692 = vset.pattern.permute.xlu0 0
    %4693 = vperm.xlu0 %4692, %v4135
    %v4694 = vpop.permute.xlu0 %4693
    %4697 = vset.pattern.permute.xlu0 0
    %4698 = vperm.xlu0 %4697, %v4136
    %v4699 = vpop.permute.xlu0 %4698
    %4702 = vset.pattern.permute.xlu0 0
    %4703 = vperm.xlu0 %4702, %v4137
    %v4704 = vpop.permute.xlu0 %4703
    %4707 = vset.pattern.permute.xlu0 0
    %4708 = vperm.xlu0 %4707, %v4138
    %v4709 = vpop.permute.xlu0 %4708
    %4712 = vset.pattern.permute.xlu0 0
    %4713 = vperm.xlu0 %4712, %v4139
    %v4714 = vpop.permute.xlu0 %4713
    %4717 = vset.pattern.permute.xlu0 0
    %4718 = vperm.xlu0 %4717, %v4140
    %v4719 = vpop.permute.xlu0 %4718
    %4722 = vset.pattern.permute.xlu0 0
    %4723 = vperm.xlu0 %4722, %v4141
    %v4724 = vpop.permute.xlu0 %4723
    %4727 = vset.pattern.permute.xlu0 0
    %4728 = vperm.xlu0 %4727, %v4142
    %v4729 = vpop.permute.xlu0 %4728
    %4732 = vset.pattern.permute.xlu0 0
    %4733 = vperm.xlu0 %4732, %v4143
    %v4734 = vpop.permute.xlu0 %4733
    %4737 = vset.pattern.permute.xlu0 0
    %4738 = vperm.xlu0 %4737, %v4144
    %v4739 = vpop.permute.xlu0 %4738
    %4742 = vset.pattern.permute.xlu0 0
    %4743 = vperm.xlu0 %4742, %v4145
    %v4744 = vpop.permute.xlu0 %4743
    %4747 = vset.pattern.permute.xlu0 0
    %4748 = vperm.xlu0 %4747, %v4146
    %v4749 = vpop.permute.xlu0 %4748
    %4752 = vset.pattern.permute.xlu0 0
    %4753 = vperm.xlu0 %4752, %v4147
    %v4754 = vpop.permute.xlu0 %4753
    %4757 = vset.pattern.permute.xlu0 0
    %4758 = vperm.xlu0 %4757, %v4148
    %v4759 = vpop.permute.xlu0 %4758
    %4762 = vset.pattern.permute.xlu0 0
    %4763 = vperm.xlu0 %4762, %v4149
    %v4764 = vpop.permute.xlu0 %4763
    %4767 = vset.pattern.permute.xlu0 0
    %4768 = vperm.xlu0 %4767, %v4150
    %v4769 = vpop.permute.xlu0 %4768
    %4772 = vset.pattern.permute.xlu0 0
    %4773 = vperm.xlu0 %4772, %v4151
    %v4774 = vpop.permute.xlu0 %4773
    %4777 = vset.pattern.permute.xlu0 0
    %4778 = vperm.xlu0 %4777, %v4152
    %v4779 = vpop.permute.xlu0 %4778
    %4782 = vset.pattern.permute.xlu0 0
    %4783 = vperm.xlu0 %4782, %v4153
    %v4784 = vpop.permute.xlu0 %4783
    %4787 = vset.pattern.permute.xlu0 0
    %4788 = vperm.xlu0 %4787, %v4154
    %v4789 = vpop.permute.xlu0 %4788
    %4792 = vset.pattern.permute.xlu0 0
    %4793 = vperm.xlu0 %4792, %v4155
    %v4794 = vpop.permute.xlu0 %4793
    %v4796 = vadd.f32 %v3900, %v4159
    %v4797 = vadd.f32 %v3901, %v4164
    %v4798 = vadd.f32 %v3902, %v4169
    %v4799 = vadd.f32 %v3903, %v4174
    %v4800 = vadd.f32 %v3904, %v4179
    %v4801 = vadd.f32 %v3905, %v4184
    %v4802 = vadd.f32 %v3906, %v4189
    %v4803 = vadd.f32 %v3907, %v4194
    %v4804 = vadd.f32 %v3908, %v4199
    %v4805 = vadd.f32 %v3909, %v4204
    %v4806 = vadd.f32 %v3910, %v4209
    %v4807 = vadd.f32 %v3911, %v4214
    %v4808 = vadd.f32 %v3912, %v4219
    %v4809 = vadd.f32 %v3913, %v4224
    %v4810 = vadd.f32 %v3914, %v4229
    %v4811 = vadd.f32 %v3915, %v4234
    %v4812 = vadd.f32 %v3916, %v4239
    %v4813 = vadd.f32 %v3917, %v4244
    %v4814 = vadd.f32 %v3918, %v4249
    %v4815 = vadd.f32 %v3919, %v4254
    %v4816 = vadd.f32 %v3920, %v4259
    %v4817 = vadd.f32 %v3921, %v4264
    %v4818 = vadd.f32 %v3922, %v4269
    %v4819 = vadd.f32 %v3923, %v4274
    %v4820 = vadd.f32 %v3924, %v4279
    %v4821 = vadd.f32 %v3925, %v4284
    %v4822 = vadd.f32 %v3926, %v4289
    %v4823 = vadd.f32 %v3927, %v4294
    %v4824 = vadd.f32 %v3928, %v4299
    %v4825 = vadd.f32 %v3929, %v4304
    %v4826 = vadd.f32 %v3930, %v4309
    %v4827 = vadd.f32 %v3931, %v4314
    %v4828 = vadd.f32 %v3932, %v4319
    %v4829 = vadd.f32 %v3933, %v4324
    %v4830 = vadd.f32 %v3934, %v4329
    %v4831 = vadd.f32 %v3935, %v4334
    %v4832 = vadd.f32 %v3936, %v4339
    %v4833 = vadd.f32 %v3937, %v4344
    %v4834 = vadd.f32 %v3938, %v4349
    %v4835 = vadd.f32 %v3939, %v4354
    %v4836 = vadd.f32 %v3940, %v4359
    %v4837 = vadd.f32 %v3941, %v4364
    %v4838 = vadd.f32 %v3942, %v4369
    %v4839 = vadd.f32 %v3943, %v4374
    %v4840 = vadd.f32 %v3944, %v4379
    %v4841 = vadd.f32 %v3945, %v4384
    %v4842 = vadd.f32 %v3946, %v4389
    %v4843 = vadd.f32 %v3947, %v4394
    %v4844 = vadd.f32 %v3948, %v4399
    %v4845 = vadd.f32 %v3949, %v4404
    %v4846 = vadd.f32 %v3950, %v4409
    %v4847 = vadd.f32 %v3951, %v4414
    %v4848 = vadd.f32 %v3952, %v4419
    %v4849 = vadd.f32 %v3953, %v4424
    %v4850 = vadd.f32 %v3954, %v4429
    %v4851 = vadd.f32 %v3955, %v4434
    %v4852 = vadd.f32 %v3956, %v4439
    %v4853 = vadd.f32 %v3957, %v4444
    %v4854 = vadd.f32 %v3958, %v4449
    %v4855 = vadd.f32 %v3959, %v4454
    %v4856 = vadd.f32 %v3960, %v4459
    %v4857 = vadd.f32 %v3961, %v4464
    %v4858 = vadd.f32 %v3962, %v4469
    %v4859 = vadd.f32 %v3963, %v4474
    %v4860 = vadd.f32 %v3964, %v4479
    %v4861 = vadd.f32 %v3965, %v4484
    %v4862 = vadd.f32 %v3966, %v4489
    %v4863 = vadd.f32 %v3967, %v4494
    %v4864 = vadd.f32 %v3968, %v4499
    %v4865 = vadd.f32 %v3969, %v4504
    %v4866 = vadd.f32 %v3970, %v4509
    %v4867 = vadd.f32 %v3971, %v4514
    %v4868 = vadd.f32 %v3972, %v4519
    %v4869 = vadd.f32 %v3973, %v4524
    %v4870 = vadd.f32 %v3974, %v4529
    %v4871 = vadd.f32 %v3975, %v4534
    %v4872 = vadd.f32 %v3976, %v4539
    %v4873 = vadd.f32 %v3977, %v4544
    %v4874 = vadd.f32 %v3978, %v4549
    %v4875 = vadd.f32 %v3979, %v4554
    %v4876 = vadd.f32 %v3980, %v4559
    %v4877 = vadd.f32 %v3981, %v4564
    %v4878 = vadd.f32 %v3982, %v4569
    %v4879 = vadd.f32 %v3983, %v4574
    %v4880 = vadd.f32 %v3984, %v4579
    %v4881 = vadd.f32 %v3985, %v4584
    %v4882 = vadd.f32 %v3986, %v4589
    %v4883 = vadd.f32 %v3987, %v4594
    %v4884 = vadd.f32 %v3988, %v4599
    %v4885 = vadd.f32 %v3989, %v4604
    %v4886 = vadd.f32 %v3990, %v4609
    %v4887 = vadd.f32 %v3991, %v4614
    %v4888 = vadd.f32 %v3992, %v4619
    %v4889 = vadd.f32 %v3993, %v4624
    %v4890 = vadd.f32 %v3994, %v4629
    %v4891 = vadd.f32 %v3995, %v4634
    %v4892 = vadd.f32 %v3996, %v4639
    %v4893 = vadd.f32 %v3997, %v4644
    %v4894 = vadd.f32 %v3998, %v4649
    %v4895 = vadd.f32 %v3999, %v4654
    %v4896 = vadd.f32 %v4000, %v4659
    %v4897 = vadd.f32 %v4001, %v4664
    %v4898 = vadd.f32 %v4002, %v4669
    %v4899 = vadd.f32 %v4003, %v4674
    %v4900 = vadd.f32 %v4004, %v4679
    %v4901 = vadd.f32 %v4005, %v4684
    %v4902 = vadd.f32 %v4006, %v4689
    %v4903 = vadd.f32 %v4007, %v4694
    %v4904 = vadd.f32 %v4008, %v4699
    %v4905 = vadd.f32 %v4009, %v4704
    %v4906 = vadd.f32 %v4010, %v4709
    %v4907 = vadd.f32 %v4011, %v4714
    %v4908 = vadd.f32 %v4012, %v4719
    %v4909 = vadd.f32 %v4013, %v4724
    %v4910 = vadd.f32 %v4014, %v4729
    %v4911 = vadd.f32 %v4015, %v4734
    %v4912 = vadd.f32 %v4016, %v4739
    %v4913 = vadd.f32 %v4017, %v4744
    %v4914 = vadd.f32 %v4018, %v4749
    %v4915 = vadd.f32 %v4019, %v4754
    %v4916 = vadd.f32 %v4020, %v4759
    %v4917 = vadd.f32 %v4021, %v4764
    %v4918 = vadd.f32 %v4022, %v4769
    %v4919 = vadd.f32 %v4023, %v4774
    %v4920 = vadd.f32 %v4024, %v4779
    %v4921 = vadd.f32 %v4025, %v4784
    %v4922 = vadd.f32 %v4026, %v4789
    %v4923 = vadd.f32 %v4027, %v4794
    %v4924 = vmax.f32 %v4796, 0.0
    %v4925 = vmax.f32 %v4797, 0.0
    %v4926 = vmax.f32 %v4798, 0.0
    %v4927 = vmax.f32 %v4799, 0.0
    %v4928 = vmax.f32 %v4800, 0.0
    %v4929 = vmax.f32 %v4801, 0.0
    %v4930 = vmax.f32 %v4802, 0.0
    %v4931 = vmax.f32 %v4803, 0.0
    %v4932 = vmax.f32 %v4804, 0.0
    %v4933 = vmax.f32 %v4805, 0.0
    %v4934 = vmax.f32 %v4806, 0.0
    %v4935 = vmax.f32 %v4807, 0.0
    %v4936 = vmax.f32 %v4808, 0.0
    %v4937 = vmax.f32 %v4809, 0.0
    %v4938 = vmax.f32 %v4810, 0.0
    %v4939 = vmax.f32 %v4811, 0.0
    %v4940 = vmax.f32 %v4812, 0.0
    %v4941 = vmax.f32 %v4813, 0.0
    %v4942 = vmax.f32 %v4814, 0.0
    %v4943 = vmax.f32 %v4815, 0.0
    %v4944 = vmax.f32 %v4816, 0.0
    %v4945 = vmax.f32 %v4817, 0.0
    %v4946 = vmax.f32 %v4818, 0.0
    %v4947 = vmax.f32 %v4819, 0.0
    %v4948 = vmax.f32 %v4820, 0.0
    %v4949 = vmax.f32 %v4821, 0.0
    %v4950 = vmax.f32 %v4822, 0.0
    %v4951 = vmax.f32 %v4823, 0.0
    %v4952 = vmax.f32 %v4824, 0.0
    %v4953 = vmax.f32 %v4825, 0.0
    %v4954 = vmax.f32 %v4826, 0.0
    %v4955 = vmax.f32 %v4827, 0.0
    %v4956 = vmax.f32 %v4828, 0.0
    %v4957 = vmax.f32 %v4829, 0.0
    %v4958 = vmax.f32 %v4830, 0.0
    %v4959 = vmax.f32 %v4831, 0.0
    %v4960 = vmax.f32 %v4832, 0.0
    %v4961 = vmax.f32 %v4833, 0.0
    %v4962 = vmax.f32 %v4834, 0.0
    %v4963 = vmax.f32 %v4835, 0.0
    %v4964 = vmax.f32 %v4836, 0.0
    %v4965 = vmax.f32 %v4837, 0.0
    %v4966 = vmax.f32 %v4838, 0.0
    %v4967 = vmax.f32 %v4839, 0.0
    %v4968 = vmax.f32 %v4840, 0.0
    %v4969 = vmax.f32 %v4841, 0.0
    %v4970 = vmax.f32 %v4842, 0.0
    %v4971 = vmax.f32 %v4843, 0.0
    %v4972 = vmax.f32 %v4844, 0.0
    %v4973 = vmax.f32 %v4845, 0.0
    %v4974 = vmax.f32 %v4846, 0.0
    %v4975 = vmax.f32 %v4847, 0.0
    %v4976 = vmax.f32 %v4848, 0.0
    %v4977 = vmax.f32 %v4849, 0.0
    %v4978 = vmax.f32 %v4850, 0.0
    %v4979 = vmax.f32 %v4851, 0.0
    %v4980 = vmax.f32 %v4852, 0.0
    %v4981 = vmax.f32 %v4853, 0.0
    %v4982 = vmax.f32 %v4854, 0.0
    %v4983 = vmax.f32 %v4855, 0.0
    %v4984 = vmax.f32 %v4856, 0.0
    %v4985 = vmax.f32 %v4857, 0.0
    %v4986 = vmax.f32 %v4858, 0.0
    %v4987 = vmax.f32 %v4859, 0.0
    %v4988 = vmax.f32 %v4860, 0.0
    %v4989 = vmax.f32 %v4861, 0.0
    %v4990 = vmax.f32 %v4862, 0.0
    %v4991 = vmax.f32 %v4863, 0.0
    %v4992 = vmax.f32 %v4864, 0.0
    %v4993 = vmax.f32 %v4865, 0.0
    %v4994 = vmax.f32 %v4866, 0.0
    %v4995 = vmax.f32 %v4867, 0.0
    %v4996 = vmax.f32 %v4868, 0.0
    %v4997 = vmax.f32 %v4869, 0.0
    %v4998 = vmax.f32 %v4870, 0.0
    %v4999 = vmax.f32 %v4871, 0.0
    %v5000 = vmax.f32 %v4872, 0.0
    %v5001 = vmax.f32 %v4873, 0.0
    %v5002 = vmax.f32 %v4874, 0.0
    %v5003 = vmax.f32 %v4875, 0.0
    %v5004 = vmax.f32 %v4876, 0.0
    %v5005 = vmax.f32 %v4877, 0.0
    %v5006 = vmax.f32 %v4878, 0.0
    %v5007 = vmax.f32 %v4879, 0.0
    %v5008 = vmax.f32 %v4880, 0.0
    %v5009 = vmax.f32 %v4881, 0.0
    %v5010 = vmax.f32 %v4882, 0.0
    %v5011 = vmax.f32 %v4883, 0.0
    %v5012 = vmax.f32 %v4884, 0.0
    %v5013 = vmax.f32 %v4885, 0.0
    %v5014 = vmax.f32 %v4886, 0.0
    %v5015 = vmax.f32 %v4887, 0.0
    %v5016 = vmax.f32 %v4888, 0.0
    %v5017 = vmax.f32 %v4889, 0.0
    %v5018 = vmax.f32 %v4890, 0.0
    %v5019 = vmax.f32 %v4891, 0.0
    %v5020 = vmax.f32 %v4892, 0.0
    %v5021 = vmax.f32 %v4893, 0.0
    %v5022 = vmax.f32 %v4894, 0.0
    %v5023 = vmax.f32 %v4895, 0.0
    %v5024 = vmax.f32 %v4896, 0.0
    %v5025 = vmax.f32 %v4897, 0.0
    %v5026 = vmax.f32 %v4898, 0.0
    %v5027 = vmax.f32 %v4899, 0.0
    %v5028 = vmax.f32 %v4900, 0.0
    %v5029 = vmax.f32 %v4901, 0.0
    %v5030 = vmax.f32 %v4902, 0.0
    %v5031 = vmax.f32 %v4903, 0.0
    %v5032 = vmax.f32 %v4904, 0.0
    %v5033 = vmax.f32 %v4905, 0.0
    %v5034 = vmax.f32 %v4906, 0.0
    %v5035 = vmax.f32 %v4907, 0.0
    %v5036 = vmax.f32 %v4908, 0.0
    %v5037 = vmax.f32 %v4909, 0.0
    %v5038 = vmax.f32 %v4910, 0.0
    %v5039 = vmax.f32 %v4911, 0.0
    %v5040 = vmax.f32 %v4912, 0.0
    %v5041 = vmax.f32 %v4913, 0.0
    %v5042 = vmax.f32 %v4914, 0.0
    %v5043 = vmax.f32 %v4915, 0.0
    %v5044 = vmax.f32 %v4916, 0.0
    %v5045 = vmax.f32 %v4917, 0.0
    %v5046 = vmax.f32 %v4918, 0.0
    %v5047 = vmax.f32 %v4919, 0.0
    %v5048 = vmax.f32 %v4920, 0.0
    %v5049 = vmax.f32 %v4921, 0.0
    %v5050 = vmax.f32 %v4922, 0.0
    %v5051 = vmax.f32 %v4923, 0.0
    %v5052 = vld [vmem:[#allocation3] sm:$0xff]
    %v5053 = vld [vmem:[#allocation3 + $0x8] sm:$0xff]
    %v5054 = vld [vmem:[#allocation3 + $0x10] sm:$0xff]
    %v5055 = vld [vmem:[#allocation3 + $0x18] sm:$0xff]
    %v5056 = vld [vmem:[#allocation3 + $0x20] sm:$0xff]
    %v5057 = vld [vmem:[#allocation3 + $0x28] sm:$0xff]
    %v5058 = vld [vmem:[#allocation3 + $0x30] sm:$0xff]
    %v5059 = vld [vmem:[#allocation3 + $0x38] sm:$0xff]
    %v5060 = vld [vmem:[#allocation3 + $0x40] sm:$0xff]
    %v5061 = vld [vmem:[#allocation3 + $0x48] sm:$0xff]
    %v5062 = vld [vmem:[#allocation3 + $0x50] sm:$0xff]
    %v5063 = vld [vmem:[#allocation3 + $0x58] sm:$0xff]
    %v5064 = vld [vmem:[#allocation3 + $0x60] sm:$0xff]
    %v5065 = vld [vmem:[#allocation3 + $0x68] sm:$0xff]
    %v5066 = vld [vmem:[#allocation3 + $0x70] sm:$0xff]
    %v5067 = vld [vmem:[#allocation3 + $0x78] sm:$0xff]
    %v5068 = vld [vmem:[#allocation3 + $0x80] sm:$0xff]
    %v5069 = vld [vmem:[#allocation3 + $0x88] sm:$0xff]
    %v5070 = vld [vmem:[#allocation3 + $0x90] sm:$0xff]
    %v5071 = vld [vmem:[#allocation3 + $0x98] sm:$0xff]
    %v5072 = vld [vmem:[#allocation3 + $0xa0] sm:$0xff]
    %v5073 = vld [vmem:[#allocation3 + $0xa8] sm:$0xff]
    %v5074 = vld [vmem:[#allocation3 + $0xb0] sm:$0xff]
    %v5075 = vld [vmem:[#allocation3 + $0xb8] sm:$0xff]
    %v5076 = vld [vmem:[#allocation3 + $0xc0] sm:$0xff]
    %v5077 = vld [vmem:[#allocation3 + $0xc8] sm:$0xff]
    %v5078 = vld [vmem:[#allocation3 + $0xd0] sm:$0xff]
    %v5079 = vld [vmem:[#allocation3 + $0xd8] sm:$0xff]
    %v5080 = vld [vmem:[#allocation3 + $0xe0] sm:$0xff]
    %v5081 = vld [vmem:[#allocation3 + $0xe8] sm:$0xff]
    %v5082 = vld [vmem:[#allocation3 + $0xf0] sm:$0xff]
    %v5083 = vld [vmem:[#allocation3 + $0xf8] sm:$0xff]
    %v5084 = vld [vmem:[#allocation3 + $0x100] sm:$0xff]
    %v5085 = vld [vmem:[#allocation3 + $0x108] sm:$0xff]
    %v5086 = vld [vmem:[#allocation3 + $0x110] sm:$0xff]
    %v5087 = vld [vmem:[#allocation3 + $0x118] sm:$0xff]
    %v5088 = vld [vmem:[#allocation3 + $0x120] sm:$0xff]
    %v5089 = vld [vmem:[#allocation3 + $0x128] sm:$0xff]
    %v5090 = vld [vmem:[#allocation3 + $0x130] sm:$0xff]
    %v5091 = vld [vmem:[#allocation3 + $0x138] sm:$0xff]
    %v5092 = vld [vmem:[#allocation3 + $0x140] sm:$0xff]
    %v5093 = vld [vmem:[#allocation3 + $0x148] sm:$0xff]
    %v5094 = vld [vmem:[#allocation3 + $0x150] sm:$0xff]
    %v5095 = vld [vmem:[#allocation3 + $0x158] sm:$0xff]
    %v5096 = vld [vmem:[#allocation3 + $0x160] sm:$0xff]
    %v5097 = vld [vmem:[#allocation3 + $0x168] sm:$0xff]
    %v5098 = vld [vmem:[#allocation3 + $0x170] sm:$0xff]
    %v5099 = vld [vmem:[#allocation3 + $0x178] sm:$0xff]
    %v5100 = vld [vmem:[#allocation3 + $0x180] sm:$0xff]
    %v5101 = vld [vmem:[#allocation3 + $0x188] sm:$0xff]
    %v5102 = vld [vmem:[#allocation3 + $0x190] sm:$0xff]
    %v5103 = vld [vmem:[#allocation3 + $0x198] sm:$0xff]
    %v5104 = vld [vmem:[#allocation3 + $0x1a0] sm:$0xff]
    %v5105 = vld [vmem:[#allocation3 + $0x1a8] sm:$0xff]
    %v5106 = vld [vmem:[#allocation3 + $0x1b0] sm:$0xff]
    %v5107 = vld [vmem:[#allocation3 + $0x1b8] sm:$0xff]
    %v5108 = vld [vmem:[#allocation3 + $0x1c0] sm:$0xff]
    %v5109 = vld [vmem:[#allocation3 + $0x1c8] sm:$0xff]
    %v5110 = vld [vmem:[#allocation3 + $0x1d0] sm:$0xff]
    %v5111 = vld [vmem:[#allocation3 + $0x1d8] sm:$0xff]
    %v5112 = vld [vmem:[#allocation3 + $0x1e0] sm:$0xff]
    %v5113 = vld [vmem:[#allocation3 + $0x1e8] sm:$0xff]
    %v5114 = vld [vmem:[#allocation3 + $0x1f0] sm:$0xff]
    %v5115 = vld [vmem:[#allocation3 + $0x1f8] sm:$0xff]
    %v5116 = vld [vmem:[#allocation3 + $0x200] sm:$0xff]
    %v5117 = vld [vmem:[#allocation3 + $0x208] sm:$0xff]
    %v5118 = vld [vmem:[#allocation3 + $0x210] sm:$0xff]
    %v5119 = vld [vmem:[#allocation3 + $0x218] sm:$0xff]
    %v5120 = vld [vmem:[#allocation3 + $0x220] sm:$0xff]
    %v5121 = vld [vmem:[#allocation3 + $0x228] sm:$0xff]
    %v5122 = vld [vmem:[#allocation3 + $0x230] sm:$0xff]
    %v5123 = vld [vmem:[#allocation3 + $0x238] sm:$0xff]
    %v5124 = vld [vmem:[#allocation3 + $0x240] sm:$0xff]
    %v5125 = vld [vmem:[#allocation3 + $0x248] sm:$0xff]
    %v5126 = vld [vmem:[#allocation3 + $0x250] sm:$0xff]
    %v5127 = vld [vmem:[#allocation3 + $0x258] sm:$0xff]
    %v5128 = vld [vmem:[#allocation3 + $0x260] sm:$0xff]
    %v5129 = vld [vmem:[#allocation3 + $0x268] sm:$0xff]
    %v5130 = vld [vmem:[#allocation3 + $0x270] sm:$0xff]
    %v5131 = vld [vmem:[#allocation3 + $0x278] sm:$0xff]
    %v5132 = vld [vmem:[#allocation3 + $0x280] sm:$0xff]
    %v5133 = vld [vmem:[#allocation3 + $0x288] sm:$0xff]
    %v5134 = vld [vmem:[#allocation3 + $0x290] sm:$0xff]
    %v5135 = vld [vmem:[#allocation3 + $0x298] sm:$0xff]
    %v5136 = vld [vmem:[#allocation3 + $0x2a0] sm:$0xff]
    %v5137 = vld [vmem:[#allocation3 + $0x2a8] sm:$0xff]
    %v5138 = vld [vmem:[#allocation3 + $0x2b0] sm:$0xff]
    %v5139 = vld [vmem:[#allocation3 + $0x2b8] sm:$0xff]
    %v5140 = vld [vmem:[#allocation3 + $0x2c0] sm:$0xff]
    %v5141 = vld [vmem:[#allocation3 + $0x2c8] sm:$0xff]
    %v5142 = vld [vmem:[#allocation3 + $0x2d0] sm:$0xff]
    %v5143 = vld [vmem:[#allocation3 + $0x2d8] sm:$0xff]
    %v5144 = vld [vmem:[#allocation3 + $0x2e0] sm:$0xff]
    %v5145 = vld [vmem:[#allocation3 + $0x2e8] sm:$0xff]
    %v5146 = vld [vmem:[#allocation3 + $0x2f0] sm:$0xff]
    %v5147 = vld [vmem:[#allocation3 + $0x2f8] sm:$0xff]
    %v5148 = vld [vmem:[#allocation3 + $0x300] sm:$0xff]
    %v5149 = vld [vmem:[#allocation3 + $0x308] sm:$0xff]
    %v5150 = vld [vmem:[#allocation3 + $0x310] sm:$0xff]
    %v5151 = vld [vmem:[#allocation3 + $0x318] sm:$0xff]
    %v5152 = vld [vmem:[#allocation3 + $0x320] sm:$0xff]
    %v5153 = vld [vmem:[#allocation3 + $0x328] sm:$0xff]
    %v5154 = vld [vmem:[#allocation3 + $0x330] sm:$0xff]
    %v5155 = vld [vmem:[#allocation3 + $0x338] sm:$0xff]
    %v5156 = vld [vmem:[#allocation3 + $0x340] sm:$0xff]
    %v5157 = vld [vmem:[#allocation3 + $0x348] sm:$0xff]
    %v5158 = vld [vmem:[#allocation3 + $0x350] sm:$0xff]
    %v5159 = vld [vmem:[#allocation3 + $0x358] sm:$0xff]
    %v5160 = vld [vmem:[#allocation3 + $0x360] sm:$0xff]
    %v5161 = vld [vmem:[#allocation3 + $0x368] sm:$0xff]
    %v5162 = vld [vmem:[#allocation3 + $0x370] sm:$0xff]
    %v5163 = vld [vmem:[#allocation3 + $0x378] sm:$0xff]
    %v5164 = vld [vmem:[#allocation3 + $0x380] sm:$0xff]
    %v5165 = vld [vmem:[#allocation3 + $0x388] sm:$0xff]
    %v5166 = vld [vmem:[#allocation3 + $0x390] sm:$0xff]
    %v5167 = vld [vmem:[#allocation3 + $0x398] sm:$0xff]
    %v5168 = vld [vmem:[#allocation3 + $0x3a0] sm:$0xff]
    %v5169 = vld [vmem:[#allocation3 + $0x3a8] sm:$0xff]
    %v5170 = vld [vmem:[#allocation3 + $0x3b0] sm:$0xff]
    %v5171 = vld [vmem:[#allocation3 + $0x3b8] sm:$0xff]
    %v5172 = vld [vmem:[#allocation3 + $0x3c0] sm:$0xff]
    %v5173 = vld [vmem:[#allocation3 + $0x3c8] sm:$0xff]
    %v5174 = vld [vmem:[#allocation3 + $0x3d0] sm:$0xff]
    %v5175 = vld [vmem:[#allocation3 + $0x3d8] sm:$0xff]
    %v5176 = vld [vmem:[#allocation3 + $0x3e0] sm:$0xff]
    %v5177 = vld [vmem:[#allocation3 + $0x3e8] sm:$0xff]
    %v5178 = vld [vmem:[#allocation3 + $0x3f0] sm:$0xff]
    %v5179 = vld [vmem:[#allocation3 + $0x3f8] sm:$0xff]
    %v5180 = vld [vmem:[#allocation3 + $0x400] sm:$0xff]
    %v5181 = vld [vmem:[#allocation3 + $0x408] sm:$0xff]
    %v5182 = vld [vmem:[#allocation3 + $0x410] sm:$0xff]
    %v5183 = vld [vmem:[#allocation3 + $0x418] sm:$0xff]
    %v5184 = vld [vmem:[#allocation3 + $0x420] sm:$0xff]
    %v5185 = vld [vmem:[#allocation3 + $0x428] sm:$0xff]
    %v5186 = vld [vmem:[#allocation3 + $0x430] sm:$0xff]
    %v5187 = vld [vmem:[#allocation3 + $0x438] sm:$0xff]
    %v5188 = vld [vmem:[#allocation3 + $0x440] sm:$0xff]
    %v5189 = vld [vmem:[#allocation3 + $0x448] sm:$0xff]
    %v5190 = vld [vmem:[#allocation3 + $0x450] sm:$0xff]
    %v5191 = vld [vmem:[#allocation3 + $0x458] sm:$0xff]
    %v5192 = vld [vmem:[#allocation3 + $0x460] sm:$0xff]
    %v5193 = vld [vmem:[#allocation3 + $0x468] sm:$0xff]
    %v5194 = vld [vmem:[#allocation3 + $0x470] sm:$0xff]
    %v5195 = vld [vmem:[#allocation3 + $0x478] sm:$0xff]
    %v5196 = vld [vmem:[#allocation3 + $0x480] sm:$0xff]
    %v5197 = vld [vmem:[#allocation3 + $0x488] sm:$0xff]
    %v5198 = vld [vmem:[#allocation3 + $0x490] sm:$0xff]
    %v5199 = vld [vmem:[#allocation3 + $0x498] sm:$0xff]
    %v5200 = vld [vmem:[#allocation3 + $0x4a0] sm:$0xff]
    %v5201 = vld [vmem:[#allocation3 + $0x4a8] sm:$0xff]
    %v5202 = vld [vmem:[#allocation3 + $0x4b0] sm:$0xff]
    %v5203 = vld [vmem:[#allocation3 + $0x4b8] sm:$0xff]
    %v5204 = vld [vmem:[#allocation3 + $0x4c0] sm:$0xff]
    %v5205 = vld [vmem:[#allocation3 + $0x4c8] sm:$0xff]
    %v5206 = vld [vmem:[#allocation3 + $0x4d0] sm:$0xff]
    %v5207 = vld [vmem:[#allocation3 + $0x4d8] sm:$0xff]
    %v5208 = vld [vmem:[#allocation3 + $0x4e0] sm:$0xff]
    %v5209 = vld [vmem:[#allocation3 + $0x4e8] sm:$0xff]
    %v5210 = vld [vmem:[#allocation3 + $0x4f0] sm:$0xff]
    %v5211 = vld [vmem:[#allocation3 + $0x4f8] sm:$0xff]
    %v5212 = vld [vmem:[#allocation3 + $0x500] sm:$0xff]
    %v5213 = vld [vmem:[#allocation3 + $0x508] sm:$0xff]
    %v5214 = vld [vmem:[#allocation3 + $0x510] sm:$0xff]
    %v5215 = vld [vmem:[#allocation3 + $0x518] sm:$0xff]
    %v5216 = vld [vmem:[#allocation3 + $0x520] sm:$0xff]
    %v5217 = vld [vmem:[#allocation3 + $0x528] sm:$0xff]
    %v5218 = vld [vmem:[#allocation3 + $0x530] sm:$0xff]
    %v5219 = vld [vmem:[#allocation3 + $0x538] sm:$0xff]
    %v5220 = vld [vmem:[#allocation3 + $0x540] sm:$0xff]
    %v5221 = vld [vmem:[#allocation3 + $0x548] sm:$0xff]
    %v5222 = vld [vmem:[#allocation3 + $0x550] sm:$0xff]
    %v5223 = vld [vmem:[#allocation3 + $0x558] sm:$0xff]
    %v5224 = vld [vmem:[#allocation3 + $0x560] sm:$0xff]
    %v5225 = vld [vmem:[#allocation3 + $0x568] sm:$0xff]
    %v5226 = vld [vmem:[#allocation3 + $0x570] sm:$0xff]
    %v5227 = vld [vmem:[#allocation3 + $0x578] sm:$0xff]
    %v5228 = vld [vmem:[#allocation3 + $0x580] sm:$0xff]
    %v5229 = vld [vmem:[#allocation3 + $0x588] sm:$0xff]
    %v5230 = vld [vmem:[#allocation3 + $0x590] sm:$0xff]
    %v5231 = vld [vmem:[#allocation3 + $0x598] sm:$0xff]
    %v5232 = vld [vmem:[#allocation3 + $0x5a0] sm:$0xff]
    %v5233 = vld [vmem:[#allocation3 + $0x5a8] sm:$0xff]
    %v5234 = vld [vmem:[#allocation3 + $0x5b0] sm:$0xff]
    %v5235 = vld [vmem:[#allocation3 + $0x5b8] sm:$0xff]
    %v5236 = vld [vmem:[#allocation3 + $0x5c0] sm:$0xff]
    %v5237 = vld [vmem:[#allocation3 + $0x5c8] sm:$0xff]
    %v5238 = vld [vmem:[#allocation3 + $0x5d0] sm:$0xff]
    %v5239 = vld [vmem:[#allocation3 + $0x5d8] sm:$0xff]
    %v5240 = vld [vmem:[#allocation3 + $0x5e0] sm:$0xff]
    %v5241 = vld [vmem:[#allocation3 + $0x5e8] sm:$0xff]
    %v5242 = vld [vmem:[#allocation3 + $0x5f0] sm:$0xff]
    %v5243 = vld [vmem:[#allocation3 + $0x5f8] sm:$0xff]
    %v5244 = vld [vmem:[#allocation3 + $0x600] sm:$0xff]
    %v5245 = vld [vmem:[#allocation3 + $0x608] sm:$0xff]
    %v5246 = vld [vmem:[#allocation3 + $0x610] sm:$0xff]
    %v5247 = vld [vmem:[#allocation3 + $0x618] sm:$0xff]
    %v5248 = vld [vmem:[#allocation3 + $0x620] sm:$0xff]
    %v5249 = vld [vmem:[#allocation3 + $0x628] sm:$0xff]
    %v5250 = vld [vmem:[#allocation3 + $0x630] sm:$0xff]
    %v5251 = vld [vmem:[#allocation3 + $0x638] sm:$0xff]
    %v5252 = vld [vmem:[#allocation3 + $0x640] sm:$0xff]
    %v5253 = vld [vmem:[#allocation3 + $0x648] sm:$0xff]
    %v5254 = vld [vmem:[#allocation3 + $0x650] sm:$0xff]
    %v5255 = vld [vmem:[#allocation3 + $0x658] sm:$0xff]
    %v5256 = vld [vmem:[#allocation3 + $0x660] sm:$0xff]
    %v5257 = vld [vmem:[#allocation3 + $0x668] sm:$0xff]
    %v5258 = vld [vmem:[#allocation3 + $0x670] sm:$0xff]
    %v5259 = vld [vmem:[#allocation3 + $0x678] sm:$0xff]
    %v5260 = vld [vmem:[#allocation3 + $0x680] sm:$0xff]
    %v5261 = vld [vmem:[#allocation3 + $0x688] sm:$0xff]
    %v5262 = vld [vmem:[#allocation3 + $0x690] sm:$0xff]
    %v5263 = vld [vmem:[#allocation3 + $0x698] sm:$0xff]
    %v5264 = vld [vmem:[#allocation3 + $0x6a0] sm:$0xff]
    %v5265 = vld [vmem:[#allocation3 + $0x6a8] sm:$0xff]
    %v5266 = vld [vmem:[#allocation3 + $0x6b0] sm:$0xff]
    %v5267 = vld [vmem:[#allocation3 + $0x6b8] sm:$0xff]
    %v5268 = vld [vmem:[#allocation3 + $0x6c0] sm:$0xff]
    %v5269 = vld [vmem:[#allocation3 + $0x6c8] sm:$0xff]
    %v5270 = vld [vmem:[#allocation3 + $0x6d0] sm:$0xff]
    %v5271 = vld [vmem:[#allocation3 + $0x6d8] sm:$0xff]
    %v5272 = vld [vmem:[#allocation3 + $0x6e0] sm:$0xff]
    %v5273 = vld [vmem:[#allocation3 + $0x6e8] sm:$0xff]
    %v5274 = vld [vmem:[#allocation3 + $0x6f0] sm:$0xff]
    %v5275 = vld [vmem:[#allocation3 + $0x6f8] sm:$0xff]
    %v5276 = vld [vmem:[#allocation3 + $0x700] sm:$0xff]
    %v5277 = vld [vmem:[#allocation3 + $0x708] sm:$0xff]
    %v5278 = vld [vmem:[#allocation3 + $0x710] sm:$0xff]
    %v5279 = vld [vmem:[#allocation3 + $0x718] sm:$0xff]
    %v5280 = vld [vmem:[#allocation3 + $0x720] sm:$0xff]
    %v5281 = vld [vmem:[#allocation3 + $0x728] sm:$0xff]
    %v5282 = vld [vmem:[#allocation3 + $0x730] sm:$0xff]
    %v5283 = vld [vmem:[#allocation3 + $0x738] sm:$0xff]
    %v5284 = vld [vmem:[#allocation3 + $0x740] sm:$0xff]
    %v5285 = vld [vmem:[#allocation3 + $0x748] sm:$0xff]
    %v5286 = vld [vmem:[#allocation3 + $0x750] sm:$0xff]
    %v5287 = vld [vmem:[#allocation3 + $0x758] sm:$0xff]
    %v5288 = vld [vmem:[#allocation3 + $0x760] sm:$0xff]
    %v5289 = vld [vmem:[#allocation3 + $0x768] sm:$0xff]
    %v5290 = vld [vmem:[#allocation3 + $0x770] sm:$0xff]
    %v5291 = vld [vmem:[#allocation3 + $0x778] sm:$0xff]
    %v5292 = vld [vmem:[#allocation3 + $0x780] sm:$0xff]
    %v5293 = vld [vmem:[#allocation3 + $0x788] sm:$0xff]
    %v5294 = vld [vmem:[#allocation3 + $0x790] sm:$0xff]
    %v5295 = vld [vmem:[#allocation3 + $0x798] sm:$0xff]
    %v5296 = vld [vmem:[#allocation3 + $0x7a0] sm:$0xff]
    %v5297 = vld [vmem:[#allocation3 + $0x7a8] sm:$0xff]
    %v5298 = vld [vmem:[#allocation3 + $0x7b0] sm:$0xff]
    %v5299 = vld [vmem:[#allocation3 + $0x7b8] sm:$0xff]
    %v5300 = vld [vmem:[#allocation3 + $0x7c0] sm:$0xff]
    %v5301 = vld [vmem:[#allocation3 + $0x7c8] sm:$0xff]
    %v5302 = vld [vmem:[#allocation3 + $0x7d0] sm:$0xff]
    %v5303 = vld [vmem:[#allocation3 + $0x7d8] sm:$0xff]
    %v5304 = vld [vmem:[#allocation3 + $0x7e0] sm:$0xff]
    %v5305 = vld [vmem:[#allocation3 + $0x7e8] sm:$0xff]
    %v5306 = vld [vmem:[#allocation3 + $0x7f0] sm:$0xff]
    %v5307 = vld [vmem:[#allocation3 + $0x7f8] sm:$0xff]
    %v5308 = vld [vmem:[#allocation3 + $0x800] sm:$0xff]
    %v5309 = vld [vmem:[#allocation3 + $0x808] sm:$0xff]
    %v5310 = vld [vmem:[#allocation3 + $0x810] sm:$0xff]
    %v5311 = vld [vmem:[#allocation3 + $0x818] sm:$0xff]
    %v5312 = vld [vmem:[#allocation3 + $0x820] sm:$0xff]
    %v5313 = vld [vmem:[#allocation3 + $0x828] sm:$0xff]
    %v5314 = vld [vmem:[#allocation3 + $0x830] sm:$0xff]
    %v5315 = vld [vmem:[#allocation3 + $0x838] sm:$0xff]
    %v5316 = vld [vmem:[#allocation3 + $0x840] sm:$0xff]
    %v5317 = vld [vmem:[#allocation3 + $0x848] sm:$0xff]
    %v5318 = vld [vmem:[#allocation3 + $0x850] sm:$0xff]
    %v5319 = vld [vmem:[#allocation3 + $0x858] sm:$0xff]
    %v5320 = vld [vmem:[#allocation3 + $0x860] sm:$0xff]
    %v5321 = vld [vmem:[#allocation3 + $0x868] sm:$0xff]
    %v5322 = vld [vmem:[#allocation3 + $0x870] sm:$0xff]
    %v5323 = vld [vmem:[#allocation3 + $0x878] sm:$0xff]
    %v5324 = vld [vmem:[#allocation3 + $0x880] sm:$0xff]
    %v5325 = vld [vmem:[#allocation3 + $0x888] sm:$0xff]
    %v5326 = vld [vmem:[#allocation3 + $0x890] sm:$0xff]
    %v5327 = vld [vmem:[#allocation3 + $0x898] sm:$0xff]
    %v5328 = vld [vmem:[#allocation3 + $0x8a0] sm:$0xff]
    %v5329 = vld [vmem:[#allocation3 + $0x8a8] sm:$0xff]
    %v5330 = vld [vmem:[#allocation3 + $0x8b0] sm:$0xff]
    %v5331 = vld [vmem:[#allocation3 + $0x8b8] sm:$0xff]
    %v5332 = vld [vmem:[#allocation3 + $0x8c0] sm:$0xff]
    %v5333 = vld [vmem:[#allocation3 + $0x8c8] sm:$0xff]
    %v5334 = vld [vmem:[#allocation3 + $0x8d0] sm:$0xff]
    %v5335 = vld [vmem:[#allocation3 + $0x8d8] sm:$0xff]
    %v5336 = vld [vmem:[#allocation3 + $0x8e0] sm:$0xff]
    %v5337 = vld [vmem:[#allocation3 + $0x8e8] sm:$0xff]
    %v5338 = vld [vmem:[#allocation3 + $0x8f0] sm:$0xff]
    %v5339 = vld [vmem:[#allocation3 + $0x8f8] sm:$0xff]
    %v5340 = vld [vmem:[#allocation3 + $0x900] sm:$0xff]
    %v5341 = vld [vmem:[#allocation3 + $0x908] sm:$0xff]
    %v5342 = vld [vmem:[#allocation3 + $0x910] sm:$0xff]
    %v5343 = vld [vmem:[#allocation3 + $0x918] sm:$0xff]
    %v5344 = vld [vmem:[#allocation3 + $0x920] sm:$0xff]
    %v5345 = vld [vmem:[#allocation3 + $0x928] sm:$0xff]
    %v5346 = vld [vmem:[#allocation3 + $0x930] sm:$0xff]
    %v5347 = vld [vmem:[#allocation3 + $0x938] sm:$0xff]
    %v5348 = vld [vmem:[#allocation3 + $0x940] sm:$0xff]
    %v5349 = vld [vmem:[#allocation3 + $0x948] sm:$0xff]
    %v5350 = vld [vmem:[#allocation3 + $0x950] sm:$0xff]
    %v5351 = vld [vmem:[#allocation3 + $0x958] sm:$0xff]
    %v5352 = vld [vmem:[#allocation3 + $0x960] sm:$0xff]
    %v5353 = vld [vmem:[#allocation3 + $0x968] sm:$0xff]
    %v5354 = vld [vmem:[#allocation3 + $0x970] sm:$0xff]
    %v5355 = vld [vmem:[#allocation3 + $0x978] sm:$0xff]
    %v5356 = vld [vmem:[#allocation3 + $0x980] sm:$0xff]
    %v5357 = vld [vmem:[#allocation3 + $0x988] sm:$0xff]
    %v5358 = vld [vmem:[#allocation3 + $0x990] sm:$0xff]
    %v5359 = vld [vmem:[#allocation3 + $0x998] sm:$0xff]
    %v5360 = vld [vmem:[#allocation3 + $0x9a0] sm:$0xff]
    %v5361 = vld [vmem:[#allocation3 + $0x9a8] sm:$0xff]
    %v5362 = vld [vmem:[#allocation3 + $0x9b0] sm:$0xff]
    %v5363 = vld [vmem:[#allocation3 + $0x9b8] sm:$0xff]
    %v5364 = vld [vmem:[#allocation3 + $0x9c0] sm:$0xff]
    %v5365 = vld [vmem:[#allocation3 + $0x9c8] sm:$0xff]
    %v5366 = vld [vmem:[#allocation3 + $0x9d0] sm:$0xff]
    %v5367 = vld [vmem:[#allocation3 + $0x9d8] sm:$0xff]
    %v5368 = vld [vmem:[#allocation3 + $0x9e0] sm:$0xff]
    %v5369 = vld [vmem:[#allocation3 + $0x9e8] sm:$0xff]
    %v5370 = vld [vmem:[#allocation3 + $0x9f0] sm:$0xff]
    %v5371 = vld [vmem:[#allocation3 + $0x9f8] sm:$0xff]
    %v5372 = vld [vmem:[#allocation3 + $0xa00] sm:$0xff]
    %v5373 = vld [vmem:[#allocation3 + $0xa08] sm:$0xff]
    %v5374 = vld [vmem:[#allocation3 + $0xa10] sm:$0xff]
    %v5375 = vld [vmem:[#allocation3 + $0xa18] sm:$0xff]
    %v5376 = vld [vmem:[#allocation3 + $0xa20] sm:$0xff]
    %v5377 = vld [vmem:[#allocation3 + $0xa28] sm:$0xff]
    %v5378 = vld [vmem:[#allocation3 + $0xa30] sm:$0xff]
    %v5379 = vld [vmem:[#allocation3 + $0xa38] sm:$0xff]
    %v5380 = vld [vmem:[#allocation3 + $0xa40] sm:$0xff]
    %v5381 = vld [vmem:[#allocation3 + $0xa48] sm:$0xff]
    %v5382 = vld [vmem:[#allocation3 + $0xa50] sm:$0xff]
    %v5383 = vld [vmem:[#allocation3 + $0xa58] sm:$0xff]
    %v5384 = vld [vmem:[#allocation3 + $0xa60] sm:$0xff]
    %v5385 = vld [vmem:[#allocation3 + $0xa68] sm:$0xff]
    %v5386 = vld [vmem:[#allocation3 + $0xa70] sm:$0xff]
    %v5387 = vld [vmem:[#allocation3 + $0xa78] sm:$0xff]
    %v5388 = vld [vmem:[#allocation3 + $0xa80] sm:$0xff]
    %v5389 = vld [vmem:[#allocation3 + $0xa88] sm:$0xff]
    %v5390 = vld [vmem:[#allocation3 + $0xa90] sm:$0xff]
    %v5391 = vld [vmem:[#allocation3 + $0xa98] sm:$0xff]
    %v5392 = vld [vmem:[#allocation3 + $0xaa0] sm:$0xff]
    %v5393 = vld [vmem:[#allocation3 + $0xaa8] sm:$0xff]
    %v5394 = vld [vmem:[#allocation3 + $0xab0] sm:$0xff]
    %v5395 = vld [vmem:[#allocation3 + $0xab8] sm:$0xff]
    %v5396 = vld [vmem:[#allocation3 + $0xac0] sm:$0xff]
    %v5397 = vld [vmem:[#allocation3 + $0xac8] sm:$0xff]
    %v5398 = vld [vmem:[#allocation3 + $0xad0] sm:$0xff]
    %v5399 = vld [vmem:[#allocation3 + $0xad8] sm:$0xff]
    %v5400 = vld [vmem:[#allocation3 + $0xae0] sm:$0xff]
    %v5401 = vld [vmem:[#allocation3 + $0xae8] sm:$0xff]
    %v5402 = vld [vmem:[#allocation3 + $0xaf0] sm:$0xff]
    %v5403 = vld [vmem:[#allocation3 + $0xaf8] sm:$0xff]
    %v5404 = vld [vmem:[#allocation3 + $0xb00] sm:$0xff]
    %v5405 = vld [vmem:[#allocation3 + $0xb08] sm:$0xff]
    %v5406 = vld [vmem:[#allocation3 + $0xb10] sm:$0xff]
    %v5407 = vld [vmem:[#allocation3 + $0xb18] sm:$0xff]
    %v5408 = vld [vmem:[#allocation3 + $0xb20] sm:$0xff]
    %v5409 = vld [vmem:[#allocation3 + $0xb28] sm:$0xff]
    %v5410 = vld [vmem:[#allocation3 + $0xb30] sm:$0xff]
    %v5411 = vld [vmem:[#allocation3 + $0xb38] sm:$0xff]
    %v5412 = vld [vmem:[#allocation3 + $0xb40] sm:$0xff]
    %v5413 = vld [vmem:[#allocation3 + $0xb48] sm:$0xff]
    %v5414 = vld [vmem:[#allocation3 + $0xb50] sm:$0xff]
    %v5415 = vld [vmem:[#allocation3 + $0xb58] sm:$0xff]
    %v5416 = vld [vmem:[#allocation3 + $0xb60] sm:$0xff]
    %v5417 = vld [vmem:[#allocation3 + $0xb68] sm:$0xff]
    %v5418 = vld [vmem:[#allocation3 + $0xb70] sm:$0xff]
    %v5419 = vld [vmem:[#allocation3 + $0xb78] sm:$0xff]
    %v5420 = vld [vmem:[#allocation3 + $0xb80] sm:$0xff]
    %v5421 = vld [vmem:[#allocation3 + $0xb88] sm:$0xff]
    %v5422 = vld [vmem:[#allocation3 + $0xb90] sm:$0xff]
    %v5423 = vld [vmem:[#allocation3 + $0xb98] sm:$0xff]
    %v5424 = vld [vmem:[#allocation3 + $0xba0] sm:$0xff]
    %v5425 = vld [vmem:[#allocation3 + $0xba8] sm:$0xff]
    %v5426 = vld [vmem:[#allocation3 + $0xbb0] sm:$0xff]
    %v5427 = vld [vmem:[#allocation3 + $0xbb8] sm:$0xff]
    %v5428 = vld [vmem:[#allocation3 + $0xbc0] sm:$0xff]
    %v5429 = vld [vmem:[#allocation3 + $0xbc8] sm:$0xff]
    %v5430 = vld [vmem:[#allocation3 + $0xbd0] sm:$0xff]
    %v5431 = vld [vmem:[#allocation3 + $0xbd8] sm:$0xff]
    %v5432 = vld [vmem:[#allocation3 + $0xbe0] sm:$0xff]
    %v5433 = vld [vmem:[#allocation3 + $0xbe8] sm:$0xff]
    %v5434 = vld [vmem:[#allocation3 + $0xbf0] sm:$0xff]
    %v5435 = vld [vmem:[#allocation3 + $0xbf8] sm:$0xff]
    %v5436 = vld [vmem:[#allocation3 + $0xc00] sm:$0xff]
    %v5437 = vld [vmem:[#allocation3 + $0xc08] sm:$0xff]
    %v5438 = vld [vmem:[#allocation3 + $0xc10] sm:$0xff]
    %v5439 = vld [vmem:[#allocation3 + $0xc18] sm:$0xff]
    %v5440 = vld [vmem:[#allocation3 + $0xc20] sm:$0xff]
    %v5441 = vld [vmem:[#allocation3 + $0xc28] sm:$0xff]
    %v5442 = vld [vmem:[#allocation3 + $0xc30] sm:$0xff]
    %v5443 = vld [vmem:[#allocation3 + $0xc38] sm:$0xff]
    %v5444 = vld [vmem:[#allocation3 + $0xc40] sm:$0xff]
    %v5445 = vld [vmem:[#allocation3 + $0xc48] sm:$0xff]
    %v5446 = vld [vmem:[#allocation3 + $0xc50] sm:$0xff]
    %v5447 = vld [vmem:[#allocation3 + $0xc58] sm:$0xff]
    %v5448 = vld [vmem:[#allocation3 + $0xc60] sm:$0xff]
    %v5449 = vld [vmem:[#allocation3 + $0xc68] sm:$0xff]
    %v5450 = vld [vmem:[#allocation3 + $0xc70] sm:$0xff]
    %v5451 = vld [vmem:[#allocation3 + $0xc78] sm:$0xff]
    %v5452 = vld [vmem:[#allocation3 + $0xc80] sm:$0xff]
    %v5453 = vld [vmem:[#allocation3 + $0xc88] sm:$0xff]
    %v5454 = vld [vmem:[#allocation3 + $0xc90] sm:$0xff]
    %v5455 = vld [vmem:[#allocation3 + $0xc98] sm:$0xff]
    %v5456 = vld [vmem:[#allocation3 + $0xca0] sm:$0xff]
    %v5457 = vld [vmem:[#allocation3 + $0xca8] sm:$0xff]
    %v5458 = vld [vmem:[#allocation3 + $0xcb0] sm:$0xff]
    %v5459 = vld [vmem:[#allocation3 + $0xcb8] sm:$0xff]
    %v5460 = vld [vmem:[#allocation3 + $0xcc0] sm:$0xff]
    %v5461 = vld [vmem:[#allocation3 + $0xcc8] sm:$0xff]
    %v5462 = vld [vmem:[#allocation3 + $0xcd0] sm:$0xff]
    %v5463 = vld [vmem:[#allocation3 + $0xcd8] sm:$0xff]
    %v5464 = vld [vmem:[#allocation3 + $0xce0] sm:$0xff]
    %v5465 = vld [vmem:[#allocation3 + $0xce8] sm:$0xff]
    %v5466 = vld [vmem:[#allocation3 + $0xcf0] sm:$0xff]
    %v5467 = vld [vmem:[#allocation3 + $0xcf8] sm:$0xff]
    %v5468 = vld [vmem:[#allocation3 + $0xd00] sm:$0xff]
    %v5469 = vld [vmem:[#allocation3 + $0xd08] sm:$0xff]
    %v5470 = vld [vmem:[#allocation3 + $0xd10] sm:$0xff]
    %v5471 = vld [vmem:[#allocation3 + $0xd18] sm:$0xff]
    %v5472 = vld [vmem:[#allocation3 + $0xd20] sm:$0xff]
    %v5473 = vld [vmem:[#allocation3 + $0xd28] sm:$0xff]
    %v5474 = vld [vmem:[#allocation3 + $0xd30] sm:$0xff]
    %v5475 = vld [vmem:[#allocation3 + $0xd38] sm:$0xff]
    %v5476 = vld [vmem:[#allocation3 + $0xd40] sm:$0xff]
    %v5477 = vld [vmem:[#allocation3 + $0xd48] sm:$0xff]
    %v5478 = vld [vmem:[#allocation3 + $0xd50] sm:$0xff]
    %v5479 = vld [vmem:[#allocation3 + $0xd58] sm:$0xff]
    %v5480 = vld [vmem:[#allocation3 + $0xd60] sm:$0xff]
    %v5481 = vld [vmem:[#allocation3 + $0xd68] sm:$0xff]
    %v5482 = vld [vmem:[#allocation3 + $0xd70] sm:$0xff]
    %v5483 = vld [vmem:[#allocation3 + $0xd78] sm:$0xff]
    %v5484 = vld [vmem:[#allocation3 + $0xd80] sm:$0xff]
    %v5485 = vld [vmem:[#allocation3 + $0xd88] sm:$0xff]
    %v5486 = vld [vmem:[#allocation3 + $0xd90] sm:$0xff]
    %v5487 = vld [vmem:[#allocation3 + $0xd98] sm:$0xff]
    %v5488 = vld [vmem:[#allocation3 + $0xda0] sm:$0xff]
    %v5489 = vld [vmem:[#allocation3 + $0xda8] sm:$0xff]
    %v5490 = vld [vmem:[#allocation3 + $0xdb0] sm:$0xff]
    %v5491 = vld [vmem:[#allocation3 + $0xdb8] sm:$0xff]
    %v5492 = vld [vmem:[#allocation3 + $0xdc0] sm:$0xff]
    %v5493 = vld [vmem:[#allocation3 + $0xdc8] sm:$0xff]
    %v5494 = vld [vmem:[#allocation3 + $0xdd0] sm:$0xff]
    %v5495 = vld [vmem:[#allocation3 + $0xdd8] sm:$0xff]
    %v5496 = vld [vmem:[#allocation3 + $0xde0] sm:$0xff]
    %v5497 = vld [vmem:[#allocation3 + $0xde8] sm:$0xff]
    %v5498 = vld [vmem:[#allocation3 + $0xdf0] sm:$0xff]
    %v5499 = vld [vmem:[#allocation3 + $0xdf8] sm:$0xff]
    %v5500 = vld [vmem:[#allocation3 + $0xe00] sm:$0xff]
    %v5501 = vld [vmem:[#allocation3 + $0xe08] sm:$0xff]
    %v5502 = vld [vmem:[#allocation3 + $0xe10] sm:$0xff]
    %v5503 = vld [vmem:[#allocation3 + $0xe18] sm:$0xff]
    %v5504 = vld [vmem:[#allocation3 + $0xe20] sm:$0xff]
    %v5505 = vld [vmem:[#allocation3 + $0xe28] sm:$0xff]
    %v5506 = vld [vmem:[#allocation3 + $0xe30] sm:$0xff]
    %v5507 = vld [vmem:[#allocation3 + $0xe38] sm:$0xff]
    %v5508 = vld [vmem:[#allocation3 + $0xe40] sm:$0xff]
    %v5509 = vld [vmem:[#allocation3 + $0xe48] sm:$0xff]
    %v5510 = vld [vmem:[#allocation3 + $0xe50] sm:$0xff]
    %v5511 = vld [vmem:[#allocation3 + $0xe58] sm:$0xff]
    %v5512 = vld [vmem:[#allocation3 + $0xe60] sm:$0xff]
    %v5513 = vld [vmem:[#allocation3 + $0xe68] sm:$0xff]
    %v5514 = vld [vmem:[#allocation3 + $0xe70] sm:$0xff]
    %v5515 = vld [vmem:[#allocation3 + $0xe78] sm:$0xff]
    %v5516 = vld [vmem:[#allocation3 + $0xe80] sm:$0xff]
    %v5517 = vld [vmem:[#allocation3 + $0xe88] sm:$0xff]
    %v5518 = vld [vmem:[#allocation3 + $0xe90] sm:$0xff]
    %v5519 = vld [vmem:[#allocation3 + $0xe98] sm:$0xff]
    %v5520 = vld [vmem:[#allocation3 + $0xea0] sm:$0xff]
    %v5521 = vld [vmem:[#allocation3 + $0xea8] sm:$0xff]
    %v5522 = vld [vmem:[#allocation3 + $0xeb0] sm:$0xff]
    %v5523 = vld [vmem:[#allocation3 + $0xeb8] sm:$0xff]
    %v5524 = vld [vmem:[#allocation3 + $0xec0] sm:$0xff]
    %v5525 = vld [vmem:[#allocation3 + $0xec8] sm:$0xff]
    %v5526 = vld [vmem:[#allocation3 + $0xed0] sm:$0xff]
    %v5527 = vld [vmem:[#allocation3 + $0xed8] sm:$0xff]
    %v5528 = vld [vmem:[#allocation3 + $0xee0] sm:$0xff]
    %v5529 = vld [vmem:[#allocation3 + $0xee8] sm:$0xff]
    %v5530 = vld [vmem:[#allocation3 + $0xef0] sm:$0xff]
    %v5531 = vld [vmem:[#allocation3 + $0xef8] sm:$0xff]
    %v5532 = vld [vmem:[#allocation3 + $0xf00] sm:$0xff]
    %v5533 = vld [vmem:[#allocation3 + $0xf08] sm:$0xff]
    %v5534 = vld [vmem:[#allocation3 + $0xf10] sm:$0xff]
    %v5535 = vld [vmem:[#allocation3 + $0xf18] sm:$0xff]
    %v5536 = vld [vmem:[#allocation3 + $0xf20] sm:$0xff]
    %v5537 = vld [vmem:[#allocation3 + $0xf28] sm:$0xff]
    %v5538 = vld [vmem:[#allocation3 + $0xf30] sm:$0xff]
    %v5539 = vld [vmem:[#allocation3 + $0xf38] sm:$0xff]
    %v5540 = vld [vmem:[#allocation3 + $0xf40] sm:$0xff]
    %v5541 = vld [vmem:[#allocation3 + $0xf48] sm:$0xff]
    %v5542 = vld [vmem:[#allocation3 + $0xf50] sm:$0xff]
    %v5543 = vld [vmem:[#allocation3 + $0xf58] sm:$0xff]
    %v5544 = vld [vmem:[#allocation3 + $0xf60] sm:$0xff]
    %v5545 = vld [vmem:[#allocation3 + $0xf68] sm:$0xff]
    %v5546 = vld [vmem:[#allocation3 + $0xf70] sm:$0xff]
    %v5547 = vld [vmem:[#allocation3 + $0xf78] sm:$0xff]
    %v5548 = vld [vmem:[#allocation3 + $0xf80] sm:$0xff]
    %v5549 = vld [vmem:[#allocation3 + $0xf88] sm:$0xff]
    %v5550 = vld [vmem:[#allocation3 + $0xf90] sm:$0xff]
    %v5551 = vld [vmem:[#allocation3 + $0xf98] sm:$0xff]
    %v5552 = vld [vmem:[#allocation3 + $0xfa0] sm:$0xff]
    %v5553 = vld [vmem:[#allocation3 + $0xfa8] sm:$0xff]
    %v5554 = vld [vmem:[#allocation3 + $0xfb0] sm:$0xff]
    %v5555 = vld [vmem:[#allocation3 + $0xfb8] sm:$0xff]
    %v5556 = vld [vmem:[#allocation3 + $0xfc0] sm:$0xff]
    %v5557 = vld [vmem:[#allocation3 + $0xfc8] sm:$0xff]
    %v5558 = vld [vmem:[#allocation3 + $0xfd0] sm:$0xff]
    %v5559 = vld [vmem:[#allocation3 + $0xfd8] sm:$0xff]
    %v5560 = vld [vmem:[#allocation3 + $0xfe0] sm:$0xff]
    %v5561 = vld [vmem:[#allocation3 + $0xfe8] sm:$0xff]
    %v5562 = vld [vmem:[#allocation3 + $0xff0] sm:$0xff]
    %v5563 = vld [vmem:[#allocation3 + $0xff8] sm:$0xff]
    %v5564 = vld [vmem:[#allocation3 + $0x1000] sm:$0xff]
    %v5565 = vld [vmem:[#allocation3 + $0x1008] sm:$0xff]
    %v5566 = vld [vmem:[#allocation3 + $0x1010] sm:$0xff]
    %v5567 = vld [vmem:[#allocation3 + $0x1018] sm:$0xff]
    %v5568 = vld [vmem:[#allocation3 + $0x1020] sm:$0xff]
    %v5569 = vld [vmem:[#allocation3 + $0x1028] sm:$0xff]
    %v5570 = vld [vmem:[#allocation3 + $0x1030] sm:$0xff]
    %v5571 = vld [vmem:[#allocation3 + $0x1038] sm:$0xff]
    %v5572 = vld [vmem:[#allocation3 + $0x1040] sm:$0xff]
    %v5573 = vld [vmem:[#allocation3 + $0x1048] sm:$0xff]
    %v5574 = vld [vmem:[#allocation3 + $0x1050] sm:$0xff]
    %v5575 = vld [vmem:[#allocation3 + $0x1058] sm:$0xff]
    %v5576 = vld [vmem:[#allocation3 + $0x1060] sm:$0xff]
    %v5577 = vld [vmem:[#allocation3 + $0x1068] sm:$0xff]
    %v5578 = vld [vmem:[#allocation3 + $0x1070] sm:$0xff]
    %v5579 = vld [vmem:[#allocation3 + $0x1078] sm:$0xff]
    %v5580 = vld [vmem:[#allocation3 + $0x1080] sm:$0xff]
    %v5581 = vld [vmem:[#allocation3 + $0x1088] sm:$0xff]
    %v5582 = vld [vmem:[#allocation3 + $0x1090] sm:$0xff]
    %v5583 = vld [vmem:[#allocation3 + $0x1098] sm:$0xff]
    %v5584 = vld [vmem:[#allocation3 + $0x10a0] sm:$0xff]
    %v5585 = vld [vmem:[#allocation3 + $0x10a8] sm:$0xff]
    %v5586 = vld [vmem:[#allocation3 + $0x10b0] sm:$0xff]
    %v5587 = vld [vmem:[#allocation3 + $0x10b8] sm:$0xff]
    %v5588 = vld [vmem:[#allocation3 + $0x10c0] sm:$0xff]
    %v5589 = vld [vmem:[#allocation3 + $0x10c8] sm:$0xff]
    %v5590 = vld [vmem:[#allocation3 + $0x10d0] sm:$0xff]
    %v5591 = vld [vmem:[#allocation3 + $0x10d8] sm:$0xff]
    %v5592 = vld [vmem:[#allocation3 + $0x10e0] sm:$0xff]
    %v5593 = vld [vmem:[#allocation3 + $0x10e8] sm:$0xff]
    %v5594 = vld [vmem:[#allocation3 + $0x10f0] sm:$0xff]
    %v5595 = vld [vmem:[#allocation3 + $0x10f8] sm:$0xff]
    %v5596 = vld [vmem:[#allocation3 + $0x1100] sm:$0xff]
    %v5597 = vld [vmem:[#allocation3 + $0x1108] sm:$0xff]
    %v5598 = vld [vmem:[#allocation3 + $0x1110] sm:$0xff]
    %v5599 = vld [vmem:[#allocation3 + $0x1118] sm:$0xff]
    %v5600 = vld [vmem:[#allocation3 + $0x1120] sm:$0xff]
    %v5601 = vld [vmem:[#allocation3 + $0x1128] sm:$0xff]
    %v5602 = vld [vmem:[#allocation3 + $0x1130] sm:$0xff]
    %v5603 = vld [vmem:[#allocation3 + $0x1138] sm:$0xff]
    %v5604 = vld [vmem:[#allocation3 + $0x1140] sm:$0xff]
    %v5605 = vld [vmem:[#allocation3 + $0x1148] sm:$0xff]
    %v5606 = vld [vmem:[#allocation3 + $0x1150] sm:$0xff]
    %v5607 = vld [vmem:[#allocation3 + $0x1158] sm:$0xff]
    %v5608 = vld [vmem:[#allocation3 + $0x1160] sm:$0xff]
    %v5609 = vld [vmem:[#allocation3 + $0x1168] sm:$0xff]
    %v5610 = vld [vmem:[#allocation3 + $0x1170] sm:$0xff]
    %v5611 = vld [vmem:[#allocation3 + $0x1178] sm:$0xff]
    %v5612 = vld [vmem:[#allocation3 + $0x1180] sm:$0xff]
    %v5613 = vld [vmem:[#allocation3 + $0x1188] sm:$0xff]
    %v5614 = vld [vmem:[#allocation3 + $0x1190] sm:$0xff]
    %v5615 = vld [vmem:[#allocation3 + $0x1198] sm:$0xff]
    %v5616 = vld [vmem:[#allocation3 + $0x11a0] sm:$0xff]
    %v5617 = vld [vmem:[#allocation3 + $0x11a8] sm:$0xff]
    %v5618 = vld [vmem:[#allocation3 + $0x11b0] sm:$0xff]
    %v5619 = vld [vmem:[#allocation3 + $0x11b8] sm:$0xff]
    %v5620 = vld [vmem:[#allocation3 + $0x11c0] sm:$0xff]
    %v5621 = vld [vmem:[#allocation3 + $0x11c8] sm:$0xff]
    %v5622 = vld [vmem:[#allocation3 + $0x11d0] sm:$0xff]
    %v5623 = vld [vmem:[#allocation3 + $0x11d8] sm:$0xff]
    %v5624 = vld [vmem:[#allocation3 + $0x11e0] sm:$0xff]
    %v5625 = vld [vmem:[#allocation3 + $0x11e8] sm:$0xff]
    %v5626 = vld [vmem:[#allocation3 + $0x11f0] sm:$0xff]
    %v5627 = vld [vmem:[#allocation3 + $0x11f8] sm:$0xff]
    %v5628 = vld [vmem:[#allocation3 + $0x1200] sm:$0xff]
    %v5629 = vld [vmem:[#allocation3 + $0x1208] sm:$0xff]
    %v5630 = vld [vmem:[#allocation3 + $0x1210] sm:$0xff]
    %v5631 = vld [vmem:[#allocation3 + $0x1218] sm:$0xff]
    %v5632 = vld [vmem:[#allocation3 + $0x1220] sm:$0xff]
    %v5633 = vld [vmem:[#allocation3 + $0x1228] sm:$0xff]
    %v5634 = vld [vmem:[#allocation3 + $0x1230] sm:$0xff]
    %v5635 = vld [vmem:[#allocation3 + $0x1238] sm:$0xff]
    %v5636 = vld [vmem:[#allocation3 + $0x1240] sm:$0xff]
    %v5637 = vld [vmem:[#allocation3 + $0x1248] sm:$0xff]
    %v5638 = vld [vmem:[#allocation3 + $0x1250] sm:$0xff]
    %v5639 = vld [vmem:[#allocation3 + $0x1258] sm:$0xff]
    %v5640 = vld [vmem:[#allocation3 + $0x1260] sm:$0xff]
    %v5641 = vld [vmem:[#allocation3 + $0x1268] sm:$0xff]
    %v5642 = vld [vmem:[#allocation3 + $0x1270] sm:$0xff]
    %v5643 = vld [vmem:[#allocation3 + $0x1278] sm:$0xff]
    %v5644 = vld [vmem:[#allocation3 + $0x1280] sm:$0xff]
    %v5645 = vld [vmem:[#allocation3 + $0x1288] sm:$0xff]
    %v5646 = vld [vmem:[#allocation3 + $0x1290] sm:$0xff]
    %v5647 = vld [vmem:[#allocation3 + $0x1298] sm:$0xff]
    %v5648 = vld [vmem:[#allocation3 + $0x12a0] sm:$0xff]
    %v5649 = vld [vmem:[#allocation3 + $0x12a8] sm:$0xff]
    %v5650 = vld [vmem:[#allocation3 + $0x12b0] sm:$0xff]
    %v5651 = vld [vmem:[#allocation3 + $0x12b8] sm:$0xff]
    %v5652 = vld [vmem:[#allocation3 + $0x12c0] sm:$0xff]
    %v5653 = vld [vmem:[#allocation3 + $0x12c8] sm:$0xff]
    %v5654 = vld [vmem:[#allocation3 + $0x12d0] sm:$0xff]
    %v5655 = vld [vmem:[#allocation3 + $0x12d8] sm:$0xff]
    %v5656 = vld [vmem:[#allocation3 + $0x12e0] sm:$0xff]
    %v5657 = vld [vmem:[#allocation3 + $0x12e8] sm:$0xff]
    %v5658 = vld [vmem:[#allocation3 + $0x12f0] sm:$0xff]
    %v5659 = vld [vmem:[#allocation3 + $0x12f8] sm:$0xff]
    %v5660 = vld [vmem:[#allocation3 + $0x1300] sm:$0xff]
    %v5661 = vld [vmem:[#allocation3 + $0x1308] sm:$0xff]
    %v5662 = vld [vmem:[#allocation3 + $0x1310] sm:$0xff]
    %v5663 = vld [vmem:[#allocation3 + $0x1318] sm:$0xff]
    %v5664 = vld [vmem:[#allocation3 + $0x1320] sm:$0xff]
    %v5665 = vld [vmem:[#allocation3 + $0x1328] sm:$0xff]
    %v5666 = vld [vmem:[#allocation3 + $0x1330] sm:$0xff]
    %v5667 = vld [vmem:[#allocation3 + $0x1338] sm:$0xff]
    %v5668 = vld [vmem:[#allocation3 + $0x1340] sm:$0xff]
    %v5669 = vld [vmem:[#allocation3 + $0x1348] sm:$0xff]
    %v5670 = vld [vmem:[#allocation3 + $0x1350] sm:$0xff]
    %v5671 = vld [vmem:[#allocation3 + $0x1358] sm:$0xff]
    %v5672 = vld [vmem:[#allocation3 + $0x1360] sm:$0xff]
    %v5673 = vld [vmem:[#allocation3 + $0x1368] sm:$0xff]
    %v5674 = vld [vmem:[#allocation3 + $0x1370] sm:$0xff]
    %v5675 = vld [vmem:[#allocation3 + $0x1378] sm:$0xff]
    %v5676 = vld [vmem:[#allocation3 + $0x1380] sm:$0xff]
    %v5677 = vld [vmem:[#allocation3 + $0x1388] sm:$0xff]
    %v5678 = vld [vmem:[#allocation3 + $0x1390] sm:$0xff]
    %v5679 = vld [vmem:[#allocation3 + $0x1398] sm:$0xff]
    %v5680 = vld [vmem:[#allocation3 + $0x13a0] sm:$0xff]
    %v5681 = vld [vmem:[#allocation3 + $0x13a8] sm:$0xff]
    %v5682 = vld [vmem:[#allocation3 + $0x13b0] sm:$0xff]
    %v5683 = vld [vmem:[#allocation3 + $0x13b8] sm:$0xff]
    %v5684 = vld [vmem:[#allocation3 + $0x13c0] sm:$0xff]
    %v5685 = vld [vmem:[#allocation3 + $0x13c8] sm:$0xff]
    %v5686 = vld [vmem:[#allocation3 + $0x13d0] sm:$0xff]
    %v5687 = vld [vmem:[#allocation3 + $0x13d8] sm:$0xff]
    %v5688 = vld [vmem:[#allocation3 + $0x13e0] sm:$0xff]
    %v5689 = vld [vmem:[#allocation3 + $0x13e8] sm:$0xff]
    %v5690 = vld [vmem:[#allocation3 + $0x13f0] sm:$0xff]
    %v5691 = vld [vmem:[#allocation3 + $0x13f8] sm:$0xff]
    %v5692 = vld [vmem:[#allocation3 + $0x1400] sm:$0xff]
    %v5693 = vld [vmem:[#allocation3 + $0x1408] sm:$0xff]
    %v5694 = vld [vmem:[#allocation3 + $0x1410] sm:$0xff]
    %v5695 = vld [vmem:[#allocation3 + $0x1418] sm:$0xff]
    %v5696 = vld [vmem:[#allocation3 + $0x1420] sm:$0xff]
    %v5697 = vld [vmem:[#allocation3 + $0x1428] sm:$0xff]
    %v5698 = vld [vmem:[#allocation3 + $0x1430] sm:$0xff]
    %v5699 = vld [vmem:[#allocation3 + $0x1438] sm:$0xff]
    %v5700 = vld [vmem:[#allocation3 + $0x1440] sm:$0xff]
    %v5701 = vld [vmem:[#allocation3 + $0x1448] sm:$0xff]
    %v5702 = vld [vmem:[#allocation3 + $0x1450] sm:$0xff]
    %v5703 = vld [vmem:[#allocation3 + $0x1458] sm:$0xff]
    %v5704 = vld [vmem:[#allocation3 + $0x1460] sm:$0xff]
    %v5705 = vld [vmem:[#allocation3 + $0x1468] sm:$0xff]
    %v5706 = vld [vmem:[#allocation3 + $0x1470] sm:$0xff]
    %v5707 = vld [vmem:[#allocation3 + $0x1478] sm:$0xff]
    %v5708 = vld [vmem:[#allocation3 + $0x1480] sm:$0xff]
    %v5709 = vld [vmem:[#allocation3 + $0x1488] sm:$0xff]
    %v5710 = vld [vmem:[#allocation3 + $0x1490] sm:$0xff]
    %v5711 = vld [vmem:[#allocation3 + $0x1498] sm:$0xff]
    %v5712 = vld [vmem:[#allocation3 + $0x14a0] sm:$0xff]
    %v5713 = vld [vmem:[#allocation3 + $0x14a8] sm:$0xff]
    %v5714 = vld [vmem:[#allocation3 + $0x14b0] sm:$0xff]
    %v5715 = vld [vmem:[#allocation3 + $0x14b8] sm:$0xff]
    %v5716 = vld [vmem:[#allocation3 + $0x14c0] sm:$0xff]
    %v5717 = vld [vmem:[#allocation3 + $0x14c8] sm:$0xff]
    %v5718 = vld [vmem:[#allocation3 + $0x14d0] sm:$0xff]
    %v5719 = vld [vmem:[#allocation3 + $0x14d8] sm:$0xff]
    %v5720 = vld [vmem:[#allocation3 + $0x14e0] sm:$0xff]
    %v5721 = vld [vmem:[#allocation3 + $0x14e8] sm:$0xff]
    %v5722 = vld [vmem:[#allocation3 + $0x14f0] sm:$0xff]
    %v5723 = vld [vmem:[#allocation3 + $0x14f8] sm:$0xff]
    %v5724 = vld [vmem:[#allocation3 + $0x1500] sm:$0xff]
    %v5725 = vld [vmem:[#allocation3 + $0x1508] sm:$0xff]
    %v5726 = vld [vmem:[#allocation3 + $0x1510] sm:$0xff]
    %v5727 = vld [vmem:[#allocation3 + $0x1518] sm:$0xff]
    %v5728 = vld [vmem:[#allocation3 + $0x1520] sm:$0xff]
    %v5729 = vld [vmem:[#allocation3 + $0x1528] sm:$0xff]
    %v5730 = vld [vmem:[#allocation3 + $0x1530] sm:$0xff]
    %v5731 = vld [vmem:[#allocation3 + $0x1538] sm:$0xff]
    %v5732 = vld [vmem:[#allocation3 + $0x1540] sm:$0xff]
    %v5733 = vld [vmem:[#allocation3 + $0x1548] sm:$0xff]
    %v5734 = vld [vmem:[#allocation3 + $0x1550] sm:$0xff]
    %v5735 = vld [vmem:[#allocation3 + $0x1558] sm:$0xff]
    %v5736 = vld [vmem:[#allocation3 + $0x1560] sm:$0xff]
    %v5737 = vld [vmem:[#allocation3 + $0x1568] sm:$0xff]
    %v5738 = vld [vmem:[#allocation3 + $0x1570] sm:$0xff]
    %v5739 = vld [vmem:[#allocation3 + $0x1578] sm:$0xff]
    %v5740 = vld [vmem:[#allocation3 + $0x1580] sm:$0xff]
    %v5741 = vld [vmem:[#allocation3 + $0x1588] sm:$0xff]
    %v5742 = vld [vmem:[#allocation3 + $0x1590] sm:$0xff]
    %v5743 = vld [vmem:[#allocation3 + $0x1598] sm:$0xff]
    %v5744 = vld [vmem:[#allocation3 + $0x15a0] sm:$0xff]
    %v5745 = vld [vmem:[#allocation3 + $0x15a8] sm:$0xff]
    %v5746 = vld [vmem:[#allocation3 + $0x15b0] sm:$0xff]
    %v5747 = vld [vmem:[#allocation3 + $0x15b8] sm:$0xff]
    %v5748 = vld [vmem:[#allocation3 + $0x15c0] sm:$0xff]
    %v5749 = vld [vmem:[#allocation3 + $0x15c8] sm:$0xff]
    %v5750 = vld [vmem:[#allocation3 + $0x15d0] sm:$0xff]
    %v5751 = vld [vmem:[#allocation3 + $0x15d8] sm:$0xff]
    %v5752 = vld [vmem:[#allocation3 + $0x15e0] sm:$0xff]
    %v5753 = vld [vmem:[#allocation3 + $0x15e8] sm:$0xff]
    %v5754 = vld [vmem:[#allocation3 + $0x15f0] sm:$0xff]
    %v5755 = vld [vmem:[#allocation3 + $0x15f8] sm:$0xff]
    %v5756 = vld [vmem:[#allocation3 + $0x1600] sm:$0xff]
    %v5757 = vld [vmem:[#allocation3 + $0x1608] sm:$0xff]
    %v5758 = vld [vmem:[#allocation3 + $0x1610] sm:$0xff]
    %v5759 = vld [vmem:[#allocation3 + $0x1618] sm:$0xff]
    %v5760 = vld [vmem:[#allocation3 + $0x1620] sm:$0xff]
    %v5761 = vld [vmem:[#allocation3 + $0x1628] sm:$0xff]
    %v5762 = vld [vmem:[#allocation3 + $0x1630] sm:$0xff]
    %v5763 = vld [vmem:[#allocation3 + $0x1638] sm:$0xff]
    %v5764 = vld [vmem:[#allocation3 + $0x1640] sm:$0xff]
    %v5765 = vld [vmem:[#allocation3 + $0x1648] sm:$0xff]
    %v5766 = vld [vmem:[#allocation3 + $0x1650] sm:$0xff]
    %v5767 = vld [vmem:[#allocation3 + $0x1658] sm:$0xff]
    %v5768 = vld [vmem:[#allocation3 + $0x1660] sm:$0xff]
    %v5769 = vld [vmem:[#allocation3 + $0x1668] sm:$0xff]
    %v5770 = vld [vmem:[#allocation3 + $0x1670] sm:$0xff]
    %v5771 = vld [vmem:[#allocation3 + $0x1678] sm:$0xff]
    %v5772 = vld [vmem:[#allocation3 + $0x1680] sm:$0xff]
    %v5773 = vld [vmem:[#allocation3 + $0x1688] sm:$0xff]
    %v5774 = vld [vmem:[#allocation3 + $0x1690] sm:$0xff]
    %v5775 = vld [vmem:[#allocation3 + $0x1698] sm:$0xff]
    %v5776 = vld [vmem:[#allocation3 + $0x16a0] sm:$0xff]
    %v5777 = vld [vmem:[#allocation3 + $0x16a8] sm:$0xff]
    %v5778 = vld [vmem:[#allocation3 + $0x16b0] sm:$0xff]
    %v5779 = vld [vmem:[#allocation3 + $0x16b8] sm:$0xff]
    %v5780 = vld [vmem:[#allocation3 + $0x16c0] sm:$0xff]
    %v5781 = vld [vmem:[#allocation3 + $0x16c8] sm:$0xff]
    %v5782 = vld [vmem:[#allocation3 + $0x16d0] sm:$0xff]
    %v5783 = vld [vmem:[#allocation3 + $0x16d8] sm:$0xff]
    %v5784 = vld [vmem:[#allocation3 + $0x16e0] sm:$0xff]
    %v5785 = vld [vmem:[#allocation3 + $0x16e8] sm:$0xff]
    %v5786 = vld [vmem:[#allocation3 + $0x16f0] sm:$0xff]
    %v5787 = vld [vmem:[#allocation3 + $0x16f8] sm:$0xff]
    %v5788 = vld [vmem:[#allocation3 + $0x1700] sm:$0xff]
    %v5789 = vld [vmem:[#allocation3 + $0x1708] sm:$0xff]
    %v5790 = vld [vmem:[#allocation3 + $0x1710] sm:$0xff]
    %v5791 = vld [vmem:[#allocation3 + $0x1718] sm:$0xff]
    %v5792 = vld [vmem:[#allocation3 + $0x1720] sm:$0xff]
    %v5793 = vld [vmem:[#allocation3 + $0x1728] sm:$0xff]
    %v5794 = vld [vmem:[#allocation3 + $0x1730] sm:$0xff]
    %v5795 = vld [vmem:[#allocation3 + $0x1738] sm:$0xff]
    %v5796 = vld [vmem:[#allocation3 + $0x1740] sm:$0xff]
    %v5797 = vld [vmem:[#allocation3 + $0x1748] sm:$0xff]
    %v5798 = vld [vmem:[#allocation3 + $0x1750] sm:$0xff]
    %v5799 = vld [vmem:[#allocation3 + $0x1758] sm:$0xff]
    %v5800 = vld [vmem:[#allocation3 + $0x1760] sm:$0xff]
    %v5801 = vld [vmem:[#allocation3 + $0x1768] sm:$0xff]
    %v5802 = vld [vmem:[#allocation3 + $0x1770] sm:$0xff]
    %v5803 = vld [vmem:[#allocation3 + $0x1778] sm:$0xff]
    %v5804 = vld [vmem:[#allocation3 + $0x1780] sm:$0xff]
    %v5805 = vld [vmem:[#allocation3 + $0x1788] sm:$0xff]
    %v5806 = vld [vmem:[#allocation3 + $0x1790] sm:$0xff]
    %v5807 = vld [vmem:[#allocation3 + $0x1798] sm:$0xff]
    %v5808 = vld [vmem:[#allocation3 + $0x17a0] sm:$0xff]
    %v5809 = vld [vmem:[#allocation3 + $0x17a8] sm:$0xff]
    %v5810 = vld [vmem:[#allocation3 + $0x17b0] sm:$0xff]
    %v5811 = vld [vmem:[#allocation3 + $0x17b8] sm:$0xff]
    %v5812 = vld [vmem:[#allocation3 + $0x17c0] sm:$0xff]
    %v5813 = vld [vmem:[#allocation3 + $0x17c8] sm:$0xff]
    %v5814 = vld [vmem:[#allocation3 + $0x17d0] sm:$0xff]
    %v5815 = vld [vmem:[#allocation3 + $0x17d8] sm:$0xff]
    %v5816 = vld [vmem:[#allocation3 + $0x17e0] sm:$0xff]
    %v5817 = vld [vmem:[#allocation3 + $0x17e8] sm:$0xff]
    %v5818 = vld [vmem:[#allocation3 + $0x17f0] sm:$0xff]
    %v5819 = vld [vmem:[#allocation3 + $0x17f8] sm:$0xff]
    %v5820 = vld [vmem:[#allocation3 + $0x1800] sm:$0xff]
    %v5821 = vld [vmem:[#allocation3 + $0x1808] sm:$0xff]
    %v5822 = vld [vmem:[#allocation3 + $0x1810] sm:$0xff]
    %v5823 = vld [vmem:[#allocation3 + $0x1818] sm:$0xff]
    %v5824 = vld [vmem:[#allocation3 + $0x1820] sm:$0xff]
    %v5825 = vld [vmem:[#allocation3 + $0x1828] sm:$0xff]
    %v5826 = vld [vmem:[#allocation3 + $0x1830] sm:$0xff]
    %v5827 = vld [vmem:[#allocation3 + $0x1838] sm:$0xff]
    %v5828 = vld [vmem:[#allocation3 + $0x1840] sm:$0xff]
    %v5829 = vld [vmem:[#allocation3 + $0x1848] sm:$0xff]
    %v5830 = vld [vmem:[#allocation3 + $0x1850] sm:$0xff]
    %v5831 = vld [vmem:[#allocation3 + $0x1858] sm:$0xff]
    %v5832 = vld [vmem:[#allocation3 + $0x1860] sm:$0xff]
    %v5833 = vld [vmem:[#allocation3 + $0x1868] sm:$0xff]
    %v5834 = vld [vmem:[#allocation3 + $0x1870] sm:$0xff]
    %v5835 = vld [vmem:[#allocation3 + $0x1878] sm:$0xff]
    %v5836 = vld [vmem:[#allocation3 + $0x1880] sm:$0xff]
    %v5837 = vld [vmem:[#allocation3 + $0x1888] sm:$0xff]
    %v5838 = vld [vmem:[#allocation3 + $0x1890] sm:$0xff]
    %v5839 = vld [vmem:[#allocation3 + $0x1898] sm:$0xff]
    %v5840 = vld [vmem:[#allocation3 + $0x18a0] sm:$0xff]
    %v5841 = vld [vmem:[#allocation3 + $0x18a8] sm:$0xff]
    %v5842 = vld [vmem:[#allocation3 + $0x18b0] sm:$0xff]
    %v5843 = vld [vmem:[#allocation3 + $0x18b8] sm:$0xff]
    %v5844 = vld [vmem:[#allocation3 + $0x18c0] sm:$0xff]
    %v5845 = vld [vmem:[#allocation3 + $0x18c8] sm:$0xff]
    %v5846 = vld [vmem:[#allocation3 + $0x18d0] sm:$0xff]
    %v5847 = vld [vmem:[#allocation3 + $0x18d8] sm:$0xff]
    %v5848 = vld [vmem:[#allocation3 + $0x18e0] sm:$0xff]
    %v5849 = vld [vmem:[#allocation3 + $0x18e8] sm:$0xff]
    %v5850 = vld [vmem:[#allocation3 + $0x18f0] sm:$0xff]
    %v5851 = vld [vmem:[#allocation3 + $0x18f8] sm:$0xff]
    %v5852 = vld [vmem:[#allocation3 + $0x1900] sm:$0xff]
    %v5853 = vld [vmem:[#allocation3 + $0x1908] sm:$0xff]
    %v5854 = vld [vmem:[#allocation3 + $0x1910] sm:$0xff]
    %v5855 = vld [vmem:[#allocation3 + $0x1918] sm:$0xff]
    %v5856 = vld [vmem:[#allocation3 + $0x1920] sm:$0xff]
    %v5857 = vld [vmem:[#allocation3 + $0x1928] sm:$0xff]
    %v5858 = vld [vmem:[#allocation3 + $0x1930] sm:$0xff]
    %v5859 = vld [vmem:[#allocation3 + $0x1938] sm:$0xff]
    %v5860 = vld [vmem:[#allocation3 + $0x1940] sm:$0xff]
    %v5861 = vld [vmem:[#allocation3 + $0x1948] sm:$0xff]
    %v5862 = vld [vmem:[#allocation3 + $0x1950] sm:$0xff]
    %v5863 = vld [vmem:[#allocation3 + $0x1958] sm:$0xff]
    %v5864 = vld [vmem:[#allocation3 + $0x1960] sm:$0xff]
    %v5865 = vld [vmem:[#allocation3 + $0x1968] sm:$0xff]
    %v5866 = vld [vmem:[#allocation3 + $0x1970] sm:$0xff]
    %v5867 = vld [vmem:[#allocation3 + $0x1978] sm:$0xff]
    %v5868 = vld [vmem:[#allocation3 + $0x1980] sm:$0xff]
    %v5869 = vld [vmem:[#allocation3 + $0x1988] sm:$0xff]
    %v5870 = vld [vmem:[#allocation3 + $0x1990] sm:$0xff]
    %v5871 = vld [vmem:[#allocation3 + $0x1998] sm:$0xff]
    %v5872 = vld [vmem:[#allocation3 + $0x19a0] sm:$0xff]
    %v5873 = vld [vmem:[#allocation3 + $0x19a8] sm:$0xff]
    %v5874 = vld [vmem:[#allocation3 + $0x19b0] sm:$0xff]
    %v5875 = vld [vmem:[#allocation3 + $0x19b8] sm:$0xff]
    %v5876 = vld [vmem:[#allocation3 + $0x19c0] sm:$0xff]
    %v5877 = vld [vmem:[#allocation3 + $0x19c8] sm:$0xff]
    %v5878 = vld [vmem:[#allocation3 + $0x19d0] sm:$0xff]
    %v5879 = vld [vmem:[#allocation3 + $0x19d8] sm:$0xff]
    %v5880 = vld [vmem:[#allocation3 + $0x19e0] sm:$0xff]
    %v5881 = vld [vmem:[#allocation3 + $0x19e8] sm:$0xff]
    %v5882 = vld [vmem:[#allocation3 + $0x19f0] sm:$0xff]
    %v5883 = vld [vmem:[#allocation3 + $0x19f8] sm:$0xff]
    %v5884 = vld [vmem:[#allocation3 + $0x1a00] sm:$0xff]
    %v5885 = vld [vmem:[#allocation3 + $0x1a08] sm:$0xff]
    %v5886 = vld [vmem:[#allocation3 + $0x1a10] sm:$0xff]
    %v5887 = vld [vmem:[#allocation3 + $0x1a18] sm:$0xff]
    %v5888 = vld [vmem:[#allocation3 + $0x1a20] sm:$0xff]
    %v5889 = vld [vmem:[#allocation3 + $0x1a28] sm:$0xff]
    %v5890 = vld [vmem:[#allocation3 + $0x1a30] sm:$0xff]
    %v5891 = vld [vmem:[#allocation3 + $0x1a38] sm:$0xff]
    %v5892 = vld [vmem:[#allocation3 + $0x1a40] sm:$0xff]
    %v5893 = vld [vmem:[#allocation3 + $0x1a48] sm:$0xff]
    %v5894 = vld [vmem:[#allocation3 + $0x1a50] sm:$0xff]
    %v5895 = vld [vmem:[#allocation3 + $0x1a58] sm:$0xff]
    %v5896 = vld [vmem:[#allocation3 + $0x1a60] sm:$0xff]
    %v5897 = vld [vmem:[#allocation3 + $0x1a68] sm:$0xff]
    %v5898 = vld [vmem:[#allocation3 + $0x1a70] sm:$0xff]
    %v5899 = vld [vmem:[#allocation3 + $0x1a78] sm:$0xff]
    %v5900 = vld [vmem:[#allocation3 + $0x1a80] sm:$0xff]
    %v5901 = vld [vmem:[#allocation3 + $0x1a88] sm:$0xff]
    %v5902 = vld [vmem:[#allocation3 + $0x1a90] sm:$0xff]
    %v5903 = vld [vmem:[#allocation3 + $0x1a98] sm:$0xff]
    %v5904 = vld [vmem:[#allocation3 + $0x1aa0] sm:$0xff]
    %v5905 = vld [vmem:[#allocation3 + $0x1aa8] sm:$0xff]
    %v5906 = vld [vmem:[#allocation3 + $0x1ab0] sm:$0xff]
    %v5907 = vld [vmem:[#allocation3 + $0x1ab8] sm:$0xff]
    %v5908 = vld [vmem:[#allocation3 + $0x1ac0] sm:$0xff]
    %v5909 = vld [vmem:[#allocation3 + $0x1ac8] sm:$0xff]
    %v5910 = vld [vmem:[#allocation3 + $0x1ad0] sm:$0xff]
    %v5911 = vld [vmem:[#allocation3 + $0x1ad8] sm:$0xff]
    %v5912 = vld [vmem:[#allocation3 + $0x1ae0] sm:$0xff]
    %v5913 = vld [vmem:[#allocation3 + $0x1ae8] sm:$0xff]
    %v5914 = vld [vmem:[#allocation3 + $0x1af0] sm:$0xff]
    %v5915 = vld [vmem:[#allocation3 + $0x1af8] sm:$0xff]
    %v5916 = vld [vmem:[#allocation3 + $0x1b00] sm:$0xff]
    %v5917 = vld [vmem:[#allocation3 + $0x1b08] sm:$0xff]
    %v5918 = vld [vmem:[#allocation3 + $0x1b10] sm:$0xff]
    %v5919 = vld [vmem:[#allocation3 + $0x1b18] sm:$0xff]
    %v5920 = vld [vmem:[#allocation3 + $0x1b20] sm:$0xff]
    %v5921 = vld [vmem:[#allocation3 + $0x1b28] sm:$0xff]
    %v5922 = vld [vmem:[#allocation3 + $0x1b30] sm:$0xff]
    %v5923 = vld [vmem:[#allocation3 + $0x1b38] sm:$0xff]
    %v5924 = vld [vmem:[#allocation3 + $0x1b40] sm:$0xff]
    %v5925 = vld [vmem:[#allocation3 + $0x1b48] sm:$0xff]
    %v5926 = vld [vmem:[#allocation3 + $0x1b50] sm:$0xff]
    %v5927 = vld [vmem:[#allocation3 + $0x1b58] sm:$0xff]
    %v5928 = vld [vmem:[#allocation3 + $0x1b60] sm:$0xff]
    %v5929 = vld [vmem:[#allocation3 + $0x1b68] sm:$0xff]
    %v5930 = vld [vmem:[#allocation3 + $0x1b70] sm:$0xff]
    %v5931 = vld [vmem:[#allocation3 + $0x1b78] sm:$0xff]
    %v5932 = vld [vmem:[#allocation3 + $0x1b80] sm:$0xff]
    %v5933 = vld [vmem:[#allocation3 + $0x1b88] sm:$0xff]
    %v5934 = vld [vmem:[#allocation3 + $0x1b90] sm:$0xff]
    %v5935 = vld [vmem:[#allocation3 + $0x1b98] sm:$0xff]
    %v5936 = vld [vmem:[#allocation3 + $0x1ba0] sm:$0xff]
    %v5937 = vld [vmem:[#allocation3 + $0x1ba8] sm:$0xff]
    %v5938 = vld [vmem:[#allocation3 + $0x1bb0] sm:$0xff]
    %v5939 = vld [vmem:[#allocation3 + $0x1bb8] sm:$0xff]
    %v5940 = vld [vmem:[#allocation3 + $0x1bc0] sm:$0xff]
    %v5941 = vld [vmem:[#allocation3 + $0x1bc8] sm:$0xff]
    %v5942 = vld [vmem:[#allocation3 + $0x1bd0] sm:$0xff]
    %v5943 = vld [vmem:[#allocation3 + $0x1bd8] sm:$0xff]
    %v5944 = vld [vmem:[#allocation3 + $0x1be0] sm:$0xff]
    %v5945 = vld [vmem:[#allocation3 + $0x1be8] sm:$0xff]
    %v5946 = vld [vmem:[#allocation3 + $0x1bf0] sm:$0xff]
    %v5947 = vld [vmem:[#allocation3 + $0x1bf8] sm:$0xff]
    %v5948 = vld [vmem:[#allocation3 + $0x1c00] sm:$0xff]
    %v5949 = vld [vmem:[#allocation3 + $0x1c08] sm:$0xff]
    %v5950 = vld [vmem:[#allocation3 + $0x1c10] sm:$0xff]
    %v5951 = vld [vmem:[#allocation3 + $0x1c18] sm:$0xff]
    %v5952 = vld [vmem:[#allocation3 + $0x1c20] sm:$0xff]
    %v5953 = vld [vmem:[#allocation3 + $0x1c28] sm:$0xff]
    %v5954 = vld [vmem:[#allocation3 + $0x1c30] sm:$0xff]
    %v5955 = vld [vmem:[#allocation3 + $0x1c38] sm:$0xff]
    %v5956 = vld [vmem:[#allocation3 + $0x1c40] sm:$0xff]
    %v5957 = vld [vmem:[#allocation3 + $0x1c48] sm:$0xff]
    %v5958 = vld [vmem:[#allocation3 + $0x1c50] sm:$0xff]
    %v5959 = vld [vmem:[#allocation3 + $0x1c58] sm:$0xff]
    %v5960 = vld [vmem:[#allocation3 + $0x1c60] sm:$0xff]
    %v5961 = vld [vmem:[#allocation3 + $0x1c68] sm:$0xff]
    %v5962 = vld [vmem:[#allocation3 + $0x1c70] sm:$0xff]
    %v5963 = vld [vmem:[#allocation3 + $0x1c78] sm:$0xff]
    %v5964 = vld [vmem:[#allocation3 + $0x1c80] sm:$0xff]
    %v5965 = vld [vmem:[#allocation3 + $0x1c88] sm:$0xff]
    %v5966 = vld [vmem:[#allocation3 + $0x1c90] sm:$0xff]
    %v5967 = vld [vmem:[#allocation3 + $0x1c98] sm:$0xff]
    %v5968 = vld [vmem:[#allocation3 + $0x1ca0] sm:$0xff]
    %v5969 = vld [vmem:[#allocation3 + $0x1ca8] sm:$0xff]
    %v5970 = vld [vmem:[#allocation3 + $0x1cb0] sm:$0xff]
    %v5971 = vld [vmem:[#allocation3 + $0x1cb8] sm:$0xff]
    %v5972 = vld [vmem:[#allocation3 + $0x1cc0] sm:$0xff]
    %v5973 = vld [vmem:[#allocation3 + $0x1cc8] sm:$0xff]
    %v5974 = vld [vmem:[#allocation3 + $0x1cd0] sm:$0xff]
    %v5975 = vld [vmem:[#allocation3 + $0x1cd8] sm:$0xff]
    %v5976 = vld [vmem:[#allocation3 + $0x1ce0] sm:$0xff]
    %v5977 = vld [vmem:[#allocation3 + $0x1ce8] sm:$0xff]
    %v5978 = vld [vmem:[#allocation3 + $0x1cf0] sm:$0xff]
    %v5979 = vld [vmem:[#allocation3 + $0x1cf8] sm:$0xff]
    %v5980 = vld [vmem:[#allocation3 + $0x1d00] sm:$0xff]
    %v5981 = vld [vmem:[#allocation3 + $0x1d08] sm:$0xff]
    %v5982 = vld [vmem:[#allocation3 + $0x1d10] sm:$0xff]
    %v5983 = vld [vmem:[#allocation3 + $0x1d18] sm:$0xff]
    %v5984 = vld [vmem:[#allocation3 + $0x1d20] sm:$0xff]
    %v5985 = vld [vmem:[#allocation3 + $0x1d28] sm:$0xff]
    %v5986 = vld [vmem:[#allocation3 + $0x1d30] sm:$0xff]
    %v5987 = vld [vmem:[#allocation3 + $0x1d38] sm:$0xff]
    %v5988 = vld [vmem:[#allocation3 + $0x1d40] sm:$0xff]
    %v5989 = vld [vmem:[#allocation3 + $0x1d48] sm:$0xff]
    %v5990 = vld [vmem:[#allocation3 + $0x1d50] sm:$0xff]
    %v5991 = vld [vmem:[#allocation3 + $0x1d58] sm:$0xff]
    %v5992 = vld [vmem:[#allocation3 + $0x1d60] sm:$0xff]
    %v5993 = vld [vmem:[#allocation3 + $0x1d68] sm:$0xff]
    %v5994 = vld [vmem:[#allocation3 + $0x1d70] sm:$0xff]
    %v5995 = vld [vmem:[#allocation3 + $0x1d78] sm:$0xff]
    %v5996 = vld [vmem:[#allocation3 + $0x1d80] sm:$0xff]
    %v5997 = vld [vmem:[#allocation3 + $0x1d88] sm:$0xff]
    %v5998 = vld [vmem:[#allocation3 + $0x1d90] sm:$0xff]
    %v5999 = vld [vmem:[#allocation3 + $0x1d98] sm:$0xff]
    %v6000 = vld [vmem:[#allocation3 + $0x1da0] sm:$0xff]
    %v6001 = vld [vmem:[#allocation3 + $0x1da8] sm:$0xff]
    %v6002 = vld [vmem:[#allocation3 + $0x1db0] sm:$0xff]
    %v6003 = vld [vmem:[#allocation3 + $0x1db8] sm:$0xff]
    %v6004 = vld [vmem:[#allocation3 + $0x1dc0] sm:$0xff]
    %v6005 = vld [vmem:[#allocation3 + $0x1dc8] sm:$0xff]
    %v6006 = vld [vmem:[#allocation3 + $0x1dd0] sm:$0xff]
    %v6007 = vld [vmem:[#allocation3 + $0x1dd8] sm:$0xff]
    %v6008 = vld [vmem:[#allocation3 + $0x1de0] sm:$0xff]
    %v6009 = vld [vmem:[#allocation3 + $0x1de8] sm:$0xff]
    %v6010 = vld [vmem:[#allocation3 + $0x1df0] sm:$0xff]
    %v6011 = vld [vmem:[#allocation3 + $0x1df8] sm:$0xff]
    %v6012 = vld [vmem:[#allocation3 + $0x1e00] sm:$0xff]
    %v6013 = vld [vmem:[#allocation3 + $0x1e08] sm:$0xff]
    %v6014 = vld [vmem:[#allocation3 + $0x1e10] sm:$0xff]
    %v6015 = vld [vmem:[#allocation3 + $0x1e18] sm:$0xff]
    %v6016 = vld [vmem:[#allocation3 + $0x1e20] sm:$0xff]
    %v6017 = vld [vmem:[#allocation3 + $0x1e28] sm:$0xff]
    %v6018 = vld [vmem:[#allocation3 + $0x1e30] sm:$0xff]
    %v6019 = vld [vmem:[#allocation3 + $0x1e38] sm:$0xff]
    %v6020 = vld [vmem:[#allocation3 + $0x1e40] sm:$0xff]
    %v6021 = vld [vmem:[#allocation3 + $0x1e48] sm:$0xff]
    %v6022 = vld [vmem:[#allocation3 + $0x1e50] sm:$0xff]
    %v6023 = vld [vmem:[#allocation3 + $0x1e58] sm:$0xff]
    %v6024 = vld [vmem:[#allocation3 + $0x1e60] sm:$0xff]
    %v6025 = vld [vmem:[#allocation3 + $0x1e68] sm:$0xff]
    %v6026 = vld [vmem:[#allocation3 + $0x1e70] sm:$0xff]
    %v6027 = vld [vmem:[#allocation3 + $0x1e78] sm:$0xff]
    %v6028 = vld [vmem:[#allocation3 + $0x1e80] sm:$0xff]
    %v6029 = vld [vmem:[#allocation3 + $0x1e88] sm:$0xff]
    %v6030 = vld [vmem:[#allocation3 + $0x1e90] sm:$0xff]
    %v6031 = vld [vmem:[#allocation3 + $0x1e98] sm:$0xff]
    %v6032 = vld [vmem:[#allocation3 + $0x1ea0] sm:$0xff]
    %v6033 = vld [vmem:[#allocation3 + $0x1ea8] sm:$0xff]
    %v6034 = vld [vmem:[#allocation3 + $0x1eb0] sm:$0xff]
    %v6035 = vld [vmem:[#allocation3 + $0x1eb8] sm:$0xff]
    %v6036 = vld [vmem:[#allocation3 + $0x1ec0] sm:$0xff]
    %v6037 = vld [vmem:[#allocation3 + $0x1ec8] sm:$0xff]
    %v6038 = vld [vmem:[#allocation3 + $0x1ed0] sm:$0xff]
    %v6039 = vld [vmem:[#allocation3 + $0x1ed8] sm:$0xff]
    %v6040 = vld [vmem:[#allocation3 + $0x1ee0] sm:$0xff]
    %v6041 = vld [vmem:[#allocation3 + $0x1ee8] sm:$0xff]
    %v6042 = vld [vmem:[#allocation3 + $0x1ef0] sm:$0xff]
    %v6043 = vld [vmem:[#allocation3 + $0x1ef8] sm:$0xff]
    %v6044 = vld [vmem:[#allocation3 + $0x1f00] sm:$0xff]
    %v6045 = vld [vmem:[#allocation3 + $0x1f08] sm:$0xff]
    %v6046 = vld [vmem:[#allocation3 + $0x1f10] sm:$0xff]
    %v6047 = vld [vmem:[#allocation3 + $0x1f18] sm:$0xff]
    %v6048 = vld [vmem:[#allocation3 + $0x1f20] sm:$0xff]
    %v6049 = vld [vmem:[#allocation3 + $0x1f28] sm:$0xff]
    %v6050 = vld [vmem:[#allocation3 + $0x1f30] sm:$0xff]
    %v6051 = vld [vmem:[#allocation3 + $0x1f38] sm:$0xff]
    %v6052 = vld [vmem:[#allocation3 + $0x1f40] sm:$0xff]
    %v6053 = vld [vmem:[#allocation3 + $0x1f48] sm:$0xff]
    %v6054 = vld [vmem:[#allocation3 + $0x1f50] sm:$0xff]
    %v6055 = vld [vmem:[#allocation3 + $0x1f58] sm:$0xff]
    %v6056 = vld [vmem:[#allocation3 + $0x1f60] sm:$0xff]
    %v6057 = vld [vmem:[#allocation3 + $0x1f68] sm:$0xff]
    %v6058 = vld [vmem:[#allocation3 + $0x1f70] sm:$0xff]
    %v6059 = vld [vmem:[#allocation3 + $0x1f78] sm:$0xff]
    %v6060 = vld [vmem:[#allocation3 + $0x1f80] sm:$0xff]
    %v6061 = vld [vmem:[#allocation3 + $0x1f88] sm:$0xff]
    %v6062 = vld [vmem:[#allocation3 + $0x1f90] sm:$0xff]
    %v6063 = vld [vmem:[#allocation3 + $0x1f98] sm:$0xff]
    %v6064 = vld [vmem:[#allocation3 + $0x1fa0] sm:$0xff]
    %v6065 = vld [vmem:[#allocation3 + $0x1fa8] sm:$0xff]
    %v6066 = vld [vmem:[#allocation3 + $0x1fb0] sm:$0xff]
    %v6067 = vld [vmem:[#allocation3 + $0x1fb8] sm:$0xff]
    %v6068 = vld [vmem:[#allocation3 + $0x1fc0] sm:$0xff]
    %v6069 = vld [vmem:[#allocation3 + $0x1fc8] sm:$0xff]
    %v6070 = vld [vmem:[#allocation3 + $0x1fd0] sm:$0xff]
    %v6071 = vld [vmem:[#allocation3 + $0x1fd8] sm:$0xff]
    %v6072 = vld [vmem:[#allocation3 + $0x1fe0] sm:$0xff]
    %v6073 = vld [vmem:[#allocation3 + $0x1fe8] sm:$0xff]
    %v6074 = vld [vmem:[#allocation3 + $0x1ff0] sm:$0xff]
    %v6075 = vld [vmem:[#allocation3 + $0x1ff8] sm:$0xff]
    %v6076 = vld [vmem:[%s8] sm:$0xff]
    %v6077 = vld [vmem:[%s8 + $0x8] sm:$0xff]
    %v6078 = vld [vmem:[%s8 + $0x10] sm:$0xff]
    %v6079 = vld [vmem:[%s8 + $0x18] sm:$0xff]
    %v6080 = vld [vmem:[%s8 + $0x20] sm:$0xff]
    %v6081 = vld [vmem:[%s8 + $0x28] sm:$0xff]
    %v6082 = vld [vmem:[%s8 + $0x30] sm:$0xff]
    %v6083 = vld [vmem:[%s8 + $0x38] sm:$0xff]
    %v6084 = vld [vmem:[%s8 + $0x40] sm:$0xff]
    %v6085 = vld [vmem:[%s8 + $0x48] sm:$0xff]
    %v6086 = vld [vmem:[%s8 + $0x50] sm:$0xff]
    %v6087 = vld [vmem:[%s8 + $0x58] sm:$0xff]
    %v6088 = vld [vmem:[%s8 + $0x60] sm:$0xff]
    %v6089 = vld [vmem:[%s8 + $0x68] sm:$0xff]
    %v6090 = vld [vmem:[%s8 + $0x70] sm:$0xff]
    %v6091 = vld [vmem:[%s8 + $0x78] sm:$0xff]
    %v6092 = vld [vmem:[%s8 + $0x80] sm:$0xff]
    %v6093 = vld [vmem:[%s8 + $0x88] sm:$0xff]
    %v6094 = vld [vmem:[%s8 + $0x90] sm:$0xff]
    %v6095 = vld [vmem:[%s8 + $0x98] sm:$0xff]
    %v6096 = vld [vmem:[%s8 + $0xa0] sm:$0xff]
    %v6097 = vld [vmem:[%s8 + $0xa8] sm:$0xff]
    %v6098 = vld [vmem:[%s8 + $0xb0] sm:$0xff]
    %v6099 = vld [vmem:[%s8 + $0xb8] sm:$0xff]
    %v6100 = vld [vmem:[%s8 + $0xc0] sm:$0xff]
    %v6101 = vld [vmem:[%s8 + $0xc8] sm:$0xff]
    %v6102 = vld [vmem:[%s8 + $0xd0] sm:$0xff]
    %v6103 = vld [vmem:[%s8 + $0xd8] sm:$0xff]
    %v6104 = vld [vmem:[%s8 + $0xe0] sm:$0xff]
    %v6105 = vld [vmem:[%s8 + $0xe8] sm:$0xff]
    %v6106 = vld [vmem:[%s8 + $0xf0] sm:$0xff]
    %v6107 = vld [vmem:[%s8 + $0xf8] sm:$0xff]
    %v6108 = vld [vmem:[%s8 + $0x100] sm:$0xff]
    %v6109 = vld [vmem:[%s8 + $0x108] sm:$0xff]
    %v6110 = vld [vmem:[%s8 + $0x110] sm:$0xff]
    %v6111 = vld [vmem:[%s8 + $0x118] sm:$0xff]
    %v6112 = vld [vmem:[%s8 + $0x120] sm:$0xff]
    %v6113 = vld [vmem:[%s8 + $0x128] sm:$0xff]
    %v6114 = vld [vmem:[%s8 + $0x130] sm:$0xff]
    %v6115 = vld [vmem:[%s8 + $0x138] sm:$0xff]
    %v6116 = vld [vmem:[%s8 + $0x140] sm:$0xff]
    %v6117 = vld [vmem:[%s8 + $0x148] sm:$0xff]
    %v6118 = vld [vmem:[%s8 + $0x150] sm:$0xff]
    %v6119 = vld [vmem:[%s8 + $0x158] sm:$0xff]
    %v6120 = vld [vmem:[%s8 + $0x160] sm:$0xff]
    %v6121 = vld [vmem:[%s8 + $0x168] sm:$0xff]
    %v6122 = vld [vmem:[%s8 + $0x170] sm:$0xff]
    %v6123 = vld [vmem:[%s8 + $0x178] sm:$0xff]
    %v6124 = vld [vmem:[%s8 + $0x180] sm:$0xff]
    %v6125 = vld [vmem:[%s8 + $0x188] sm:$0xff]
    %v6126 = vld [vmem:[%s8 + $0x190] sm:$0xff]
    %v6127 = vld [vmem:[%s8 + $0x198] sm:$0xff]
    %v6128 = vld [vmem:[%s8 + $0x1a0] sm:$0xff]
    %v6129 = vld [vmem:[%s8 + $0x1a8] sm:$0xff]
    %v6130 = vld [vmem:[%s8 + $0x1b0] sm:$0xff]
    %v6131 = vld [vmem:[%s8 + $0x1b8] sm:$0xff]
    %v6132 = vld [vmem:[%s8 + $0x1c0] sm:$0xff]
    %v6133 = vld [vmem:[%s8 + $0x1c8] sm:$0xff]
    %v6134 = vld [vmem:[%s8 + $0x1d0] sm:$0xff]
    %v6135 = vld [vmem:[%s8 + $0x1d8] sm:$0xff]
    %v6136 = vld [vmem:[%s8 + $0x1e0] sm:$0xff]
    %v6137 = vld [vmem:[%s8 + $0x1e8] sm:$0xff]
    %v6138 = vld [vmem:[%s8 + $0x1f0] sm:$0xff]
    %v6139 = vld [vmem:[%s8 + $0x1f8] sm:$0xff]
    %v6140 = vld [vmem:[%s8 + $0x200] sm:$0xff]
    %v6141 = vld [vmem:[%s8 + $0x208] sm:$0xff]
    %v6142 = vld [vmem:[%s8 + $0x210] sm:$0xff]
    %v6143 = vld [vmem:[%s8 + $0x218] sm:$0xff]
    %v6144 = vld [vmem:[%s8 + $0x220] sm:$0xff]
    %v6145 = vld [vmem:[%s8 + $0x228] sm:$0xff]
    %v6146 = vld [vmem:[%s8 + $0x230] sm:$0xff]
    %v6147 = vld [vmem:[%s8 + $0x238] sm:$0xff]
    %v6148 = vld [vmem:[%s8 + $0x240] sm:$0xff]
    %v6149 = vld [vmem:[%s8 + $0x248] sm:$0xff]
    %v6150 = vld [vmem:[%s8 + $0x250] sm:$0xff]
    %v6151 = vld [vmem:[%s8 + $0x258] sm:$0xff]
    %v6152 = vld [vmem:[%s8 + $0x260] sm:$0xff]
    %v6153 = vld [vmem:[%s8 + $0x268] sm:$0xff]
    %v6154 = vld [vmem:[%s8 + $0x270] sm:$0xff]
    %v6155 = vld [vmem:[%s8 + $0x278] sm:$0xff]
    %v6156 = vld [vmem:[%s8 + $0x280] sm:$0xff]
    %v6157 = vld [vmem:[%s8 + $0x288] sm:$0xff]
    %v6158 = vld [vmem:[%s8 + $0x290] sm:$0xff]
    %v6159 = vld [vmem:[%s8 + $0x298] sm:$0xff]
    %v6160 = vld [vmem:[%s8 + $0x2a0] sm:$0xff]
    %v6161 = vld [vmem:[%s8 + $0x2a8] sm:$0xff]
    %v6162 = vld [vmem:[%s8 + $0x2b0] sm:$0xff]
    %v6163 = vld [vmem:[%s8 + $0x2b8] sm:$0xff]
    %v6164 = vld [vmem:[%s8 + $0x2c0] sm:$0xff]
    %v6165 = vld [vmem:[%s8 + $0x2c8] sm:$0xff]
    %v6166 = vld [vmem:[%s8 + $0x2d0] sm:$0xff]
    %v6167 = vld [vmem:[%s8 + $0x2d8] sm:$0xff]
    %v6168 = vld [vmem:[%s8 + $0x2e0] sm:$0xff]
    %v6169 = vld [vmem:[%s8 + $0x2e8] sm:$0xff]
    %v6170 = vld [vmem:[%s8 + $0x2f0] sm:$0xff]
    %v6171 = vld [vmem:[%s8 + $0x2f8] sm:$0xff]
    %v6172 = vld [vmem:[%s8 + $0x300] sm:$0xff]
    %v6173 = vld [vmem:[%s8 + $0x308] sm:$0xff]
    %v6174 = vld [vmem:[%s8 + $0x310] sm:$0xff]
    %v6175 = vld [vmem:[%s8 + $0x318] sm:$0xff]
    %v6176 = vld [vmem:[%s8 + $0x320] sm:$0xff]
    %v6177 = vld [vmem:[%s8 + $0x328] sm:$0xff]
    %v6178 = vld [vmem:[%s8 + $0x330] sm:$0xff]
    %v6179 = vld [vmem:[%s8 + $0x338] sm:$0xff]
    %v6180 = vld [vmem:[%s8 + $0x340] sm:$0xff]
    %v6181 = vld [vmem:[%s8 + $0x348] sm:$0xff]
    %v6182 = vld [vmem:[%s8 + $0x350] sm:$0xff]
    %v6183 = vld [vmem:[%s8 + $0x358] sm:$0xff]
    %v6184 = vld [vmem:[%s8 + $0x360] sm:$0xff]
    %v6185 = vld [vmem:[%s8 + $0x368] sm:$0xff]
    %v6186 = vld [vmem:[%s8 + $0x370] sm:$0xff]
    %v6187 = vld [vmem:[%s8 + $0x378] sm:$0xff]
    %v6188 = vld [vmem:[%s8 + $0x380] sm:$0xff]
    %v6189 = vld [vmem:[%s8 + $0x388] sm:$0xff]
    %v6190 = vld [vmem:[%s8 + $0x390] sm:$0xff]
    %v6191 = vld [vmem:[%s8 + $0x398] sm:$0xff]
    %v6192 = vld [vmem:[%s8 + $0x3a0] sm:$0xff]
    %v6193 = vld [vmem:[%s8 + $0x3a8] sm:$0xff]
    %v6194 = vld [vmem:[%s8 + $0x3b0] sm:$0xff]
    %v6195 = vld [vmem:[%s8 + $0x3b8] sm:$0xff]
    %v6196 = vld [vmem:[%s8 + $0x3c0] sm:$0xff]
    %v6197 = vld [vmem:[%s8 + $0x3c8] sm:$0xff]
    %v6198 = vld [vmem:[%s8 + $0x3d0] sm:$0xff]
    %v6199 = vld [vmem:[%s8 + $0x3d8] sm:$0xff]
    %v6200 = vld [vmem:[%s8 + $0x3e0] sm:$0xff]
    %v6201 = vld [vmem:[%s8 + $0x3e8] sm:$0xff]
    %v6202 = vld [vmem:[%s8 + $0x3f0] sm:$0xff]
    %v6203 = vld [vmem:[%s8 + $0x3f8] sm:$0xff]
    %6205 = vset.pattern.permute.xlu0 0
    %6206 = vperm.xlu0 %6205, %v6076
    %v6207 = vpop.permute.xlu0 %6206
    %6210 = vset.pattern.permute.xlu0 0
    %6211 = vperm.xlu0 %6210, %v6077
    %v6212 = vpop.permute.xlu0 %6211
    %6215 = vset.pattern.permute.xlu0 0
    %6216 = vperm.xlu0 %6215, %v6078
    %v6217 = vpop.permute.xlu0 %6216
    %6220 = vset.pattern.permute.xlu0 0
    %6221 = vperm.xlu0 %6220, %v6079
    %v6222 = vpop.permute.xlu0 %6221
    %6225 = vset.pattern.permute.xlu0 0
    %6226 = vperm.xlu0 %6225, %v6080
    %v6227 = vpop.permute.xlu0 %6226
    %6230 = vset.pattern.permute.xlu0 0
    %6231 = vperm.xlu0 %6230, %v6081
    %v6232 = vpop.permute.xlu0 %6231
    %6235 = vset.pattern.permute.xlu0 0
    %6236 = vperm.xlu0 %6235, %v6082
    %v6237 = vpop.permute.xlu0 %6236
    %6240 = vset.pattern.permute.xlu0 0
    %6241 = vperm.xlu0 %6240, %v6083
    %v6242 = vpop.permute.xlu0 %6241
    %6245 = vset.pattern.permute.xlu0 0
    %6246 = vperm.xlu0 %6245, %v6084
    %v6247 = vpop.permute.xlu0 %6246
    %6250 = vset.pattern.permute.xlu0 0
    %6251 = vperm.xlu0 %6250, %v6085
    %v6252 = vpop.permute.xlu0 %6251
    %6255 = vset.pattern.permute.xlu0 0
    %6256 = vperm.xlu0 %6255, %v6086
    %v6257 = vpop.permute.xlu0 %6256
    %6260 = vset.pattern.permute.xlu0 0
    %6261 = vperm.xlu0 %6260, %v6087
    %v6262 = vpop.permute.xlu0 %6261
    %6265 = vset.pattern.permute.xlu0 0
    %6266 = vperm.xlu0 %6265, %v6088
    %v6267 = vpop.permute.xlu0 %6266
    %6270 = vset.pattern.permute.xlu0 0
    %6271 = vperm.xlu0 %6270, %v6089
    %v6272 = vpop.permute.xlu0 %6271
    %6275 = vset.pattern.permute.xlu0 0
    %6276 = vperm.xlu0 %6275, %v6090
    %v6277 = vpop.permute.xlu0 %6276
    %6280 = vset.pattern.permute.xlu0 0
    %6281 = vperm.xlu0 %6280, %v6091
    %v6282 = vpop.permute.xlu0 %6281
    %6285 = vset.pattern.permute.xlu0 0
    %6286 = vperm.xlu0 %6285, %v6092
    %v6287 = vpop.permute.xlu0 %6286
    %6290 = vset.pattern.permute.xlu0 0
    %6291 = vperm.xlu0 %6290, %v6093
    %v6292 = vpop.permute.xlu0 %6291
    %6295 = vset.pattern.permute.xlu0 0
    %6296 = vperm.xlu0 %6295, %v6094
    %v6297 = vpop.permute.xlu0 %6296
    %6300 = vset.pattern.permute.xlu0 0
    %6301 = vperm.xlu0 %6300, %v6095
    %v6302 = vpop.permute.xlu0 %6301
    %6305 = vset.pattern.permute.xlu0 0
    %6306 = vperm.xlu0 %6305, %v6096
    %v6307 = vpop.permute.xlu0 %6306
    %6310 = vset.pattern.permute.xlu0 0
    %6311 = vperm.xlu0 %6310, %v6097
    %v6312 = vpop.permute.xlu0 %6311
    %6315 = vset.pattern.permute.xlu0 0
    %6316 = vperm.xlu0 %6315, %v6098
    %v6317 = vpop.permute.xlu0 %6316
    %6320 = vset.pattern.permute.xlu0 0
    %6321 = vperm.xlu0 %6320, %v6099
    %v6322 = vpop.permute.xlu0 %6321
    %6325 = vset.pattern.permute.xlu0 0
    %6326 = vperm.xlu0 %6325, %v6100
    %v6327 = vpop.permute.xlu0 %6326
    %6330 = vset.pattern.permute.xlu0 0
    %6331 = vperm.xlu0 %6330, %v6101
    %v6332 = vpop.permute.xlu0 %6331
    %6335 = vset.pattern.permute.xlu0 0
    %6336 = vperm.xlu0 %6335, %v6102
    %v6337 = vpop.permute.xlu0 %6336
    %6340 = vset.pattern.permute.xlu0 0
    %6341 = vperm.xlu0 %6340, %v6103
    %v6342 = vpop.permute.xlu0 %6341
    %6345 = vset.pattern.permute.xlu0 0
    %6346 = vperm.xlu0 %6345, %v6104
    %v6347 = vpop.permute.xlu0 %6346
    %6350 = vset.pattern.permute.xlu0 0
    %6351 = vperm.xlu0 %6350, %v6105
    %v6352 = vpop.permute.xlu0 %6351
    %6355 = vset.pattern.permute.xlu0 0
    %6356 = vperm.xlu0 %6355, %v6106
    %v6357 = vpop.permute.xlu0 %6356
    %6360 = vset.pattern.permute.xlu0 0
    %6361 = vperm.xlu0 %6360, %v6107
    %v6362 = vpop.permute.xlu0 %6361
    %6365 = vset.pattern.permute.xlu0 0
    %6366 = vperm.xlu0 %6365, %v6108
    %v6367 = vpop.permute.xlu0 %6366
    %6370 = vset.pattern.permute.xlu0 0
    %6371 = vperm.xlu0 %6370, %v6109
    %v6372 = vpop.permute.xlu0 %6371
    %6375 = vset.pattern.permute.xlu0 0
    %6376 = vperm.xlu0 %6375, %v6110
    %v6377 = vpop.permute.xlu0 %6376
    %6380 = vset.pattern.permute.xlu0 0
    %6381 = vperm.xlu0 %6380, %v6111
    %v6382 = vpop.permute.xlu0 %6381
    %6385 = vset.pattern.permute.xlu0 0
    %6386 = vperm.xlu0 %6385, %v6112
    %v6387 = vpop.permute.xlu0 %6386
    %6390 = vset.pattern.permute.xlu0 0
    %6391 = vperm.xlu0 %6390, %v6113
    %v6392 = vpop.permute.xlu0 %6391
    %6395 = vset.pattern.permute.xlu0 0
    %6396 = vperm.xlu0 %6395, %v6114
    %v6397 = vpop.permute.xlu0 %6396
    %6400 = vset.pattern.permute.xlu0 0
    %6401 = vperm.xlu0 %6400, %v6115
    %v6402 = vpop.permute.xlu0 %6401
    %6405 = vset.pattern.permute.xlu0 0
    %6406 = vperm.xlu0 %6405, %v6116
    %v6407 = vpop.permute.xlu0 %6406
    %6410 = vset.pattern.permute.xlu0 0
    %6411 = vperm.xlu0 %6410, %v6117
    %v6412 = vpop.permute.xlu0 %6411
    %6415 = vset.pattern.permute.xlu0 0
    %6416 = vperm.xlu0 %6415, %v6118
    %v6417 = vpop.permute.xlu0 %6416
    %6420 = vset.pattern.permute.xlu0 0
    %6421 = vperm.xlu0 %6420, %v6119
    %v6422 = vpop.permute.xlu0 %6421
    %6425 = vset.pattern.permute.xlu0 0
    %6426 = vperm.xlu0 %6425, %v6120
    %v6427 = vpop.permute.xlu0 %6426
    %6430 = vset.pattern.permute.xlu0 0
    %6431 = vperm.xlu0 %6430, %v6121
    %v6432 = vpop.permute.xlu0 %6431
    %6435 = vset.pattern.permute.xlu0 0
    %6436 = vperm.xlu0 %6435, %v6122
    %v6437 = vpop.permute.xlu0 %6436
    %6440 = vset.pattern.permute.xlu0 0
    %6441 = vperm.xlu0 %6440, %v6123
    %v6442 = vpop.permute.xlu0 %6441
    %6445 = vset.pattern.permute.xlu0 0
    %6446 = vperm.xlu0 %6445, %v6124
    %v6447 = vpop.permute.xlu0 %6446
    %6450 = vset.pattern.permute.xlu0 0
    %6451 = vperm.xlu0 %6450, %v6125
    %v6452 = vpop.permute.xlu0 %6451
    %6455 = vset.pattern.permute.xlu0 0
    %6456 = vperm.xlu0 %6455, %v6126
    %v6457 = vpop.permute.xlu0 %6456
    %6460 = vset.pattern.permute.xlu0 0
    %6461 = vperm.xlu0 %6460, %v6127
    %v6462 = vpop.permute.xlu0 %6461
    %6465 = vset.pattern.permute.xlu0 0
    %6466 = vperm.xlu0 %6465, %v6128
    %v6467 = vpop.permute.xlu0 %6466
    %6470 = vset.pattern.permute.xlu0 0
    %6471 = vperm.xlu0 %6470, %v6129
    %v6472 = vpop.permute.xlu0 %6471
    %6475 = vset.pattern.permute.xlu0 0
    %6476 = vperm.xlu0 %6475, %v6130
    %v6477 = vpop.permute.xlu0 %6476
    %6480 = vset.pattern.permute.xlu0 0
    %6481 = vperm.xlu0 %6480, %v6131
    %v6482 = vpop.permute.xlu0 %6481
    %6485 = vset.pattern.permute.xlu0 0
    %6486 = vperm.xlu0 %6485, %v6132
    %v6487 = vpop.permute.xlu0 %6486
    %6490 = vset.pattern.permute.xlu0 0
    %6491 = vperm.xlu0 %6490, %v6133
    %v6492 = vpop.permute.xlu0 %6491
    %6495 = vset.pattern.permute.xlu0 0
    %6496 = vperm.xlu0 %6495, %v6134
    %v6497 = vpop.permute.xlu0 %6496
    %6500 = vset.pattern.permute.xlu0 0
    %6501 = vperm.xlu0 %6500, %v6135
    %v6502 = vpop.permute.xlu0 %6501
    %6505 = vset.pattern.permute.xlu0 0
    %6506 = vperm.xlu0 %6505, %v6136
    %v6507 = vpop.permute.xlu0 %6506
    %6510 = vset.pattern.permute.xlu0 0
    %6511 = vperm.xlu0 %6510, %v6137
    %v6512 = vpop.permute.xlu0 %6511
    %6515 = vset.pattern.permute.xlu0 0
    %6516 = vperm.xlu0 %6515, %v6138
    %v6517 = vpop.permute.xlu0 %6516
    %6520 = vset.pattern.permute.xlu0 0
    %6521 = vperm.xlu0 %6520, %v6139
    %v6522 = vpop.permute.xlu0 %6521
    %6525 = vset.pattern.permute.xlu0 0
    %6526 = vperm.xlu0 %6525, %v6140
    %v6527 = vpop.permute.xlu0 %6526
    %6530 = vset.pattern.permute.xlu0 0
    %6531 = vperm.xlu0 %6530, %v6141
    %v6532 = vpop.permute.xlu0 %6531
    %6535 = vset.pattern.permute.xlu0 0
    %6536 = vperm.xlu0 %6535, %v6142
    %v6537 = vpop.permute.xlu0 %6536
    %6540 = vset.pattern.permute.xlu0 0
    %6541 = vperm.xlu0 %6540, %v6143
    %v6542 = vpop.permute.xlu0 %6541
    %6545 = vset.pattern.permute.xlu0 0
    %6546 = vperm.xlu0 %6545, %v6144
    %v6547 = vpop.permute.xlu0 %6546
    %6550 = vset.pattern.permute.xlu0 0
    %6551 = vperm.xlu0 %6550, %v6145
    %v6552 = vpop.permute.xlu0 %6551
    %6555 = vset.pattern.permute.xlu0 0
    %6556 = vperm.xlu0 %6555, %v6146
    %v6557 = vpop.permute.xlu0 %6556
    %6560 = vset.pattern.permute.xlu0 0
    %6561 = vperm.xlu0 %6560, %v6147
    %v6562 = vpop.permute.xlu0 %6561
    %6565 = vset.pattern.permute.xlu0 0
    %6566 = vperm.xlu0 %6565, %v6148
    %v6567 = vpop.permute.xlu0 %6566
    %6570 = vset.pattern.permute.xlu0 0
    %6571 = vperm.xlu0 %6570, %v6149
    %v6572 = vpop.permute.xlu0 %6571
    %6575 = vset.pattern.permute.xlu0 0
    %6576 = vperm.xlu0 %6575, %v6150
    %v6577 = vpop.permute.xlu0 %6576
    %6580 = vset.pattern.permute.xlu0 0
    %6581 = vperm.xlu0 %6580, %v6151
    %v6582 = vpop.permute.xlu0 %6581
    %6585 = vset.pattern.permute.xlu0 0
    %6586 = vperm.xlu0 %6585, %v6152
    %v6587 = vpop.permute.xlu0 %6586
    %6590 = vset.pattern.permute.xlu0 0
    %6591 = vperm.xlu0 %6590, %v6153
    %v6592 = vpop.permute.xlu0 %6591
    %6595 = vset.pattern.permute.xlu0 0
    %6596 = vperm.xlu0 %6595, %v6154
    %v6597 = vpop.permute.xlu0 %6596
    %6600 = vset.pattern.permute.xlu0 0
    %6601 = vperm.xlu0 %6600, %v6155
    %v6602 = vpop.permute.xlu0 %6601
    %6605 = vset.pattern.permute.xlu0 0
    %6606 = vperm.xlu0 %6605, %v6156
    %v6607 = vpop.permute.xlu0 %6606
    %6610 = vset.pattern.permute.xlu0 0
    %6611 = vperm.xlu0 %6610, %v6157
    %v6612 = vpop.permute.xlu0 %6611
    %6615 = vset.pattern.permute.xlu0 0
    %6616 = vperm.xlu0 %6615, %v6158
    %v6617 = vpop.permute.xlu0 %6616
    %6620 = vset.pattern.permute.xlu0 0
    %6621 = vperm.xlu0 %6620, %v6159
    %v6622 = vpop.permute.xlu0 %6621
    %6625 = vset.pattern.permute.xlu0 0
    %6626 = vperm.xlu0 %6625, %v6160
    %v6627 = vpop.permute.xlu0 %6626
    %6630 = vset.pattern.permute.xlu0 0
    %6631 = vperm.xlu0 %6630, %v6161
    %v6632 = vpop.permute.xlu0 %6631
    %6635 = vset.pattern.permute.xlu0 0
    %6636 = vperm.xlu0 %6635, %v6162
    %v6637 = vpop.permute.xlu0 %6636
    %6640 = vset.pattern.permute.xlu0 0
    %6641 = vperm.xlu0 %6640, %v6163
    %v6642 = vpop.permute.xlu0 %6641
    %6645 = vset.pattern.permute.xlu0 0
    %6646 = vperm.xlu0 %6645, %v6164
    %v6647 = vpop.permute.xlu0 %6646
    %6650 = vset.pattern.permute.xlu0 0
    %6651 = vperm.xlu0 %6650, %v6165
    %v6652 = vpop.permute.xlu0 %6651
    %6655 = vset.pattern.permute.xlu0 0
    %6656 = vperm.xlu0 %6655, %v6166
    %v6657 = vpop.permute.xlu0 %6656
    %6660 = vset.pattern.permute.xlu0 0
    %6661 = vperm.xlu0 %6660, %v6167
    %v6662 = vpop.permute.xlu0 %6661
    %6665 = vset.pattern.permute.xlu0 0
    %6666 = vperm.xlu0 %6665, %v6168
    %v6667 = vpop.permute.xlu0 %6666
    %6670 = vset.pattern.permute.xlu0 0
    %6671 = vperm.xlu0 %6670, %v6169
    %v6672 = vpop.permute.xlu0 %6671
    %6675 = vset.pattern.permute.xlu0 0
    %6676 = vperm.xlu0 %6675, %v6170
    %v6677 = vpop.permute.xlu0 %6676
    %6680 = vset.pattern.permute.xlu0 0
    %6681 = vperm.xlu0 %6680, %v6171
    %v6682 = vpop.permute.xlu0 %6681
    %6685 = vset.pattern.permute.xlu0 0
    %6686 = vperm.xlu0 %6685, %v6172
    %v6687 = vpop.permute.xlu0 %6686
    %6690 = vset.pattern.permute.xlu0 0
    %6691 = vperm.xlu0 %6690, %v6173
    %v6692 = vpop.permute.xlu0 %6691
    %6695 = vset.pattern.permute.xlu0 0
    %6696 = vperm.xlu0 %6695, %v6174
    %v6697 = vpop.permute.xlu0 %6696
    %6700 = vset.pattern.permute.xlu0 0
    %6701 = vperm.xlu0 %6700, %v6175
    %v6702 = vpop.permute.xlu0 %6701
    %6705 = vset.pattern.permute.xlu0 0
    %6706 = vperm.xlu0 %6705, %v6176
    %v6707 = vpop.permute.xlu0 %6706
    %6710 = vset.pattern.permute.xlu0 0
    %6711 = vperm.xlu0 %6710, %v6177
    %v6712 = vpop.permute.xlu0 %6711
    %6715 = vset.pattern.permute.xlu0 0
    %6716 = vperm.xlu0 %6715, %v6178
    %v6717 = vpop.permute.xlu0 %6716
    %6720 = vset.pattern.permute.xlu0 0
    %6721 = vperm.xlu0 %6720, %v6179
    %v6722 = vpop.permute.xlu0 %6721
    %6725 = vset.pattern.permute.xlu0 0
    %6726 = vperm.xlu0 %6725, %v6180
    %v6727 = vpop.permute.xlu0 %6726
    %6730 = vset.pattern.permute.xlu0 0
    %6731 = vperm.xlu0 %6730, %v6181
    %v6732 = vpop.permute.xlu0 %6731
    %6735 = vset.pattern.permute.xlu0 0
    %6736 = vperm.xlu0 %6735, %v6182
    %v6737 = vpop.permute.xlu0 %6736
    %6740 = vset.pattern.permute.xlu0 0
    %6741 = vperm.xlu0 %6740, %v6183
    %v6742 = vpop.permute.xlu0 %6741
    %6745 = vset.pattern.permute.xlu0 0
    %6746 = vperm.xlu0 %6745, %v6184
    %v6747 = vpop.permute.xlu0 %6746
    %6750 = vset.pattern.permute.xlu0 0
    %6751 = vperm.xlu0 %6750, %v6185
    %v6752 = vpop.permute.xlu0 %6751
    %6755 = vset.pattern.permute.xlu0 0
    %6756 = vperm.xlu0 %6755, %v6186
    %v6757 = vpop.permute.xlu0 %6756
    %6760 = vset.pattern.permute.xlu0 0
    %6761 = vperm.xlu0 %6760, %v6187
    %v6762 = vpop.permute.xlu0 %6761
    %6765 = vset.pattern.permute.xlu0 0
    %6766 = vperm.xlu0 %6765, %v6188
    %v6767 = vpop.permute.xlu0 %6766
    %6770 = vset.pattern.permute.xlu0 0
    %6771 = vperm.xlu0 %6770, %v6189
    %v6772 = vpop.permute.xlu0 %6771
    %6775 = vset.pattern.permute.xlu0 0
    %6776 = vperm.xlu0 %6775, %v6190
    %v6777 = vpop.permute.xlu0 %6776
    %6780 = vset.pattern.permute.xlu0 0
    %6781 = vperm.xlu0 %6780, %v6191
    %v6782 = vpop.permute.xlu0 %6781
    %6785 = vset.pattern.permute.xlu0 0
    %6786 = vperm.xlu0 %6785, %v6192
    %v6787 = vpop.permute.xlu0 %6786
    %6790 = vset.pattern.permute.xlu0 0
    %6791 = vperm.xlu0 %6790, %v6193
    %v6792 = vpop.permute.xlu0 %6791
    %6795 = vset.pattern.permute.xlu0 0
    %6796 = vperm.xlu0 %6795, %v6194
    %v6797 = vpop.permute.xlu0 %6796
    %6800 = vset.pattern.permute.xlu0 0
    %6801 = vperm.xlu0 %6800, %v6195
    %v6802 = vpop.permute.xlu0 %6801
    %6805 = vset.pattern.permute.xlu0 0
    %6806 = vperm.xlu0 %6805, %v6196
    %v6807 = vpop.permute.xlu0 %6806
    %6810 = vset.pattern.permute.xlu0 0
    %6811 = vperm.xlu0 %6810, %v6197
    %v6812 = vpop.permute.xlu0 %6811
    %6815 = vset.pattern.permute.xlu0 0
    %6816 = vperm.xlu0 %6815, %v6198
    %v6817 = vpop.permute.xlu0 %6816
    %6820 = vset.pattern.permute.xlu0 0
    %6821 = vperm.xlu0 %6820, %v6199
    %v6822 = vpop.permute.xlu0 %6821
    %6825 = vset.pattern.permute.xlu0 0
    %6826 = vperm.xlu0 %6825, %v6200
    %v6827 = vpop.permute.xlu0 %6826
    %6830 = vset.pattern.permute.xlu0 0
    %6831 = vperm.xlu0 %6830, %v6201
    %v6832 = vpop.permute.xlu0 %6831
    %6835 = vset.pattern.permute.xlu0 0
    %6836 = vperm.xlu0 %6835, %v6202
    %v6837 = vpop.permute.xlu0 %6836
    %6840 = vset.pattern.permute.xlu0 0
    %6841 = vperm.xlu0 %6840, %v6203
    %v6842 = vpop.permute.xlu0 %6841
    %6844 = vmatprep.subr.mxu0 0.0
    %6845 = vmatpush1.msra.mxu0 %v4939
    %6846 = vmatprep.subr.mxu0 0.0
    %6847 = vmatpush1.msra.mxu0 %v4938
    %6848 = vmatprep.subr.mxu0 0.0
    %6849 = vmatpush1.msra.mxu0 %v4937
    %6850 = vmatprep.subr.mxu0 0.0
    %6851 = vmatpush1.msra.mxu0 %v4936
    %6852 = vmatprep.subr.mxu0 0.0
    %6853 = vmatpush1.msra.mxu0 %v4935
    %6854 = vmatprep.subr.mxu0 0.0
    %6855 = vmatpush1.msra.mxu0 %v4934
    %6856 = vmatprep.subr.mxu0 0.0
    %6857 = vmatpush1.msra.mxu0 %v4933
    %6858 = vmatprep.subr.mxu0 0.0
    %6859 = vmatpush1.msra.mxu0 %v4932
    %6860 = vmatprep.subr.mxu0 0.0
    %6861 = vmatpush1.msra.mxu0 %v4931
    %6862 = vmatprep.subr.mxu0 0.0
    %6863 = vmatpush1.msra.mxu0 %v4930
    %6864 = vmatprep.subr.mxu0 0.0
    %6865 = vmatpush1.msra.mxu0 %v4929
    %6866 = vmatprep.subr.mxu0 0.0
    %6867 = vmatpush1.msra.mxu0 %v4928
    %6868 = vmatprep.subr.mxu0 0.0
    %6869 = vmatpush1.msra.mxu0 %v4927
    %6870 = vmatprep.subr.mxu0 0.0
    %6871 = vmatpush1.msra.mxu0 %v4926
    %6872 = vmatprep.subr.mxu0 0.0
    %6873 = vmatpush1.msra.mxu0 %v4925
    %6874 = vmatprep.subr.mxu0 0.0
    %6875 = vmatpush1.msra.mxu0 %v4924
    %6876 = vmatprep.subr.mxu0 0.0
    %6877 = vmatpush2.msra.mxu0 %v4955
    %6878 = vmatprep.subr.mxu0 0.0
    %6879 = vmatpush2.msra.mxu0 %v4954
    %6880 = vmatprep.subr.mxu0 0.0
    %6881 = vmatpush2.msra.mxu0 %v4953
    %6882 = vmatprep.subr.mxu0 0.0
    %6883 = vmatpush2.msra.mxu0 %v4952
    %6884 = vmatprep.subr.mxu0 0.0
    %6885 = vmatpush2.msra.mxu0 %v4951
    %6886 = vmatprep.subr.mxu0 0.0
    %6887 = vmatpush2.msra.mxu0 %v4950
    %6888 = vmatprep.subr.mxu0 0.0
    %6889 = vmatpush2.msra.mxu0 %v4949
    %6890 = vmatprep.subr.mxu0 0.0
    %6891 = vmatpush2.msra.mxu0 %v4948
    %6892 = vmatprep.subr.mxu0 0.0
    %6893 = vmatpush2.msra.mxu0 %v4947
    %6894 = vmatprep.subr.mxu0 0.0
    %6895 = vmatpush2.msra.mxu0 %v4946
    %6896 = vmatprep.subr.mxu0 0.0
    %6897 = vmatpush2.msra.mxu0 %v4945
    %6898 = vmatprep.subr.mxu0 0.0
    %6899 = vmatpush2.msra.mxu0 %v4944
    %6900 = vmatprep.subr.mxu0 0.0
    %6901 = vmatpush2.msra.mxu0 %v4943
    %6902 = vmatprep.subr.mxu0 0.0
    %6903 = vmatpush2.msra.mxu0 %v4942
    %6904 = vmatprep.subr.mxu0 0.0
    %6905 = vmatpush2.msra.mxu0 %v4941
    %6906 = vmatprep.subr.mxu0 0.0
    %6907 = vmatpush2.msra.mxu0 %v4940
    %6908 = vmatprep.mubr.f32.mxu0 %v5053
    %6909 = vmatmul.mubr.f32.gmra.mxu0 %v5052
    %v6910 = vpop.f32.mrf.mxu0
    %v6911 = vadd.f32 %v6207, %v6910
    %v6912 = vpop.f32.mrf.mxu0
    %6913 = vmatprep.mubr.f32.mxu0 %v5061
    %6914 = vmatmul.mubr.f32.gmra.mxu0 %v5060
    %v6915 = vpop.f32.mrf.mxu0
    %v6916 = vadd.f32 %v6212, %v6915
    %v6917 = vpop.f32.mrf.mxu0
    %6918 = vmatprep.mubr.f32.mxu0 %v5069
    %6919 = vmatmul.mubr.f32.gmra.mxu0 %v5068
    %v6920 = vpop.f32.mrf.mxu0
    %v6921 = vadd.f32 %v6217, %v6920
    %v6922 = vpop.f32.mrf.mxu0
    %6923 = vmatprep.mubr.f32.mxu0 %v5077
    %6924 = vmatmul.mubr.f32.gmra.mxu0 %v5076
    %v6925 = vpop.f32.mrf.mxu0
    %v6926 = vadd.f32 %v6222, %v6925
    %v6927 = vpop.f32.mrf.mxu0
    %6928 = vmatprep.mubr.f32.mxu0 %v5085
    %6929 = vmatmul.mubr.f32.gmra.mxu0 %v5084
    %v6930 = vpop.f32.mrf.mxu0
    %v6931 = vadd.f32 %v6227, %v6930
    %v6932 = vpop.f32.mrf.mxu0
    %6933 = vmatprep.mubr.f32.mxu0 %v5093
    %6934 = vmatmul.mubr.f32.gmra.mxu0 %v5092
    %v6935 = vpop.f32.mrf.mxu0
    %v6936 = vadd.f32 %v6232, %v6935
    %v6937 = vpop.f32.mrf.mxu0
    %6938 = vmatprep.mubr.f32.mxu0 %v5101
    %6939 = vmatmul.mubr.f32.gmra.mxu0 %v5100
    %v6940 = vpop.f32.mrf.mxu0
    %v6941 = vadd.f32 %v6237, %v6940
    %v6942 = vpop.f32.mrf.mxu0
    %6943 = vmatprep.mubr.f32.mxu0 %v5109
    %6944 = vmatmul.mubr.f32.gmra.mxu0 %v5108
    %v6945 = vpop.f32.mrf.mxu0
    %v6946 = vadd.f32 %v6242, %v6945
    %v6947 = vpop.f32.mrf.mxu0
    %6948 = vmatprep.mubr.f32.mxu0 %v5117
    %6949 = vmatmul.mubr.f32.gmra.mxu0 %v5116
    %v6950 = vpop.f32.mrf.mxu0
    %v6951 = vadd.f32 %v6247, %v6950
    %v6952 = vpop.f32.mrf.mxu0
    %6953 = vmatprep.mubr.f32.mxu0 %v5125
    %6954 = vmatmul.mubr.f32.gmra.mxu0 %v5124
    %v6955 = vpop.f32.mrf.mxu0
    %v6956 = vadd.f32 %v6252, %v6955
    %v6957 = vpop.f32.mrf.mxu0
    %6958 = vmatprep.mubr.f32.mxu0 %v5133
    %6959 = vmatmul.mubr.f32.gmra.mxu0 %v5132
    %v6960 = vpop.f32.mrf.mxu0
    %v6961 = vadd.f32 %v6257, %v6960
    %v6962 = vpop.f32.mrf.mxu0
    %6963 = vmatprep.mubr.f32.mxu0 %v5141
    %6964 = vmatmul.mubr.f32.gmra.mxu0 %v5140
    %v6965 = vpop.f32.mrf.mxu0
    %v6966 = vadd.f32 %v6262, %v6965
    %v6967 = vpop.f32.mrf.mxu0
    %6968 = vmatprep.mubr.f32.mxu0 %v5149
    %6969 = vmatmul.mubr.f32.gmra.mxu0 %v5148
    %v6970 = vpop.f32.mrf.mxu0
    %v6971 = vadd.f32 %v6267, %v6970
    %v6972 = vpop.f32.mrf.mxu0
    %6973 = vmatprep.mubr.f32.mxu0 %v5157
    %6974 = vmatmul.mubr.f32.gmra.mxu0 %v5156
    %v6975 = vpop.f32.mrf.mxu0
    %v6976 = vadd.f32 %v6272, %v6975
    %v6977 = vpop.f32.mrf.mxu0
    %6978 = vmatprep.mubr.f32.mxu0 %v5165
    %6979 = vmatmul.mubr.f32.gmra.mxu0 %v5164
    %v6980 = vpop.f32.mrf.mxu0
    %v6981 = vadd.f32 %v6277, %v6980
    %v6982 = vpop.f32.mrf.mxu0
    %6983 = vmatprep.mubr.f32.mxu0 %v5173
    %6984 = vmatmul.mubr.f32.gmra.mxu0 %v5172
    %v6985 = vpop.f32.mrf.mxu0
    %v6986 = vadd.f32 %v6282, %v6985
    %v6987 = vpop.f32.mrf.mxu0
    %6988 = vmatprep.mubr.f32.mxu0 %v5181
    %6989 = vmatmul.mubr.f32.gmra.mxu0 %v5180
    %v6990 = vpop.f32.mrf.mxu0
    %v6991 = vadd.f32 %v6287, %v6990
    %v6992 = vpop.f32.mrf.mxu0
    %6993 = vmatprep.mubr.f32.mxu0 %v5189
    %6994 = vmatmul.mubr.f32.gmra.mxu0 %v5188
    %v6995 = vpop.f32.mrf.mxu0
    %v6996 = vadd.f32 %v6292, %v6995
    %v6997 = vpop.f32.mrf.mxu0
    %6998 = vmatprep.mubr.f32.mxu0 %v5197
    %6999 = vmatmul.mubr.f32.gmra.mxu0 %v5196
    %v7000 = vpop.f32.mrf.mxu0
    %v7001 = vadd.f32 %v6297, %v7000
    %v7002 = vpop.f32.mrf.mxu0
    %7003 = vmatprep.mubr.f32.mxu0 %v5205
    %7004 = vmatmul.mubr.f32.gmra.mxu0 %v5204
    %v7005 = vpop.f32.mrf.mxu0
    %v7006 = vadd.f32 %v6302, %v7005
    %v7007 = vpop.f32.mrf.mxu0
    %7008 = vmatprep.mubr.f32.mxu0 %v5213
    %7009 = vmatmul.mubr.f32.gmra.mxu0 %v5212
    %v7010 = vpop.f32.mrf.mxu0
    %v7011 = vadd.f32 %v6307, %v7010
    %v7012 = vpop.f32.mrf.mxu0
    %7013 = vmatprep.mubr.f32.mxu0 %v5221
    %7014 = vmatmul.mubr.f32.gmra.mxu0 %v5220
    %v7015 = vpop.f32.mrf.mxu0
    %v7016 = vadd.f32 %v6312, %v7015
    %v7017 = vpop.f32.mrf.mxu0
    %7018 = vmatprep.mubr.f32.mxu0 %v5229
    %7019 = vmatmul.mubr.f32.gmra.mxu0 %v5228
    %v7020 = vpop.f32.mrf.mxu0
    %v7021 = vadd.f32 %v6317, %v7020
    %v7022 = vpop.f32.mrf.mxu0
    %7023 = vmatprep.mubr.f32.mxu0 %v5237
    %7024 = vmatmul.mubr.f32.gmra.mxu0 %v5236
    %v7025 = vpop.f32.mrf.mxu0
    %v7026 = vadd.f32 %v6322, %v7025
    %v7027 = vpop.f32.mrf.mxu0
    %7028 = vmatprep.mubr.f32.mxu0 %v5245
    %7029 = vmatmul.mubr.f32.gmra.mxu0 %v5244
    %v7030 = vpop.f32.mrf.mxu0
    %v7031 = vadd.f32 %v6327, %v7030
    %v7032 = vpop.f32.mrf.mxu0
    %7033 = vmatprep.mubr.f32.mxu0 %v5253
    %7034 = vmatmul.mubr.f32.gmra.mxu0 %v5252
    %v7035 = vpop.f32.mrf.mxu0
    %v7036 = vadd.f32 %v6332, %v7035
    %v7037 = vpop.f32.mrf.mxu0
    %7038 = vmatprep.mubr.f32.mxu0 %v5261
    %7039 = vmatmul.mubr.f32.gmra.mxu0 %v5260
    %v7040 = vpop.f32.mrf.mxu0
    %v7041 = vadd.f32 %v6337, %v7040
    %v7042 = vpop.f32.mrf.mxu0
    %7043 = vmatprep.mubr.f32.mxu0 %v5269
    %7044 = vmatmul.mubr.f32.gmra.mxu0 %v5268
    %v7045 = vpop.f32.mrf.mxu0
    %v7046 = vadd.f32 %v6342, %v7045
    %v7047 = vpop.f32.mrf.mxu0
    %7048 = vmatprep.mubr.f32.mxu0 %v5277
    %7049 = vmatmul.mubr.f32.gmra.mxu0 %v5276
    %v7050 = vpop.f32.mrf.mxu0
    %v7051 = vadd.f32 %v6347, %v7050
    %v7052 = vpop.f32.mrf.mxu0
    %7053 = vmatprep.mubr.f32.mxu0 %v5285
    %7054 = vmatmul.mubr.f32.gmra.mxu0 %v5284
    %v7055 = vpop.f32.mrf.mxu0
    %v7056 = vadd.f32 %v6352, %v7055
    %v7057 = vpop.f32.mrf.mxu0
    %7058 = vmatprep.mubr.f32.mxu0 %v5293
    %7059 = vmatmul.mubr.f32.gmra.mxu0 %v5292
    %v7060 = vpop.f32.mrf.mxu0
    %v7061 = vadd.f32 %v6357, %v7060
    %v7062 = vpop.f32.mrf.mxu0
    %7063 = vmatprep.mubr.f32.mxu0 %v5301
    %7064 = vmatmul.mubr.f32.gmra.mxu0 %v5300
    %v7065 = vpop.f32.mrf.mxu0
    %v7066 = vadd.f32 %v6362, %v7065
    %v7067 = vpop.f32.mrf.mxu0
    %7068 = vmatprep.mubr.f32.mxu0 %v5309
    %7069 = vmatmul.mubr.f32.gmra.mxu0 %v5308
    %v7070 = vpop.f32.mrf.mxu0
    %v7071 = vadd.f32 %v6367, %v7070
    %v7072 = vpop.f32.mrf.mxu0
    %7073 = vmatprep.mubr.f32.mxu0 %v5317
    %7074 = vmatmul.mubr.f32.gmra.mxu0 %v5316
    %v7075 = vpop.f32.mrf.mxu0
    %v7076 = vadd.f32 %v6372, %v7075
    %v7077 = vpop.f32.mrf.mxu0
    %7078 = vmatprep.mubr.f32.mxu0 %v5325
    %7079 = vmatmul.mubr.f32.gmra.mxu0 %v5324
    %v7080 = vpop.f32.mrf.mxu0
    %v7081 = vadd.f32 %v6377, %v7080
    %v7082 = vpop.f32.mrf.mxu0
    %7083 = vmatprep.mubr.f32.mxu0 %v5333
    %7084 = vmatmul.mubr.f32.gmra.mxu0 %v5332
    %v7085 = vpop.f32.mrf.mxu0
    %v7086 = vadd.f32 %v6382, %v7085
    %v7087 = vpop.f32.mrf.mxu0
    %7088 = vmatprep.mubr.f32.mxu0 %v5341
    %7089 = vmatmul.mubr.f32.gmra.mxu0 %v5340
    %v7090 = vpop.f32.mrf.mxu0
    %v7091 = vadd.f32 %v6387, %v7090
    %v7092 = vpop.f32.mrf.mxu0
    %7093 = vmatprep.mubr.f32.mxu0 %v5349
    %7094 = vmatmul.mubr.f32.gmra.mxu0 %v5348
    %v7095 = vpop.f32.mrf.mxu0
    %v7096 = vadd.f32 %v6392, %v7095
    %v7097 = vpop.f32.mrf.mxu0
    %7098 = vmatprep.mubr.f32.mxu0 %v5357
    %7099 = vmatmul.mubr.f32.gmra.mxu0 %v5356
    %v7100 = vpop.f32.mrf.mxu0
    %v7101 = vadd.f32 %v6397, %v7100
    %v7102 = vpop.f32.mrf.mxu0
    %7103 = vmatprep.mubr.f32.mxu0 %v5365
    %7104 = vmatmul.mubr.f32.gmra.mxu0 %v5364
    %v7105 = vpop.f32.mrf.mxu0
    %v7106 = vadd.f32 %v6402, %v7105
    %v7107 = vpop.f32.mrf.mxu0
    %7108 = vmatprep.mubr.f32.mxu0 %v5373
    %7109 = vmatmul.mubr.f32.gmra.mxu0 %v5372
    %v7110 = vpop.f32.mrf.mxu0
    %v7111 = vadd.f32 %v6407, %v7110
    %v7112 = vpop.f32.mrf.mxu0
    %7113 = vmatprep.mubr.f32.mxu0 %v5381
    %7114 = vmatmul.mubr.f32.gmra.mxu0 %v5380
    %v7115 = vpop.f32.mrf.mxu0
    %v7116 = vadd.f32 %v6412, %v7115
    %v7117 = vpop.f32.mrf.mxu0
    %7118 = vmatprep.mubr.f32.mxu0 %v5389
    %7119 = vmatmul.mubr.f32.gmra.mxu0 %v5388
    %v7120 = vpop.f32.mrf.mxu0
    %v7121 = vadd.f32 %v6417, %v7120
    %v7122 = vpop.f32.mrf.mxu0
    %7123 = vmatprep.mubr.f32.mxu0 %v5397
    %7124 = vmatmul.mubr.f32.gmra.mxu0 %v5396
    %v7125 = vpop.f32.mrf.mxu0
    %v7126 = vadd.f32 %v6422, %v7125
    %v7127 = vpop.f32.mrf.mxu0
    %7128 = vmatprep.mubr.f32.mxu0 %v5405
    %7129 = vmatmul.mubr.f32.gmra.mxu0 %v5404
    %v7130 = vpop.f32.mrf.mxu0
    %v7131 = vadd.f32 %v6427, %v7130
    %v7132 = vpop.f32.mrf.mxu0
    %7133 = vmatprep.mubr.f32.mxu0 %v5413
    %7134 = vmatmul.mubr.f32.gmra.mxu0 %v5412
    %v7135 = vpop.f32.mrf.mxu0
    %v7136 = vadd.f32 %v6432, %v7135
    %v7137 = vpop.f32.mrf.mxu0
    %7138 = vmatprep.mubr.f32.mxu0 %v5421
    %7139 = vmatmul.mubr.f32.gmra.mxu0 %v5420
    %v7140 = vpop.f32.mrf.mxu0
    %v7141 = vadd.f32 %v6437, %v7140
    %v7142 = vpop.f32.mrf.mxu0
    %7143 = vmatprep.mubr.f32.mxu0 %v5429
    %7144 = vmatmul.mubr.f32.gmra.mxu0 %v5428
    %v7145 = vpop.f32.mrf.mxu0
    %v7146 = vadd.f32 %v6442, %v7145
    %v7147 = vpop.f32.mrf.mxu0
    %7148 = vmatprep.mubr.f32.mxu0 %v5437
    %7149 = vmatmul.mubr.f32.gmra.mxu0 %v5436
    %v7150 = vpop.f32.mrf.mxu0
    %v7151 = vadd.f32 %v6447, %v7150
    %v7152 = vpop.f32.mrf.mxu0
    %7153 = vmatprep.mubr.f32.mxu0 %v5445
    %7154 = vmatmul.mubr.f32.gmra.mxu0 %v5444
    %v7155 = vpop.f32.mrf.mxu0
    %v7156 = vadd.f32 %v6452, %v7155
    %v7157 = vpop.f32.mrf.mxu0
    %7158 = vmatprep.mubr.f32.mxu0 %v5453
    %7159 = vmatmul.mubr.f32.gmra.mxu0 %v5452
    %v7160 = vpop.f32.mrf.mxu0
    %v7161 = vadd.f32 %v6457, %v7160
    %v7162 = vpop.f32.mrf.mxu0
    %7163 = vmatprep.mubr.f32.mxu0 %v5461
    %7164 = vmatmul.mubr.f32.gmra.mxu0 %v5460
    %v7165 = vpop.f32.mrf.mxu0
    %v7166 = vadd.f32 %v6462, %v7165
    %v7167 = vpop.f32.mrf.mxu0
    %7168 = vmatprep.mubr.f32.mxu0 %v5469
    %7169 = vmatmul.mubr.f32.gmra.mxu0 %v5468
    %v7170 = vpop.f32.mrf.mxu0
    %v7171 = vadd.f32 %v6467, %v7170
    %v7172 = vpop.f32.mrf.mxu0
    %7173 = vmatprep.mubr.f32.mxu0 %v5477
    %7174 = vmatmul.mubr.f32.gmra.mxu0 %v5476
    %v7175 = vpop.f32.mrf.mxu0
    %v7176 = vadd.f32 %v6472, %v7175
    %v7177 = vpop.f32.mrf.mxu0
    %7178 = vmatprep.mubr.f32.mxu0 %v5485
    %7179 = vmatmul.mubr.f32.gmra.mxu0 %v5484
    %v7180 = vpop.f32.mrf.mxu0
    %v7181 = vadd.f32 %v6477, %v7180
    %v7182 = vpop.f32.mrf.mxu0
    %7183 = vmatprep.mubr.f32.mxu0 %v5493
    %7184 = vmatmul.mubr.f32.gmra.mxu0 %v5492
    %v7185 = vpop.f32.mrf.mxu0
    %v7186 = vadd.f32 %v6482, %v7185
    %v7187 = vpop.f32.mrf.mxu0
    %7188 = vmatprep.mubr.f32.mxu0 %v5501
    %7189 = vmatmul.mubr.f32.gmra.mxu0 %v5500
    %v7190 = vpop.f32.mrf.mxu0
    %v7191 = vadd.f32 %v6487, %v7190
    %v7192 = vpop.f32.mrf.mxu0
    %7193 = vmatprep.mubr.f32.mxu0 %v5509
    %7194 = vmatmul.mubr.f32.gmra.mxu0 %v5508
    %v7195 = vpop.f32.mrf.mxu0
    %v7196 = vadd.f32 %v6492, %v7195
    %v7197 = vpop.f32.mrf.mxu0
    %7198 = vmatprep.mubr.f32.mxu0 %v5517
    %7199 = vmatmul.mubr.f32.gmra.mxu0 %v5516
    %v7200 = vpop.f32.mrf.mxu0
    %v7201 = vadd.f32 %v6497, %v7200
    %v7202 = vpop.f32.mrf.mxu0
    %7203 = vmatprep.mubr.f32.mxu0 %v5525
    %7204 = vmatmul.mubr.f32.gmra.mxu0 %v5524
    %v7205 = vpop.f32.mrf.mxu0
    %v7206 = vadd.f32 %v6502, %v7205
    %v7207 = vpop.f32.mrf.mxu0
    %7208 = vmatprep.mubr.f32.mxu0 %v5533
    %7209 = vmatmul.mubr.f32.gmra.mxu0 %v5532
    %v7210 = vpop.f32.mrf.mxu0
    %v7211 = vadd.f32 %v6507, %v7210
    %v7212 = vpop.f32.mrf.mxu0
    %7213 = vmatprep.mubr.f32.mxu0 %v5541
    %7214 = vmatmul.mubr.f32.gmra.mxu0 %v5540
    %v7215 = vpop.f32.mrf.mxu0
    %v7216 = vadd.f32 %v6512, %v7215
    %v7217 = vpop.f32.mrf.mxu0
    %7218 = vmatprep.mubr.f32.mxu0 %v5549
    %7219 = vmatmul.mubr.f32.gmra.mxu0 %v5548
    %v7220 = vpop.f32.mrf.mxu0
    %v7221 = vadd.f32 %v6517, %v7220
    %v7222 = vpop.f32.mrf.mxu0
    %7223 = vmatprep.mubr.f32.mxu0 %v5557
    %7224 = vmatmul.mubr.f32.gmra.mxu0 %v5556
    %v7225 = vpop.f32.mrf.mxu0
    %v7226 = vadd.f32 %v6522, %v7225
    %v7227 = vpop.f32.mrf.mxu0
    %7228 = vmatprep.mubr.f32.mxu0 %v5565
    %7229 = vmatmul.mubr.f32.gmra.mxu0 %v5564
    %v7230 = vpop.f32.mrf.mxu0
    %v7231 = vadd.f32 %v6527, %v7230
    %v7232 = vpop.f32.mrf.mxu0
    %7233 = vmatprep.mubr.f32.mxu0 %v5573
    %7234 = vmatmul.mubr.f32.gmra.mxu0 %v5572
    %v7235 = vpop.f32.mrf.mxu0
    %v7236 = vadd.f32 %v6532, %v7235
    %v7237 = vpop.f32.mrf.mxu0
    %7238 = vmatprep.mubr.f32.mxu0 %v5581
    %7239 = vmatmul.mubr.f32.gmra.mxu0 %v5580
    %v7240 = vpop.f32.mrf.mxu0
    %v7241 = vadd.f32 %v6537, %v7240
    %v7242 = vpop.f32.mrf.mxu0
    %7243 = vmatprep.mubr.f32.mxu0 %v5589
    %7244 = vmatmul.mubr.f32.gmra.mxu0 %v5588
    %v7245 = vpop.f32.mrf.mxu0
    %v7246 = vadd.f32 %v6542, %v7245
    %v7247 = vpop.f32.mrf.mxu0
    %7248 = vmatprep.mubr.f32.mxu0 %v5597
    %7249 = vmatmul.mubr.f32.gmra.mxu0 %v5596
    %v7250 = vpop.f32.mrf.mxu0
    %v7251 = vadd.f32 %v6547, %v7250
    %v7252 = vpop.f32.mrf.mxu0
    %7253 = vmatprep.mubr.f32.mxu0 %v5605
    %7254 = vmatmul.mubr.f32.gmra.mxu0 %v5604
    %v7255 = vpop.f32.mrf.mxu0
    %v7256 = vadd.f32 %v6552, %v7255
    %v7257 = vpop.f32.mrf.mxu0
    %7258 = vmatprep.mubr.f32.mxu0 %v5613
    %7259 = vmatmul.mubr.f32.gmra.mxu0 %v5612
    %v7260 = vpop.f32.mrf.mxu0
    %v7261 = vadd.f32 %v6557, %v7260
    %v7262 = vpop.f32.mrf.mxu0
    %7263 = vmatprep.mubr.f32.mxu0 %v5621
    %7264 = vmatmul.mubr.f32.gmra.mxu0 %v5620
    %v7265 = vpop.f32.mrf.mxu0
    %v7266 = vadd.f32 %v6562, %v7265
    %v7267 = vpop.f32.mrf.mxu0
    %7268 = vmatprep.mubr.f32.mxu0 %v5629
    %7269 = vmatmul.mubr.f32.gmra.mxu0 %v5628
    %v7270 = vpop.f32.mrf.mxu0
    %v7271 = vadd.f32 %v6567, %v7270
    %v7272 = vpop.f32.mrf.mxu0
    %7273 = vmatprep.mubr.f32.mxu0 %v5637
    %7274 = vmatmul.mubr.f32.gmra.mxu0 %v5636
    %v7275 = vpop.f32.mrf.mxu0
    %v7276 = vadd.f32 %v6572, %v7275
    %v7277 = vpop.f32.mrf.mxu0
    %7278 = vmatprep.mubr.f32.mxu0 %v5645
    %7279 = vmatmul.mubr.f32.gmra.mxu0 %v5644
    %v7280 = vpop.f32.mrf.mxu0
    %v7281 = vadd.f32 %v6577, %v7280
    %v7282 = vpop.f32.mrf.mxu0
    %7283 = vmatprep.mubr.f32.mxu0 %v5653
    %7284 = vmatmul.mubr.f32.gmra.mxu0 %v5652
    %v7285 = vpop.f32.mrf.mxu0
    %v7286 = vadd.f32 %v6582, %v7285
    %v7287 = vpop.f32.mrf.mxu0
    %7288 = vmatprep.mubr.f32.mxu0 %v5661
    %7289 = vmatmul.mubr.f32.gmra.mxu0 %v5660
    %v7290 = vpop.f32.mrf.mxu0
    %v7291 = vadd.f32 %v6587, %v7290
    %v7292 = vpop.f32.mrf.mxu0
    %7293 = vmatprep.mubr.f32.mxu0 %v5669
    %7294 = vmatmul.mubr.f32.gmra.mxu0 %v5668
    %v7295 = vpop.f32.mrf.mxu0
    %v7296 = vadd.f32 %v6592, %v7295
    %v7297 = vpop.f32.mrf.mxu0
    %7298 = vmatprep.mubr.f32.mxu0 %v5677
    %7299 = vmatmul.mubr.f32.gmra.mxu0 %v5676
    %v7300 = vpop.f32.mrf.mxu0
    %v7301 = vadd.f32 %v6597, %v7300
    %v7302 = vpop.f32.mrf.mxu0
    %7303 = vmatprep.mubr.f32.mxu0 %v5685
    %7304 = vmatmul.mubr.f32.gmra.mxu0 %v5684
    %v7305 = vpop.f32.mrf.mxu0
    %v7306 = vadd.f32 %v6602, %v7305
    %v7307 = vpop.f32.mrf.mxu0
    %7308 = vmatprep.mubr.f32.mxu0 %v5693
    %7309 = vmatmul.mubr.f32.gmra.mxu0 %v5692
    %v7310 = vpop.f32.mrf.mxu0
    %v7311 = vadd.f32 %v6607, %v7310
    %v7312 = vpop.f32.mrf.mxu0
    %7313 = vmatprep.mubr.f32.mxu0 %v5701
    %7314 = vmatmul.mubr.f32.gmra.mxu0 %v5700
    %v7315 = vpop.f32.mrf.mxu0
    %v7316 = vadd.f32 %v6612, %v7315
    %v7317 = vpop.f32.mrf.mxu0
    %7318 = vmatprep.mubr.f32.mxu0 %v5709
    %7319 = vmatmul.mubr.f32.gmra.mxu0 %v5708
    %v7320 = vpop.f32.mrf.mxu0
    %v7321 = vadd.f32 %v6617, %v7320
    %v7322 = vpop.f32.mrf.mxu0
    %7323 = vmatprep.mubr.f32.mxu0 %v5717
    %7324 = vmatmul.mubr.f32.gmra.mxu0 %v5716
    %v7325 = vpop.f32.mrf.mxu0
    %v7326 = vadd.f32 %v6622, %v7325
    %v7327 = vpop.f32.mrf.mxu0
    %7328 = vmatprep.mubr.f32.mxu0 %v5725
    %7329 = vmatmul.mubr.f32.gmra.mxu0 %v5724
    %v7330 = vpop.f32.mrf.mxu0
    %v7331 = vadd.f32 %v6627, %v7330
    %v7332 = vpop.f32.mrf.mxu0
    %7333 = vmatprep.mubr.f32.mxu0 %v5733
    %7334 = vmatmul.mubr.f32.gmra.mxu0 %v5732
    %v7335 = vpop.f32.mrf.mxu0
    %v7336 = vadd.f32 %v6632, %v7335
    %v7337 = vpop.f32.mrf.mxu0
    %7338 = vmatprep.mubr.f32.mxu0 %v5741
    %7339 = vmatmul.mubr.f32.gmra.mxu0 %v5740
    %v7340 = vpop.f32.mrf.mxu0
    %v7341 = vadd.f32 %v6637, %v7340
    %v7342 = vpop.f32.mrf.mxu0
    %7343 = vmatprep.mubr.f32.mxu0 %v5749
    %7344 = vmatmul.mubr.f32.gmra.mxu0 %v5748
    %v7345 = vpop.f32.mrf.mxu0
    %v7346 = vadd.f32 %v6642, %v7345
    %v7347 = vpop.f32.mrf.mxu0
    %7348 = vmatprep.mubr.f32.mxu0 %v5757
    %7349 = vmatmul.mubr.f32.gmra.mxu0 %v5756
    %v7350 = vpop.f32.mrf.mxu0
    %v7351 = vadd.f32 %v6647, %v7350
    %v7352 = vpop.f32.mrf.mxu0
    %7353 = vmatprep.mubr.f32.mxu0 %v5765
    %7354 = vmatmul.mubr.f32.gmra.mxu0 %v5764
    %v7355 = vpop.f32.mrf.mxu0
    %v7356 = vadd.f32 %v6652, %v7355
    %v7357 = vpop.f32.mrf.mxu0
    %7358 = vmatprep.mubr.f32.mxu0 %v5773
    %7359 = vmatmul.mubr.f32.gmra.mxu0 %v5772
    %v7360 = vpop.f32.mrf.mxu0
    %v7361 = vadd.f32 %v6657, %v7360
    %v7362 = vpop.f32.mrf.mxu0
    %7363 = vmatprep.mubr.f32.mxu0 %v5781
    %7364 = vmatmul.mubr.f32.gmra.mxu0 %v5780
    %v7365 = vpop.f32.mrf.mxu0
    %v7366 = vadd.f32 %v6662, %v7365
    %v7367 = vpop.f32.mrf.mxu0
    %7368 = vmatprep.mubr.f32.mxu0 %v5789
    %7369 = vmatmul.mubr.f32.gmra.mxu0 %v5788
    %v7370 = vpop.f32.mrf.mxu0
    %v7371 = vadd.f32 %v6667, %v7370
    %v7372 = vpop.f32.mrf.mxu0
    %7373 = vmatprep.mubr.f32.mxu0 %v5797
    %7374 = vmatmul.mubr.f32.gmra.mxu0 %v5796
    %v7375 = vpop.f32.mrf.mxu0
    %v7376 = vadd.f32 %v6672, %v7375
    %v7377 = vpop.f32.mrf.mxu0
    %7378 = vmatprep.mubr.f32.mxu0 %v5805
    %7379 = vmatmul.mubr.f32.gmra.mxu0 %v5804
    %v7380 = vpop.f32.mrf.mxu0
    %v7381 = vadd.f32 %v6677, %v7380
    %v7382 = vpop.f32.mrf.mxu0
    %7383 = vmatprep.mubr.f32.mxu0 %v5813
    %7384 = vmatmul.mubr.f32.gmra.mxu0 %v5812
    %v7385 = vpop.f32.mrf.mxu0
    %v7386 = vadd.f32 %v6682, %v7385
    %v7387 = vpop.f32.mrf.mxu0
    %7388 = vmatprep.mubr.f32.mxu0 %v5821
    %7389 = vmatmul.mubr.f32.gmra.mxu0 %v5820
    %v7390 = vpop.f32.mrf.mxu0
    %v7391 = vadd.f32 %v6687, %v7390
    %v7392 = vpop.f32.mrf.mxu0
    %7393 = vmatprep.mubr.f32.mxu0 %v5829
    %7394 = vmatmul.mubr.f32.gmra.mxu0 %v5828
    %v7395 = vpop.f32.mrf.mxu0
    %v7396 = vadd.f32 %v6692, %v7395
    %v7397 = vpop.f32.mrf.mxu0
    %7398 = vmatprep.mubr.f32.mxu0 %v5837
    %7399 = vmatmul.mubr.f32.gmra.mxu0 %v5836
    %v7400 = vpop.f32.mrf.mxu0
    %v7401 = vadd.f32 %v6697, %v7400
    %v7402 = vpop.f32.mrf.mxu0
    %7403 = vmatprep.mubr.f32.mxu0 %v5845
    %7404 = vmatmul.mubr.f32.gmra.mxu0 %v5844
    %v7405 = vpop.f32.mrf.mxu0
    %v7406 = vadd.f32 %v6702, %v7405
    %v7407 = vpop.f32.mrf.mxu0
    %7408 = vmatprep.mubr.f32.mxu0 %v5853
    %7409 = vmatmul.mubr.f32.gmra.mxu0 %v5852
    %v7410 = vpop.f32.mrf.mxu0
    %v7411 = vadd.f32 %v6707, %v7410
    %v7412 = vpop.f32.mrf.mxu0
    %7413 = vmatprep.mubr.f32.mxu0 %v5861
    %7414 = vmatmul.mubr.f32.gmra.mxu0 %v5860
    %v7415 = vpop.f32.mrf.mxu0
    %v7416 = vadd.f32 %v6712, %v7415
    %v7417 = vpop.f32.mrf.mxu0
    %7418 = vmatprep.mubr.f32.mxu0 %v5869
    %7419 = vmatmul.mubr.f32.gmra.mxu0 %v5868
    %v7420 = vpop.f32.mrf.mxu0
    %v7421 = vadd.f32 %v6717, %v7420
    %v7422 = vpop.f32.mrf.mxu0
    %7423 = vmatprep.mubr.f32.mxu0 %v5877
    %7424 = vmatmul.mubr.f32.gmra.mxu0 %v5876
    %v7425 = vpop.f32.mrf.mxu0
    %v7426 = vadd.f32 %v6722, %v7425
    %v7427 = vpop.f32.mrf.mxu0
    %7428 = vmatprep.mubr.f32.mxu0 %v5885
    %7429 = vmatmul.mubr.f32.gmra.mxu0 %v5884
    %v7430 = vpop.f32.mrf.mxu0
    %v7431 = vadd.f32 %v6727, %v7430
    %v7432 = vpop.f32.mrf.mxu0
    %7433 = vmatprep.mubr.f32.mxu0 %v5893
    %7434 = vmatmul.mubr.f32.gmra.mxu0 %v5892
    %v7435 = vpop.f32.mrf.mxu0
    %v7436 = vadd.f32 %v6732, %v7435
    %v7437 = vpop.f32.mrf.mxu0
    %7438 = vmatprep.mubr.f32.mxu0 %v5901
    %7439 = vmatmul.mubr.f32.gmra.mxu0 %v5900
    %v7440 = vpop.f32.mrf.mxu0
    %v7441 = vadd.f32 %v6737, %v7440
    %v7442 = vpop.f32.mrf.mxu0
    %7443 = vmatprep.mubr.f32.mxu0 %v5909
    %7444 = vmatmul.mubr.f32.gmra.mxu0 %v5908
    %v7445 = vpop.f32.mrf.mxu0
    %v7446 = vadd.f32 %v6742, %v7445
    %v7447 = vpop.f32.mrf.mxu0
    %7448 = vmatprep.mubr.f32.mxu0 %v5917
    %7449 = vmatmul.mubr.f32.gmra.mxu0 %v5916
    %v7450 = vpop.f32.mrf.mxu0
    %v7451 = vadd.f32 %v6747, %v7450
    %v7452 = vpop.f32.mrf.mxu0
    %7453 = vmatprep.mubr.f32.mxu0 %v5925
    %7454 = vmatmul.mubr.f32.gmra.mxu0 %v5924
    %v7455 = vpop.f32.mrf.mxu0
    %v7456 = vadd.f32 %v6752, %v7455
    %v7457 = vpop.f32.mrf.mxu0
    %7458 = vmatprep.mubr.f32.mxu0 %v5933
    %7459 = vmatmul.mubr.f32.gmra.mxu0 %v5932
    %v7460 = vpop.f32.mrf.mxu0
    %v7461 = vadd.f32 %v6757, %v7460
    %v7462 = vpop.f32.mrf.mxu0
    %7463 = vmatprep.mubr.f32.mxu0 %v5941
    %7464 = vmatmul.mubr.f32.gmra.mxu0 %v5940
    %v7465 = vpop.f32.mrf.mxu0
    %v7466 = vadd.f32 %v6762, %v7465
    %v7467 = vpop.f32.mrf.mxu0
    %7468 = vmatprep.mubr.f32.mxu0 %v5949
    %7469 = vmatmul.mubr.f32.gmra.mxu0 %v5948
    %v7470 = vpop.f32.mrf.mxu0
    %v7471 = vadd.f32 %v6767, %v7470
    %v7472 = vpop.f32.mrf.mxu0
    %7473 = vmatprep.mubr.f32.mxu0 %v5957
    %7474 = vmatmul.mubr.f32.gmra.mxu0 %v5956
    %v7475 = vpop.f32.mrf.mxu0
    %v7476 = vadd.f32 %v6772, %v7475
    %v7477 = vpop.f32.mrf.mxu0
    %7478 = vmatprep.mubr.f32.mxu0 %v5965
    %7479 = vmatmul.mubr.f32.gmra.mxu0 %v5964
    %v7480 = vpop.f32.mrf.mxu0
    %v7481 = vadd.f32 %v6777, %v7480
    %v7482 = vpop.f32.mrf.mxu0
    %7483 = vmatprep.mubr.f32.mxu0 %v5973
    %7484 = vmatmul.mubr.f32.gmra.mxu0 %v5972
    %v7485 = vpop.f32.mrf.mxu0
    %v7486 = vadd.f32 %v6782, %v7485
    %v7487 = vpop.f32.mrf.mxu0
    %7488 = vmatprep.mubr.f32.mxu0 %v5981
    %7489 = vmatmul.mubr.f32.gmra.mxu0 %v5980
    %v7490 = vpop.f32.mrf.mxu0
    %v7491 = vadd.f32 %v6787, %v7490
    %v7492 = vpop.f32.mrf.mxu0
    %7493 = vmatprep.mubr.f32.mxu0 %v5989
    %7494 = vmatmul.mubr.f32.gmra.mxu0 %v5988
    %v7495 = vpop.f32.mrf.mxu0
    %v7496 = vadd.f32 %v6792, %v7495
    %v7497 = vpop.f32.mrf.mxu0
    %7498 = vmatprep.mubr.f32.mxu0 %v5997
    %7499 = vmatmul.mubr.f32.gmra.mxu0 %v5996
    %v7500 = vpop.f32.mrf.mxu0
    %v7501 = vadd.f32 %v6797, %v7500
    %v7502 = vpop.f32.mrf.mxu0
    %7503 = vmatprep.mubr.f32.mxu0 %v6005
    %7504 = vmatmul.mubr.f32.gmra.mxu0 %v6004
    %v7505 = vpop.f32.mrf.mxu0
    %v7506 = vadd.f32 %v6802, %v7505
    %v7507 = vpop.f32.mrf.mxu0
    %7508 = vmatprep.mubr.f32.mxu0 %v6013
    %7509 = vmatmul.mubr.f32.gmra.mxu0 %v6012
    %v7510 = vpop.f32.mrf.mxu0
    %v7511 = vadd.f32 %v6807, %v7510
    %v7512 = vpop.f32.mrf.mxu0
    %7513 = vmatprep.mubr.f32.mxu0 %v6021
    %7514 = vmatmul.mubr.f32.gmra.mxu0 %v6020
    %v7515 = vpop.f32.mrf.mxu0
    %v7516 = vadd.f32 %v6812, %v7515
    %v7517 = vpop.f32.mrf.mxu0
    %7518 = vmatprep.mubr.f32.mxu0 %v6029
    %7519 = vmatmul.mubr.f32.gmra.mxu0 %v6028
    %v7520 = vpop.f32.mrf.mxu0
    %v7521 = vadd.f32 %v6817, %v7520
    %v7522 = vpop.f32.mrf.mxu0
    %7523 = vmatprep.mubr.f32.mxu0 %v6037
    %7524 = vmatmul.mubr.f32.gmra.mxu0 %v6036
    %v7525 = vpop.f32.mrf.mxu0
    %v7526 = vadd.f32 %v6822, %v7525
    %v7527 = vpop.f32.mrf.mxu0
    %7528 = vmatprep.mubr.f32.mxu0 %v6045
    %7529 = vmatmul.mubr.f32.gmra.mxu0 %v6044
    %v7530 = vpop.f32.mrf.mxu0
    %v7531 = vadd.f32 %v6827, %v7530
    %v7532 = vpop.f32.mrf.mxu0
    %7533 = vmatprep.mubr.f32.mxu0 %v6053
    %7534 = vmatmul.mubr.f32.gmra.mxu0 %v6052
    %v7535 = vpop.f32.mrf.mxu0
    %v7536 = vadd.f32 %v6832, %v7535
    %v7537 = vpop.f32.mrf.mxu0
    %7538 = vmatprep.mubr.f32.mxu0 %v6061
    %7539 = vmatmul.mubr.f32.gmra.mxu0 %v6060
    %v7540 = vpop.f32.mrf.mxu0
    %v7541 = vadd.f32 %v6837, %v7540
    %v7542 = vpop.f32.mrf.mxu0
    %7543 = vmatprep.mubr.f32.mxu0 %v6069
    %7544 = vmatmul.mubr.f32.gmra.mxu0 %v6068
    %v7545 = vpop.f32.mrf.mxu0
    %v7546 = vadd.f32 %v6842, %v7545
    %v7547 = vpop.f32.mrf.mxu0
    %7548 = vdwg.mxu0
    %7549 = vmatprep.subr.mxu0 0.0
    %7550 = vmatpush1.msra.mxu0 %v4971
    %7551 = vmatprep.subr.mxu0 0.0
    %7552 = vmatpush1.msra.mxu0 %v4970
    %7553 = vmatprep.subr.mxu0 0.0
    %7554 = vmatpush1.msra.mxu0 %v4969
    %7555 = vmatprep.subr.mxu0 0.0
    %7556 = vmatpush1.msra.mxu0 %v4968
    %7557 = vmatprep.subr.mxu0 0.0
    %7558 = vmatpush1.msra.mxu0 %v4967
    %7559 = vmatprep.subr.mxu0 0.0
    %7560 = vmatpush1.msra.mxu0 %v4966
    %7561 = vmatprep.subr.mxu0 0.0
    %7562 = vmatpush1.msra.mxu0 %v4965
    %7563 = vmatprep.subr.mxu0 0.0
    %7564 = vmatpush1.msra.mxu0 %v4964
    %7565 = vmatprep.subr.mxu0 0.0
    %7566 = vmatpush1.msra.mxu0 %v4963
    %7567 = vmatprep.subr.mxu0 0.0
    %7568 = vmatpush1.msra.mxu0 %v4962
    %7569 = vmatprep.subr.mxu0 0.0
    %7570 = vmatpush1.msra.mxu0 %v4961
    %7571 = vmatprep.subr.mxu0 0.0
    %7572 = vmatpush1.msra.mxu0 %v4960
    %7573 = vmatprep.subr.mxu0 0.0
    %7574 = vmatpush1.msra.mxu0 %v4959
    %7575 = vmatprep.subr.mxu0 0.0
    %7576 = vmatpush1.msra.mxu0 %v4958
    %7577 = vmatprep.subr.mxu0 0.0
    %7578 = vmatpush1.msra.mxu0 %v4957
    %7579 = vmatprep.subr.mxu0 0.0
    %7580 = vmatpush1.msra.mxu0 %v4956
    %7581 = vmatprep.subr.mxu0 0.0
    %7582 = vmatpush2.msra.mxu0 %v4987
    %7583 = vmatprep.subr.mxu0 0.0
    %7584 = vmatpush2.msra.mxu0 %v4986
    %7585 = vmatprep.subr.mxu0 0.0
    %7586 = vmatpush2.msra.mxu0 %v4985
    %7587 = vmatprep.subr.mxu0 0.0
    %7588 = vmatpush2.msra.mxu0 %v4984
    %7589 = vmatprep.subr.mxu0 0.0
    %7590 = vmatpush2.msra.mxu0 %v4983
    %7591 = vmatprep.subr.mxu0 0.0
    %7592 = vmatpush2.msra.mxu0 %v4982
    %7593 = vmatprep.subr.mxu0 0.0
    %7594 = vmatpush2.msra.mxu0 %v4981
    %7595 = vmatprep.subr.mxu0 0.0
    %7596 = vmatpush2.msra.mxu0 %v4980
    %7597 = vmatprep.subr.mxu0 0.0
    %7598 = vmatpush2.msra.mxu0 %v4979
    %7599 = vmatprep.subr.mxu0 0.0
    %7600 = vmatpush2.msra.mxu0 %v4978
    %7601 = vmatprep.subr.mxu0 0.0
    %7602 = vmatpush2.msra.mxu0 %v4977
    %7603 = vmatprep.subr.mxu0 0.0
    %7604 = vmatpush2.msra.mxu0 %v4976
    %7605 = vmatprep.subr.mxu0 0.0
    %7606 = vmatpush2.msra.mxu0 %v4975
    %7607 = vmatprep.subr.mxu0 0.0
    %7608 = vmatpush2.msra.mxu0 %v4974
    %7609 = vmatprep.subr.mxu0 0.0
    %7610 = vmatpush2.msra.mxu0 %v4973
    %7611 = vmatprep.subr.mxu0 0.0
    %7612 = vmatpush2.msra.mxu0 %v4972
    %7613 = vmatprep.mubr.f32.mxu0 %v5055
    %7614 = vmatmul.mubr.f32.gmra.mxu0 %v5054
    %v7615 = vpop.f32.mrf.mxu0
    %v7616 = vadd.f32 %v6911, %v7615
    %v7617 = vpop.f32.mrf.mxu0
    %7618 = vmatprep.mubr.f32.mxu0 %v5063
    %7619 = vmatmul.mubr.f32.gmra.mxu0 %v5062
    %v7620 = vpop.f32.mrf.mxu0
    %v7621 = vadd.f32 %v6916, %v7620
    %v7622 = vpop.f32.mrf.mxu0
    %7623 = vmatprep.mubr.f32.mxu0 %v5071
    %7624 = vmatmul.mubr.f32.gmra.mxu0 %v5070
    %v7625 = vpop.f32.mrf.mxu0
    %v7626 = vadd.f32 %v6921, %v7625
    %v7627 = vpop.f32.mrf.mxu0
    %7628 = vmatprep.mubr.f32.mxu0 %v5079
    %7629 = vmatmul.mubr.f32.gmra.mxu0 %v5078
    %v7630 = vpop.f32.mrf.mxu0
    %v7631 = vadd.f32 %v6926, %v7630
    %v7632 = vpop.f32.mrf.mxu0
    %7633 = vmatprep.mubr.f32.mxu0 %v5087
    %7634 = vmatmul.mubr.f32.gmra.mxu0 %v5086
    %v7635 = vpop.f32.mrf.mxu0
    %v7636 = vadd.f32 %v6931, %v7635
    %v7637 = vpop.f32.mrf.mxu0
    %7638 = vmatprep.mubr.f32.mxu0 %v5095
    %7639 = vmatmul.mubr.f32.gmra.mxu0 %v5094
    %v7640 = vpop.f32.mrf.mxu0
    %v7641 = vadd.f32 %v6936, %v7640
    %v7642 = vpop.f32.mrf.mxu0
    %7643 = vmatprep.mubr.f32.mxu0 %v5103
    %7644 = vmatmul.mubr.f32.gmra.mxu0 %v5102
    %v7645 = vpop.f32.mrf.mxu0
    %v7646 = vadd.f32 %v6941, %v7645
    %v7647 = vpop.f32.mrf.mxu0
    %7648 = vmatprep.mubr.f32.mxu0 %v5111
    %7649 = vmatmul.mubr.f32.gmra.mxu0 %v5110
    %v7650 = vpop.f32.mrf.mxu0
    %v7651 = vadd.f32 %v6946, %v7650
    %v7652 = vpop.f32.mrf.mxu0
    %7653 = vmatprep.mubr.f32.mxu0 %v5119
    %7654 = vmatmul.mubr.f32.gmra.mxu0 %v5118
    %v7655 = vpop.f32.mrf.mxu0
    %v7656 = vadd.f32 %v6951, %v7655
    %v7657 = vpop.f32.mrf.mxu0
    %7658 = vmatprep.mubr.f32.mxu0 %v5127
    %7659 = vmatmul.mubr.f32.gmra.mxu0 %v5126
    %v7660 = vpop.f32.mrf.mxu0
    %v7661 = vadd.f32 %v6956, %v7660
    %v7662 = vpop.f32.mrf.mxu0
    %7663 = vmatprep.mubr.f32.mxu0 %v5135
    %7664 = vmatmul.mubr.f32.gmra.mxu0 %v5134
    %v7665 = vpop.f32.mrf.mxu0
    %v7666 = vadd.f32 %v6961, %v7665
    %v7667 = vpop.f32.mrf.mxu0
    %7668 = vmatprep.mubr.f32.mxu0 %v5143
    %7669 = vmatmul.mubr.f32.gmra.mxu0 %v5142
    %v7670 = vpop.f32.mrf.mxu0
    %v7671 = vadd.f32 %v6966, %v7670
    %v7672 = vpop.f32.mrf.mxu0
    %7673 = vmatprep.mubr.f32.mxu0 %v5151
    %7674 = vmatmul.mubr.f32.gmra.mxu0 %v5150
    %v7675 = vpop.f32.mrf.mxu0
    %v7676 = vadd.f32 %v6971, %v7675
    %v7677 = vpop.f32.mrf.mxu0
    %7678 = vmatprep.mubr.f32.mxu0 %v5159
    %7679 = vmatmul.mubr.f32.gmra.mxu0 %v5158
    %v7680 = vpop.f32.mrf.mxu0
    %v7681 = vadd.f32 %v6976, %v7680
    %v7682 = vpop.f32.mrf.mxu0
    %7683 = vmatprep.mubr.f32.mxu0 %v5167
    %7684 = vmatmul.mubr.f32.gmra.mxu0 %v5166
    %v7685 = vpop.f32.mrf.mxu0
    %v7686 = vadd.f32 %v6981, %v7685
    %v7687 = vpop.f32.mrf.mxu0
    %7688 = vmatprep.mubr.f32.mxu0 %v5175
    %7689 = vmatmul.mubr.f32.gmra.mxu0 %v5174
    %v7690 = vpop.f32.mrf.mxu0
    %v7691 = vadd.f32 %v6986, %v7690
    %v7692 = vpop.f32.mrf.mxu0
    %7693 = vmatprep.mubr.f32.mxu0 %v5183
    %7694 = vmatmul.mubr.f32.gmra.mxu0 %v5182
    %v7695 = vpop.f32.mrf.mxu0
    %v7696 = vadd.f32 %v6991, %v7695
    %v7697 = vpop.f32.mrf.mxu0
    %7698 = vmatprep.mubr.f32.mxu0 %v5191
    %7699 = vmatmul.mubr.f32.gmra.mxu0 %v5190
    %v7700 = vpop.f32.mrf.mxu0
    %v7701 = vadd.f32 %v6996, %v7700
    %v7702 = vpop.f32.mrf.mxu0
    %7703 = vmatprep.mubr.f32.mxu0 %v5199
    %7704 = vmatmul.mubr.f32.gmra.mxu0 %v5198
    %v7705 = vpop.f32.mrf.mxu0
    %v7706 = vadd.f32 %v7001, %v7705
    %v7707 = vpop.f32.mrf.mxu0
    %7708 = vmatprep.mubr.f32.mxu0 %v5207
    %7709 = vmatmul.mubr.f32.gmra.mxu0 %v5206
    %v7710 = vpop.f32.mrf.mxu0
    %v7711 = vadd.f32 %v7006, %v7710
    %v7712 = vpop.f32.mrf.mxu0
    %7713 = vmatprep.mubr.f32.mxu0 %v5215
    %7714 = vmatmul.mubr.f32.gmra.mxu0 %v5214
    %v7715 = vpop.f32.mrf.mxu0
    %v7716 = vadd.f32 %v7011, %v7715
    %v7717 = vpop.f32.mrf.mxu0
    %7718 = vmatprep.mubr.f32.mxu0 %v5223
    %7719 = vmatmul.mubr.f32.gmra.mxu0 %v5222
    %v7720 = vpop.f32.mrf.mxu0
    %v7721 = vadd.f32 %v7016, %v7720
    %v7722 = vpop.f32.mrf.mxu0
    %7723 = vmatprep.mubr.f32.mxu0 %v5231
    %7724 = vmatmul.mubr.f32.gmra.mxu0 %v5230
    %v7725 = vpop.f32.mrf.mxu0
    %v7726 = vadd.f32 %v7021, %v7725
    %v7727 = vpop.f32.mrf.mxu0
    %7728 = vmatprep.mubr.f32.mxu0 %v5239
    %7729 = vmatmul.mubr.f32.gmra.mxu0 %v5238
    %v7730 = vpop.f32.mrf.mxu0
    %v7731 = vadd.f32 %v7026, %v7730
    %v7732 = vpop.f32.mrf.mxu0
    %7733 = vmatprep.mubr.f32.mxu0 %v5247
    %7734 = vmatmul.mubr.f32.gmra.mxu0 %v5246
    %v7735 = vpop.f32.mrf.mxu0
    %v7736 = vadd.f32 %v7031, %v7735
    %v7737 = vpop.f32.mrf.mxu0
    %7738 = vmatprep.mubr.f32.mxu0 %v5255
    %7739 = vmatmul.mubr.f32.gmra.mxu0 %v5254
    %v7740 = vpop.f32.mrf.mxu0
    %v7741 = vadd.f32 %v7036, %v7740
    %v7742 = vpop.f32.mrf.mxu0
    %7743 = vmatprep.mubr.f32.mxu0 %v5263
    %7744 = vmatmul.mubr.f32.gmra.mxu0 %v5262
    %v7745 = vpop.f32.mrf.mxu0
    %v7746 = vadd.f32 %v7041, %v7745
    %v7747 = vpop.f32.mrf.mxu0
    %7748 = vmatprep.mubr.f32.mxu0 %v5271
    %7749 = vmatmul.mubr.f32.gmra.mxu0 %v5270
    %v7750 = vpop.f32.mrf.mxu0
    %v7751 = vadd.f32 %v7046, %v7750
    %v7752 = vpop.f32.mrf.mxu0
    %7753 = vmatprep.mubr.f32.mxu0 %v5279
    %7754 = vmatmul.mubr.f32.gmra.mxu0 %v5278
    %v7755 = vpop.f32.mrf.mxu0
    %v7756 = vadd.f32 %v7051, %v7755
    %v7757 = vpop.f32.mrf.mxu0
    %7758 = vmatprep.mubr.f32.mxu0 %v5287
    %7759 = vmatmul.mubr.f32.gmra.mxu0 %v5286
    %v7760 = vpop.f32.mrf.mxu0
    %v7761 = vadd.f32 %v7056, %v7760
    %v7762 = vpop.f32.mrf.mxu0
    %7763 = vmatprep.mubr.f32.mxu0 %v5295
    %7764 = vmatmul.mubr.f32.gmra.mxu0 %v5294
    %v7765 = vpop.f32.mrf.mxu0
    %v7766 = vadd.f32 %v7061, %v7765
    %v7767 = vpop.f32.mrf.mxu0
    %7768 = vmatprep.mubr.f32.mxu0 %v5303
    %7769 = vmatmul.mubr.f32.gmra.mxu0 %v5302
    %v7770 = vpop.f32.mrf.mxu0
    %v7771 = vadd.f32 %v7066, %v7770
    %v7772 = vpop.f32.mrf.mxu0
    %7773 = vmatprep.mubr.f32.mxu0 %v5311
    %7774 = vmatmul.mubr.f32.gmra.mxu0 %v5310
    %v7775 = vpop.f32.mrf.mxu0
    %v7776 = vadd.f32 %v7071, %v7775
    %v7777 = vpop.f32.mrf.mxu0
    %7778 = vmatprep.mubr.f32.mxu0 %v5319
    %7779 = vmatmul.mubr.f32.gmra.mxu0 %v5318
    %v7780 = vpop.f32.mrf.mxu0
    %v7781 = vadd.f32 %v7076, %v7780
    %v7782 = vpop.f32.mrf.mxu0
    %7783 = vmatprep.mubr.f32.mxu0 %v5327
    %7784 = vmatmul.mubr.f32.gmra.mxu0 %v5326
    %v7785 = vpop.f32.mrf.mxu0
    %v7786 = vadd.f32 %v7081, %v7785
    %v7787 = vpop.f32.mrf.mxu0
    %7788 = vmatprep.mubr.f32.mxu0 %v5335
    %7789 = vmatmul.mubr.f32.gmra.mxu0 %v5334
    %v7790 = vpop.f32.mrf.mxu0
    %v7791 = vadd.f32 %v7086, %v7790
    %v7792 = vpop.f32.mrf.mxu0
    %7793 = vmatprep.mubr.f32.mxu0 %v5343
    %7794 = vmatmul.mubr.f32.gmra.mxu0 %v5342
    %v7795 = vpop.f32.mrf.mxu0
    %v7796 = vadd.f32 %v7091, %v7795
    %v7797 = vpop.f32.mrf.mxu0
    %7798 = vmatprep.mubr.f32.mxu0 %v5351
    %7799 = vmatmul.mubr.f32.gmra.mxu0 %v5350
    %v7800 = vpop.f32.mrf.mxu0
    %v7801 = vadd.f32 %v7096, %v7800
    %v7802 = vpop.f32.mrf.mxu0
    %7803 = vmatprep.mubr.f32.mxu0 %v5359
    %7804 = vmatmul.mubr.f32.gmra.mxu0 %v5358
    %v7805 = vpop.f32.mrf.mxu0
    %v7806 = vadd.f32 %v7101, %v7805
    %v7807 = vpop.f32.mrf.mxu0
    %7808 = vmatprep.mubr.f32.mxu0 %v5367
    %7809 = vmatmul.mubr.f32.gmra.mxu0 %v5366
    %v7810 = vpop.f32.mrf.mxu0
    %v7811 = vadd.f32 %v7106, %v7810
    %v7812 = vpop.f32.mrf.mxu0
    %7813 = vmatprep.mubr.f32.mxu0 %v5375
    %7814 = vmatmul.mubr.f32.gmra.mxu0 %v5374
    %v7815 = vpop.f32.mrf.mxu0
    %v7816 = vadd.f32 %v7111, %v7815
    %v7817 = vpop.f32.mrf.mxu0
    %7818 = vmatprep.mubr.f32.mxu0 %v5383
    %7819 = vmatmul.mubr.f32.gmra.mxu0 %v5382
    %v7820 = vpop.f32.mrf.mxu0
    %v7821 = vadd.f32 %v7116, %v7820
    %v7822 = vpop.f32.mrf.mxu0
    %7823 = vmatprep.mubr.f32.mxu0 %v5391
    %7824 = vmatmul.mubr.f32.gmra.mxu0 %v5390
    %v7825 = vpop.f32.mrf.mxu0
    %v7826 = vadd.f32 %v7121, %v7825
    %v7827 = vpop.f32.mrf.mxu0
    %7828 = vmatprep.mubr.f32.mxu0 %v5399
    %7829 = vmatmul.mubr.f32.gmra.mxu0 %v5398
    %v7830 = vpop.f32.mrf.mxu0
    %v7831 = vadd.f32 %v7126, %v7830
    %v7832 = vpop.f32.mrf.mxu0
    %7833 = vmatprep.mubr.f32.mxu0 %v5407
    %7834 = vmatmul.mubr.f32.gmra.mxu0 %v5406
    %v7835 = vpop.f32.mrf.mxu0
    %v7836 = vadd.f32 %v7131, %v7835
    %v7837 = vpop.f32.mrf.mxu0
    %7838 = vmatprep.mubr.f32.mxu0 %v5415
    %7839 = vmatmul.mubr.f32.gmra.mxu0 %v5414
    %v7840 = vpop.f32.mrf.mxu0
    %v7841 = vadd.f32 %v7136, %v7840
    %v7842 = vpop.f32.mrf.mxu0
    %7843 = vmatprep.mubr.f32.mxu0 %v5423
    %7844 = vmatmul.mubr.f32.gmra.mxu0 %v5422
    %v7845 = vpop.f32.mrf.mxu0
    %v7846 = vadd.f32 %v7141, %v7845
    %v7847 = vpop.f32.mrf.mxu0
    %7848 = vmatprep.mubr.f32.mxu0 %v5431
    %7849 = vmatmul.mubr.f32.gmra.mxu0 %v5430
    %v7850 = vpop.f32.mrf.mxu0
    %v7851 = vadd.f32 %v7146, %v7850
    %v7852 = vpop.f32.mrf.mxu0
    %7853 = vmatprep.mubr.f32.mxu0 %v5439
    %7854 = vmatmul.mubr.f32.gmra.mxu0 %v5438
    %v7855 = vpop.f32.mrf.mxu0
    %v7856 = vadd.f32 %v7151, %v7855
    %v7857 = vpop.f32.mrf.mxu0
    %7858 = vmatprep.mubr.f32.mxu0 %v5447
    %7859 = vmatmul.mubr.f32.gmra.mxu0 %v5446
    %v7860 = vpop.f32.mrf.mxu0
    %v7861 = vadd.f32 %v7156, %v7860
    %v7862 = vpop.f32.mrf.mxu0
    %7863 = vmatprep.mubr.f32.mxu0 %v5455
    %7864 = vmatmul.mubr.f32.gmra.mxu0 %v5454
    %v7865 = vpop.f32.mrf.mxu0
    %v7866 = vadd.f32 %v7161, %v7865
    %v7867 = vpop.f32.mrf.mxu0
    %7868 = vmatprep.mubr.f32.mxu0 %v5463
    %7869 = vmatmul.mubr.f32.gmra.mxu0 %v5462
    %v7870 = vpop.f32.mrf.mxu0
    %v7871 = vadd.f32 %v7166, %v7870
    %v7872 = vpop.f32.mrf.mxu0
    %7873 = vmatprep.mubr.f32.mxu0 %v5471
    %7874 = vmatmul.mubr.f32.gmra.mxu0 %v5470
    %v7875 = vpop.f32.mrf.mxu0
    %v7876 = vadd.f32 %v7171, %v7875
    %v7877 = vpop.f32.mrf.mxu0
    %7878 = vmatprep.mubr.f32.mxu0 %v5479
    %7879 = vmatmul.mubr.f32.gmra.mxu0 %v5478
    %v7880 = vpop.f32.mrf.mxu0
    %v7881 = vadd.f32 %v7176, %v7880
    %v7882 = vpop.f32.mrf.mxu0
    %7883 = vmatprep.mubr.f32.mxu0 %v5487
    %7884 = vmatmul.mubr.f32.gmra.mxu0 %v5486
    %v7885 = vpop.f32.mrf.mxu0
    %v7886 = vadd.f32 %v7181, %v7885
    %v7887 = vpop.f32.mrf.mxu0
    %7888 = vmatprep.mubr.f32.mxu0 %v5495
    %7889 = vmatmul.mubr.f32.gmra.mxu0 %v5494
    %v7890 = vpop.f32.mrf.mxu0
    %v7891 = vadd.f32 %v7186, %v7890
    %v7892 = vpop.f32.mrf.mxu0
    %7893 = vmatprep.mubr.f32.mxu0 %v5503
    %7894 = vmatmul.mubr.f32.gmra.mxu0 %v5502
    %v7895 = vpop.f32.mrf.mxu0
    %v7896 = vadd.f32 %v7191, %v7895
    %v7897 = vpop.f32.mrf.mxu0
    %7898 = vmatprep.mubr.f32.mxu0 %v5511
    %7899 = vmatmul.mubr.f32.gmra.mxu0 %v5510
    %v7900 = vpop.f32.mrf.mxu0
    %v7901 = vadd.f32 %v7196, %v7900
    %v7902 = vpop.f32.mrf.mxu0
    %7903 = vmatprep.mubr.f32.mxu0 %v5519
    %7904 = vmatmul.mubr.f32.gmra.mxu0 %v5518
    %v7905 = vpop.f32.mrf.mxu0
    %v7906 = vadd.f32 %v7201, %v7905
    %v7907 = vpop.f32.mrf.mxu0
    %7908 = vmatprep.mubr.f32.mxu0 %v5527
    %7909 = vmatmul.mubr.f32.gmra.mxu0 %v5526
    %v7910 = vpop.f32.mrf.mxu0
    %v7911 = vadd.f32 %v7206, %v7910
    %v7912 = vpop.f32.mrf.mxu0
    %7913 = vmatprep.mubr.f32.mxu0 %v5535
    %7914 = vmatmul.mubr.f32.gmra.mxu0 %v5534
    %v7915 = vpop.f32.mrf.mxu0
    %v7916 = vadd.f32 %v7211, %v7915
    %v7917 = vpop.f32.mrf.mxu0
    %7918 = vmatprep.mubr.f32.mxu0 %v5543
    %7919 = vmatmul.mubr.f32.gmra.mxu0 %v5542
    %v7920 = vpop.f32.mrf.mxu0
    %v7921 = vadd.f32 %v7216, %v7920
    %v7922 = vpop.f32.mrf.mxu0
    %7923 = vmatprep.mubr.f32.mxu0 %v5551
    %7924 = vmatmul.mubr.f32.gmra.mxu0 %v5550
    %v7925 = vpop.f32.mrf.mxu0
    %v7926 = vadd.f32 %v7221, %v7925
    %v7927 = vpop.f32.mrf.mxu0
    %7928 = vmatprep.mubr.f32.mxu0 %v5559
    %7929 = vmatmul.mubr.f32.gmra.mxu0 %v5558
    %v7930 = vpop.f32.mrf.mxu0
    %v7931 = vadd.f32 %v7226, %v7930
    %v7932 = vpop.f32.mrf.mxu0
    %7933 = vmatprep.mubr.f32.mxu0 %v5567
    %7934 = vmatmul.mubr.f32.gmra.mxu0 %v5566
    %v7935 = vpop.f32.mrf.mxu0
    %v7936 = vadd.f32 %v7231, %v7935
    %v7937 = vpop.f32.mrf.mxu0
    %7938 = vmatprep.mubr.f32.mxu0 %v5575
    %7939 = vmatmul.mubr.f32.gmra.mxu0 %v5574
    %v7940 = vpop.f32.mrf.mxu0
    %v7941 = vadd.f32 %v7236, %v7940
    %v7942 = vpop.f32.mrf.mxu0
    %7943 = vmatprep.mubr.f32.mxu0 %v5583
    %7944 = vmatmul.mubr.f32.gmra.mxu0 %v5582
    %v7945 = vpop.f32.mrf.mxu0
    %v7946 = vadd.f32 %v7241, %v7945
    %v7947 = vpop.f32.mrf.mxu0
    %7948 = vmatprep.mubr.f32.mxu0 %v5591
    %7949 = vmatmul.mubr.f32.gmra.mxu0 %v5590
    %v7950 = vpop.f32.mrf.mxu0
    %v7951 = vadd.f32 %v7246, %v7950
    %v7952 = vpop.f32.mrf.mxu0
    %7953 = vmatprep.mubr.f32.mxu0 %v5599
    %7954 = vmatmul.mubr.f32.gmra.mxu0 %v5598
    %v7955 = vpop.f32.mrf.mxu0
    %v7956 = vadd.f32 %v7251, %v7955
    %v7957 = vpop.f32.mrf.mxu0
    %7958 = vmatprep.mubr.f32.mxu0 %v5607
    %7959 = vmatmul.mubr.f32.gmra.mxu0 %v5606
    %v7960 = vpop.f32.mrf.mxu0
    %v7961 = vadd.f32 %v7256, %v7960
    %v7962 = vpop.f32.mrf.mxu0
    %7963 = vmatprep.mubr.f32.mxu0 %v5615
    %7964 = vmatmul.mubr.f32.gmra.mxu0 %v5614
    %v7965 = vpop.f32.mrf.mxu0
    %v7966 = vadd.f32 %v7261, %v7965
    %v7967 = vpop.f32.mrf.mxu0
    %7968 = vmatprep.mubr.f32.mxu0 %v5623
    %7969 = vmatmul.mubr.f32.gmra.mxu0 %v5622
    %v7970 = vpop.f32.mrf.mxu0
    %v7971 = vadd.f32 %v7266, %v7970
    %v7972 = vpop.f32.mrf.mxu0
    %7973 = vmatprep.mubr.f32.mxu0 %v5631
    %7974 = vmatmul.mubr.f32.gmra.mxu0 %v5630
    %v7975 = vpop.f32.mrf.mxu0
    %v7976 = vadd.f32 %v7271, %v7975
    %v7977 = vpop.f32.mrf.mxu0
    %7978 = vmatprep.mubr.f32.mxu0 %v5639
    %7979 = vmatmul.mubr.f32.gmra.mxu0 %v5638
    %v7980 = vpop.f32.mrf.mxu0
    %v7981 = vadd.f32 %v7276, %v7980
    %v7982 = vpop.f32.mrf.mxu0
    %7983 = vmatprep.mubr.f32.mxu0 %v5647
    %7984 = vmatmul.mubr.f32.gmra.mxu0 %v5646
    %v7985 = vpop.f32.mrf.mxu0
    %v7986 = vadd.f32 %v7281, %v7985
    %v7987 = vpop.f32.mrf.mxu0
    %7988 = vmatprep.mubr.f32.mxu0 %v5655
    %7989 = vmatmul.mubr.f32.gmra.mxu0 %v5654
    %v7990 = vpop.f32.mrf.mxu0
    %v7991 = vadd.f32 %v7286, %v7990
    %v7992 = vpop.f32.mrf.mxu0
    %7993 = vmatprep.mubr.f32.mxu0 %v5663
    %7994 = vmatmul.mubr.f32.gmra.mxu0 %v5662
    %v7995 = vpop.f32.mrf.mxu0
    %v7996 = vadd.f32 %v7291, %v7995
    %v7997 = vpop.f32.mrf.mxu0
    %7998 = vmatprep.mubr.f32.mxu0 %v5671
    %7999 = vmatmul.mubr.f32.gmra.mxu0 %v5670
    %v8000 = vpop.f32.mrf.mxu0
    %v8001 = vadd.f32 %v7296, %v8000
    %v8002 = vpop.f32.mrf.mxu0
    %8003 = vmatprep.mubr.f32.mxu0 %v5679
    %8004 = vmatmul.mubr.f32.gmra.mxu0 %v5678
    %v8005 = vpop.f32.mrf.mxu0
    %v8006 = vadd.f32 %v7301, %v8005
    %v8007 = vpop.f32.mrf.mxu0
    %8008 = vmatprep.mubr.f32.mxu0 %v5687
    %8009 = vmatmul.mubr.f32.gmra.mxu0 %v5686
    %v8010 = vpop.f32.mrf.mxu0
    %v8011 = vadd.f32 %v7306, %v8010
    %v8012 = vpop.f32.mrf.mxu0
    %8013 = vmatprep.mubr.f32.mxu0 %v5695
    %8014 = vmatmul.mubr.f32.gmra.mxu0 %v5694
    %v8015 = vpop.f32.mrf.mxu0
    %v8016 = vadd.f32 %v7311, %v8015
    %v8017 = vpop.f32.mrf.mxu0
    %8018 = vmatprep.mubr.f32.mxu0 %v5703
    %8019 = vmatmul.mubr.f32.gmra.mxu0 %v5702
    %v8020 = vpop.f32.mrf.mxu0
    %v8021 = vadd.f32 %v7316, %v8020
    %v8022 = vpop.f32.mrf.mxu0
    %8023 = vmatprep.mubr.f32.mxu0 %v5711
    %8024 = vmatmul.mubr.f32.gmra.mxu0 %v5710
    %v8025 = vpop.f32.mrf.mxu0
    %v8026 = vadd.f32 %v7321, %v8025
    %v8027 = vpop.f32.mrf.mxu0
    %8028 = vmatprep.mubr.f32.mxu0 %v5719
    %8029 = vmatmul.mubr.f32.gmra.mxu0 %v5718
    %v8030 = vpop.f32.mrf.mxu0
    %v8031 = vadd.f32 %v7326, %v8030
    %v8032 = vpop.f32.mrf.mxu0
    %8033 = vmatprep.mubr.f32.mxu0 %v5727
    %8034 = vmatmul.mubr.f32.gmra.mxu0 %v5726
    %v8035 = vpop.f32.mrf.mxu0
    %v8036 = vadd.f32 %v7331, %v8035
    %v8037 = vpop.f32.mrf.mxu0
    %8038 = vmatprep.mubr.f32.mxu0 %v5735
    %8039 = vmatmul.mubr.f32.gmra.mxu0 %v5734
    %v8040 = vpop.f32.mrf.mxu0
    %v8041 = vadd.f32 %v7336, %v8040
    %v8042 = vpop.f32.mrf.mxu0
    %8043 = vmatprep.mubr.f32.mxu0 %v5743
    %8044 = vmatmul.mubr.f32.gmra.mxu0 %v5742
    %v8045 = vpop.f32.mrf.mxu0
    %v8046 = vadd.f32 %v7341, %v8045
    %v8047 = vpop.f32.mrf.mxu0
    %8048 = vmatprep.mubr.f32.mxu0 %v5751
    %8049 = vmatmul.mubr.f32.gmra.mxu0 %v5750
    %v8050 = vpop.f32.mrf.mxu0
    %v8051 = vadd.f32 %v7346, %v8050
    %v8052 = vpop.f32.mrf.mxu0
    %8053 = vmatprep.mubr.f32.mxu0 %v5759
    %8054 = vmatmul.mubr.f32.gmra.mxu0 %v5758
    %v8055 = vpop.f32.mrf.mxu0
    %v8056 = vadd.f32 %v7351, %v8055
    %v8057 = vpop.f32.mrf.mxu0
    %8058 = vmatprep.mubr.f32.mxu0 %v5767
    %8059 = vmatmul.mubr.f32.gmra.mxu0 %v5766
    %v8060 = vpop.f32.mrf.mxu0
    %v8061 = vadd.f32 %v7356, %v8060
    %v8062 = vpop.f32.mrf.mxu0
    %8063 = vmatprep.mubr.f32.mxu0 %v5775
    %8064 = vmatmul.mubr.f32.gmra.mxu0 %v5774
    %v8065 = vpop.f32.mrf.mxu0
    %v8066 = vadd.f32 %v7361, %v8065
    %v8067 = vpop.f32.mrf.mxu0
    %8068 = vmatprep.mubr.f32.mxu0 %v5783
    %8069 = vmatmul.mubr.f32.gmra.mxu0 %v5782
    %v8070 = vpop.f32.mrf.mxu0
    %v8071 = vadd.f32 %v7366, %v8070
    %v8072 = vpop.f32.mrf.mxu0
    %8073 = vmatprep.mubr.f32.mxu0 %v5791
    %8074 = vmatmul.mubr.f32.gmra.mxu0 %v5790
    %v8075 = vpop.f32.mrf.mxu0
    %v8076 = vadd.f32 %v7371, %v8075
    %v8077 = vpop.f32.mrf.mxu0
    %8078 = vmatprep.mubr.f32.mxu0 %v5799
    %8079 = vmatmul.mubr.f32.gmra.mxu0 %v5798
    %v8080 = vpop.f32.mrf.mxu0
    %v8081 = vadd.f32 %v7376, %v8080
    %v8082 = vpop.f32.mrf.mxu0
    %8083 = vmatprep.mubr.f32.mxu0 %v5807
    %8084 = vmatmul.mubr.f32.gmra.mxu0 %v5806
    %v8085 = vpop.f32.mrf.mxu0
    %v8086 = vadd.f32 %v7381, %v8085
    %v8087 = vpop.f32.mrf.mxu0
    %8088 = vmatprep.mubr.f32.mxu0 %v5815
    %8089 = vmatmul.mubr.f32.gmra.mxu0 %v5814
    %v8090 = vpop.f32.mrf.mxu0
    %v8091 = vadd.f32 %v7386, %v8090
    %v8092 = vpop.f32.mrf.mxu0
    %8093 = vmatprep.mubr.f32.mxu0 %v5823
    %8094 = vmatmul.mubr.f32.gmra.mxu0 %v5822
    %v8095 = vpop.f32.mrf.mxu0
    %v8096 = vadd.f32 %v7391, %v8095
    %v8097 = vpop.f32.mrf.mxu0
    %8098 = vmatprep.mubr.f32.mxu0 %v5831
    %8099 = vmatmul.mubr.f32.gmra.mxu0 %v5830
    %v8100 = vpop.f32.mrf.mxu0
    %v8101 = vadd.f32 %v7396, %v8100
    %v8102 = vpop.f32.mrf.mxu0
    %8103 = vmatprep.mubr.f32.mxu0 %v5839
    %8104 = vmatmul.mubr.f32.gmra.mxu0 %v5838
    %v8105 = vpop.f32.mrf.mxu0
    %v8106 = vadd.f32 %v7401, %v8105
    %v8107 = vpop.f32.mrf.mxu0
    %8108 = vmatprep.mubr.f32.mxu0 %v5847
    %8109 = vmatmul.mubr.f32.gmra.mxu0 %v5846
    %v8110 = vpop.f32.mrf.mxu0
    %v8111 = vadd.f32 %v7406, %v8110
    %v8112 = vpop.f32.mrf.mxu0
    %8113 = vmatprep.mubr.f32.mxu0 %v5855
    %8114 = vmatmul.mubr.f32.gmra.mxu0 %v5854
    %v8115 = vpop.f32.mrf.mxu0
    %v8116 = vadd.f32 %v7411, %v8115
    %v8117 = vpop.f32.mrf.mxu0
    %8118 = vmatprep.mubr.f32.mxu0 %v5863
    %8119 = vmatmul.mubr.f32.gmra.mxu0 %v5862
    %v8120 = vpop.f32.mrf.mxu0
    %v8121 = vadd.f32 %v7416, %v8120
    %v8122 = vpop.f32.mrf.mxu0
    %8123 = vmatprep.mubr.f32.mxu0 %v5871
    %8124 = vmatmul.mubr.f32.gmra.mxu0 %v5870
    %v8125 = vpop.f32.mrf.mxu0
    %v8126 = vadd.f32 %v7421, %v8125
    %v8127 = vpop.f32.mrf.mxu0
    %8128 = vmatprep.mubr.f32.mxu0 %v5879
    %8129 = vmatmul.mubr.f32.gmra.mxu0 %v5878
    %v8130 = vpop.f32.mrf.mxu0
    %v8131 = vadd.f32 %v7426, %v8130
    %v8132 = vpop.f32.mrf.mxu0
    %8133 = vmatprep.mubr.f32.mxu0 %v5887
    %8134 = vmatmul.mubr.f32.gmra.mxu0 %v5886
    %v8135 = vpop.f32.mrf.mxu0
    %v8136 = vadd.f32 %v7431, %v8135
    %v8137 = vpop.f32.mrf.mxu0
    %8138 = vmatprep.mubr.f32.mxu0 %v5895
    %8139 = vmatmul.mubr.f32.gmra.mxu0 %v5894
    %v8140 = vpop.f32.mrf.mxu0
    %v8141 = vadd.f32 %v7436, %v8140
    %v8142 = vpop.f32.mrf.mxu0
    %8143 = vmatprep.mubr.f32.mxu0 %v5903
    %8144 = vmatmul.mubr.f32.gmra.mxu0 %v5902
    %v8145 = vpop.f32.mrf.mxu0
    %v8146 = vadd.f32 %v7441, %v8145
    %v8147 = vpop.f32.mrf.mxu0
    %8148 = vmatprep.mubr.f32.mxu0 %v5911
    %8149 = vmatmul.mubr.f32.gmra.mxu0 %v5910
    %v8150 = vpop.f32.mrf.mxu0
    %v8151 = vadd.f32 %v7446, %v8150
    %v8152 = vpop.f32.mrf.mxu0
    %8153 = vmatprep.mubr.f32.mxu0 %v5919
    %8154 = vmatmul.mubr.f32.gmra.mxu0 %v5918
    %v8155 = vpop.f32.mrf.mxu0
    %v8156 = vadd.f32 %v7451, %v8155
    %v8157 = vpop.f32.mrf.mxu0
    %8158 = vmatprep.mubr.f32.mxu0 %v5927
    %8159 = vmatmul.mubr.f32.gmra.mxu0 %v5926
    %v8160 = vpop.f32.mrf.mxu0
    %v8161 = vadd.f32 %v7456, %v8160
    %v8162 = vpop.f32.mrf.mxu0
    %8163 = vmatprep.mubr.f32.mxu0 %v5935
    %8164 = vmatmul.mubr.f32.gmra.mxu0 %v5934
    %v8165 = vpop.f32.mrf.mxu0
    %v8166 = vadd.f32 %v7461, %v8165
    %v8167 = vpop.f32.mrf.mxu0
    %8168 = vmatprep.mubr.f32.mxu0 %v5943
    %8169 = vmatmul.mubr.f32.gmra.mxu0 %v5942
    %v8170 = vpop.f32.mrf.mxu0
    %v8171 = vadd.f32 %v7466, %v8170
    %v8172 = vpop.f32.mrf.mxu0
    %8173 = vmatprep.mubr.f32.mxu0 %v5951
    %8174 = vmatmul.mubr.f32.gmra.mxu0 %v5950
    %v8175 = vpop.f32.mrf.mxu0
    %v8176 = vadd.f32 %v7471, %v8175
    %v8177 = vpop.f32.mrf.mxu0
    %8178 = vmatprep.mubr.f32.mxu0 %v5959
    %8179 = vmatmul.mubr.f32.gmra.mxu0 %v5958
    %v8180 = vpop.f32.mrf.mxu0
    %v8181 = vadd.f32 %v7476, %v8180
    %v8182 = vpop.f32.mrf.mxu0
    %8183 = vmatprep.mubr.f32.mxu0 %v5967
    %8184 = vmatmul.mubr.f32.gmra.mxu0 %v5966
    %v8185 = vpop.f32.mrf.mxu0
    %v8186 = vadd.f32 %v7481, %v8185
    %v8187 = vpop.f32.mrf.mxu0
    %8188 = vmatprep.mubr.f32.mxu0 %v5975
    %8189 = vmatmul.mubr.f32.gmra.mxu0 %v5974
    %v8190 = vpop.f32.mrf.mxu0
    %v8191 = vadd.f32 %v7486, %v8190
    %v8192 = vpop.f32.mrf.mxu0
    %8193 = vmatprep.mubr.f32.mxu0 %v5983
    %8194 = vmatmul.mubr.f32.gmra.mxu0 %v5982
    %v8195 = vpop.f32.mrf.mxu0
    %v8196 = vadd.f32 %v7491, %v8195
    %v8197 = vpop.f32.mrf.mxu0
    %8198 = vmatprep.mubr.f32.mxu0 %v5991
    %8199 = vmatmul.mubr.f32.gmra.mxu0 %v5990
    %v8200 = vpop.f32.mrf.mxu0
    %v8201 = vadd.f32 %v7496, %v8200
    %v8202 = vpop.f32.mrf.mxu0
    %8203 = vmatprep.mubr.f32.mxu0 %v5999
    %8204 = vmatmul.mubr.f32.gmra.mxu0 %v5998
    %v8205 = vpop.f32.mrf.mxu0
    %v8206 = vadd.f32 %v7501, %v8205
    %v8207 = vpop.f32.mrf.mxu0
    %8208 = vmatprep.mubr.f32.mxu0 %v6007
    %8209 = vmatmul.mubr.f32.gmra.mxu0 %v6006
    %v8210 = vpop.f32.mrf.mxu0
    %v8211 = vadd.f32 %v7506, %v8210
    %v8212 = vpop.f32.mrf.mxu0
    %8213 = vmatprep.mubr.f32.mxu0 %v6015
    %8214 = vmatmul.mubr.f32.gmra.mxu0 %v6014
    %v8215 = vpop.f32.mrf.mxu0
    %v8216 = vadd.f32 %v7511, %v8215
    %v8217 = vpop.f32.mrf.mxu0
    %8218 = vmatprep.mubr.f32.mxu0 %v6023
    %8219 = vmatmul.mubr.f32.gmra.mxu0 %v6022
    %v8220 = vpop.f32.mrf.mxu0
    %v8221 = vadd.f32 %v7516, %v8220
    %v8222 = vpop.f32.mrf.mxu0
    %8223 = vmatprep.mubr.f32.mxu0 %v6031
    %8224 = vmatmul.mubr.f32.gmra.mxu0 %v6030
    %v8225 = vpop.f32.mrf.mxu0
    %v8226 = vadd.f32 %v7521, %v8225
    %v8227 = vpop.f32.mrf.mxu0
    %8228 = vmatprep.mubr.f32.mxu0 %v6039
    %8229 = vmatmul.mubr.f32.gmra.mxu0 %v6038
    %v8230 = vpop.f32.mrf.mxu0
    %v8231 = vadd.f32 %v7526, %v8230
    %v8232 = vpop.f32.mrf.mxu0
    %8233 = vmatprep.mubr.f32.mxu0 %v6047
    %8234 = vmatmul.mubr.f32.gmra.mxu0 %v6046
    %v8235 = vpop.f32.mrf.mxu0
    %v8236 = vadd.f32 %v7531, %v8235
    %v8237 = vpop.f32.mrf.mxu0
    %8238 = vmatprep.mubr.f32.mxu0 %v6055
    %8239 = vmatmul.mubr.f32.gmra.mxu0 %v6054
    %v8240 = vpop.f32.mrf.mxu0
    %v8241 = vadd.f32 %v7536, %v8240
    %v8242 = vpop.f32.mrf.mxu0
    %8243 = vmatprep.mubr.f32.mxu0 %v6063
    %8244 = vmatmul.mubr.f32.gmra.mxu0 %v6062
    %v8245 = vpop.f32.mrf.mxu0
    %v8246 = vadd.f32 %v7541, %v8245
    %v8247 = vpop.f32.mrf.mxu0
    %8248 = vmatprep.mubr.f32.mxu0 %v6071
    %8249 = vmatmul.mubr.f32.gmra.mxu0 %v6070
    %v8250 = vpop.f32.mrf.mxu0
    %v8251 = vadd.f32 %v7546, %v8250
    %v8252 = vpop.f32.mrf.mxu0
    %8253 = vdwg.mxu0
    %8254 = vmatprep.subr.mxu0 0.0
    %8255 = vmatpush1.msra.mxu0 %v5003
    %8256 = vmatprep.subr.mxu0 0.0
    %8257 = vmatpush1.msra.mxu0 %v5002
    %8258 = vmatprep.subr.mxu0 0.0
    %8259 = vmatpush1.msra.mxu0 %v5001
    %8260 = vmatprep.subr.mxu0 0.0
    %8261 = vmatpush1.msra.mxu0 %v5000
    %8262 = vmatprep.subr.mxu0 0.0
    %8263 = vmatpush1.msra.mxu0 %v4999
    %8264 = vmatprep.subr.mxu0 0.0
    %8265 = vmatpush1.msra.mxu0 %v4998
    %8266 = vmatprep.subr.mxu0 0.0
    %8267 = vmatpush1.msra.mxu0 %v4997
    %8268 = vmatprep.subr.mxu0 0.0
    %8269 = vmatpush1.msra.mxu0 %v4996
    %8270 = vmatprep.subr.mxu0 0.0
    %8271 = vmatpush1.msra.mxu0 %v4995
    %8272 = vmatprep.subr.mxu0 0.0
    %8273 = vmatpush1.msra.mxu0 %v4994
    %8274 = vmatprep.subr.mxu0 0.0
    %8275 = vmatpush1.msra.mxu0 %v4993
    %8276 = vmatprep.subr.mxu0 0.0
    %8277 = vmatpush1.msra.mxu0 %v4992
    %8278 = vmatprep.subr.mxu0 0.0
    %8279 = vmatpush1.msra.mxu0 %v4991
    %8280 = vmatprep.subr.mxu0 0.0
    %8281 = vmatpush1.msra.mxu0 %v4990
    %8282 = vmatprep.subr.mxu0 0.0
    %8283 = vmatpush1.msra.mxu0 %v4989
    %8284 = vmatprep.subr.mxu0 0.0
    %8285 = vmatpush1.msra.mxu0 %v4988
    %8286 = vmatprep.subr.mxu0 0.0
    %8287 = vmatpush2.msra.mxu0 %v5019
    %8288 = vmatprep.subr.mxu0 0.0
    %8289 = vmatpush2.msra.mxu0 %v5018
    %8290 = vmatprep.subr.mxu0 0.0
    %8291 = vmatpush2.msra.mxu0 %v5017
    %8292 = vmatprep.subr.mxu0 0.0
    %8293 = vmatpush2.msra.mxu0 %v5016
    %8294 = vmatprep.subr.mxu0 0.0
    %8295 = vmatpush2.msra.mxu0 %v5015
    %8296 = vmatprep.subr.mxu0 0.0
    %8297 = vmatpush2.msra.mxu0 %v5014
    %8298 = vmatprep.subr.mxu0 0.0
    %8299 = vmatpush2.msra.mxu0 %v5013
    %8300 = vmatprep.subr.mxu0 0.0
    %8301 = vmatpush2.msra.mxu0 %v5012
    %8302 = vmatprep.subr.mxu0 0.0
    %8303 = vmatpush2.msra.mxu0 %v5011
    %8304 = vmatprep.subr.mxu0 0.0
    %8305 = vmatpush2.msra.mxu0 %v5010
    %8306 = vmatprep.subr.mxu0 0.0
    %8307 = vmatpush2.msra.mxu0 %v5009
    %8308 = vmatprep.subr.mxu0 0.0
    %8309 = vmatpush2.msra.mxu0 %v5008
    %8310 = vmatprep.subr.mxu0 0.0
    %8311 = vmatpush2.msra.mxu0 %v5007
    %8312 = vmatprep.subr.mxu0 0.0
    %8313 = vmatpush2.msra.mxu0 %v5006
    %8314 = vmatprep.subr.mxu0 0.0
    %8315 = vmatpush2.msra.mxu0 %v5005
    %8316 = vmatprep.subr.mxu0 0.0
    %8317 = vmatpush2.msra.mxu0 %v5004
    %8318 = vmatprep.mubr.f32.mxu0 %v5057
    %8319 = vmatmul.mubr.f32.gmra.mxu0 %v5056
    %v8320 = vpop.f32.mrf.mxu0
    %v8321 = vadd.f32 %v7616, %v8320
    %v8322 = vpop.f32.mrf.mxu0
    %8323 = vmatprep.mubr.f32.mxu0 %v5065
    %8324 = vmatmul.mubr.f32.gmra.mxu0 %v5064
    %v8325 = vpop.f32.mrf.mxu0
    %v8326 = vadd.f32 %v7621, %v8325
    %v8327 = vpop.f32.mrf.mxu0
    %8328 = vmatprep.mubr.f32.mxu0 %v5073
    %8329 = vmatmul.mubr.f32.gmra.mxu0 %v5072
    %v8330 = vpop.f32.mrf.mxu0
    %v8331 = vadd.f32 %v7626, %v8330
    %v8332 = vpop.f32.mrf.mxu0
    %8333 = vmatprep.mubr.f32.mxu0 %v5081
    %8334 = vmatmul.mubr.f32.gmra.mxu0 %v5080
    %v8335 = vpop.f32.mrf.mxu0
    %v8336 = vadd.f32 %v7631, %v8335
    %v8337 = vpop.f32.mrf.mxu0
    %8338 = vmatprep.mubr.f32.mxu0 %v5089
    %8339 = vmatmul.mubr.f32.gmra.mxu0 %v5088
    %v8340 = vpop.f32.mrf.mxu0
    %v8341 = vadd.f32 %v7636, %v8340
    %v8342 = vpop.f32.mrf.mxu0
    %8343 = vmatprep.mubr.f32.mxu0 %v5097
    %8344 = vmatmul.mubr.f32.gmra.mxu0 %v5096
    %v8345 = vpop.f32.mrf.mxu0
    %v8346 = vadd.f32 %v7641, %v8345
    %v8347 = vpop.f32.mrf.mxu0
    %8348 = vmatprep.mubr.f32.mxu0 %v5105
    %8349 = vmatmul.mubr.f32.gmra.mxu0 %v5104
    %v8350 = vpop.f32.mrf.mxu0
    %v8351 = vadd.f32 %v7646, %v8350
    %v8352 = vpop.f32.mrf.mxu0
    %8353 = vmatprep.mubr.f32.mxu0 %v5113
    %8354 = vmatmul.mubr.f32.gmra.mxu0 %v5112
    %v8355 = vpop.f32.mrf.mxu0
    %v8356 = vadd.f32 %v7651, %v8355
    %v8357 = vpop.f32.mrf.mxu0
    %8358 = vmatprep.mubr.f32.mxu0 %v5121
    %8359 = vmatmul.mubr.f32.gmra.mxu0 %v5120
    %v8360 = vpop.f32.mrf.mxu0
    %v8361 = vadd.f32 %v7656, %v8360
    %v8362 = vpop.f32.mrf.mxu0
    %8363 = vmatprep.mubr.f32.mxu0 %v5129
    %8364 = vmatmul.mubr.f32.gmra.mxu0 %v5128
    %v8365 = vpop.f32.mrf.mxu0
    %v8366 = vadd.f32 %v7661, %v8365
    %v8367 = vpop.f32.mrf.mxu0
    %8368 = vmatprep.mubr.f32.mxu0 %v5137
    %8369 = vmatmul.mubr.f32.gmra.mxu0 %v5136
    %v8370 = vpop.f32.mrf.mxu0
    %v8371 = vadd.f32 %v7666, %v8370
    %v8372 = vpop.f32.mrf.mxu0
    %8373 = vmatprep.mubr.f32.mxu0 %v5145
    %8374 = vmatmul.mubr.f32.gmra.mxu0 %v5144
    %v8375 = vpop.f32.mrf.mxu0
    %v8376 = vadd.f32 %v7671, %v8375
    %v8377 = vpop.f32.mrf.mxu0
    %8378 = vmatprep.mubr.f32.mxu0 %v5153
    %8379 = vmatmul.mubr.f32.gmra.mxu0 %v5152
    %v8380 = vpop.f32.mrf.mxu0
    %v8381 = vadd.f32 %v7676, %v8380
    %v8382 = vpop.f32.mrf.mxu0
    %8383 = vmatprep.mubr.f32.mxu0 %v5161
    %8384 = vmatmul.mubr.f32.gmra.mxu0 %v5160
    %v8385 = vpop.f32.mrf.mxu0
    %v8386 = vadd.f32 %v7681, %v8385
    %v8387 = vpop.f32.mrf.mxu0
    %8388 = vmatprep.mubr.f32.mxu0 %v5169
    %8389 = vmatmul.mubr.f32.gmra.mxu0 %v5168
    %v8390 = vpop.f32.mrf.mxu0
    %v8391 = vadd.f32 %v7686, %v8390
    %v8392 = vpop.f32.mrf.mxu0
    %8393 = vmatprep.mubr.f32.mxu0 %v5177
    %8394 = vmatmul.mubr.f32.gmra.mxu0 %v5176
    %v8395 = vpop.f32.mrf.mxu0
    %v8396 = vadd.f32 %v7691, %v8395
    %v8397 = vpop.f32.mrf.mxu0
    %8398 = vmatprep.mubr.f32.mxu0 %v5185
    %8399 = vmatmul.mubr.f32.gmra.mxu0 %v5184
    %v8400 = vpop.f32.mrf.mxu0
    %v8401 = vadd.f32 %v7696, %v8400
    %v8402 = vpop.f32.mrf.mxu0
    %8403 = vmatprep.mubr.f32.mxu0 %v5193
    %8404 = vmatmul.mubr.f32.gmra.mxu0 %v5192
    %v8405 = vpop.f32.mrf.mxu0
    %v8406 = vadd.f32 %v7701, %v8405
    %v8407 = vpop.f32.mrf.mxu0
    %8408 = vmatprep.mubr.f32.mxu0 %v5201
    %8409 = vmatmul.mubr.f32.gmra.mxu0 %v5200
    %v8410 = vpop.f32.mrf.mxu0
    %v8411 = vadd.f32 %v7706, %v8410
    %v8412 = vpop.f32.mrf.mxu0
    %8413 = vmatprep.mubr.f32.mxu0 %v5209
    %8414 = vmatmul.mubr.f32.gmra.mxu0 %v5208
    %v8415 = vpop.f32.mrf.mxu0
    %v8416 = vadd.f32 %v7711, %v8415
    %v8417 = vpop.f32.mrf.mxu0
    %8418 = vmatprep.mubr.f32.mxu0 %v5217
    %8419 = vmatmul.mubr.f32.gmra.mxu0 %v5216
    %v8420 = vpop.f32.mrf.mxu0
    %v8421 = vadd.f32 %v7716, %v8420
    %v8422 = vpop.f32.mrf.mxu0
    %8423 = vmatprep.mubr.f32.mxu0 %v5225
    %8424 = vmatmul.mubr.f32.gmra.mxu0 %v5224
    %v8425 = vpop.f32.mrf.mxu0
    %v8426 = vadd.f32 %v7721, %v8425
    %v8427 = vpop.f32.mrf.mxu0
    %8428 = vmatprep.mubr.f32.mxu0 %v5233
    %8429 = vmatmul.mubr.f32.gmra.mxu0 %v5232
    %v8430 = vpop.f32.mrf.mxu0
    %v8431 = vadd.f32 %v7726, %v8430
    %v8432 = vpop.f32.mrf.mxu0
    %8433 = vmatprep.mubr.f32.mxu0 %v5241
    %8434 = vmatmul.mubr.f32.gmra.mxu0 %v5240
    %v8435 = vpop.f32.mrf.mxu0
    %v8436 = vadd.f32 %v7731, %v8435
    %v8437 = vpop.f32.mrf.mxu0
    %8438 = vmatprep.mubr.f32.mxu0 %v5249
    %8439 = vmatmul.mubr.f32.gmra.mxu0 %v5248
    %v8440 = vpop.f32.mrf.mxu0
    %v8441 = vadd.f32 %v7736, %v8440
    %v8442 = vpop.f32.mrf.mxu0
    %8443 = vmatprep.mubr.f32.mxu0 %v5257
    %8444 = vmatmul.mubr.f32.gmra.mxu0 %v5256
    %v8445 = vpop.f32.mrf.mxu0
    %v8446 = vadd.f32 %v7741, %v8445
    %v8447 = vpop.f32.mrf.mxu0
    %8448 = vmatprep.mubr.f32.mxu0 %v5265
    %8449 = vmatmul.mubr.f32.gmra.mxu0 %v5264
    %v8450 = vpop.f32.mrf.mxu0
    %v8451 = vadd.f32 %v7746, %v8450
    %v8452 = vpop.f32.mrf.mxu0
    %8453 = vmatprep.mubr.f32.mxu0 %v5273
    %8454 = vmatmul.mubr.f32.gmra.mxu0 %v5272
    %v8455 = vpop.f32.mrf.mxu0
    %v8456 = vadd.f32 %v7751, %v8455
    %v8457 = vpop.f32.mrf.mxu0
    %8458 = vmatprep.mubr.f32.mxu0 %v5281
    %8459 = vmatmul.mubr.f32.gmra.mxu0 %v5280
    %v8460 = vpop.f32.mrf.mxu0
    %v8461 = vadd.f32 %v7756, %v8460
    %v8462 = vpop.f32.mrf.mxu0
    %8463 = vmatprep.mubr.f32.mxu0 %v5289
    %8464 = vmatmul.mubr.f32.gmra.mxu0 %v5288
    %v8465 = vpop.f32.mrf.mxu0
    %v8466 = vadd.f32 %v7761, %v8465
    %v8467 = vpop.f32.mrf.mxu0
    %8468 = vmatprep.mubr.f32.mxu0 %v5297
    %8469 = vmatmul.mubr.f32.gmra.mxu0 %v5296
    %v8470 = vpop.f32.mrf.mxu0
    %v8471 = vadd.f32 %v7766, %v8470
    %v8472 = vpop.f32.mrf.mxu0
    %8473 = vmatprep.mubr.f32.mxu0 %v5305
    %8474 = vmatmul.mubr.f32.gmra.mxu0 %v5304
    %v8475 = vpop.f32.mrf.mxu0
    %v8476 = vadd.f32 %v7771, %v8475
    %v8477 = vpop.f32.mrf.mxu0
    %8478 = vmatprep.mubr.f32.mxu0 %v5313
    %8479 = vmatmul.mubr.f32.gmra.mxu0 %v5312
    %v8480 = vpop.f32.mrf.mxu0
    %v8481 = vadd.f32 %v7776, %v8480
    %v8482 = vpop.f32.mrf.mxu0
    %8483 = vmatprep.mubr.f32.mxu0 %v5321
    %8484 = vmatmul.mubr.f32.gmra.mxu0 %v5320
    %v8485 = vpop.f32.mrf.mxu0
    %v8486 = vadd.f32 %v7781, %v8485
    %v8487 = vpop.f32.mrf.mxu0
    %8488 = vmatprep.mubr.f32.mxu0 %v5329
    %8489 = vmatmul.mubr.f32.gmra.mxu0 %v5328
    %v8490 = vpop.f32.mrf.mxu0
    %v8491 = vadd.f32 %v7786, %v8490
    %v8492 = vpop.f32.mrf.mxu0
    %8493 = vmatprep.mubr.f32.mxu0 %v5337
    %8494 = vmatmul.mubr.f32.gmra.mxu0 %v5336
    %v8495 = vpop.f32.mrf.mxu0
    %v8496 = vadd.f32 %v7791, %v8495
    %v8497 = vpop.f32.mrf.mxu0
    %8498 = vmatprep.mubr.f32.mxu0 %v5345
    %8499 = vmatmul.mubr.f32.gmra.mxu0 %v5344
    %v8500 = vpop.f32.mrf.mxu0
    %v8501 = vadd.f32 %v7796, %v8500
    %v8502 = vpop.f32.mrf.mxu0
    %8503 = vmatprep.mubr.f32.mxu0 %v5353
    %8504 = vmatmul.mubr.f32.gmra.mxu0 %v5352
    %v8505 = vpop.f32.mrf.mxu0
    %v8506 = vadd.f32 %v7801, %v8505
    %v8507 = vpop.f32.mrf.mxu0
    %8508 = vmatprep.mubr.f32.mxu0 %v5361
    %8509 = vmatmul.mubr.f32.gmra.mxu0 %v5360
    %v8510 = vpop.f32.mrf.mxu0
    %v8511 = vadd.f32 %v7806, %v8510
    %v8512 = vpop.f32.mrf.mxu0
    %8513 = vmatprep.mubr.f32.mxu0 %v5369
    %8514 = vmatmul.mubr.f32.gmra.mxu0 %v5368
    %v8515 = vpop.f32.mrf.mxu0
    %v8516 = vadd.f32 %v7811, %v8515
    %v8517 = vpop.f32.mrf.mxu0
    %8518 = vmatprep.mubr.f32.mxu0 %v5377
    %8519 = vmatmul.mubr.f32.gmra.mxu0 %v5376
    %v8520 = vpop.f32.mrf.mxu0
    %v8521 = vadd.f32 %v7816, %v8520
    %v8522 = vpop.f32.mrf.mxu0
    %8523 = vmatprep.mubr.f32.mxu0 %v5385
    %8524 = vmatmul.mubr.f32.gmra.mxu0 %v5384
    %v8525 = vpop.f32.mrf.mxu0
    %v8526 = vadd.f32 %v7821, %v8525
    %v8527 = vpop.f32.mrf.mxu0
    %8528 = vmatprep.mubr.f32.mxu0 %v5393
    %8529 = vmatmul.mubr.f32.gmra.mxu0 %v5392
    %v8530 = vpop.f32.mrf.mxu0
    %v8531 = vadd.f32 %v7826, %v8530
    %v8532 = vpop.f32.mrf.mxu0
    %8533 = vmatprep.mubr.f32.mxu0 %v5401
    %8534 = vmatmul.mubr.f32.gmra.mxu0 %v5400
    %v8535 = vpop.f32.mrf.mxu0
    %v8536 = vadd.f32 %v7831, %v8535
    %v8537 = vpop.f32.mrf.mxu0
    %8538 = vmatprep.mubr.f32.mxu0 %v5409
    %8539 = vmatmul.mubr.f32.gmra.mxu0 %v5408
    %v8540 = vpop.f32.mrf.mxu0
    %v8541 = vadd.f32 %v7836, %v8540
    %v8542 = vpop.f32.mrf.mxu0
    %8543 = vmatprep.mubr.f32.mxu0 %v5417
    %8544 = vmatmul.mubr.f32.gmra.mxu0 %v5416
    %v8545 = vpop.f32.mrf.mxu0
    %v8546 = vadd.f32 %v7841, %v8545
    %v8547 = vpop.f32.mrf.mxu0
    %8548 = vmatprep.mubr.f32.mxu0 %v5425
    %8549 = vmatmul.mubr.f32.gmra.mxu0 %v5424
    %v8550 = vpop.f32.mrf.mxu0
    %v8551 = vadd.f32 %v7846, %v8550
    %v8552 = vpop.f32.mrf.mxu0
    %8553 = vmatprep.mubr.f32.mxu0 %v5433
    %8554 = vmatmul.mubr.f32.gmra.mxu0 %v5432
    %v8555 = vpop.f32.mrf.mxu0
    %v8556 = vadd.f32 %v7851, %v8555
    %v8557 = vpop.f32.mrf.mxu0
    %8558 = vmatprep.mubr.f32.mxu0 %v5441
    %8559 = vmatmul.mubr.f32.gmra.mxu0 %v5440
    %v8560 = vpop.f32.mrf.mxu0
    %v8561 = vadd.f32 %v7856, %v8560
    %v8562 = vpop.f32.mrf.mxu0
    %8563 = vmatprep.mubr.f32.mxu0 %v5449
    %8564 = vmatmul.mubr.f32.gmra.mxu0 %v5448
    %v8565 = vpop.f32.mrf.mxu0
    %v8566 = vadd.f32 %v7861, %v8565
    %v8567 = vpop.f32.mrf.mxu0
    %8568 = vmatprep.mubr.f32.mxu0 %v5457
    %8569 = vmatmul.mubr.f32.gmra.mxu0 %v5456
    %v8570 = vpop.f32.mrf.mxu0
    %v8571 = vadd.f32 %v7866, %v8570
    %v8572 = vpop.f32.mrf.mxu0
    %8573 = vmatprep.mubr.f32.mxu0 %v5465
    %8574 = vmatmul.mubr.f32.gmra.mxu0 %v5464
    %v8575 = vpop.f32.mrf.mxu0
    %v8576 = vadd.f32 %v7871, %v8575
    %v8577 = vpop.f32.mrf.mxu0
    %8578 = vmatprep.mubr.f32.mxu0 %v5473
    %8579 = vmatmul.mubr.f32.gmra.mxu0 %v5472
    %v8580 = vpop.f32.mrf.mxu0
    %v8581 = vadd.f32 %v7876, %v8580
    %v8582 = vpop.f32.mrf.mxu0
    %8583 = vmatprep.mubr.f32.mxu0 %v5481
    %8584 = vmatmul.mubr.f32.gmra.mxu0 %v5480
    %v8585 = vpop.f32.mrf.mxu0
    %v8586 = vadd.f32 %v7881, %v8585
    %v8587 = vpop.f32.mrf.mxu0
    %8588 = vmatprep.mubr.f32.mxu0 %v5489
    %8589 = vmatmul.mubr.f32.gmra.mxu0 %v5488
    %v8590 = vpop.f32.mrf.mxu0
    %v8591 = vadd.f32 %v7886, %v8590
    %v8592 = vpop.f32.mrf.mxu0
    %8593 = vmatprep.mubr.f32.mxu0 %v5497
    %8594 = vmatmul.mubr.f32.gmra.mxu0 %v5496
    %v8595 = vpop.f32.mrf.mxu0
    %v8596 = vadd.f32 %v7891, %v8595
    %v8597 = vpop.f32.mrf.mxu0
    %8598 = vmatprep.mubr.f32.mxu0 %v5505
    %8599 = vmatmul.mubr.f32.gmra.mxu0 %v5504
    %v8600 = vpop.f32.mrf.mxu0
    %v8601 = vadd.f32 %v7896, %v8600
    %v8602 = vpop.f32.mrf.mxu0
    %8603 = vmatprep.mubr.f32.mxu0 %v5513
    %8604 = vmatmul.mubr.f32.gmra.mxu0 %v5512
    %v8605 = vpop.f32.mrf.mxu0
    %v8606 = vadd.f32 %v7901, %v8605
    %v8607 = vpop.f32.mrf.mxu0
    %8608 = vmatprep.mubr.f32.mxu0 %v5521
    %8609 = vmatmul.mubr.f32.gmra.mxu0 %v5520
    %v8610 = vpop.f32.mrf.mxu0
    %v8611 = vadd.f32 %v7906, %v8610
    %v8612 = vpop.f32.mrf.mxu0
    %8613 = vmatprep.mubr.f32.mxu0 %v5529
    %8614 = vmatmul.mubr.f32.gmra.mxu0 %v5528
    %v8615 = vpop.f32.mrf.mxu0
    %v8616 = vadd.f32 %v7911, %v8615
    %v8617 = vpop.f32.mrf.mxu0
    %8618 = vmatprep.mubr.f32.mxu0 %v5537
    %8619 = vmatmul.mubr.f32.gmra.mxu0 %v5536
    %v8620 = vpop.f32.mrf.mxu0
    %v8621 = vadd.f32 %v7916, %v8620
    %v8622 = vpop.f32.mrf.mxu0
    %8623 = vmatprep.mubr.f32.mxu0 %v5545
    %8624 = vmatmul.mubr.f32.gmra.mxu0 %v5544
    %v8625 = vpop.f32.mrf.mxu0
    %v8626 = vadd.f32 %v7921, %v8625
    %v8627 = vpop.f32.mrf.mxu0
    %8628 = vmatprep.mubr.f32.mxu0 %v5553
    %8629 = vmatmul.mubr.f32.gmra.mxu0 %v5552
    %v8630 = vpop.f32.mrf.mxu0
    %v8631 = vadd.f32 %v7926, %v8630
    %v8632 = vpop.f32.mrf.mxu0
    %8633 = vmatprep.mubr.f32.mxu0 %v5561
    %8634 = vmatmul.mubr.f32.gmra.mxu0 %v5560
    %v8635 = vpop.f32.mrf.mxu0
    %v8636 = vadd.f32 %v7931, %v8635
    %v8637 = vpop.f32.mrf.mxu0
    %8638 = vmatprep.mubr.f32.mxu0 %v5569
    %8639 = vmatmul.mubr.f32.gmra.mxu0 %v5568
    %v8640 = vpop.f32.mrf.mxu0
    %v8641 = vadd.f32 %v7936, %v8640
    %v8642 = vpop.f32.mrf.mxu0
    %8643 = vmatprep.mubr.f32.mxu0 %v5577
    %8644 = vmatmul.mubr.f32.gmra.mxu0 %v5576
    %v8645 = vpop.f32.mrf.mxu0
    %v8646 = vadd.f32 %v7941, %v8645
    %v8647 = vpop.f32.mrf.mxu0
    %8648 = vmatprep.mubr.f32.mxu0 %v5585
    %8649 = vmatmul.mubr.f32.gmra.mxu0 %v5584
    %v8650 = vpop.f32.mrf.mxu0
    %v8651 = vadd.f32 %v7946, %v8650
    %v8652 = vpop.f32.mrf.mxu0
    %8653 = vmatprep.mubr.f32.mxu0 %v5593
    %8654 = vmatmul.mubr.f32.gmra.mxu0 %v5592
    %v8655 = vpop.f32.mrf.mxu0
    %v8656 = vadd.f32 %v7951, %v8655
    %v8657 = vpop.f32.mrf.mxu0
    %8658 = vmatprep.mubr.f32.mxu0 %v5601
    %8659 = vmatmul.mubr.f32.gmra.mxu0 %v5600
    %v8660 = vpop.f32.mrf.mxu0
    %v8661 = vadd.f32 %v7956, %v8660
    %v8662 = vpop.f32.mrf.mxu0
    %8663 = vmatprep.mubr.f32.mxu0 %v5609
    %8664 = vmatmul.mubr.f32.gmra.mxu0 %v5608
    %v8665 = vpop.f32.mrf.mxu0
    %v8666 = vadd.f32 %v7961, %v8665
    %v8667 = vpop.f32.mrf.mxu0
    %8668 = vmatprep.mubr.f32.mxu0 %v5617
    %8669 = vmatmul.mubr.f32.gmra.mxu0 %v5616
    %v8670 = vpop.f32.mrf.mxu0
    %v8671 = vadd.f32 %v7966, %v8670
    %v8672 = vpop.f32.mrf.mxu0
    %8673 = vmatprep.mubr.f32.mxu0 %v5625
    %8674 = vmatmul.mubr.f32.gmra.mxu0 %v5624
    %v8675 = vpop.f32.mrf.mxu0
    %v8676 = vadd.f32 %v7971, %v8675
    %v8677 = vpop.f32.mrf.mxu0
    %8678 = vmatprep.mubr.f32.mxu0 %v5633
    %8679 = vmatmul.mubr.f32.gmra.mxu0 %v5632
    %v8680 = vpop.f32.mrf.mxu0
    %v8681 = vadd.f32 %v7976, %v8680
    %v8682 = vpop.f32.mrf.mxu0
    %8683 = vmatprep.mubr.f32.mxu0 %v5641
    %8684 = vmatmul.mubr.f32.gmra.mxu0 %v5640
    %v8685 = vpop.f32.mrf.mxu0
    %v8686 = vadd.f32 %v7981, %v8685
    %v8687 = vpop.f32.mrf.mxu0
    %8688 = vmatprep.mubr.f32.mxu0 %v5649
    %8689 = vmatmul.mubr.f32.gmra.mxu0 %v5648
    %v8690 = vpop.f32.mrf.mxu0
    %v8691 = vadd.f32 %v7986, %v8690
    %v8692 = vpop.f32.mrf.mxu0
    %8693 = vmatprep.mubr.f32.mxu0 %v5657
    %8694 = vmatmul.mubr.f32.gmra.mxu0 %v5656
    %v8695 = vpop.f32.mrf.mxu0
    %v8696 = vadd.f32 %v7991, %v8695
    %v8697 = vpop.f32.mrf.mxu0
    %8698 = vmatprep.mubr.f32.mxu0 %v5665
    %8699 = vmatmul.mubr.f32.gmra.mxu0 %v5664
    %v8700 = vpop.f32.mrf.mxu0
    %v8701 = vadd.f32 %v7996, %v8700
    %v8702 = vpop.f32.mrf.mxu0
    %8703 = vmatprep.mubr.f32.mxu0 %v5673
    %8704 = vmatmul.mubr.f32.gmra.mxu0 %v5672
    %v8705 = vpop.f32.mrf.mxu0
    %v8706 = vadd.f32 %v8001, %v8705
    %v8707 = vpop.f32.mrf.mxu0
    %8708 = vmatprep.mubr.f32.mxu0 %v5681
    %8709 = vmatmul.mubr.f32.gmra.mxu0 %v5680
    %v8710 = vpop.f32.mrf.mxu0
    %v8711 = vadd.f32 %v8006, %v8710
    %v8712 = vpop.f32.mrf.mxu0
    %8713 = vmatprep.mubr.f32.mxu0 %v5689
    %8714 = vmatmul.mubr.f32.gmra.mxu0 %v5688
    %v8715 = vpop.f32.mrf.mxu0
    %v8716 = vadd.f32 %v8011, %v8715
    %v8717 = vpop.f32.mrf.mxu0
    %8718 = vmatprep.mubr.f32.mxu0 %v5697
    %8719 = vmatmul.mubr.f32.gmra.mxu0 %v5696
    %v8720 = vpop.f32.mrf.mxu0
    %v8721 = vadd.f32 %v8016, %v8720
    %v8722 = vpop.f32.mrf.mxu0
    %8723 = vmatprep.mubr.f32.mxu0 %v5705
    %8724 = vmatmul.mubr.f32.gmra.mxu0 %v5704
    %v8725 = vpop.f32.mrf.mxu0
    %v8726 = vadd.f32 %v8021, %v8725
    %v8727 = vpop.f32.mrf.mxu0
    %8728 = vmatprep.mubr.f32.mxu0 %v5713
    %8729 = vmatmul.mubr.f32.gmra.mxu0 %v5712
    %v8730 = vpop.f32.mrf.mxu0
    %v8731 = vadd.f32 %v8026, %v8730
    %v8732 = vpop.f32.mrf.mxu0
    %8733 = vmatprep.mubr.f32.mxu0 %v5721
    %8734 = vmatmul.mubr.f32.gmra.mxu0 %v5720
    %v8735 = vpop.f32.mrf.mxu0
    %v8736 = vadd.f32 %v8031, %v8735
    %v8737 = vpop.f32.mrf.mxu0
    %8738 = vmatprep.mubr.f32.mxu0 %v5729
    %8739 = vmatmul.mubr.f32.gmra.mxu0 %v5728
    %v8740 = vpop.f32.mrf.mxu0
    %v8741 = vadd.f32 %v8036, %v8740
    %v8742 = vpop.f32.mrf.mxu0
    %8743 = vmatprep.mubr.f32.mxu0 %v5737
    %8744 = vmatmul.mubr.f32.gmra.mxu0 %v5736
    %v8745 = vpop.f32.mrf.mxu0
    %v8746 = vadd.f32 %v8041, %v8745
    %v8747 = vpop.f32.mrf.mxu0
    %8748 = vmatprep.mubr.f32.mxu0 %v5745
    %8749 = vmatmul.mubr.f32.gmra.mxu0 %v5744
    %v8750 = vpop.f32.mrf.mxu0
    %v8751 = vadd.f32 %v8046, %v8750
    %v8752 = vpop.f32.mrf.mxu0
    %8753 = vmatprep.mubr.f32.mxu0 %v5753
    %8754 = vmatmul.mubr.f32.gmra.mxu0 %v5752
    %v8755 = vpop.f32.mrf.mxu0
    %v8756 = vadd.f32 %v8051, %v8755
    %v8757 = vpop.f32.mrf.mxu0
    %8758 = vmatprep.mubr.f32.mxu0 %v5761
    %8759 = vmatmul.mubr.f32.gmra.mxu0 %v5760
    %v8760 = vpop.f32.mrf.mxu0
    %v8761 = vadd.f32 %v8056, %v8760
    %v8762 = vpop.f32.mrf.mxu0
    %8763 = vmatprep.mubr.f32.mxu0 %v5769
    %8764 = vmatmul.mubr.f32.gmra.mxu0 %v5768
    %v8765 = vpop.f32.mrf.mxu0
    %v8766 = vadd.f32 %v8061, %v8765
    %v8767 = vpop.f32.mrf.mxu0
    %8768 = vmatprep.mubr.f32.mxu0 %v5777
    %8769 = vmatmul.mubr.f32.gmra.mxu0 %v5776
    %v8770 = vpop.f32.mrf.mxu0
    %v8771 = vadd.f32 %v8066, %v8770
    %v8772 = vpop.f32.mrf.mxu0
    %8773 = vmatprep.mubr.f32.mxu0 %v5785
    %8774 = vmatmul.mubr.f32.gmra.mxu0 %v5784
    %v8775 = vpop.f32.mrf.mxu0
    %v8776 = vadd.f32 %v8071, %v8775
    %v8777 = vpop.f32.mrf.mxu0
    %8778 = vmatprep.mubr.f32.mxu0 %v5793
    %8779 = vmatmul.mubr.f32.gmra.mxu0 %v5792
    %v8780 = vpop.f32.mrf.mxu0
    %v8781 = vadd.f32 %v8076, %v8780
    %v8782 = vpop.f32.mrf.mxu0
    %8783 = vmatprep.mubr.f32.mxu0 %v5801
    %8784 = vmatmul.mubr.f32.gmra.mxu0 %v5800
    %v8785 = vpop.f32.mrf.mxu0
    %v8786 = vadd.f32 %v8081, %v8785
    %v8787 = vpop.f32.mrf.mxu0
    %8788 = vmatprep.mubr.f32.mxu0 %v5809
    %8789 = vmatmul.mubr.f32.gmra.mxu0 %v5808
    %v8790 = vpop.f32.mrf.mxu0
    %v8791 = vadd.f32 %v8086, %v8790
    %v8792 = vpop.f32.mrf.mxu0
    %8793 = vmatprep.mubr.f32.mxu0 %v5817
    %8794 = vmatmul.mubr.f32.gmra.mxu0 %v5816
    %v8795 = vpop.f32.mrf.mxu0
    %v8796 = vadd.f32 %v8091, %v8795
    %v8797 = vpop.f32.mrf.mxu0
    %8798 = vmatprep.mubr.f32.mxu0 %v5825
    %8799 = vmatmul.mubr.f32.gmra.mxu0 %v5824
    %v8800 = vpop.f32.mrf.mxu0
    %v8801 = vadd.f32 %v8096, %v8800
    %v8802 = vpop.f32.mrf.mxu0
    %8803 = vmatprep.mubr.f32.mxu0 %v5833
    %8804 = vmatmul.mubr.f32.gmra.mxu0 %v5832
    %v8805 = vpop.f32.mrf.mxu0
    %v8806 = vadd.f32 %v8101, %v8805
    %v8807 = vpop.f32.mrf.mxu0
    %8808 = vmatprep.mubr.f32.mxu0 %v5841
    %8809 = vmatmul.mubr.f32.gmra.mxu0 %v5840
    %v8810 = vpop.f32.mrf.mxu0
    %v8811 = vadd.f32 %v8106, %v8810
    %v8812 = vpop.f32.mrf.mxu0
    %8813 = vmatprep.mubr.f32.mxu0 %v5849
    %8814 = vmatmul.mubr.f32.gmra.mxu0 %v5848
    %v8815 = vpop.f32.mrf.mxu0
    %v8816 = vadd.f32 %v8111, %v8815
    %v8817 = vpop.f32.mrf.mxu0
    %8818 = vmatprep.mubr.f32.mxu0 %v5857
    %8819 = vmatmul.mubr.f32.gmra.mxu0 %v5856
    %v8820 = vpop.f32.mrf.mxu0
    %v8821 = vadd.f32 %v8116, %v8820
    %v8822 = vpop.f32.mrf.mxu0
    %8823 = vmatprep.mubr.f32.mxu0 %v5865
    %8824 = vmatmul.mubr.f32.gmra.mxu0 %v5864
    %v8825 = vpop.f32.mrf.mxu0
    %v8826 = vadd.f32 %v8121, %v8825
    %v8827 = vpop.f32.mrf.mxu0
    %8828 = vmatprep.mubr.f32.mxu0 %v5873
    %8829 = vmatmul.mubr.f32.gmra.mxu0 %v5872
    %v8830 = vpop.f32.mrf.mxu0
    %v8831 = vadd.f32 %v8126, %v8830
    %v8832 = vpop.f32.mrf.mxu0
    %8833 = vmatprep.mubr.f32.mxu0 %v5881
    %8834 = vmatmul.mubr.f32.gmra.mxu0 %v5880
    %v8835 = vpop.f32.mrf.mxu0
    %v8836 = vadd.f32 %v8131, %v8835
    %v8837 = vpop.f32.mrf.mxu0
    %8838 = vmatprep.mubr.f32.mxu0 %v5889
    %8839 = vmatmul.mubr.f32.gmra.mxu0 %v5888
    %v8840 = vpop.f32.mrf.mxu0
    %v8841 = vadd.f32 %v8136, %v8840
    %v8842 = vpop.f32.mrf.mxu0
    %8843 = vmatprep.mubr.f32.mxu0 %v5897
    %8844 = vmatmul.mubr.f32.gmra.mxu0 %v5896
    %v8845 = vpop.f32.mrf.mxu0
    %v8846 = vadd.f32 %v8141, %v8845
    %v8847 = vpop.f32.mrf.mxu0
    %8848 = vmatprep.mubr.f32.mxu0 %v5905
    %8849 = vmatmul.mubr.f32.gmra.mxu0 %v5904
    %v8850 = vpop.f32.mrf.mxu0
    %v8851 = vadd.f32 %v8146, %v8850
    %v8852 = vpop.f32.mrf.mxu0
    %8853 = vmatprep.mubr.f32.mxu0 %v5913
    %8854 = vmatmul.mubr.f32.gmra.mxu0 %v5912
    %v8855 = vpop.f32.mrf.mxu0
    %v8856 = vadd.f32 %v8151, %v8855
    %v8857 = vpop.f32.mrf.mxu0
    %8858 = vmatprep.mubr.f32.mxu0 %v5921
    %8859 = vmatmul.mubr.f32.gmra.mxu0 %v5920
    %v8860 = vpop.f32.mrf.mxu0
    %v8861 = vadd.f32 %v8156, %v8860
    %v8862 = vpop.f32.mrf.mxu0
    %8863 = vmatprep.mubr.f32.mxu0 %v5929
    %8864 = vmatmul.mubr.f32.gmra.mxu0 %v5928
    %v8865 = vpop.f32.mrf.mxu0
    %v8866 = vadd.f32 %v8161, %v8865
    %v8867 = vpop.f32.mrf.mxu0
    %8868 = vmatprep.mubr.f32.mxu0 %v5937
    %8869 = vmatmul.mubr.f32.gmra.mxu0 %v5936
    %v8870 = vpop.f32.mrf.mxu0
    %v8871 = vadd.f32 %v8166, %v8870
    %v8872 = vpop.f32.mrf.mxu0
    %8873 = vmatprep.mubr.f32.mxu0 %v5945
    %8874 = vmatmul.mubr.f32.gmra.mxu0 %v5944
    %v8875 = vpop.f32.mrf.mxu0
    %v8876 = vadd.f32 %v8171, %v8875
    %v8877 = vpop.f32.mrf.mxu0
    %8878 = vmatprep.mubr.f32.mxu0 %v5953
    %8879 = vmatmul.mubr.f32.gmra.mxu0 %v5952
    %v8880 = vpop.f32.mrf.mxu0
    %v8881 = vadd.f32 %v8176, %v8880
    %v8882 = vpop.f32.mrf.mxu0
    %8883 = vmatprep.mubr.f32.mxu0 %v5961
    %8884 = vmatmul.mubr.f32.gmra.mxu0 %v5960
    %v8885 = vpop.f32.mrf.mxu0
    %v8886 = vadd.f32 %v8181, %v8885
    %v8887 = vpop.f32.mrf.mxu0
    %8888 = vmatprep.mubr.f32.mxu0 %v5969
    %8889 = vmatmul.mubr.f32.gmra.mxu0 %v5968
    %v8890 = vpop.f32.mrf.mxu0
    %v8891 = vadd.f32 %v8186, %v8890
    %v8892 = vpop.f32.mrf.mxu0
    %8893 = vmatprep.mubr.f32.mxu0 %v5977
    %8894 = vmatmul.mubr.f32.gmra.mxu0 %v5976
    %v8895 = vpop.f32.mrf.mxu0
    %v8896 = vadd.f32 %v8191, %v8895
    %v8897 = vpop.f32.mrf.mxu0
    %8898 = vmatprep.mubr.f32.mxu0 %v5985
    %8899 = vmatmul.mubr.f32.gmra.mxu0 %v5984
    %v8900 = vpop.f32.mrf.mxu0
    %v8901 = vadd.f32 %v8196, %v8900
    %v8902 = vpop.f32.mrf.mxu0
    %8903 = vmatprep.mubr.f32.mxu0 %v5993
    %8904 = vmatmul.mubr.f32.gmra.mxu0 %v5992
    %v8905 = vpop.f32.mrf.mxu0
    %v8906 = vadd.f32 %v8201, %v8905
    %v8907 = vpop.f32.mrf.mxu0
    %8908 = vmatprep.mubr.f32.mxu0 %v6001
    %8909 = vmatmul.mubr.f32.gmra.mxu0 %v6000
    %v8910 = vpop.f32.mrf.mxu0
    %v8911 = vadd.f32 %v8206, %v8910
    %v8912 = vpop.f32.mrf.mxu0
    %8913 = vmatprep.mubr.f32.mxu0 %v6009
    %8914 = vmatmul.mubr.f32.gmra.mxu0 %v6008
    %v8915 = vpop.f32.mrf.mxu0
    %v8916 = vadd.f32 %v8211, %v8915
    %v8917 = vpop.f32.mrf.mxu0
    %8918 = vmatprep.mubr.f32.mxu0 %v6017
    %8919 = vmatmul.mubr.f32.gmra.mxu0 %v6016
    %v8920 = vpop.f32.mrf.mxu0
    %v8921 = vadd.f32 %v8216, %v8920
    %v8922 = vpop.f32.mrf.mxu0
    %8923 = vmatprep.mubr.f32.mxu0 %v6025
    %8924 = vmatmul.mubr.f32.gmra.mxu0 %v6024
    %v8925 = vpop.f32.mrf.mxu0
    %v8926 = vadd.f32 %v8221, %v8925
    %v8927 = vpop.f32.mrf.mxu0
    %8928 = vmatprep.mubr.f32.mxu0 %v6033
    %8929 = vmatmul.mubr.f32.gmra.mxu0 %v6032
    %v8930 = vpop.f32.mrf.mxu0
    %v8931 = vadd.f32 %v8226, %v8930
    %v8932 = vpop.f32.mrf.mxu0
    %8933 = vmatprep.mubr.f32.mxu0 %v6041
    %8934 = vmatmul.mubr.f32.gmra.mxu0 %v6040
    %v8935 = vpop.f32.mrf.mxu0
    %v8936 = vadd.f32 %v8231, %v8935
    %v8937 = vpop.f32.mrf.mxu0
    %8938 = vmatprep.mubr.f32.mxu0 %v6049
    %8939 = vmatmul.mubr.f32.gmra.mxu0 %v6048
    %v8940 = vpop.f32.mrf.mxu0
    %v8941 = vadd.f32 %v8236, %v8940
    %v8942 = vpop.f32.mrf.mxu0
    %8943 = vmatprep.mubr.f32.mxu0 %v6057
    %8944 = vmatmul.mubr.f32.gmra.mxu0 %v6056
    %v8945 = vpop.f32.mrf.mxu0
    %v8946 = vadd.f32 %v8241, %v8945
    %v8947 = vpop.f32.mrf.mxu0
    %8948 = vmatprep.mubr.f32.mxu0 %v6065
    %8949 = vmatmul.mubr.f32.gmra.mxu0 %v6064
    %v8950 = vpop.f32.mrf.mxu0
    %v8951 = vadd.f32 %v8246, %v8950
    %v8952 = vpop.f32.mrf.mxu0
    %8953 = vmatprep.mubr.f32.mxu0 %v6073
    %8954 = vmatmul.mubr.f32.gmra.mxu0 %v6072
    %v8955 = vpop.f32.mrf.mxu0
    %v8956 = vadd.f32 %v8251, %v8955
    %v8957 = vpop.f32.mrf.mxu0
    %8958 = vdwg.mxu0
    %8959 = vmatprep.subr.mxu0 0.0
    %8960 = vmatpush1.msra.mxu0 %v5035
    %8961 = vmatprep.subr.mxu0 0.0
    %8962 = vmatpush1.msra.mxu0 %v5034
    %8963 = vmatprep.subr.mxu0 0.0
    %8964 = vmatpush1.msra.mxu0 %v5033
    %8965 = vmatprep.subr.mxu0 0.0
    %8966 = vmatpush1.msra.mxu0 %v5032
    %8967 = vmatprep.subr.mxu0 0.0
    %8968 = vmatpush1.msra.mxu0 %v5031
    %8969 = vmatprep.subr.mxu0 0.0
    %8970 = vmatpush1.msra.mxu0 %v5030
    %8971 = vmatprep.subr.mxu0 0.0
    %8972 = vmatpush1.msra.mxu0 %v5029
    %8973 = vmatprep.subr.mxu0 0.0
    %8974 = vmatpush1.msra.mxu0 %v5028
    %8975 = vmatprep.subr.mxu0 0.0
    %8976 = vmatpush1.msra.mxu0 %v5027
    %8977 = vmatprep.subr.mxu0 0.0
    %8978 = vmatpush1.msra.mxu0 %v5026
    %8979 = vmatprep.subr.mxu0 0.0
    %8980 = vmatpush1.msra.mxu0 %v5025
    %8981 = vmatprep.subr.mxu0 0.0
    %8982 = vmatpush1.msra.mxu0 %v5024
    %8983 = vmatprep.subr.mxu0 0.0
    %8984 = vmatpush1.msra.mxu0 %v5023
    %8985 = vmatprep.subr.mxu0 0.0
    %8986 = vmatpush1.msra.mxu0 %v5022
    %8987 = vmatprep.subr.mxu0 0.0
    %8988 = vmatpush1.msra.mxu0 %v5021
    %8989 = vmatprep.subr.mxu0 0.0
    %8990 = vmatpush1.msra.mxu0 %v5020
    %8991 = vmatprep.subr.mxu0 0.0
    %8992 = vmatpush2.msra.mxu0 %v5051
    %8993 = vmatprep.subr.mxu0 0.0
    %8994 = vmatpush2.msra.mxu0 %v5050
    %8995 = vmatprep.subr.mxu0 0.0
    %8996 = vmatpush2.msra.mxu0 %v5049
    %8997 = vmatprep.subr.mxu0 0.0
    %8998 = vmatpush2.msra.mxu0 %v5048
    %8999 = vmatprep.subr.mxu0 0.0
    %9000 = vmatpush2.msra.mxu0 %v5047
    %9001 = vmatprep.subr.mxu0 0.0
    %9002 = vmatpush2.msra.mxu0 %v5046
    %9003 = vmatprep.subr.mxu0 0.0
    %9004 = vmatpush2.msra.mxu0 %v5045
    %9005 = vmatprep.subr.mxu0 0.0
    %9006 = vmatpush2.msra.mxu0 %v5044
    %9007 = vmatprep.subr.mxu0 0.0
    %9008 = vmatpush2.msra.mxu0 %v5043
    %9009 = vmatprep.subr.mxu0 0.0
    %9010 = vmatpush2.msra.mxu0 %v5042
    %9011 = vmatprep.subr.mxu0 0.0
    %9012 = vmatpush2.msra.mxu0 %v5041
    %9013 = vmatprep.subr.mxu0 0.0
    %9014 = vmatpush2.msra.mxu0 %v5040
    %9015 = vmatprep.subr.mxu0 0.0
    %9016 = vmatpush2.msra.mxu0 %v5039
    %9017 = vmatprep.subr.mxu0 0.0
    %9018 = vmatpush2.msra.mxu0 %v5038
    %9019 = vmatprep.subr.mxu0 0.0
    %9020 = vmatpush2.msra.mxu0 %v5037
    %9021 = vmatprep.subr.mxu0 0.0
    %9022 = vmatpush2.msra.mxu0 %v5036
    %9023 = vmatprep.mubr.f32.mxu0 %v5059
    %9024 = vmatmul.mubr.f32.gmra.mxu0 %v5058
    %v9025 = vpop.f32.mrf.mxu0
    %v9026 = vadd.f32 %v8321, %v9025
    %v9027 = vpop.f32.mrf.mxu0
    %9028 = vmatprep.mubr.f32.mxu0 %v5067
    %9029 = vmatmul.mubr.f32.gmra.mxu0 %v5066
    %v9030 = vpop.f32.mrf.mxu0
    %v9031 = vadd.f32 %v8326, %v9030
    %v9032 = vpop.f32.mrf.mxu0
    %9033 = vmatprep.mubr.f32.mxu0 %v5075
    %9034 = vmatmul.mubr.f32.gmra.mxu0 %v5074
    %v9035 = vpop.f32.mrf.mxu0
    %v9036 = vadd.f32 %v8331, %v9035
    %v9037 = vpop.f32.mrf.mxu0
    %9038 = vmatprep.mubr.f32.mxu0 %v5083
    %9039 = vmatmul.mubr.f32.gmra.mxu0 %v5082
    %v9040 = vpop.f32.mrf.mxu0
    %v9041 = vadd.f32 %v8336, %v9040
    %v9042 = vpop.f32.mrf.mxu0
    %9043 = vmatprep.mubr.f32.mxu0 %v5091
    %9044 = vmatmul.mubr.f32.gmra.mxu0 %v5090
    %v9045 = vpop.f32.mrf.mxu0
    %v9046 = vadd.f32 %v8341, %v9045
    %v9047 = vpop.f32.mrf.mxu0
    %9048 = vmatprep.mubr.f32.mxu0 %v5099
    %9049 = vmatmul.mubr.f32.gmra.mxu0 %v5098
    %v9050 = vpop.f32.mrf.mxu0
    %v9051 = vadd.f32 %v8346, %v9050
    %v9052 = vpop.f32.mrf.mxu0
    %9053 = vmatprep.mubr.f32.mxu0 %v5107
    %9054 = vmatmul.mubr.f32.gmra.mxu0 %v5106
    %v9055 = vpop.f32.mrf.mxu0
    %v9056 = vadd.f32 %v8351, %v9055
    %v9057 = vpop.f32.mrf.mxu0
    %9058 = vmatprep.mubr.f32.mxu0 %v5115
    %9059 = vmatmul.mubr.f32.gmra.mxu0 %v5114
    %v9060 = vpop.f32.mrf.mxu0
    %v9061 = vadd.f32 %v8356, %v9060
    %v9062 = vpop.f32.mrf.mxu0
    %9063 = vmatprep.mubr.f32.mxu0 %v5123
    %9064 = vmatmul.mubr.f32.gmra.mxu0 %v5122
    %v9065 = vpop.f32.mrf.mxu0
    %v9066 = vadd.f32 %v8361, %v9065
    %v9067 = vpop.f32.mrf.mxu0
    %9068 = vmatprep.mubr.f32.mxu0 %v5131
    %9069 = vmatmul.mubr.f32.gmra.mxu0 %v5130
    %v9070 = vpop.f32.mrf.mxu0
    %v9071 = vadd.f32 %v8366, %v9070
    %v9072 = vpop.f32.mrf.mxu0
    %9073 = vmatprep.mubr.f32.mxu0 %v5139
    %9074 = vmatmul.mubr.f32.gmra.mxu0 %v5138
    %v9075 = vpop.f32.mrf.mxu0
    %v9076 = vadd.f32 %v8371, %v9075
    %v9077 = vpop.f32.mrf.mxu0
    %9078 = vmatprep.mubr.f32.mxu0 %v5147
    %9079 = vmatmul.mubr.f32.gmra.mxu0 %v5146
    %v9080 = vpop.f32.mrf.mxu0
    %v9081 = vadd.f32 %v8376, %v9080
    %v9082 = vpop.f32.mrf.mxu0
    %9083 = vmatprep.mubr.f32.mxu0 %v5155
    %9084 = vmatmul.mubr.f32.gmra.mxu0 %v5154
    %v9085 = vpop.f32.mrf.mxu0
    %v9086 = vadd.f32 %v8381, %v9085
    %v9087 = vpop.f32.mrf.mxu0
    %9088 = vmatprep.mubr.f32.mxu0 %v5163
    %9089 = vmatmul.mubr.f32.gmra.mxu0 %v5162
    %v9090 = vpop.f32.mrf.mxu0
    %v9091 = vadd.f32 %v8386, %v9090
    %v9092 = vpop.f32.mrf.mxu0
    %9093 = vmatprep.mubr.f32.mxu0 %v5171
    %9094 = vmatmul.mubr.f32.gmra.mxu0 %v5170
    %v9095 = vpop.f32.mrf.mxu0
    %v9096 = vadd.f32 %v8391, %v9095
    %v9097 = vpop.f32.mrf.mxu0
    %9098 = vmatprep.mubr.f32.mxu0 %v5179
    %9099 = vmatmul.mubr.f32.gmra.mxu0 %v5178
    %v9100 = vpop.f32.mrf.mxu0
    %v9101 = vadd.f32 %v8396, %v9100
    %v9102 = vpop.f32.mrf.mxu0
    %9103 = vmatprep.mubr.f32.mxu0 %v5187
    %9104 = vmatmul.mubr.f32.gmra.mxu0 %v5186
    %v9105 = vpop.f32.mrf.mxu0
    %v9106 = vadd.f32 %v8401, %v9105
    %v9107 = vpop.f32.mrf.mxu0
    %9108 = vmatprep.mubr.f32.mxu0 %v5195
    %9109 = vmatmul.mubr.f32.gmra.mxu0 %v5194
    %v9110 = vpop.f32.mrf.mxu0
    %v9111 = vadd.f32 %v8406, %v9110
    %v9112 = vpop.f32.mrf.mxu0
    %9113 = vmatprep.mubr.f32.mxu0 %v5203
    %9114 = vmatmul.mubr.f32.gmra.mxu0 %v5202
    %v9115 = vpop.f32.mrf.mxu0
    %v9116 = vadd.f32 %v8411, %v9115
    %v9117 = vpop.f32.mrf.mxu0
    %9118 = vmatprep.mubr.f32.mxu0 %v5211
    %9119 = vmatmul.mubr.f32.gmra.mxu0 %v5210
    %v9120 = vpop.f32.mrf.mxu0
    %v9121 = vadd.f32 %v8416, %v9120
    %v9122 = vpop.f32.mrf.mxu0
    %9123 = vmatprep.mubr.f32.mxu0 %v5219
    %9124 = vmatmul.mubr.f32.gmra.mxu0 %v5218
    %v9125 = vpop.f32.mrf.mxu0
    %v9126 = vadd.f32 %v8421, %v9125
    %v9127 = vpop.f32.mrf.mxu0
    %9128 = vmatprep.mubr.f32.mxu0 %v5227
    %9129 = vmatmul.mubr.f32.gmra.mxu0 %v5226
    %v9130 = vpop.f32.mrf.mxu0
    %v9131 = vadd.f32 %v8426, %v9130
    %v9132 = vpop.f32.mrf.mxu0
    %9133 = vmatprep.mubr.f32.mxu0 %v5235
    %9134 = vmatmul.mubr.f32.gmra.mxu0 %v5234
    %v9135 = vpop.f32.mrf.mxu0
    %v9136 = vadd.f32 %v8431, %v9135
    %v9137 = vpop.f32.mrf.mxu0
    %9138 = vmatprep.mubr.f32.mxu0 %v5243
    %9139 = vmatmul.mubr.f32.gmra.mxu0 %v5242
    %v9140 = vpop.f32.mrf.mxu0
    %v9141 = vadd.f32 %v8436, %v9140
    %v9142 = vpop.f32.mrf.mxu0
    %9143 = vmatprep.mubr.f32.mxu0 %v5251
    %9144 = vmatmul.mubr.f32.gmra.mxu0 %v5250
    %v9145 = vpop.f32.mrf.mxu0
    %v9146 = vadd.f32 %v8441, %v9145
    %v9147 = vpop.f32.mrf.mxu0
    %9148 = vmatprep.mubr.f32.mxu0 %v5259
    %9149 = vmatmul.mubr.f32.gmra.mxu0 %v5258
    %v9150 = vpop.f32.mrf.mxu0
    %v9151 = vadd.f32 %v8446, %v9150
    %v9152 = vpop.f32.mrf.mxu0
    %9153 = vmatprep.mubr.f32.mxu0 %v5267
    %9154 = vmatmul.mubr.f32.gmra.mxu0 %v5266
    %v9155 = vpop.f32.mrf.mxu0
    %v9156 = vadd.f32 %v8451, %v9155
    %v9157 = vpop.f32.mrf.mxu0
    %9158 = vmatprep.mubr.f32.mxu0 %v5275
    %9159 = vmatmul.mubr.f32.gmra.mxu0 %v5274
    %v9160 = vpop.f32.mrf.mxu0
    %v9161 = vadd.f32 %v8456, %v9160
    %v9162 = vpop.f32.mrf.mxu0
    %9163 = vmatprep.mubr.f32.mxu0 %v5283
    %9164 = vmatmul.mubr.f32.gmra.mxu0 %v5282
    %v9165 = vpop.f32.mrf.mxu0
    %v9166 = vadd.f32 %v8461, %v9165
    %v9167 = vpop.f32.mrf.mxu0
    %9168 = vmatprep.mubr.f32.mxu0 %v5291
    %9169 = vmatmul.mubr.f32.gmra.mxu0 %v5290
    %v9170 = vpop.f32.mrf.mxu0
    %v9171 = vadd.f32 %v8466, %v9170
    %v9172 = vpop.f32.mrf.mxu0
    %9173 = vmatprep.mubr.f32.mxu0 %v5299
    %9174 = vmatmul.mubr.f32.gmra.mxu0 %v5298
    %v9175 = vpop.f32.mrf.mxu0
    %v9176 = vadd.f32 %v8471, %v9175
    %v9177 = vpop.f32.mrf.mxu0
    %9178 = vmatprep.mubr.f32.mxu0 %v5307
    %9179 = vmatmul.mubr.f32.gmra.mxu0 %v5306
    %v9180 = vpop.f32.mrf.mxu0
    %v9181 = vadd.f32 %v8476, %v9180
    %v9182 = vpop.f32.mrf.mxu0
    %9183 = vmatprep.mubr.f32.mxu0 %v5315
    %9184 = vmatmul.mubr.f32.gmra.mxu0 %v5314
    %v9185 = vpop.f32.mrf.mxu0
    %v9186 = vadd.f32 %v8481, %v9185
    %v9187 = vpop.f32.mrf.mxu0
    %9188 = vmatprep.mubr.f32.mxu0 %v5323
    %9189 = vmatmul.mubr.f32.gmra.mxu0 %v5322
    %v9190 = vpop.f32.mrf.mxu0
    %v9191 = vadd.f32 %v8486, %v9190
    %v9192 = vpop.f32.mrf.mxu0
    %9193 = vmatprep.mubr.f32.mxu0 %v5331
    %9194 = vmatmul.mubr.f32.gmra.mxu0 %v5330
    %v9195 = vpop.f32.mrf.mxu0
    %v9196 = vadd.f32 %v8491, %v9195
    %v9197 = vpop.f32.mrf.mxu0
    %9198 = vmatprep.mubr.f32.mxu0 %v5339
    %9199 = vmatmul.mubr.f32.gmra.mxu0 %v5338
    %v9200 = vpop.f32.mrf.mxu0
    %v9201 = vadd.f32 %v8496, %v9200
    %v9202 = vpop.f32.mrf.mxu0
    %9203 = vmatprep.mubr.f32.mxu0 %v5347
    %9204 = vmatmul.mubr.f32.gmra.mxu0 %v5346
    %v9205 = vpop.f32.mrf.mxu0
    %v9206 = vadd.f32 %v8501, %v9205
    %v9207 = vpop.f32.mrf.mxu0
    %9208 = vmatprep.mubr.f32.mxu0 %v5355
    %9209 = vmatmul.mubr.f32.gmra.mxu0 %v5354
    %v9210 = vpop.f32.mrf.mxu0
    %v9211 = vadd.f32 %v8506, %v9210
    %v9212 = vpop.f32.mrf.mxu0
    %9213 = vmatprep.mubr.f32.mxu0 %v5363
    %9214 = vmatmul.mubr.f32.gmra.mxu0 %v5362
    %v9215 = vpop.f32.mrf.mxu0
    %v9216 = vadd.f32 %v8511, %v9215
    %v9217 = vpop.f32.mrf.mxu0
    %9218 = vmatprep.mubr.f32.mxu0 %v5371
    %9219 = vmatmul.mubr.f32.gmra.mxu0 %v5370
    %v9220 = vpop.f32.mrf.mxu0
    %v9221 = vadd.f32 %v8516, %v9220
    %v9222 = vpop.f32.mrf.mxu0
    %9223 = vmatprep.mubr.f32.mxu0 %v5379
    %9224 = vmatmul.mubr.f32.gmra.mxu0 %v5378
    %v9225 = vpop.f32.mrf.mxu0
    %v9226 = vadd.f32 %v8521, %v9225
    %v9227 = vpop.f32.mrf.mxu0
    %9228 = vmatprep.mubr.f32.mxu0 %v5387
    %9229 = vmatmul.mubr.f32.gmra.mxu0 %v5386
    %v9230 = vpop.f32.mrf.mxu0
    %v9231 = vadd.f32 %v8526, %v9230
    %v9232 = vpop.f32.mrf.mxu0
    %9233 = vmatprep.mubr.f32.mxu0 %v5395
    %9234 = vmatmul.mubr.f32.gmra.mxu0 %v5394
    %v9235 = vpop.f32.mrf.mxu0
    %v9236 = vadd.f32 %v8531, %v9235
    %v9237 = vpop.f32.mrf.mxu0
    %9238 = vmatprep.mubr.f32.mxu0 %v5403
    %9239 = vmatmul.mubr.f32.gmra.mxu0 %v5402
    %v9240 = vpop.f32.mrf.mxu0
    %v9241 = vadd.f32 %v8536, %v9240
    %v9242 = vpop.f32.mrf.mxu0
    %9243 = vmatprep.mubr.f32.mxu0 %v5411
    %9244 = vmatmul.mubr.f32.gmra.mxu0 %v5410
    %v9245 = vpop.f32.mrf.mxu0
    %v9246 = vadd.f32 %v8541, %v9245
    %v9247 = vpop.f32.mrf.mxu0
    %9248 = vmatprep.mubr.f32.mxu0 %v5419
    %9249 = vmatmul.mubr.f32.gmra.mxu0 %v5418
    %v9250 = vpop.f32.mrf.mxu0
    %v9251 = vadd.f32 %v8546, %v9250
    %v9252 = vpop.f32.mrf.mxu0
    %9253 = vmatprep.mubr.f32.mxu0 %v5427
    %9254 = vmatmul.mubr.f32.gmra.mxu0 %v5426
    %v9255 = vpop.f32.mrf.mxu0
    %v9256 = vadd.f32 %v8551, %v9255
    %v9257 = vpop.f32.mrf.mxu0
    %9258 = vmatprep.mubr.f32.mxu0 %v5435
    %9259 = vmatmul.mubr.f32.gmra.mxu0 %v5434
    %v9260 = vpop.f32.mrf.mxu0
    %v9261 = vadd.f32 %v8556, %v9260
    %v9262 = vpop.f32.mrf.mxu0
    %9263 = vmatprep.mubr.f32.mxu0 %v5443
    %9264 = vmatmul.mubr.f32.gmra.mxu0 %v5442
    %v9265 = vpop.f32.mrf.mxu0
    %v9266 = vadd.f32 %v8561, %v9265
    %v9267 = vpop.f32.mrf.mxu0
    %9268 = vmatprep.mubr.f32.mxu0 %v5451
    %9269 = vmatmul.mubr.f32.gmra.mxu0 %v5450
    %v9270 = vpop.f32.mrf.mxu0
    %v9271 = vadd.f32 %v8566, %v9270
    %v9272 = vpop.f32.mrf.mxu0
    %9273 = vmatprep.mubr.f32.mxu0 %v5459
    %9274 = vmatmul.mubr.f32.gmra.mxu0 %v5458
    %v9275 = vpop.f32.mrf.mxu0
    %v9276 = vadd.f32 %v8571, %v9275
    %v9277 = vpop.f32.mrf.mxu0
    %9278 = vmatprep.mubr.f32.mxu0 %v5467
    %9279 = vmatmul.mubr.f32.gmra.mxu0 %v5466
    %v9280 = vpop.f32.mrf.mxu0
    %v9281 = vadd.f32 %v8576, %v9280
    %v9282 = vpop.f32.mrf.mxu0
    %9283 = vmatprep.mubr.f32.mxu0 %v5475
    %9284 = vmatmul.mubr.f32.gmra.mxu0 %v5474
    %v9285 = vpop.f32.mrf.mxu0
    %v9286 = vadd.f32 %v8581, %v9285
    %v9287 = vpop.f32.mrf.mxu0
    %9288 = vmatprep.mubr.f32.mxu0 %v5483
    %9289 = vmatmul.mubr.f32.gmra.mxu0 %v5482
    %v9290 = vpop.f32.mrf.mxu0
    %v9291 = vadd.f32 %v8586, %v9290
    %v9292 = vpop.f32.mrf.mxu0
    %9293 = vmatprep.mubr.f32.mxu0 %v5491
    %9294 = vmatmul.mubr.f32.gmra.mxu0 %v5490
    %v9295 = vpop.f32.mrf.mxu0
    %v9296 = vadd.f32 %v8591, %v9295
    %v9297 = vpop.f32.mrf.mxu0
    %9298 = vmatprep.mubr.f32.mxu0 %v5499
    %9299 = vmatmul.mubr.f32.gmra.mxu0 %v5498
    %v9300 = vpop.f32.mrf.mxu0
    %v9301 = vadd.f32 %v8596, %v9300
    %v9302 = vpop.f32.mrf.mxu0
    %9303 = vmatprep.mubr.f32.mxu0 %v5507
    %9304 = vmatmul.mubr.f32.gmra.mxu0 %v5506
    %v9305 = vpop.f32.mrf.mxu0
    %v9306 = vadd.f32 %v8601, %v9305
    %v9307 = vpop.f32.mrf.mxu0
    %9308 = vmatprep.mubr.f32.mxu0 %v5515
    %9309 = vmatmul.mubr.f32.gmra.mxu0 %v5514
    %v9310 = vpop.f32.mrf.mxu0
    %v9311 = vadd.f32 %v8606, %v9310
    %v9312 = vpop.f32.mrf.mxu0
    %9313 = vmatprep.mubr.f32.mxu0 %v5523
    %9314 = vmatmul.mubr.f32.gmra.mxu0 %v5522
    %v9315 = vpop.f32.mrf.mxu0
    %v9316 = vadd.f32 %v8611, %v9315
    %v9317 = vpop.f32.mrf.mxu0
    %9318 = vmatprep.mubr.f32.mxu0 %v5531
    %9319 = vmatmul.mubr.f32.gmra.mxu0 %v5530
    %v9320 = vpop.f32.mrf.mxu0
    %v9321 = vadd.f32 %v8616, %v9320
    %v9322 = vpop.f32.mrf.mxu0
    %9323 = vmatprep.mubr.f32.mxu0 %v5539
    %9324 = vmatmul.mubr.f32.gmra.mxu0 %v5538
    %v9325 = vpop.f32.mrf.mxu0
    %v9326 = vadd.f32 %v8621, %v9325
    %v9327 = vpop.f32.mrf.mxu0
    %9328 = vmatprep.mubr.f32.mxu0 %v5547
    %9329 = vmatmul.mubr.f32.gmra.mxu0 %v5546
    %v9330 = vpop.f32.mrf.mxu0
    %v9331 = vadd.f32 %v8626, %v9330
    %v9332 = vpop.f32.mrf.mxu0
    %9333 = vmatprep.mubr.f32.mxu0 %v5555
    %9334 = vmatmul.mubr.f32.gmra.mxu0 %v5554
    %v9335 = vpop.f32.mrf.mxu0
    %v9336 = vadd.f32 %v8631, %v9335
    %v9337 = vpop.f32.mrf.mxu0
    %9338 = vmatprep.mubr.f32.mxu0 %v5563
    %9339 = vmatmul.mubr.f32.gmra.mxu0 %v5562
    %v9340 = vpop.f32.mrf.mxu0
    %v9341 = vadd.f32 %v8636, %v9340
    %v9342 = vpop.f32.mrf.mxu0
    %9343 = vmatprep.mubr.f32.mxu0 %v5571
    %9344 = vmatmul.mubr.f32.gmra.mxu0 %v5570
    %v9345 = vpop.f32.mrf.mxu0
    %v9346 = vadd.f32 %v8641, %v9345
    %v9347 = vpop.f32.mrf.mxu0
    %9348 = vmatprep.mubr.f32.mxu0 %v5579
    %9349 = vmatmul.mubr.f32.gmra.mxu0 %v5578
    %v9350 = vpop.f32.mrf.mxu0
    %v9351 = vadd.f32 %v8646, %v9350
    %v9352 = vpop.f32.mrf.mxu0
    %9353 = vmatprep.mubr.f32.mxu0 %v5587
    %9354 = vmatmul.mubr.f32.gmra.mxu0 %v5586
    %v9355 = vpop.f32.mrf.mxu0
    %v9356 = vadd.f32 %v8651, %v9355
    %v9357 = vpop.f32.mrf.mxu0
    %9358 = vmatprep.mubr.f32.mxu0 %v5595
    %9359 = vmatmul.mubr.f32.gmra.mxu0 %v5594
    %v9360 = vpop.f32.mrf.mxu0
    %v9361 = vadd.f32 %v8656, %v9360
    %v9362 = vpop.f32.mrf.mxu0
    %9363 = vmatprep.mubr.f32.mxu0 %v5603
    %9364 = vmatmul.mubr.f32.gmra.mxu0 %v5602
    %v9365 = vpop.f32.mrf.mxu0
    %v9366 = vadd.f32 %v8661, %v9365
    %v9367 = vpop.f32.mrf.mxu0
    %9368 = vmatprep.mubr.f32.mxu0 %v5611
    %9369 = vmatmul.mubr.f32.gmra.mxu0 %v5610
    %v9370 = vpop.f32.mrf.mxu0
    %v9371 = vadd.f32 %v8666, %v9370
    %v9372 = vpop.f32.mrf.mxu0
    %9373 = vmatprep.mubr.f32.mxu0 %v5619
    %9374 = vmatmul.mubr.f32.gmra.mxu0 %v5618
    %v9375 = vpop.f32.mrf.mxu0
    %v9376 = vadd.f32 %v8671, %v9375
    %v9377 = vpop.f32.mrf.mxu0
    %9378 = vmatprep.mubr.f32.mxu0 %v5627
    %9379 = vmatmul.mubr.f32.gmra.mxu0 %v5626
    %v9380 = vpop.f32.mrf.mxu0
    %v9381 = vadd.f32 %v8676, %v9380
    %v9382 = vpop.f32.mrf.mxu0
    %9383 = vmatprep.mubr.f32.mxu0 %v5635
    %9384 = vmatmul.mubr.f32.gmra.mxu0 %v5634
    %v9385 = vpop.f32.mrf.mxu0
    %v9386 = vadd.f32 %v8681, %v9385
    %v9387 = vpop.f32.mrf.mxu0
    %9388 = vmatprep.mubr.f32.mxu0 %v5643
    %9389 = vmatmul.mubr.f32.gmra.mxu0 %v5642
    %v9390 = vpop.f32.mrf.mxu0
    %v9391 = vadd.f32 %v8686, %v9390
    %v9392 = vpop.f32.mrf.mxu0
    %9393 = vmatprep.mubr.f32.mxu0 %v5651
    %9394 = vmatmul.mubr.f32.gmra.mxu0 %v5650
    %v9395 = vpop.f32.mrf.mxu0
    %v9396 = vadd.f32 %v8691, %v9395
    %v9397 = vpop.f32.mrf.mxu0
    %9398 = vmatprep.mubr.f32.mxu0 %v5659
    %9399 = vmatmul.mubr.f32.gmra.mxu0 %v5658
    %v9400 = vpop.f32.mrf.mxu0
    %v9401 = vadd.f32 %v8696, %v9400
    %v9402 = vpop.f32.mrf.mxu0
    %9403 = vmatprep.mubr.f32.mxu0 %v5667
    %9404 = vmatmul.mubr.f32.gmra.mxu0 %v5666
    %v9405 = vpop.f32.mrf.mxu0
    %v9406 = vadd.f32 %v8701, %v9405
    %v9407 = vpop.f32.mrf.mxu0
    %9408 = vmatprep.mubr.f32.mxu0 %v5675
    %9409 = vmatmul.mubr.f32.gmra.mxu0 %v5674
    %v9410 = vpop.f32.mrf.mxu0
    %v9411 = vadd.f32 %v8706, %v9410
    %v9412 = vpop.f32.mrf.mxu0
    %9413 = vmatprep.mubr.f32.mxu0 %v5683
    %9414 = vmatmul.mubr.f32.gmra.mxu0 %v5682
    %v9415 = vpop.f32.mrf.mxu0
    %v9416 = vadd.f32 %v8711, %v9415
    %v9417 = vpop.f32.mrf.mxu0
    %9418 = vmatprep.mubr.f32.mxu0 %v5691
    %9419 = vmatmul.mubr.f32.gmra.mxu0 %v5690
    %v9420 = vpop.f32.mrf.mxu0
    %v9421 = vadd.f32 %v8716, %v9420
    %v9422 = vpop.f32.mrf.mxu0
    %9423 = vmatprep.mubr.f32.mxu0 %v5699
    %9424 = vmatmul.mubr.f32.gmra.mxu0 %v5698
    %v9425 = vpop.f32.mrf.mxu0
    %v9426 = vadd.f32 %v8721, %v9425
    %v9427 = vpop.f32.mrf.mxu0
    %9428 = vmatprep.mubr.f32.mxu0 %v5707
    %9429 = vmatmul.mubr.f32.gmra.mxu0 %v5706
    %v9430 = vpop.f32.mrf.mxu0
    %v9431 = vadd.f32 %v8726, %v9430
    %v9432 = vpop.f32.mrf.mxu0
    %9433 = vmatprep.mubr.f32.mxu0 %v5715
    %9434 = vmatmul.mubr.f32.gmra.mxu0 %v5714
    %v9435 = vpop.f32.mrf.mxu0
    %v9436 = vadd.f32 %v8731, %v9435
    %v9437 = vpop.f32.mrf.mxu0
    %9438 = vmatprep.mubr.f32.mxu0 %v5723
    %9439 = vmatmul.mubr.f32.gmra.mxu0 %v5722
    %v9440 = vpop.f32.mrf.mxu0
    %v9441 = vadd.f32 %v8736, %v9440
    %v9442 = vpop.f32.mrf.mxu0
    %9443 = vmatprep.mubr.f32.mxu0 %v5731
    %9444 = vmatmul.mubr.f32.gmra.mxu0 %v5730
    %v9445 = vpop.f32.mrf.mxu0
    %v9446 = vadd.f32 %v8741, %v9445
    %v9447 = vpop.f32.mrf.mxu0
    %9448 = vmatprep.mubr.f32.mxu0 %v5739
    %9449 = vmatmul.mubr.f32.gmra.mxu0 %v5738
    %v9450 = vpop.f32.mrf.mxu0
    %v9451 = vadd.f32 %v8746, %v9450
    %v9452 = vpop.f32.mrf.mxu0
    %9453 = vmatprep.mubr.f32.mxu0 %v5747
    %9454 = vmatmul.mubr.f32.gmra.mxu0 %v5746
    %v9455 = vpop.f32.mrf.mxu0
    %v9456 = vadd.f32 %v8751, %v9455
    %v9457 = vpop.f32.mrf.mxu0
    %9458 = vmatprep.mubr.f32.mxu0 %v5755
    %9459 = vmatmul.mubr.f32.gmra.mxu0 %v5754
    %v9460 = vpop.f32.mrf.mxu0
    %v9461 = vadd.f32 %v8756, %v9460
    %v9462 = vpop.f32.mrf.mxu0
    %9463 = vmatprep.mubr.f32.mxu0 %v5763
    %9464 = vmatmul.mubr.f32.gmra.mxu0 %v5762
    %v9465 = vpop.f32.mrf.mxu0
    %v9466 = vadd.f32 %v8761, %v9465
    %v9467 = vpop.f32.mrf.mxu0
    %9468 = vmatprep.mubr.f32.mxu0 %v5771
    %9469 = vmatmul.mubr.f32.gmra.mxu0 %v5770
    %v9470 = vpop.f32.mrf.mxu0
    %v9471 = vadd.f32 %v8766, %v9470
    %v9472 = vpop.f32.mrf.mxu0
    %9473 = vmatprep.mubr.f32.mxu0 %v5779
    %9474 = vmatmul.mubr.f32.gmra.mxu0 %v5778
    %v9475 = vpop.f32.mrf.mxu0
    %v9476 = vadd.f32 %v8771, %v9475
    %v9477 = vpop.f32.mrf.mxu0
    %9478 = vmatprep.mubr.f32.mxu0 %v5787
    %9479 = vmatmul.mubr.f32.gmra.mxu0 %v5786
    %v9480 = vpop.f32.mrf.mxu0
    %v9481 = vadd.f32 %v8776, %v9480
    %v9482 = vpop.f32.mrf.mxu0
    %9483 = vmatprep.mubr.f32.mxu0 %v5795
    %9484 = vmatmul.mubr.f32.gmra.mxu0 %v5794
    %v9485 = vpop.f32.mrf.mxu0
    %v9486 = vadd.f32 %v8781, %v9485
    %v9487 = vpop.f32.mrf.mxu0
    %9488 = vmatprep.mubr.f32.mxu0 %v5803
    %9489 = vmatmul.mubr.f32.gmra.mxu0 %v5802
    %v9490 = vpop.f32.mrf.mxu0
    %v9491 = vadd.f32 %v8786, %v9490
    %v9492 = vpop.f32.mrf.mxu0
    %9493 = vmatprep.mubr.f32.mxu0 %v5811
    %9494 = vmatmul.mubr.f32.gmra.mxu0 %v5810
    %v9495 = vpop.f32.mrf.mxu0
    %v9496 = vadd.f32 %v8791, %v9495
    %v9497 = vpop.f32.mrf.mxu0
    %9498 = vmatprep.mubr.f32.mxu0 %v5819
    %9499 = vmatmul.mubr.f32.gmra.mxu0 %v5818
    %v9500 = vpop.f32.mrf.mxu0
    %v9501 = vadd.f32 %v8796, %v9500
    %v9502 = vpop.f32.mrf.mxu0
    %9503 = vmatprep.mubr.f32.mxu0 %v5827
    %9504 = vmatmul.mubr.f32.gmra.mxu0 %v5826
    %v9505 = vpop.f32.mrf.mxu0
    %v9506 = vadd.f32 %v8801, %v9505
    %v9507 = vpop.f32.mrf.mxu0
    %9508 = vmatprep.mubr.f32.mxu0 %v5835
    %9509 = vmatmul.mubr.f32.gmra.mxu0 %v5834
    %v9510 = vpop.f32.mrf.mxu0
    %v9511 = vadd.f32 %v8806, %v9510
    %v9512 = vpop.f32.mrf.mxu0
    %9513 = vmatprep.mubr.f32.mxu0 %v5843
    %9514 = vmatmul.mubr.f32.gmra.mxu0 %v5842
    %v9515 = vpop.f32.mrf.mxu0
    %v9516 = vadd.f32 %v8811, %v9515
    %v9517 = vpop.f32.mrf.mxu0
    %9518 = vmatprep.mubr.f32.mxu0 %v5851
    %9519 = vmatmul.mubr.f32.gmra.mxu0 %v5850
    %v9520 = vpop.f32.mrf.mxu0
    %v9521 = vadd.f32 %v8816, %v9520
    %v9522 = vpop.f32.mrf.mxu0
    %9523 = vmatprep.mubr.f32.mxu0 %v5859
    %9524 = vmatmul.mubr.f32.gmra.mxu0 %v5858
    %v9525 = vpop.f32.mrf.mxu0
    %v9526 = vadd.f32 %v8821, %v9525
    %v9527 = vpop.f32.mrf.mxu0
    %9528 = vmatprep.mubr.f32.mxu0 %v5867
    %9529 = vmatmul.mubr.f32.gmra.mxu0 %v5866
    %v9530 = vpop.f32.mrf.mxu0
    %v9531 = vadd.f32 %v8826, %v9530
    %v9532 = vpop.f32.mrf.mxu0
    %9533 = vmatprep.mubr.f32.mxu0 %v5875
    %9534 = vmatmul.mubr.f32.gmra.mxu0 %v5874
    %v9535 = vpop.f32.mrf.mxu0
    %v9536 = vadd.f32 %v8831, %v9535
    %v9537 = vpop.f32.mrf.mxu0
    %9538 = vmatprep.mubr.f32.mxu0 %v5883
    %9539 = vmatmul.mubr.f32.gmra.mxu0 %v5882
    %v9540 = vpop.f32.mrf.mxu0
    %v9541 = vadd.f32 %v8836, %v9540
    %v9542 = vpop.f32.mrf.mxu0
    %9543 = vmatprep.mubr.f32.mxu0 %v5891
    %9544 = vmatmul.mubr.f32.gmra.mxu0 %v5890
    %v9545 = vpop.f32.mrf.mxu0
    %v9546 = vadd.f32 %v8841, %v9545
    %v9547 = vpop.f32.mrf.mxu0
    %9548 = vmatprep.mubr.f32.mxu0 %v5899
    %9549 = vmatmul.mubr.f32.gmra.mxu0 %v5898
    %v9550 = vpop.f32.mrf.mxu0
    %v9551 = vadd.f32 %v8846, %v9550
    %v9552 = vpop.f32.mrf.mxu0
    %9553 = vmatprep.mubr.f32.mxu0 %v5907
    %9554 = vmatmul.mubr.f32.gmra.mxu0 %v5906
    %v9555 = vpop.f32.mrf.mxu0
    %v9556 = vadd.f32 %v8851, %v9555
    %v9557 = vpop.f32.mrf.mxu0
    %9558 = vmatprep.mubr.f32.mxu0 %v5915
    %9559 = vmatmul.mubr.f32.gmra.mxu0 %v5914
    %v9560 = vpop.f32.mrf.mxu0
    %v9561 = vadd.f32 %v8856, %v9560
    %v9562 = vpop.f32.mrf.mxu0
    %9563 = vmatprep.mubr.f32.mxu0 %v5923
    %9564 = vmatmul.mubr.f32.gmra.mxu0 %v5922
    %v9565 = vpop.f32.mrf.mxu0
    %v9566 = vadd.f32 %v8861, %v9565
    %v9567 = vpop.f32.mrf.mxu0
    %9568 = vmatprep.mubr.f32.mxu0 %v5931
    %9569 = vmatmul.mubr.f32.gmra.mxu0 %v5930
    %v9570 = vpop.f32.mrf.mxu0
    %v9571 = vadd.f32 %v8866, %v9570
    %v9572 = vpop.f32.mrf.mxu0
    %9573 = vmatprep.mubr.f32.mxu0 %v5939
    %9574 = vmatmul.mubr.f32.gmra.mxu0 %v5938
    %v9575 = vpop.f32.mrf.mxu0
    %v9576 = vadd.f32 %v8871, %v9575
    %v9577 = vpop.f32.mrf.mxu0
    %9578 = vmatprep.mubr.f32.mxu0 %v5947
    %9579 = vmatmul.mubr.f32.gmra.mxu0 %v5946
    %v9580 = vpop.f32.mrf.mxu0
    %v9581 = vadd.f32 %v8876, %v9580
    %v9582 = vpop.f32.mrf.mxu0
    %9583 = vmatprep.mubr.f32.mxu0 %v5955
    %9584 = vmatmul.mubr.f32.gmra.mxu0 %v5954
    %v9585 = vpop.f32.mrf.mxu0
    %v9586 = vadd.f32 %v8881, %v9585
    %v9587 = vpop.f32.mrf.mxu0
    %9588 = vmatprep.mubr.f32.mxu0 %v5963
    %9589 = vmatmul.mubr.f32.gmra.mxu0 %v5962
    %v9590 = vpop.f32.mrf.mxu0
    %v9591 = vadd.f32 %v8886, %v9590
    %v9592 = vpop.f32.mrf.mxu0
    %9593 = vmatprep.mubr.f32.mxu0 %v5971
    %9594 = vmatmul.mubr.f32.gmra.mxu0 %v5970
    %v9595 = vpop.f32.mrf.mxu0
    %v9596 = vadd.f32 %v8891, %v9595
    %v9597 = vpop.f32.mrf.mxu0
    %9598 = vmatprep.mubr.f32.mxu0 %v5979
    %9599 = vmatmul.mubr.f32.gmra.mxu0 %v5978
    %v9600 = vpop.f32.mrf.mxu0
    %v9601 = vadd.f32 %v8896, %v9600
    %v9602 = vpop.f32.mrf.mxu0
    %9603 = vmatprep.mubr.f32.mxu0 %v5987
    %9604 = vmatmul.mubr.f32.gmra.mxu0 %v5986
    %v9605 = vpop.f32.mrf.mxu0
    %v9606 = vadd.f32 %v8901, %v9605
    %v9607 = vpop.f32.mrf.mxu0
    %9608 = vmatprep.mubr.f32.mxu0 %v5995
    %9609 = vmatmul.mubr.f32.gmra.mxu0 %v5994
    %v9610 = vpop.f32.mrf.mxu0
    %v9611 = vadd.f32 %v8906, %v9610
    %v9612 = vpop.f32.mrf.mxu0
    %9613 = vmatprep.mubr.f32.mxu0 %v6003
    %9614 = vmatmul.mubr.f32.gmra.mxu0 %v6002
    %v9615 = vpop.f32.mrf.mxu0
    %v9616 = vadd.f32 %v8911, %v9615
    %v9617 = vpop.f32.mrf.mxu0
    %9618 = vmatprep.mubr.f32.mxu0 %v6011
    %9619 = vmatmul.mubr.f32.gmra.mxu0 %v6010
    %v9620 = vpop.f32.mrf.mxu0
    %v9621 = vadd.f32 %v8916, %v9620
    %v9622 = vpop.f32.mrf.mxu0
    %9623 = vmatprep.mubr.f32.mxu0 %v6019
    %9624 = vmatmul.mubr.f32.gmra.mxu0 %v6018
    %v9625 = vpop.f32.mrf.mxu0
    %v9626 = vadd.f32 %v8921, %v9625
    %v9627 = vpop.f32.mrf.mxu0
    %9628 = vmatprep.mubr.f32.mxu0 %v6027
    %9629 = vmatmul.mubr.f32.gmra.mxu0 %v6026
    %v9630 = vpop.f32.mrf.mxu0
    %v9631 = vadd.f32 %v8926, %v9630
    %v9632 = vpop.f32.mrf.mxu0
    %9633 = vmatprep.mubr.f32.mxu0 %v6035
    %9634 = vmatmul.mubr.f32.gmra.mxu0 %v6034
    %v9635 = vpop.f32.mrf.mxu0
    %v9636 = vadd.f32 %v8931, %v9635
    %v9637 = vpop.f32.mrf.mxu0
    %9638 = vmatprep.mubr.f32.mxu0 %v6043
    %9639 = vmatmul.mubr.f32.gmra.mxu0 %v6042
    %v9640 = vpop.f32.mrf.mxu0
    %v9641 = vadd.f32 %v8936, %v9640
    %v9642 = vpop.f32.mrf.mxu0
    %9643 = vmatprep.mubr.f32.mxu0 %v6051
    %9644 = vmatmul.mubr.f32.gmra.mxu0 %v6050
    %v9645 = vpop.f32.mrf.mxu0
    %v9646 = vadd.f32 %v8941, %v9645
    %v9647 = vpop.f32.mrf.mxu0
    %9648 = vmatprep.mubr.f32.mxu0 %v6059
    %9649 = vmatmul.mubr.f32.gmra.mxu0 %v6058
    %v9650 = vpop.f32.mrf.mxu0
    %v9651 = vadd.f32 %v8946, %v9650
    %v9652 = vpop.f32.mrf.mxu0
    %9653 = vmatprep.mubr.f32.mxu0 %v6067
    %9654 = vmatmul.mubr.f32.gmra.mxu0 %v6066
    %v9655 = vpop.f32.mrf.mxu0
    %v9656 = vadd.f32 %v8951, %v9655
    %v9657 = vpop.f32.mrf.mxu0
    %9658 = vmatprep.mubr.f32.mxu0 %v6075
    %9659 = vmatmul.mubr.f32.gmra.mxu0 %v6074
    %v9660 = vpop.f32.mrf.mxu0
    %v9661 = vadd.f32 %v8956, %v9660
    %v9662 = vpop.f32.mrf.mxu0
    %9663 = vdwg.mxu0
    %v9664 = vmax.f32 %v9026, 0.0
    %v9665 = vmax.f32 %v9031, 0.0
    %v9666 = vmax.f32 %v9036, 0.0
    %v9667 = vmax.f32 %v9041, 0.0
    %v9668 = vmax.f32 %v9046, 0.0
    %v9669 = vmax.f32 %v9051, 0.0
    %v9670 = vmax.f32 %v9056, 0.0
    %v9671 = vmax.f32 %v9061, 0.0
    %v9672 = vmax.f32 %v9066, 0.0
    %v9673 = vmax.f32 %v9071, 0.0
    %v9674 = vmax.f32 %v9076, 0.0
    %v9675 = vmax.f32 %v9081, 0.0
    %v9676 = vmax.f32 %v9086, 0.0
    %v9677 = vmax.f32 %v9091, 0.0
    %v9678 = vmax.f32 %v9096, 0.0
    %v9679 = vmax.f32 %v9101, 0.0
    %v9680 = vmax.f32 %v9106, 0.0
    %v9681 = vmax.f32 %v9111, 0.0
    %v9682 = vmax.f32 %v9116, 0.0
    %v9683 = vmax.f32 %v9121, 0.0
    %v9684 = vmax.f32 %v9126, 0.0
    %v9685 = vmax.f32 %v9131, 0.0
    %v9686 = vmax.f32 %v9136, 0.0
    %v9687 = vmax.f32 %v9141, 0.0
    %v9688 = vmax.f32 %v9146, 0.0
    %v9689 = vmax.f32 %v9151, 0.0
    %v9690 = vmax.f32 %v9156, 0.0
    %v9691 = vmax.f32 %v9161, 0.0
    %v9692 = vmax.f32 %v9166, 0.0
    %v9693 = vmax.f32 %v9171, 0.0
    %v9694 = vmax.f32 %v9176, 0.0
    %v9695 = vmax.f32 %v9181, 0.0
    %v9696 = vmax.f32 %v9186, 0.0
    %v9697 = vmax.f32 %v9191, 0.0
    %v9698 = vmax.f32 %v9196, 0.0
    %v9699 = vmax.f32 %v9201, 0.0
    %v9700 = vmax.f32 %v9206, 0.0
    %v9701 = vmax.f32 %v9211, 0.0
    %v9702 = vmax.f32 %v9216, 0.0
    %v9703 = vmax.f32 %v9221, 0.0
    %v9704 = vmax.f32 %v9226, 0.0
    %v9705 = vmax.f32 %v9231, 0.0
    %v9706 = vmax.f32 %v9236, 0.0
    %v9707 = vmax.f32 %v9241, 0.0
    %v9708 = vmax.f32 %v9246, 0.0
    %v9709 = vmax.f32 %v9251, 0.0
    %v9710 = vmax.f32 %v9256, 0.0
    %v9711 = vmax.f32 %v9261, 0.0
    %v9712 = vmax.f32 %v9266, 0.0
    %v9713 = vmax.f32 %v9271, 0.0
    %v9714 = vmax.f32 %v9276, 0.0
    %v9715 = vmax.f32 %v9281, 0.0
    %v9716 = vmax.f32 %v9286, 0.0
    %v9717 = vmax.f32 %v9291, 0.0
    %v9718 = vmax.f32 %v9296, 0.0
    %v9719 = vmax.f32 %v9301, 0.0
    %v9720 = vmax.f32 %v9306, 0.0
    %v9721 = vmax.f32 %v9311, 0.0
    %v9722 = vmax.f32 %v9316, 0.0
    %v9723 = vmax.f32 %v9321, 0.0
    %v9724 = vmax.f32 %v9326, 0.0
    %v9725 = vmax.f32 %v9331, 0.0
    %v9726 = vmax.f32 %v9336, 0.0
    %v9727 = vmax.f32 %v9341, 0.0
    %v9728 = vmax.f32 %v9346, 0.0
    %v9729 = vmax.f32 %v9351, 0.0
    %v9730 = vmax.f32 %v9356, 0.0
    %v9731 = vmax.f32 %v9361, 0.0
    %v9732 = vmax.f32 %v9366, 0.0
    %v9733 = vmax.f32 %v9371, 0.0
    %v9734 = vmax.f32 %v9376, 0.0
    %v9735 = vmax.f32 %v9381, 0.0
    %v9736 = vmax.f32 %v9386, 0.0
    %v9737 = vmax.f32 %v9391, 0.0
    %v9738 = vmax.f32 %v9396, 0.0
    %v9739 = vmax.f32 %v9401, 0.0
    %v9740 = vmax.f32 %v9406, 0.0
    %v9741 = vmax.f32 %v9411, 0.0
    %v9742 = vmax.f32 %v9416, 0.0
    %v9743 = vmax.f32 %v9421, 0.0
    %v9744 = vmax.f32 %v9426, 0.0
    %v9745 = vmax.f32 %v9431, 0.0
    %v9746 = vmax.f32 %v9436, 0.0
    %v9747 = vmax.f32 %v9441, 0.0
    %v9748 = vmax.f32 %v9446, 0.0
    %v9749 = vmax.f32 %v9451, 0.0
    %v9750 = vmax.f32 %v9456, 0.0
    %v9751 = vmax.f32 %v9461, 0.0
    %v9752 = vmax.f32 %v9466, 0.0
    %v9753 = vmax.f32 %v9471, 0.0
    %v9754 = vmax.f32 %v9476, 0.0
    %v9755 = vmax.f32 %v9481, 0.0
    %v9756 = vmax.f32 %v9486, 0.0
    %v9757 = vmax.f32 %v9491, 0.0
    %v9758 = vmax.f32 %v9496, 0.0
    %v9759 = vmax.f32 %v9501, 0.0
    %v9760 = vmax.f32 %v9506, 0.0
    %v9761 = vmax.f32 %v9511, 0.0
    %v9762 = vmax.f32 %v9516, 0.0
    %v9763 = vmax.f32 %v9521, 0.0
    %v9764 = vmax.f32 %v9526, 0.0
    %v9765 = vmax.f32 %v9531, 0.0
    %v9766 = vmax.f32 %v9536, 0.0
    %v9767 = vmax.f32 %v9541, 0.0
    %v9768 = vmax.f32 %v9546, 0.0
    %v9769 = vmax.f32 %v9551, 0.0
    %v9770 = vmax.f32 %v9556, 0.0
    %v9771 = vmax.f32 %v9561, 0.0
    %v9772 = vmax.f32 %v9566, 0.0
    %v9773 = vmax.f32 %v9571, 0.0
    %v9774 = vmax.f32 %v9576, 0.0
    %v9775 = vmax.f32 %v9581, 0.0
    %v9776 = vmax.f32 %v9586, 0.0
    %v9777 = vmax.f32 %v9591, 0.0
    %v9778 = vmax.f32 %v9596, 0.0
    %v9779 = vmax.f32 %v9601, 0.0
    %v9780 = vmax.f32 %v9606, 0.0
    %v9781 = vmax.f32 %v9611, 0.0
    %v9782 = vmax.f32 %v9616, 0.0
    %v9783 = vmax.f32 %v9621, 0.0
    %v9784 = vmax.f32 %v9626, 0.0
    %v9785 = vmax.f32 %v9631, 0.0
    %v9786 = vmax.f32 %v9636, 0.0
    %v9787 = vmax.f32 %v9641, 0.0
    %v9788 = vmax.f32 %v9646, 0.0
    %v9789 = vmax.f32 %v9651, 0.0
    %v9790 = vmax.f32 %v9656, 0.0
    %v9791 = vmax.f32 %v9661, 0.0
    %v9792 = vld [vmem:[%s9] sm:$0xff]
    %v9793 = vld [vmem:[%s9 + $0x8] sm:$0xff]
    %v9794 = vld [vmem:[%s9 + $0x10] sm:$0xff]
    %v9795 = vld [vmem:[%s9 + $0x18] sm:$0xff]
    %v9796 = vld [vmem:[%s9 + $0x20] sm:$0xff]
    %v9797 = vld [vmem:[%s9 + $0x28] sm:$0xff]
    %v9798 = vld [vmem:[%s9 + $0x30] sm:$0xff]
    %v9799 = vld [vmem:[%s9 + $0x38] sm:$0xff]
    %v9800 = vld [vmem:[%s9 + $0x40] sm:$0xff]
    %v9801 = vld [vmem:[%s9 + $0x48] sm:$0xff]
    %v9802 = vld [vmem:[%s9 + $0x50] sm:$0xff]
    %v9803 = vld [vmem:[%s9 + $0x58] sm:$0xff]
    %v9804 = vld [vmem:[%s9 + $0x60] sm:$0xff]
    %v9805 = vld [vmem:[%s9 + $0x68] sm:$0xff]
    %v9806 = vld [vmem:[%s9 + $0x70] sm:$0xff]
    %v9807 = vld [vmem:[%s9 + $0x78] sm:$0xff]
    %v9808 = vld [vmem:[%s9 + $0x80] sm:$0xff]
    %v9809 = vld [vmem:[%s9 + $0x88] sm:$0xff]
    %v9810 = vld [vmem:[%s9 + $0x90] sm:$0xff]
    %v9811 = vld [vmem:[%s9 + $0x98] sm:$0xff]
    %v9812 = vld [vmem:[%s9 + $0xa0] sm:$0xff]
    %v9813 = vld [vmem:[%s9 + $0xa8] sm:$0xff]
    %v9814 = vld [vmem:[%s9 + $0xb0] sm:$0xff]
    %v9815 = vld [vmem:[%s9 + $0xb8] sm:$0xff]
    %v9816 = vld [vmem:[%s9 + $0xc0] sm:$0xff]
    %v9817 = vld [vmem:[%s9 + $0xc8] sm:$0xff]
    %v9818 = vld [vmem:[%s9 + $0xd0] sm:$0xff]
    %v9819 = vld [vmem:[%s9 + $0xd8] sm:$0xff]
    %v9820 = vld [vmem:[%s9 + $0xe0] sm:$0xff]
    %v9821 = vld [vmem:[%s9 + $0xe8] sm:$0xff]
    %v9822 = vld [vmem:[%s9 + $0xf0] sm:$0xff]
    %v9823 = vld [vmem:[%s9 + $0xf8] sm:$0xff]
    %v9824 = vld [vmem:[%s9 + $0x100] sm:$0xff]
    %v9825 = vld [vmem:[%s9 + $0x108] sm:$0xff]
    %v9826 = vld [vmem:[%s9 + $0x110] sm:$0xff]
    %v9827 = vld [vmem:[%s9 + $0x118] sm:$0xff]
    %v9828 = vld [vmem:[%s9 + $0x120] sm:$0xff]
    %v9829 = vld [vmem:[%s9 + $0x128] sm:$0xff]
    %v9830 = vld [vmem:[%s9 + $0x130] sm:$0xff]
    %v9831 = vld [vmem:[%s9 + $0x138] sm:$0xff]
    %v9832 = vld [vmem:[%s9 + $0x140] sm:$0xff]
    %v9833 = vld [vmem:[%s9 + $0x148] sm:$0xff]
    %v9834 = vld [vmem:[%s9 + $0x150] sm:$0xff]
    %v9835 = vld [vmem:[%s9 + $0x158] sm:$0xff]
    %v9836 = vld [vmem:[%s9 + $0x160] sm:$0xff]
    %v9837 = vld [vmem:[%s9 + $0x168] sm:$0xff]
    %v9838 = vld [vmem:[%s9 + $0x170] sm:$0xff]
    %v9839 = vld [vmem:[%s9 + $0x178] sm:$0xff]
    %v9840 = vld [vmem:[%s9 + $0x180] sm:$0xff]
    %v9841 = vld [vmem:[%s9 + $0x188] sm:$0xff]
    %v9842 = vld [vmem:[%s9 + $0x190] sm:$0xff]
    %v9843 = vld [vmem:[%s9 + $0x198] sm:$0xff]
    %v9844 = vld [vmem:[%s9 + $0x1a0] sm:$0xff]
    %v9845 = vld [vmem:[%s9 + $0x1a8] sm:$0xff]
    %v9846 = vld [vmem:[%s9 + $0x1b0] sm:$0xff]
    %v9847 = vld [vmem:[%s9 + $0x1b8] sm:$0xff]
    %v9848 = vld [vmem:[%s9 + $0x1c0] sm:$0xff]
    %v9849 = vld [vmem:[%s9 + $0x1c8] sm:$0xff]
    %v9850 = vld [vmem:[%s9 + $0x1d0] sm:$0xff]
    %v9851 = vld [vmem:[%s9 + $0x1d8] sm:$0xff]
    %v9852 = vld [vmem:[%s9 + $0x1e0] sm:$0xff]
    %v9853 = vld [vmem:[%s9 + $0x1e8] sm:$0xff]
    %v9854 = vld [vmem:[%s9 + $0x1f0] sm:$0xff]
    %v9855 = vld [vmem:[%s9 + $0x1f8] sm:$0xff]
    %v9856 = vld [vmem:[%s9 + $0x200] sm:$0xff]
    %v9857 = vld [vmem:[%s9 + $0x208] sm:$0xff]
    %v9858 = vld [vmem:[%s9 + $0x210] sm:$0xff]
    %v9859 = vld [vmem:[%s9 + $0x218] sm:$0xff]
    %v9860 = vld [vmem:[%s9 + $0x220] sm:$0xff]
    %v9861 = vld [vmem:[%s9 + $0x228] sm:$0xff]
    %v9862 = vld [vmem:[%s9 + $0x230] sm:$0xff]
    %v9863 = vld [vmem:[%s9 + $0x238] sm:$0xff]
    %v9864 = vld [vmem:[%s9 + $0x240] sm:$0xff]
    %v9865 = vld [vmem:[%s9 + $0x248] sm:$0xff]
    %v9866 = vld [vmem:[%s9 + $0x250] sm:$0xff]
    %v9867 = vld [vmem:[%s9 + $0x258] sm:$0xff]
    %v9868 = vld [vmem:[%s9 + $0x260] sm:$0xff]
    %v9869 = vld [vmem:[%s9 + $0x268] sm:$0xff]
    %v9870 = vld [vmem:[%s9 + $0x270] sm:$0xff]
    %v9871 = vld [vmem:[%s9 + $0x278] sm:$0xff]
    %v9872 = vld [vmem:[%s9 + $0x280] sm:$0xff]
    %v9873 = vld [vmem:[%s9 + $0x288] sm:$0xff]
    %v9874 = vld [vmem:[%s9 + $0x290] sm:$0xff]
    %v9875 = vld [vmem:[%s9 + $0x298] sm:$0xff]
    %v9876 = vld [vmem:[%s9 + $0x2a0] sm:$0xff]
    %v9877 = vld [vmem:[%s9 + $0x2a8] sm:$0xff]
    %v9878 = vld [vmem:[%s9 + $0x2b0] sm:$0xff]
    %v9879 = vld [vmem:[%s9 + $0x2b8] sm:$0xff]
    %v9880 = vld [vmem:[%s9 + $0x2c0] sm:$0xff]
    %v9881 = vld [vmem:[%s9 + $0x2c8] sm:$0xff]
    %v9882 = vld [vmem:[%s9 + $0x2d0] sm:$0xff]
    %v9883 = vld [vmem:[%s9 + $0x2d8] sm:$0xff]
    %v9884 = vld [vmem:[%s9 + $0x2e0] sm:$0xff]
    %v9885 = vld [vmem:[%s9 + $0x2e8] sm:$0xff]
    %v9886 = vld [vmem:[%s9 + $0x2f0] sm:$0xff]
    %v9887 = vld [vmem:[%s9 + $0x2f8] sm:$0xff]
    %v9888 = vld [vmem:[%s9 + $0x300] sm:$0xff]
    %v9889 = vld [vmem:[%s9 + $0x308] sm:$0xff]
    %v9890 = vld [vmem:[%s9 + $0x310] sm:$0xff]
    %v9891 = vld [vmem:[%s9 + $0x318] sm:$0xff]
    %v9892 = vld [vmem:[%s9 + $0x320] sm:$0xff]
    %v9893 = vld [vmem:[%s9 + $0x328] sm:$0xff]
    %v9894 = vld [vmem:[%s9 + $0x330] sm:$0xff]
    %v9895 = vld [vmem:[%s9 + $0x338] sm:$0xff]
    %v9896 = vld [vmem:[%s9 + $0x340] sm:$0xff]
    %v9897 = vld [vmem:[%s9 + $0x348] sm:$0xff]
    %v9898 = vld [vmem:[%s9 + $0x350] sm:$0xff]
    %v9899 = vld [vmem:[%s9 + $0x358] sm:$0xff]
    %v9900 = vld [vmem:[%s9 + $0x360] sm:$0xff]
    %v9901 = vld [vmem:[%s9 + $0x368] sm:$0xff]
    %v9902 = vld [vmem:[%s9 + $0x370] sm:$0xff]
    %v9903 = vld [vmem:[%s9 + $0x378] sm:$0xff]
    %v9904 = vld [vmem:[%s9 + $0x380] sm:$0xff]
    %v9905 = vld [vmem:[%s9 + $0x388] sm:$0xff]
    %v9906 = vld [vmem:[%s9 + $0x390] sm:$0xff]
    %v9907 = vld [vmem:[%s9 + $0x398] sm:$0xff]
    %v9908 = vld [vmem:[%s9 + $0x3a0] sm:$0xff]
    %v9909 = vld [vmem:[%s9 + $0x3a8] sm:$0xff]
    %v9910 = vld [vmem:[%s9 + $0x3b0] sm:$0xff]
    %v9911 = vld [vmem:[%s9 + $0x3b8] sm:$0xff]
    %v9912 = vld [vmem:[%s9 + $0x3c0] sm:$0xff]
    %v9913 = vld [vmem:[%s9 + $0x3c8] sm:$0xff]
    %v9914 = vld [vmem:[%s9 + $0x3d0] sm:$0xff]
    %v9915 = vld [vmem:[%s9 + $0x3d8] sm:$0xff]
    %v9916 = vld [vmem:[%s9 + $0x3e0] sm:$0xff]
    %v9917 = vld [vmem:[%s9 + $0x3e8] sm:$0xff]
    %v9918 = vld [vmem:[%s9 + $0x3f0] sm:$0xff]
    %v9919 = vld [vmem:[%s9 + $0x3f8] sm:$0xff]
    %9921 = vset.pattern.permute.xlu0 0
    %9922 = vperm.xlu0 %9921, %v9792
    %v9923 = vpop.permute.xlu0 %9922
    %9926 = vset.pattern.permute.xlu0 0
    %9927 = vperm.xlu0 %9926, %v9793
    %v9928 = vpop.permute.xlu0 %9927
    %9931 = vset.pattern.permute.xlu0 0
    %9932 = vperm.xlu0 %9931, %v9794
    %v9933 = vpop.permute.xlu0 %9932
    %9936 = vset.pattern.permute.xlu0 0
    %9937 = vperm.xlu0 %9936, %v9795
    %v9938 = vpop.permute.xlu0 %9937
    %9941 = vset.pattern.permute.xlu0 0
    %9942 = vperm.xlu0 %9941, %v9796
    %v9943 = vpop.permute.xlu0 %9942
    %9946 = vset.pattern.permute.xlu0 0
    %9947 = vperm.xlu0 %9946, %v9797
    %v9948 = vpop.permute.xlu0 %9947
    %9951 = vset.pattern.permute.xlu0 0
    %9952 = vperm.xlu0 %9951, %v9798
    %v9953 = vpop.permute.xlu0 %9952
    %9956 = vset.pattern.permute.xlu0 0
    %9957 = vperm.xlu0 %9956, %v9799
    %v9958 = vpop.permute.xlu0 %9957
    %9961 = vset.pattern.permute.xlu0 0
    %9962 = vperm.xlu0 %9961, %v9800
    %v9963 = vpop.permute.xlu0 %9962
    %9966 = vset.pattern.permute.xlu0 0
    %9967 = vperm.xlu0 %9966, %v9801
    %v9968 = vpop.permute.xlu0 %9967
    %9971 = vset.pattern.permute.xlu0 0
    %9972 = vperm.xlu0 %9971, %v9802
    %v9973 = vpop.permute.xlu0 %9972
    %9976 = vset.pattern.permute.xlu0 0
    %9977 = vperm.xlu0 %9976, %v9803
    %v9978 = vpop.permute.xlu0 %9977
    %9981 = vset.pattern.permute.xlu0 0
    %9982 = vperm.xlu0 %9981, %v9804
    %v9983 = vpop.permute.xlu0 %9982
    %9986 = vset.pattern.permute.xlu0 0
    %9987 = vperm.xlu0 %9986, %v9805
    %v9988 = vpop.permute.xlu0 %9987
    %9991 = vset.pattern.permute.xlu0 0
    %9992 = vperm.xlu0 %9991, %v9806
    %v9993 = vpop.permute.xlu0 %9992
    %9996 = vset.pattern.permute.xlu0 0
    %9997 = vperm.xlu0 %9996, %v9807
    %v9998 = vpop.permute.xlu0 %9997
    %10001 = vset.pattern.permute.xlu0 0
    %10002 = vperm.xlu0 %10001, %v9808
    %v10003 = vpop.permute.xlu0 %10002
    %10006 = vset.pattern.permute.xlu0 0
    %10007 = vperm.xlu0 %10006, %v9809
    %v10008 = vpop.permute.xlu0 %10007
    %10011 = vset.pattern.permute.xlu0 0
    %10012 = vperm.xlu0 %10011, %v9810
    %v10013 = vpop.permute.xlu0 %10012
    %10016 = vset.pattern.permute.xlu0 0
    %10017 = vperm.xlu0 %10016, %v9811
    %v10018 = vpop.permute.xlu0 %10017
    %10021 = vset.pattern.permute.xlu0 0
    %10022 = vperm.xlu0 %10021, %v9812
    %v10023 = vpop.permute.xlu0 %10022
    %10026 = vset.pattern.permute.xlu0 0
    %10027 = vperm.xlu0 %10026, %v9813
    %v10028 = vpop.permute.xlu0 %10027
    %10031 = vset.pattern.permute.xlu0 0
    %10032 = vperm.xlu0 %10031, %v9814
    %v10033 = vpop.permute.xlu0 %10032
    %10036 = vset.pattern.permute.xlu0 0
    %10037 = vperm.xlu0 %10036, %v9815
    %v10038 = vpop.permute.xlu0 %10037
    %10041 = vset.pattern.permute.xlu0 0
    %10042 = vperm.xlu0 %10041, %v9816
    %v10043 = vpop.permute.xlu0 %10042
    %10046 = vset.pattern.permute.xlu0 0
    %10047 = vperm.xlu0 %10046, %v9817
    %v10048 = vpop.permute.xlu0 %10047
    %10051 = vset.pattern.permute.xlu0 0
    %10052 = vperm.xlu0 %10051, %v9818
    %v10053 = vpop.permute.xlu0 %10052
    %10056 = vset.pattern.permute.xlu0 0
    %10057 = vperm.xlu0 %10056, %v9819
    %v10058 = vpop.permute.xlu0 %10057
    %10061 = vset.pattern.permute.xlu0 0
    %10062 = vperm.xlu0 %10061, %v9820
    %v10063 = vpop.permute.xlu0 %10062
    %10066 = vset.pattern.permute.xlu0 0
    %10067 = vperm.xlu0 %10066, %v9821
    %v10068 = vpop.permute.xlu0 %10067
    %10071 = vset.pattern.permute.xlu0 0
    %10072 = vperm.xlu0 %10071, %v9822
    %v10073 = vpop.permute.xlu0 %10072
    %10076 = vset.pattern.permute.xlu0 0
    %10077 = vperm.xlu0 %10076, %v9823
    %v10078 = vpop.permute.xlu0 %10077
    %10081 = vset.pattern.permute.xlu0 0
    %10082 = vperm.xlu0 %10081, %v9824
    %v10083 = vpop.permute.xlu0 %10082
    %10086 = vset.pattern.permute.xlu0 0
    %10087 = vperm.xlu0 %10086, %v9825
    %v10088 = vpop.permute.xlu0 %10087
    %10091 = vset.pattern.permute.xlu0 0
    %10092 = vperm.xlu0 %10091, %v9826
    %v10093 = vpop.permute.xlu0 %10092
    %10096 = vset.pattern.permute.xlu0 0
    %10097 = vperm.xlu0 %10096, %v9827
    %v10098 = vpop.permute.xlu0 %10097
    %10101 = vset.pattern.permute.xlu0 0
    %10102 = vperm.xlu0 %10101, %v9828
    %v10103 = vpop.permute.xlu0 %10102
    %10106 = vset.pattern.permute.xlu0 0
    %10107 = vperm.xlu0 %10106, %v9829
    %v10108 = vpop.permute.xlu0 %10107
    %10111 = vset.pattern.permute.xlu0 0
    %10112 = vperm.xlu0 %10111, %v9830
    %v10113 = vpop.permute.xlu0 %10112
    %10116 = vset.pattern.permute.xlu0 0
    %10117 = vperm.xlu0 %10116, %v9831
    %v10118 = vpop.permute.xlu0 %10117
    %10121 = vset.pattern.permute.xlu0 0
    %10122 = vperm.xlu0 %10121, %v9832
    %v10123 = vpop.permute.xlu0 %10122
    %10126 = vset.pattern.permute.xlu0 0
    %10127 = vperm.xlu0 %10126, %v9833
    %v10128 = vpop.permute.xlu0 %10127
    %10131 = vset.pattern.permute.xlu0 0
    %10132 = vperm.xlu0 %10131, %v9834
    %v10133 = vpop.permute.xlu0 %10132
    %10136 = vset.pattern.permute.xlu0 0
    %10137 = vperm.xlu0 %10136, %v9835
    %v10138 = vpop.permute.xlu0 %10137
    %10141 = vset.pattern.permute.xlu0 0
    %10142 = vperm.xlu0 %10141, %v9836
    %v10143 = vpop.permute.xlu0 %10142
    %10146 = vset.pattern.permute.xlu0 0
    %10147 = vperm.xlu0 %10146, %v9837
    %v10148 = vpop.permute.xlu0 %10147
    %10151 = vset.pattern.permute.xlu0 0
    %10152 = vperm.xlu0 %10151, %v9838
    %v10153 = vpop.permute.xlu0 %10152
    %10156 = vset.pattern.permute.xlu0 0
    %10157 = vperm.xlu0 %10156, %v9839
    %v10158 = vpop.permute.xlu0 %10157
    %10161 = vset.pattern.permute.xlu0 0
    %10162 = vperm.xlu0 %10161, %v9840
    %v10163 = vpop.permute.xlu0 %10162
    %10166 = vset.pattern.permute.xlu0 0
    %10167 = vperm.xlu0 %10166, %v9841
    %v10168 = vpop.permute.xlu0 %10167
    %10171 = vset.pattern.permute.xlu0 0
    %10172 = vperm.xlu0 %10171, %v9842
    %v10173 = vpop.permute.xlu0 %10172
    %10176 = vset.pattern.permute.xlu0 0
    %10177 = vperm.xlu0 %10176, %v9843
    %v10178 = vpop.permute.xlu0 %10177
    %10181 = vset.pattern.permute.xlu0 0
    %10182 = vperm.xlu0 %10181, %v9844
    %v10183 = vpop.permute.xlu0 %10182
    %10186 = vset.pattern.permute.xlu0 0
    %10187 = vperm.xlu0 %10186, %v9845
    %v10188 = vpop.permute.xlu0 %10187
    %10191 = vset.pattern.permute.xlu0 0
    %10192 = vperm.xlu0 %10191, %v9846
    %v10193 = vpop.permute.xlu0 %10192
    %10196 = vset.pattern.permute.xlu0 0
    %10197 = vperm.xlu0 %10196, %v9847
    %v10198 = vpop.permute.xlu0 %10197
    %10201 = vset.pattern.permute.xlu0 0
    %10202 = vperm.xlu0 %10201, %v9848
    %v10203 = vpop.permute.xlu0 %10202
    %10206 = vset.pattern.permute.xlu0 0
    %10207 = vperm.xlu0 %10206, %v9849
    %v10208 = vpop.permute.xlu0 %10207
    %10211 = vset.pattern.permute.xlu0 0
    %10212 = vperm.xlu0 %10211, %v9850
    %v10213 = vpop.permute.xlu0 %10212
    %10216 = vset.pattern.permute.xlu0 0
    %10217 = vperm.xlu0 %10216, %v9851
    %v10218 = vpop.permute.xlu0 %10217
    %10221 = vset.pattern.permute.xlu0 0
    %10222 = vperm.xlu0 %10221, %v9852
    %v10223 = vpop.permute.xlu0 %10222
    %10226 = vset.pattern.permute.xlu0 0
    %10227 = vperm.xlu0 %10226, %v9853
    %v10228 = vpop.permute.xlu0 %10227
    %10231 = vset.pattern.permute.xlu0 0
    %10232 = vperm.xlu0 %10231, %v9854
    %v10233 = vpop.permute.xlu0 %10232
    %10236 = vset.pattern.permute.xlu0 0
    %10237 = vperm.xlu0 %10236, %v9855
    %v10238 = vpop.permute.xlu0 %10237
    %10241 = vset.pattern.permute.xlu0 0
    %10242 = vperm.xlu0 %10241, %v9856
    %v10243 = vpop.permute.xlu0 %10242
    %10246 = vset.pattern.permute.xlu0 0
    %10247 = vperm.xlu0 %10246, %v9857
    %v10248 = vpop.permute.xlu0 %10247
    %10251 = vset.pattern.permute.xlu0 0
    %10252 = vperm.xlu0 %10251, %v9858
    %v10253 = vpop.permute.xlu0 %10252
    %10256 = vset.pattern.permute.xlu0 0
    %10257 = vperm.xlu0 %10256, %v9859
    %v10258 = vpop.permute.xlu0 %10257
    %10261 = vset.pattern.permute.xlu0 0
    %10262 = vperm.xlu0 %10261, %v9860
    %v10263 = vpop.permute.xlu0 %10262
    %10266 = vset.pattern.permute.xlu0 0
    %10267 = vperm.xlu0 %10266, %v9861
    %v10268 = vpop.permute.xlu0 %10267
    %10271 = vset.pattern.permute.xlu0 0
    %10272 = vperm.xlu0 %10271, %v9862
    %v10273 = vpop.permute.xlu0 %10272
    %10276 = vset.pattern.permute.xlu0 0
    %10277 = vperm.xlu0 %10276, %v9863
    %v10278 = vpop.permute.xlu0 %10277
    %10281 = vset.pattern.permute.xlu0 0
    %10282 = vperm.xlu0 %10281, %v9864
    %v10283 = vpop.permute.xlu0 %10282
    %10286 = vset.pattern.permute.xlu0 0
    %10287 = vperm.xlu0 %10286, %v9865
    %v10288 = vpop.permute.xlu0 %10287
    %10291 = vset.pattern.permute.xlu0 0
    %10292 = vperm.xlu0 %10291, %v9866
    %v10293 = vpop.permute.xlu0 %10292
    %10296 = vset.pattern.permute.xlu0 0
    %10297 = vperm.xlu0 %10296, %v9867
    %v10298 = vpop.permute.xlu0 %10297
    %10301 = vset.pattern.permute.xlu0 0
    %10302 = vperm.xlu0 %10301, %v9868
    %v10303 = vpop.permute.xlu0 %10302
    %10306 = vset.pattern.permute.xlu0 0
    %10307 = vperm.xlu0 %10306, %v9869
    %v10308 = vpop.permute.xlu0 %10307
    %10311 = vset.pattern.permute.xlu0 0
    %10312 = vperm.xlu0 %10311, %v9870
    %v10313 = vpop.permute.xlu0 %10312
    %10316 = vset.pattern.permute.xlu0 0
    %10317 = vperm.xlu0 %10316, %v9871
    %v10318 = vpop.permute.xlu0 %10317
    %10321 = vset.pattern.permute.xlu0 0
    %10322 = vperm.xlu0 %10321, %v9872
    %v10323 = vpop.permute.xlu0 %10322
    %10326 = vset.pattern.permute.xlu0 0
    %10327 = vperm.xlu0 %10326, %v9873
    %v10328 = vpop.permute.xlu0 %10327
    %10331 = vset.pattern.permute.xlu0 0
    %10332 = vperm.xlu0 %10331, %v9874
    %v10333 = vpop.permute.xlu0 %10332
    %10336 = vset.pattern.permute.xlu0 0
    %10337 = vperm.xlu0 %10336, %v9875
    %v10338 = vpop.permute.xlu0 %10337
    %10341 = vset.pattern.permute.xlu0 0
    %10342 = vperm.xlu0 %10341, %v9876
    %v10343 = vpop.permute.xlu0 %10342
    %10346 = vset.pattern.permute.xlu0 0
    %10347 = vperm.xlu0 %10346, %v9877
    %v10348 = vpop.permute.xlu0 %10347
    %10351 = vset.pattern.permute.xlu0 0
    %10352 = vperm.xlu0 %10351, %v9878
    %v10353 = vpop.permute.xlu0 %10352
    %10356 = vset.pattern.permute.xlu0 0
    %10357 = vperm.xlu0 %10356, %v9879
    %v10358 = vpop.permute.xlu0 %10357
    %10361 = vset.pattern.permute.xlu0 0
    %10362 = vperm.xlu0 %10361, %v9880
    %v10363 = vpop.permute.xlu0 %10362
    %10366 = vset.pattern.permute.xlu0 0
    %10367 = vperm.xlu0 %10366, %v9881
    %v10368 = vpop.permute.xlu0 %10367
    %10371 = vset.pattern.permute.xlu0 0
    %10372 = vperm.xlu0 %10371, %v9882
    %v10373 = vpop.permute.xlu0 %10372
    %10376 = vset.pattern.permute.xlu0 0
    %10377 = vperm.xlu0 %10376, %v9883
    %v10378 = vpop.permute.xlu0 %10377
    %10381 = vset.pattern.permute.xlu0 0
    %10382 = vperm.xlu0 %10381, %v9884
    %v10383 = vpop.permute.xlu0 %10382
    %10386 = vset.pattern.permute.xlu0 0
    %10387 = vperm.xlu0 %10386, %v9885
    %v10388 = vpop.permute.xlu0 %10387
    %10391 = vset.pattern.permute.xlu0 0
    %10392 = vperm.xlu0 %10391, %v9886
    %v10393 = vpop.permute.xlu0 %10392
    %10396 = vset.pattern.permute.xlu0 0
    %10397 = vperm.xlu0 %10396, %v9887
    %v10398 = vpop.permute.xlu0 %10397
    %10401 = vset.pattern.permute.xlu0 0
    %10402 = vperm.xlu0 %10401, %v9888
    %v10403 = vpop.permute.xlu0 %10402
    %10406 = vset.pattern.permute.xlu0 0
    %10407 = vperm.xlu0 %10406, %v9889
    %v10408 = vpop.permute.xlu0 %10407
    %10411 = vset.pattern.permute.xlu0 0
    %10412 = vperm.xlu0 %10411, %v9890
    %v10413 = vpop.permute.xlu0 %10412
    %10416 = vset.pattern.permute.xlu0 0
    %10417 = vperm.xlu0 %10416, %v9891
    %v10418 = vpop.permute.xlu0 %10417
    %10421 = vset.pattern.permute.xlu0 0
    %10422 = vperm.xlu0 %10421, %v9892
    %v10423 = vpop.permute.xlu0 %10422
    %10426 = vset.pattern.permute.xlu0 0
    %10427 = vperm.xlu0 %10426, %v9893
    %v10428 = vpop.permute.xlu0 %10427
    %10431 = vset.pattern.permute.xlu0 0
    %10432 = vperm.xlu0 %10431, %v9894
    %v10433 = vpop.permute.xlu0 %10432
    %10436 = vset.pattern.permute.xlu0 0
    %10437 = vperm.xlu0 %10436, %v9895
    %v10438 = vpop.permute.xlu0 %10437
    %10441 = vset.pattern.permute.xlu0 0
    %10442 = vperm.xlu0 %10441, %v9896
    %v10443 = vpop.permute.xlu0 %10442
    %10446 = vset.pattern.permute.xlu0 0
    %10447 = vperm.xlu0 %10446, %v9897
    %v10448 = vpop.permute.xlu0 %10447
    %10451 = vset.pattern.permute.xlu0 0
    %10452 = vperm.xlu0 %10451, %v9898
    %v10453 = vpop.permute.xlu0 %10452
    %10456 = vset.pattern.permute.xlu0 0
    %10457 = vperm.xlu0 %10456, %v9899
    %v10458 = vpop.permute.xlu0 %10457
    %10461 = vset.pattern.permute.xlu0 0
    %10462 = vperm.xlu0 %10461, %v9900
    %v10463 = vpop.permute.xlu0 %10462
    %10466 = vset.pattern.permute.xlu0 0
    %10467 = vperm.xlu0 %10466, %v9901
    %v10468 = vpop.permute.xlu0 %10467
    %10471 = vset.pattern.permute.xlu0 0
    %10472 = vperm.xlu0 %10471, %v9902
    %v10473 = vpop.permute.xlu0 %10472
    %10476 = vset.pattern.permute.xlu0 0
    %10477 = vperm.xlu0 %10476, %v9903
    %v10478 = vpop.permute.xlu0 %10477
    %10481 = vset.pattern.permute.xlu0 0
    %10482 = vperm.xlu0 %10481, %v9904
    %v10483 = vpop.permute.xlu0 %10482
    %10486 = vset.pattern.permute.xlu0 0
    %10487 = vperm.xlu0 %10486, %v9905
    %v10488 = vpop.permute.xlu0 %10487
    %10491 = vset.pattern.permute.xlu0 0
    %10492 = vperm.xlu0 %10491, %v9906
    %v10493 = vpop.permute.xlu0 %10492
    %10496 = vset.pattern.permute.xlu0 0
    %10497 = vperm.xlu0 %10496, %v9907
    %v10498 = vpop.permute.xlu0 %10497
    %10501 = vset.pattern.permute.xlu0 0
    %10502 = vperm.xlu0 %10501, %v9908
    %v10503 = vpop.permute.xlu0 %10502
    %10506 = vset.pattern.permute.xlu0 0
    %10507 = vperm.xlu0 %10506, %v9909
    %v10508 = vpop.permute.xlu0 %10507
    %10511 = vset.pattern.permute.xlu0 0
    %10512 = vperm.xlu0 %10511, %v9910
    %v10513 = vpop.permute.xlu0 %10512
    %10516 = vset.pattern.permute.xlu0 0
    %10517 = vperm.xlu0 %10516, %v9911
    %v10518 = vpop.permute.xlu0 %10517
    %10521 = vset.pattern.permute.xlu0 0
    %10522 = vperm.xlu0 %10521, %v9912
    %v10523 = vpop.permute.xlu0 %10522
    %10526 = vset.pattern.permute.xlu0 0
    %10527 = vperm.xlu0 %10526, %v9913
    %v10528 = vpop.permute.xlu0 %10527
    %10531 = vset.pattern.permute.xlu0 0
    %10532 = vperm.xlu0 %10531, %v9914
    %v10533 = vpop.permute.xlu0 %10532
    %10536 = vset.pattern.permute.xlu0 0
    %10537 = vperm.xlu0 %10536, %v9915
    %v10538 = vpop.permute.xlu0 %10537
    %10541 = vset.pattern.permute.xlu0 0
    %10542 = vperm.xlu0 %10541, %v9916
    %v10543 = vpop.permute.xlu0 %10542
    %10546 = vset.pattern.permute.xlu0 0
    %10547 = vperm.xlu0 %10546, %v9917
    %v10548 = vpop.permute.xlu0 %10547
    %10551 = vset.pattern.permute.xlu0 0
    %10552 = vperm.xlu0 %10551, %v9918
    %v10553 = vpop.permute.xlu0 %10552
    %10556 = vset.pattern.permute.xlu0 0
    %10557 = vperm.xlu0 %10556, %v9919
    %v10558 = vpop.permute.xlu0 %10557
    %v10560 = vmul.f32 %v9664, %v9923
    %v10561 = vmul.f32 %v9665, %v9928
    %v10562 = vmul.f32 %v9666, %v9933
    %v10563 = vmul.f32 %v9667, %v9938
    %v10564 = vmul.f32 %v9668, %v9943
    %v10565 = vmul.f32 %v9669, %v9948
    %v10566 = vmul.f32 %v9670, %v9953
    %v10567 = vmul.f32 %v9671, %v9958
    %v10568 = vmul.f32 %v9672, %v9963
    %v10569 = vmul.f32 %v9673, %v9968
    %v10570 = vmul.f32 %v9674, %v9973
    %v10571 = vmul.f32 %v9675, %v9978
    %v10572 = vmul.f32 %v9676, %v9983
    %v10573 = vmul.f32 %v9677, %v9988
    %v10574 = vmul.f32 %v9678, %v9993
    %v10575 = vmul.f32 %v9679, %v9998
    %v10576 = vmul.f32 %v9680, %v10003
    %v10577 = vmul.f32 %v9681, %v10008
    %v10578 = vmul.f32 %v9682, %v10013
    %v10579 = vmul.f32 %v9683, %v10018
    %v10580 = vmul.f32 %v9684, %v10023
    %v10581 = vmul.f32 %v9685, %v10028
    %v10582 = vmul.f32 %v9686, %v10033
    %v10583 = vmul.f32 %v9687, %v10038
    %v10584 = vmul.f32 %v9688, %v10043
    %v10585 = vmul.f32 %v9689, %v10048
    %v10586 = vmul.f32 %v9690, %v10053
    %v10587 = vmul.f32 %v9691, %v10058
    %v10588 = vmul.f32 %v9692, %v10063
    %v10589 = vmul.f32 %v9693, %v10068
    %v10590 = vmul.f32 %v9694, %v10073
    %v10591 = vmul.f32 %v9695, %v10078
    %v10592 = vmul.f32 %v9696, %v10083
    %v10593 = vmul.f32 %v9697, %v10088
    %v10594 = vmul.f32 %v9698, %v10093
    %v10595 = vmul.f32 %v9699, %v10098
    %v10596 = vmul.f32 %v9700, %v10103
    %v10597 = vmul.f32 %v9701, %v10108
    %v10598 = vmul.f32 %v9702, %v10113
    %v10599 = vmul.f32 %v9703, %v10118
    %v10600 = vmul.f32 %v9704, %v10123
    %v10601 = vmul.f32 %v9705, %v10128
    %v10602 = vmul.f32 %v9706, %v10133
    %v10603 = vmul.f32 %v9707, %v10138
    %v10604 = vmul.f32 %v9708, %v10143
    %v10605 = vmul.f32 %v9709, %v10148
    %v10606 = vmul.f32 %v9710, %v10153
    %v10607 = vmul.f32 %v9711, %v10158
    %v10608 = vmul.f32 %v9712, %v10163
    %v10609 = vmul.f32 %v9713, %v10168
    %v10610 = vmul.f32 %v9714, %v10173
    %v10611 = vmul.f32 %v9715, %v10178
    %v10612 = vmul.f32 %v9716, %v10183
    %v10613 = vmul.f32 %v9717, %v10188
    %v10614 = vmul.f32 %v9718, %v10193
    %v10615 = vmul.f32 %v9719, %v10198
    %v10616 = vmul.f32 %v9720, %v10203
    %v10617 = vmul.f32 %v9721, %v10208
    %v10618 = vmul.f32 %v9722, %v10213
    %v10619 = vmul.f32 %v9723, %v10218
    %v10620 = vmul.f32 %v9724, %v10223
    %v10621 = vmul.f32 %v9725, %v10228
    %v10622 = vmul.f32 %v9726, %v10233
    %v10623 = vmul.f32 %v9727, %v10238
    %v10624 = vmul.f32 %v9728, %v10243
    %v10625 = vmul.f32 %v9729, %v10248
    %v10626 = vmul.f32 %v9730, %v10253
    %v10627 = vmul.f32 %v9731, %v10258
    %v10628 = vmul.f32 %v9732, %v10263
    %v10629 = vmul.f32 %v9733, %v10268
    %v10630 = vmul.f32 %v9734, %v10273
    %v10631 = vmul.f32 %v9735, %v10278
    %v10632 = vmul.f32 %v9736, %v10283
    %v10633 = vmul.f32 %v9737, %v10288
    %v10634 = vmul.f32 %v9738, %v10293
    %v10635 = vmul.f32 %v9739, %v10298
    %v10636 = vmul.f32 %v9740, %v10303
    %v10637 = vmul.f32 %v9741, %v10308
    %v10638 = vmul.f32 %v9742, %v10313
    %v10639 = vmul.f32 %v9743, %v10318
    %v10640 = vmul.f32 %v9744, %v10323
    %v10641 = vmul.f32 %v9745, %v10328
    %v10642 = vmul.f32 %v9746, %v10333
    %v10643 = vmul.f32 %v9747, %v10338
    %v10644 = vmul.f32 %v9748, %v10343
    %v10645 = vmul.f32 %v9749, %v10348
    %v10646 = vmul.f32 %v9750, %v10353
    %v10647 = vmul.f32 %v9751, %v10358
    %v10648 = vmul.f32 %v9752, %v10363
    %v10649 = vmul.f32 %v9753, %v10368
    %v10650 = vmul.f32 %v9754, %v10373
    %v10651 = vmul.f32 %v9755, %v10378
    %v10652 = vmul.f32 %v9756, %v10383
    %v10653 = vmul.f32 %v9757, %v10388
    %v10654 = vmul.f32 %v9758, %v10393
    %v10655 = vmul.f32 %v9759, %v10398
    %v10656 = vmul.f32 %v9760, %v10403
    %v10657 = vmul.f32 %v9761, %v10408
    %v10658 = vmul.f32 %v9762, %v10413
    %v10659 = vmul.f32 %v9763, %v10418
    %v10660 = vmul.f32 %v9764, %v10423
    %v10661 = vmul.f32 %v9765, %v10428
    %v10662 = vmul.f32 %v9766, %v10433
    %v10663 = vmul.f32 %v9767, %v10438
    %v10664 = vmul.f32 %v9768, %v10443
    %v10665 = vmul.f32 %v9769, %v10448
    %v10666 = vmul.f32 %v9770, %v10453
    %v10667 = vmul.f32 %v9771, %v10458
    %v10668 = vmul.f32 %v9772, %v10463
    %v10669 = vmul.f32 %v9773, %v10468
    %v10670 = vmul.f32 %v9774, %v10473
    %v10671 = vmul.f32 %v9775, %v10478
    %v10672 = vmul.f32 %v9776, %v10483
    %v10673 = vmul.f32 %v9777, %v10488
    %v10674 = vmul.f32 %v9778, %v10493
    %v10675 = vmul.f32 %v9779, %v10498
    %v10676 = vmul.f32 %v9780, %v10503
    %v10677 = vmul.f32 %v9781, %v10508
    %v10678 = vmul.f32 %v9782, %v10513
    %v10679 = vmul.f32 %v9783, %v10518
    %v10680 = vmul.f32 %v9784, %v10523
    %v10681 = vmul.f32 %v9785, %v10528
    %v10682 = vmul.f32 %v9786, %v10533
    %v10683 = vmul.f32 %v9787, %v10538
    %v10684 = vmul.f32 %v9788, %v10543
    %v10685 = vmul.f32 %v9789, %v10548
    %v10686 = vmul.f32 %v9790, %v10553
    %v10687 = vmul.f32 %v9791, %v10558
    %v10688 = vadd.f32 %v10560, %v10561
    %v10689 = vadd.f32 %v10688, %v10562
    %v10690 = vadd.f32 %v10689, %v10563
    %v10691 = vadd.f32 %v10690, %v10564
    %v10692 = vadd.f32 %v10691, %v10565
    %v10693 = vadd.f32 %v10692, %v10566
    %v10694 = vadd.f32 %v10693, %v10567
    %v10695 = vadd.f32 %v10694, %v10568
    %v10696 = vadd.f32 %v10695, %v10569
    %v10697 = vadd.f32 %v10696, %v10570
    %v10698 = vadd.f32 %v10697, %v10571
    %v10699 = vadd.f32 %v10698, %v10572
    %v10700 = vadd.f32 %v10699, %v10573
    %v10701 = vadd.f32 %v10700, %v10574
    %v10702 = vadd.f32 %v10701, %v10575
    %v10703 = vadd.f32 %v10702, %v10576
    %v10704 = vadd.f32 %v10703, %v10577
    %v10705 = vadd.f32 %v10704, %v10578
    %v10706 = vadd.f32 %v10705, %v10579
    %v10707 = vadd.f32 %v10706, %v10580
    %v10708 = vadd.f32 %v10707, %v10581
    %v10709 = vadd.f32 %v10708, %v10582
    %v10710 = vadd.f32 %v10709, %v10583
    %v10711 = vadd.f32 %v10710, %v10584
    %v10712 = vadd.f32 %v10711, %v10585
    %v10713 = vadd.f32 %v10712, %v10586
    %v10714 = vadd.f32 %v10713, %v10587
    %v10715 = vadd.f32 %v10714, %v10588
    %v10716 = vadd.f32 %v10715, %v10589
    %v10717 = vadd.f32 %v10716, %v10590
    %v10718 = vadd.f32 %v10717, %v10591
    %v10719 = vadd.f32 %v10718, %v10592
    %v10720 = vadd.f32 %v10719, %v10593
    %v10721 = vadd.f32 %v10720, %v10594
    %v10722 = vadd.f32 %v10721, %v10595
    %v10723 = vadd.f32 %v10722, %v10596
    %v10724 = vadd.f32 %v10723, %v10597
    %v10725 = vadd.f32 %v10724, %v10598
    %v10726 = vadd.f32 %v10725, %v10599
    %v10727 = vadd.f32 %v10726, %v10600
    %v10728 = vadd.f32 %v10727, %v10601
    %v10729 = vadd.f32 %v10728, %v10602
    %v10730 = vadd.f32 %v10729, %v10603
    %v10731 = vadd.f32 %v10730, %v10604
    %v10732 = vadd.f32 %v10731, %v10605
    %v10733 = vadd.f32 %v10732, %v10606
    %v10734 = vadd.f32 %v10733, %v10607
    %v10735 = vadd.f32 %v10734, %v10608
    %v10736 = vadd.f32 %v10735, %v10609
    %v10737 = vadd.f32 %v10736, %v10610
    %v10738 = vadd.f32 %v10737, %v10611
    %v10739 = vadd.f32 %v10738, %v10612
    %v10740 = vadd.f32 %v10739, %v10613
    %v10741 = vadd.f32 %v10740, %v10614
    %v10742 = vadd.f32 %v10741, %v10615
    %v10743 = vadd.f32 %v10742, %v10616
    %v10744 = vadd.f32 %v10743, %v10617
    %v10745 = vadd.f32 %v10744, %v10618
    %v10746 = vadd.f32 %v10745, %v10619
    %v10747 = vadd.f32 %v10746, %v10620
    %v10748 = vadd.f32 %v10747, %v10621
    %v10749 = vadd.f32 %v10748, %v10622
    %v10750 = vadd.f32 %v10749, %v10623
    %v10751 = vadd.f32 %v10750, %v10624
    %v10752 = vadd.f32 %v10751, %v10625
    %v10753 = vadd.f32 %v10752, %v10626
    %v10754 = vadd.f32 %v10753, %v10627
    %v10755 = vadd.f32 %v10754, %v10628
    %v10756 = vadd.f32 %v10755, %v10629
    %v10757 = vadd.f32 %v10756, %v10630
    %v10758 = vadd.f32 %v10757, %v10631
    %v10759 = vadd.f32 %v10758, %v10632
    %v10760 = vadd.f32 %v10759, %v10633
    %v10761 = vadd.f32 %v10760, %v10634
    %v10762 = vadd.f32 %v10761, %v10635
    %v10763 = vadd.f32 %v10762, %v10636
    %v10764 = vadd.f32 %v10763, %v10637
    %v10765 = vadd.f32 %v10764, %v10638
    %v10766 = vadd.f32 %v10765, %v10639
    %v10767 = vadd.f32 %v10766, %v10640
    %v10768 = vadd.f32 %v10767, %v10641
    %v10769 = vadd.f32 %v10768, %v10642
    %v10770 = vadd.f32 %v10769, %v10643
    %v10771 = vadd.f32 %v10770, %v10644
    %v10772 = vadd.f32 %v10771, %v10645
    %v10773 = vadd.f32 %v10772, %v10646
    %v10774 = vadd.f32 %v10773, %v10647
    %v10775 = vadd.f32 %v10774, %v10648
    %v10776 = vadd.f32 %v10775, %v10649
    %v10777 = vadd.f32 %v10776, %v10650
    %v10778 = vadd.f32 %v10777, %v10651
    %v10779 = vadd.f32 %v10778, %v10652
    %v10780 = vadd.f32 %v10779, %v10653
    %v10781 = vadd.f32 %v10780, %v10654
    %v10782 = vadd.f32 %v10781, %v10655
    %v10783 = vadd.f32 %v10782, %v10656
    %v10784 = vadd.f32 %v10783, %v10657
    %v10785 = vadd.f32 %v10784, %v10658
    %v10786 = vadd.f32 %v10785, %v10659
    %v10787 = vadd.f32 %v10786, %v10660
    %v10788 = vadd.f32 %v10787, %v10661
    %v10789 = vadd.f32 %v10788, %v10662
    %v10790 = vadd.f32 %v10789, %v10663
    %v10791 = vadd.f32 %v10790, %v10664
    %v10792 = vadd.f32 %v10791, %v10665
    %v10793 = vadd.f32 %v10792, %v10666
    %v10794 = vadd.f32 %v10793, %v10667
    %v10795 = vadd.f32 %v10794, %v10668
    %v10796 = vadd.f32 %v10795, %v10669
    %v10797 = vadd.f32 %v10796, %v10670
    %v10798 = vadd.f32 %v10797, %v10671
    %v10799 = vadd.f32 %v10798, %v10672
    %v10800 = vadd.f32 %v10799, %v10673
    %v10801 = vadd.f32 %v10800, %v10674
    %v10802 = vadd.f32 %v10801, %v10675
    %v10803 = vadd.f32 %v10802, %v10676
    %v10804 = vadd.f32 %v10803, %v10677
    %v10805 = vadd.f32 %v10804, %v10678
    %v10806 = vadd.f32 %v10805, %v10679
    %v10807 = vadd.f32 %v10806, %v10680
    %v10808 = vadd.f32 %v10807, %v10681
    %v10809 = vadd.f32 %v10808, %v10682
    %v10810 = vadd.f32 %v10809, %v10683
    %v10811 = vadd.f32 %v10810, %v10684
    %v10812 = vadd.f32 %v10811, %v10685
    %v10813 = vadd.f32 %v10812, %v10686
    %v10814 = vadd.f32 %v10813, %v10687
    %v10815 = vrot.slane %v10814, 4
    %v10816 = vadd.f32 %v10814, %v10815
    %v10817 = vrot.slane %v10816, 2
    %v10818 = vadd.f32 %v10816, %v10817
    %v10819 = vrot.slane %v10818, 1
    %v10820 = vadd.f32 %v10818, %v10819
    %v10821 = vld [vmem:[#allocation2] sm:$0x1]
    %10823 = vset.pattern.permute.xlu0 0
    %10824 = vperm.xlu0 %10823, %v10821
    %v10825 = vpop.permute.xlu0 %10824
    %v10827 = vlaneseq
    %v10828 = vshrl.u32 %v10827, 7
    %v10829 = vsub.s32 0, %v10828
    %v10830 = vrot.slane %v10825, %v10829
    %v10831 = vadd.f32 %v10820, %v10830
    %10832 = vst [vmem:[#allocation6] sm:$0x1] %v10831
    // Predicated region
    $region50: #{tpu_custom_call.1} parent=1 // pred_check
      _
    $region51: #{tpu_custom_call.1} parent=1 // pred_check_branch
      %10834 = sbr.rel (0) target = $region53
    $region52: #{tpu_custom_call.1} parent=1 // pred_region
      %s10836 = ssub.s32 16, 16
      %10837 = vsyncadd [#allocation5], %s10836
      %s10839 = sshll.u32 [#allocation6], 4
      %s10840 = int_to_ptr.vmem [resolvable:$true] %s10839
      %10842 = dma.vmem_to_hbm [thread:$0]  %s10840, 16, %s11, [#allocation5]
    $region53: #{tpu_custom_call.1} parent=1 // pred_fallthru
      _
    // Predicated region
    $region54: #{tpu_custom_call.1} parent=1 // pred_check
      _
    $region55: #{tpu_custom_call.1} parent=1 // pred_check_branch
      %10844 = sbr.rel (0) target = $region57
    $region56: #{tpu_custom_call.1} parent=1 // pred_region
      %10845 = dma.done [#allocation5], 16
    $region57: #{tpu_custom_call.1} parent=1 // pred_fallthru
      _
    %10846 = vsyncpa [#allocation4], 1
    %10847 = vsyncpa [#allocation5], 1

</llo_original>
